<compile_context>
chip_gen: v7x
topology: tpu7x:2x2x1
jax: 0.10.0
libtpu: 0.0.40
codegen_flags: <defaults>
</compile_context>

<pallas_src>
import numpy as np

import jax
import jax.numpy as jnp
from jax.experimental import pallas as pl
from jax.experimental.pallas import tpu as pltpu


# --------------------------------------------------------------------------- gather prep
def _conv_gather_per_image(h_in, w_in, k=3, stride=2, pad=1):
    """0/1 selection matrices implementing im2col for one image.

    g[t, (ho, wo), (hi, wi)] = 1  iff  hi == ho*stride - pad + kh  and
                                       wi == wo*stride - pad + kw  (t = kh*k + kw),
    else 0 (out-of-bounds taps == zero padding)."""
    h_out = (h_in + 2 * pad - k) // stride + 1
    w_out = (w_in + 2 * pad - k) // stride + 1
    g = np.zeros((k * k, h_out * w_out, h_in * w_in), np.float32)
    for kh in range(k):
        for kw in range(k):
            t = kh * k + kw
            for ho in range(h_out):
                hi = ho * stride - pad + kh
                if hi < 0 or hi >= h_in:
                    continue
                for wo in range(w_out):
                    wi = wo * stride - pad + kw
                    if wi < 0 or wi >= w_in:
                        continue
                    g[t, ho * w_out + wo, hi * w_in + wi] = 1.0
    return g, h_out, w_out


# --------------------------------------------------------------------------- fused kernel
def _make_fused_kernel(num_layers, hw_f):
    """Kernel processing ONE image per grid step: conv stack + flatten/fc + MLP head."""

    def kernel(*refs):
        x_ref = refs[0]
        conv_refs = refs[1:1 + 3 * num_layers]
        (wfc_ref, bfc_ref, w1_ref, b1_ref, w2_ref, b2_ref) = refs[
            1 + 3 * num_layers:7 + 3 * num_layers]
        c_ref, y_ref = refs[7 + 3 * num_layers], refs[8 + 3 * num_layers]

        a = x_ref[...]                                       # (H*W, C_in) f32, rows=(h,w)
        for l in range(num_layers):
            g_ref = conv_refs[3 * l]                         # (9, R_out, R_in) bf16 0/1
            w_ref = conv_refs[3 * l + 1]                     # (9, C_in, C_out) f32
            b_ref = conv_refs[3 * l + 2]                     # (1, C_out)       f32
            r_out, c_out = g_ref.shape[1], w_ref.shape[2]
            acc = jnp.zeros((r_out, c_out), jnp.float32)
            for t in range(9):                               # 3x3 taps, unrolled
                patch = jnp.dot(g_ref[t].astype(jnp.float32), a,
                                preferred_element_type=jnp.float32)   # in-kernel im2col
                acc = acc + jnp.dot(patch, w_ref[t],
                                    preferred_element_type=jnp.float32)
            a = jnp.maximum(acc + b_ref[...], 0.0)           # bias + ReLU

        # flatten (PyTorch (c, h, w) order is folded into wfc's prepared layout) + fc
        assert a.shape[0] == hw_f and a.shape[1] == wfc_ref.shape[1]
        cvec = bfc_ref[...]                                  # (1, num_concepts) f32
        for p in range(hw_f):
            row = a if hw_f == 1 else a[p:p + 1, :]
            cvec = cvec + jnp.dot(row, wfc_ref[p],
                                  preferred_element_type=jnp.float32)
        c_ref[...] = cvec

        # MLP head: Linear -> LeakyReLU(0.01, PyTorch default) -> Linear
        hid = jnp.dot(cvec, w1_ref[...], preferred_element_type=jnp.float32) + b1_ref[...]
        hid = jnp.where(hid >= 0.0, hid, 0.01 * hid)
        y_ref[...] = jnp.dot(hid, w2_ref[...],
                             preferred_element_type=jnp.float32) + b2_ref[...]

    return kernel


# --------------------------------------------------------------------------- params
def init_params(key, input_size, num_concepts, num_classes,
                feature_sizes=(16, 32, 64, 128), expand_dim=16):
    """Random params kept in PyTorch layouts: conv (C_out, C_in, 3, 3); linear (in, out),
    with the fc input features ordered like torch.flatten of NCHW, i.e. (c, h, w)."""
    params = {"conv": []}
    in_ch = input_size[0]
    keys = jax.random.split(key, 2 * len(feature_sizes) + 6)
    ki = 0
    for out_ch in feature_sizes:
        bound = 1.0 / float(np.sqrt(in_ch * 9))
        w = jax.random.uniform(keys[ki], (out_ch, in_ch, 3, 3), jnp.float32, -bound, bound)
        ki += 1
        b = jax.random.uniform(keys[ki], (out_ch,), jnp.float32, -bound, bound)
        ki += 1
        params["conv"].append((w, b))
        in_ch = out_ch

    h, w_sp = input_size[1], input_size[2]
    for _ in feature_sizes:
        h = (h + 2 - 3) // 2 + 1
        w_sp = (w_sp + 2 - 3) // 2 + 1
    fc_in = feature_sizes[-1] * h * w_sp

    def lin(kw_, kb_, fin, fout):
        bound = 1.0 / float(np.sqrt(fin))
        return (jax.random.uniform(kw_, (fin, fout), jnp.float32, -bound, bound),
                jax.random.uniform(kb_, (fout,), jnp.float32, -bound, bound))

    params["fc"] = lin(keys[ki], keys[ki + 1], fc_in, num_concepts); ki += 2
    params["mlp1"] = lin(keys[ki], keys[ki + 1], num_concepts, expand_dim); ki += 2
    params["mlp2"] = lin(keys[ki], keys[ki + 1], expand_dim, num_classes); ki += 2
    return params


def prepare_params(params, input_size):
    """One-time reformatting (hoisted out of the jitted forward): gather matrices,
    per-tap conv weights, per-spatial-position fc weights, 2-D biases."""
    c_cur, h_cur, w_cur = input_size
    conv_prepped = []
    for (wt, bt) in params["conv"]:
        c_out, c_in = int(wt.shape[0]), int(wt.shape[1])
        assert c_in == c_cur
        g_np, h_cur, w_cur = _conv_gather_per_image(h_cur, w_cur)
        g = jnp.asarray(g_np, jnp.bfloat16)                           # 0/1 exact in bf16
        w_taps = jnp.transpose(wt, (2, 3, 1, 0)).reshape(9, c_in, c_out).astype(jnp.float32)
        conv_prepped.append((g, w_taps, bt.reshape(1, c_out).astype(jnp.float32)))
        c_cur = c_out

    h_f, w_f, c_f = h_cur, w_cur, c_cur
    wfc, bfc = params["fc"]
    nc = int(wfc.shape[1])
    # PyTorch flatten order is (c, h, w); reorder rows to per-spatial-position slices
    # matching the kernel's (h, w)-major activation rows.
    wfc_r = (wfc.reshape(c_f, h_f, w_f, nc).transpose(1, 2, 0, 3)
             .reshape(h_f * w_f, c_f, nc).astype(jnp.float32))
    (w1, b1), (w2, b2) = params["mlp1"], params["mlp2"]
    return {
        "conv": conv_prepped,
        "wfc": wfc_r,
        "bfc": bfc.reshape(1, nc).astype(jnp.float32),
        "w1": w1.astype(jnp.float32), "b1": b1.reshape(1, -1).astype(jnp.float32),
        "w2": w2.astype(jnp.float32), "b2": b2.reshape(1, -1).astype(jnp.float32),
    }


# --------------------------------------------------------------------------- forward
@jax.jit
def independent_mlp_forward(x, prepped):
    """x: (N, C, H, W) f32 (PyTorch layout).  Returns (concepts, logits)."""
    n, c_in, h, w = x.shape
    # Single tiny XLA relayout of the input; everything else is one pallas_call.
    x_rows = jnp.transpose(x, (0, 2, 3, 1)).reshape(n, h * w, c_in)

    conv = prepped["conv"]
    wfc_r = prepped["wfc"]
    hw_f, c_f, nc = wfc_r.shape
    ed = prepped["w1"].shape[1]
    ncls = prepped["w2"].shape[1]

    operands = [x_rows]
    for (g, wt, bt) in conv:
        operands += [g, wt, bt]
    operands += [wfc_r, prepped["bfc"], prepped["w1"], prepped["b1"],
                 prepped["w2"], prepped["b2"]]

    def _resident(arr):                      # whole array, VMEM-resident across grid steps
        return pl.BlockSpec(arr.shape, lambda i, _nd=arr.ndim: (0,) * _nd)

    in_specs = ([pl.BlockSpec((None, h * w, c_in), lambda i: (i, 0, 0))]
                + [_resident(arr) for arr in operands[1:]])
    out_shape = (jax.ShapeDtypeStruct((n, 1, nc), jnp.float32),
                 jax.ShapeDtypeStruct((n, 1, ncls), jnp.float32))
    out_specs = (pl.BlockSpec((None, 1, nc), lambda i: (i, 0, 0)),
                 pl.BlockSpec((None, 1, ncls), lambda i: (i, 0, 0)))

    # Derived VMEM budget: operands + outputs, x4 headroom, 8 MiB floor, 64 MiB (v7x) cap.
    total_bytes = sum(int(np.prod(a.shape)) * a.dtype.itemsize for a in operands)
    total_bytes += n * (nc + ncls) * 4
    vmem_limit = int(min(64 * 1024 * 1024, max(8 * 1024 * 1024, 4 * total_bytes)))

    # Advisory cost estimate.
    flops, r_in, cc = 0, h * w, c_in
    for (g, wt, _) in conv:
        r_out, c_out = int(g.shape[1]), int(wt.shape[2])
        flops += 9 * (2 * r_out * r_in * cc + 2 * r_out * cc * c_out)
        r_in, cc = r_out, c_out
    flops += 2 * hw_f * c_f * nc + 2 * nc * ed + 2 * ed * ncls
    flops *= n

    kernel = _make_fused_kernel(len(conv), hw_f)
    c3, y3 = pl.pallas_call(
        kernel,
        out_shape=out_shape,
        grid=(n,),
        in_specs=in_specs,
        out_specs=out_specs,
        compiler_params=pltpu.CompilerParams(
            dimension_semantics=("parallel",),        # batch across v7x's 2 TensorCores
            vmem_limit_bytes=vmem_limit),
        cost_estimate=pl.CostEstimate(flops=flops, transcendentals=0,
                                      bytes_accessed=total_bytes),
    )(*operands)
    return c3.reshape(n, nc), y3.reshape(n, ncls)


# --------------------------------------------------------------------------- reference
def _reference_forward(x, params):
    """Pure-XLA reference of the PyTorch module (for tolerance checking)."""
    out = x
    for (w, b) in params["conv"]:
        out = jax.lax.conv_general_dilated(
            out, w, window_strides=(2, 2), padding=((1, 1), (1, 1)),
            dimension_numbers=("NCHW", "OIHW", "NCHW"))
        out = jnp.maximum(out + b.reshape(1, -1, 1, 1), 0.0)
    feat = out.reshape(out.shape[0], -1)
    wfc, bfc = params["fc"]
    c = feat @ wfc + bfc
    w1, b1 = params["mlp1"]
    hid = c @ w1 + b1
    hid = jnp.where(hid >= 0.0, hid, 0.01 * hid)
    w2, b2 = params["mlp2"]
    return c, hid @ w2 + b2


# --------------------------------------------------------------------------- main
if __name__ == "__main__":
    input_size = (4, 16, 16)     # (C, H, W)
    num_concepts = 8
    num_classes = 5
    batch = 2

    key = jax.random.PRNGKey(0)
    kx, kp = jax.random.split(key)
    x = jax.random.normal(kx, (batch,) + input_size, dtype=jnp.float32)
    params = init_params(kp, input_size, num_concepts, num_classes)
    prepped = prepare_params(params, input_size)      # one-time, outside the hot path

    c, y = independent_mlp_forward(x, prepped)
    jax.block_until_ready((c, y))
    assert c.shape == (batch, num_concepts) and y.shape == (batch, num_classes)

    c_ref, y_ref = _reference_forward(x, params)
    assert jnp.allclose(c, c_ref, rtol=1e-2, atol=1e-2), "concepts mismatch vs reference"
    assert jnp.allclose(y, y_ref, rtol=1e-2, atol=1e-2), "logits mismatch vs reference"
    print("KERNEL_OK")
</pallas_src>

<mosaic_0001>
module attributes {stable_mosaic.version = 11 : i64} {
  func.func @kernel(%arg0: i32, %arg1: memref<1x256x4xf32, #tpu.memory_space<vmem>>, %arg2: memref<9x64x256xbf16, #tpu.memory_space<vmem>>, %arg3: memref<9x4x16xf32, #tpu.memory_space<vmem>>, %arg4: memref<1x16xf32, #tpu.memory_space<vmem>>, %arg5: memref<9x16x64xbf16, #tpu.memory_space<vmem>>, %arg6: memref<9x16x32xf32, #tpu.memory_space<vmem>>, %arg7: memref<1x32xf32, #tpu.memory_space<vmem>>, %arg8: memref<9x4x16xbf16, #tpu.memory_space<vmem>>, %arg9: memref<9x32x64xf32, #tpu.memory_space<vmem>>, %arg10: memref<1x64xf32, #tpu.memory_space<vmem>>, %arg11: memref<9x1x4xbf16, #tpu.memory_space<vmem>>, %arg12: memref<9x64x128xf32, #tpu.memory_space<vmem>>, %arg13: memref<1x128xf32, #tpu.memory_space<vmem>>, %arg14: memref<1x128x8xf32, #tpu.memory_space<vmem>>, %arg15: memref<1x8xf32, #tpu.memory_space<vmem>>, %arg16: memref<8x16xf32, #tpu.memory_space<vmem>>, %arg17: memref<1x16xf32, #tpu.memory_space<vmem>>, %arg18: memref<16x5xf32, #tpu.memory_space<vmem>>, %arg19: memref<1x5xf32, #tpu.memory_space<vmem>>, %arg20: memref<1x1x8xf32, #tpu.memory_space<vmem>>, %arg21: memref<1x1x5xf32, #tpu.memory_space<vmem>>) attributes {dimension_semantics = [#tpu.dimension_semantics<parallel>], iteration_bounds = array<i64: 2>, scalar_prefetch = 0 : i64, scratch_operands = 0 : i64, tpu.core_type = #tpu.core_type<tc>, window_params = [{transform_indices = @transform_0, window_bounds = array<i64: 1, 256, 4>}, {pipeline_mode = #tpu.pipeline_mode<synchronous>, transform_indices = @transform_1, window_bounds = array<i64: 9, 64, 256>}, {pipeline_mode = #tpu.pipeline_mode<synchronous>, transform_indices = @transform_2, window_bounds = array<i64: 9, 4, 16>}, {pipeline_mode = #tpu.pipeline_mode<synchronous>, transform_indices = @transform_3, window_bounds = array<i64: 1, 16>}, {pipeline_mode = #tpu.pipeline_mode<synchronous>, transform_indices = @transform_4, window_bounds = array<i64: 9, 16, 64>}, {pipeline_mode = #tpu.pipeline_mode<synchronous>, transform_indices = @transform_5, window_bounds = array<i64: 9, 16, 32>}, {pipeline_mode = #tpu.pipeline_mode<synchronous>, transform_indices = @transform_6, window_bounds = array<i64: 1, 32>}, {pipeline_mode = #tpu.pipeline_mode<synchronous>, transform_indices = @transform_7, window_bounds = array<i64: 9, 4, 16>}, {pipeline_mode = #tpu.pipeline_mode<synchronous>, transform_indices = @transform_8, window_bounds = array<i64: 9, 32, 64>}, {pipeline_mode = #tpu.pipeline_mode<synchronous>, transform_indices = @transform_9, window_bounds = array<i64: 1, 64>}, {pipeline_mode = #tpu.pipeline_mode<synchronous>, transform_indices = @transform_10, window_bounds = array<i64: 9, 1, 4>}, {pipeline_mode = #tpu.pipeline_mode<synchronous>, transform_indices = @transform_11, window_bounds = array<i64: 9, 64, 128>}, {pipeline_mode = #tpu.pipeline_mode<synchronous>, transform_indices = @transform_12, window_bounds = array<i64: 1, 128>}, {pipeline_mode = #tpu.pipeline_mode<synchronous>, transform_indices = @transform_13, window_bounds = array<i64: 1, 128, 8>}, {pipeline_mode = #tpu.pipeline_mode<synchronous>, transform_indices = @transform_14, window_bounds = array<i64: 1, 8>}, {pipeline_mode = #tpu.pipeline_mode<synchronous>, transform_indices = @transform_15, window_bounds = array<i64: 8, 16>}, {pipeline_mode = #tpu.pipeline_mode<synchronous>, transform_indices = @transform_16, window_bounds = array<i64: 1, 16>}, {pipeline_mode = #tpu.pipeline_mode<synchronous>, transform_indices = @transform_17, window_bounds = array<i64: 16, 5>}, {pipeline_mode = #tpu.pipeline_mode<synchronous>, transform_indices = @transform_18, window_bounds = array<i64: 1, 5>}, {transform_indices = @transform_19, window_bounds = array<i64: 1, 1, 8>}, {transform_indices = @transform_20, window_bounds = array<i64: 1, 1, 5>}]} {
    %c0 = arith.constant 0 : index
    %c0_0 = arith.constant 0 : index
    %c0_1 = arith.constant 0 : index
    %0 = vector.load %arg1[%c0, %c0_0, %c0_1] : memref<1x256x4xf32, #tpu.memory_space<vmem>>, vector<1x256x4xf32>
    %1 = vector.shape_cast %0 : vector<1x256x4xf32> to vector<256x4xf32>
    %cst = arith.constant 0.000000e+00 : f32
    %2 = vector.broadcast %cst : f32 to vector<64x16xf32>
    %c0_2 = arith.constant 0 : index
    %c0_3 = arith.constant 0 : index
    %c0_4 = arith.constant 0 : index
    %3 = vector.load %arg2[%c0_2, %c0_3, %c0_4] : memref<9x64x256xbf16, #tpu.memory_space<vmem>>, vector<1x64x256xbf16>
    %4 = vector.shape_cast %3 : vector<1x64x256xbf16> to vector<64x256xbf16>
    %5 = arith.extf %4 : vector<64x256xbf16> to vector<64x256xf32>
    %cst_5 = arith.constant dense<0.000000e+00> : vector<64x4xf32>
    %6 = tpu.matmul %5, %1, %cst_5 {dimension_numbers = #tpu.dot_dimension_numbers<[1], [0], [0], [1], [0, 0, 1, 1], [], []>} : vector<64x256xf32>, vector<256x4xf32>, vector<64x4xf32> -> vector<64x4xf32>
    %c0_6 = arith.constant 0 : index
    %c0_7 = arith.constant 0 : index
    %c0_8 = arith.constant 0 : index
    %7 = vector.load %arg3[%c0_6, %c0_7, %c0_8] : memref<9x4x16xf32, #tpu.memory_space<vmem>>, vector<1x4x16xf32>
    %8 = vector.shape_cast %7 : vector<1x4x16xf32> to vector<4x16xf32>
    %cst_9 = arith.constant dense<0.000000e+00> : vector<64x16xf32>
    %9 = tpu.matmul %6, %8, %cst_9 {dimension_numbers = #tpu.dot_dimension_numbers<[1], [0], [0], [1], [0, 0, 1, 1], [], []>} : vector<64x4xf32>, vector<4x16xf32>, vector<64x16xf32> -> vector<64x16xf32>
    %10 = arith.addf %2, %9 : vector<64x16xf32>
    %c1 = arith.constant 1 : index
    %c0_10 = arith.constant 0 : index
    %c0_11 = arith.constant 0 : index
    %11 = vector.load %arg2[%c1, %c0_10, %c0_11] : memref<9x64x256xbf16, #tpu.memory_space<vmem>>, vector<1x64x256xbf16>
    %12 = vector.shape_cast %11 : vector<1x64x256xbf16> to vector<64x256xbf16>
    %13 = arith.extf %12 : vector<64x256xbf16> to vector<64x256xf32>
    %cst_12 = arith.constant dense<0.000000e+00> : vector<64x4xf32>
    %14 = tpu.matmul %13, %1, %cst_12 {dimension_numbers = #tpu.dot_dimension_numbers<[1], [0], [0], [1], [0, 0, 1, 1], [], []>} : vector<64x256xf32>, vector<256x4xf32>, vector<64x4xf32> -> vector<64x4xf32>
    %c1_13 = arith.constant 1 : index
    %c0_14 = arith.constant 0 : index
    %c0_15 = arith.constant 0 : index
    %15 = vector.load %arg3[%c1_13, %c0_14, %c0_15] : memref<9x4x16xf32, #tpu.memory_space<vmem>>, vector<1x4x16xf32>
    %16 = vector.shape_cast %15 : vector<1x4x16xf32> to vector<4x16xf32>
    %cst_16 = arith.constant dense<0.000000e+00> : vector<64x16xf32>
    %17 = tpu.matmul %14, %16, %cst_16 {dimension_numbers = #tpu.dot_dimension_numbers<[1], [0], [0], [1], [0, 0, 1, 1], [], []>} : vector<64x4xf32>, vector<4x16xf32>, vector<64x16xf32> -> vector<64x16xf32>
    %18 = arith.addf %10, %17 : vector<64x16xf32>
    %c2 = arith.constant 2 : index
    %c0_17 = arith.constant 0 : index
    %c0_18 = arith.constant 0 : index
    %19 = vector.load %arg2[%c2, %c0_17, %c0_18] : memref<9x64x256xbf16, #tpu.memory_space<vmem>>, vector<1x64x256xbf16>
    %20 = vector.shape_cast %19 : vector<1x64x256xbf16> to vector<64x256xbf16>
    %21 = arith.extf %20 : vector<64x256xbf16> to vector<64x256xf32>
    %cst_19 = arith.constant dense<0.000000e+00> : vector<64x4xf32>
    %22 = tpu.matmul %21, %1, %cst_19 {dimension_numbers = #tpu.dot_dimension_numbers<[1], [0], [0], [1], [0, 0, 1, 1], [], []>} : vector<64x256xf32>, vector<256x4xf32>, vector<64x4xf32> -> vector<64x4xf32>
    %c2_20 = arith.constant 2 : index
    %c0_21 = arith.constant 0 : index
    %c0_22 = arith.constant 0 : index
    %23 = vector.load %arg3[%c2_20, %c0_21, %c0_22] : memref<9x4x16xf32, #tpu.memory_space<vmem>>, vector<1x4x16xf32>
    %24 = vector.shape_cast %23 : vector<1x4x16xf32> to vector<4x16xf32>
    %cst_23 = arith.constant dense<0.000000e+00> : vector<64x16xf32>
    %25 = tpu.matmul %22, %24, %cst_23 {dimension_numbers = #tpu.dot_dimension_numbers<[1], [0], [0], [1], [0, 0, 1, 1], [], []>} : vector<64x4xf32>, vector<4x16xf32>, vector<64x16xf32> -> vector<64x16xf32>
    %26 = arith.addf %18, %25 : vector<64x16xf32>
    %c3 = arith.constant 3 : index
    %c0_24 = arith.constant 0 : index
    %c0_25 = arith.constant 0 : index
    %27 = vector.load %arg2[%c3, %c0_24, %c0_25] : memref<9x64x256xbf16, #tpu.memory_space<vmem>>, vector<1x64x256xbf16>
    %28 = vector.shape_cast %27 : vector<1x64x256xbf16> to vector<64x256xbf16>
    %29 = arith.extf %28 : vector<64x256xbf16> to vector<64x256xf32>
    %cst_26 = arith.constant dense<0.000000e+00> : vector<64x4xf32>
    %30 = tpu.matmul %29, %1, %cst_26 {dimension_numbers = #tpu.dot_dimension_numbers<[1], [0], [0], [1], [0, 0, 1, 1], [], []>} : vector<64x256xf32>, vector<256x4xf32>, vector<64x4xf32> -> vector<64x4xf32>
    %c3_27 = arith.constant 3 : index
    %c0_28 = arith.constant 0 : index
    %c0_29 = arith.constant 0 : index
    %31 = vector.load %arg3[%c3_27, %c0_28, %c0_29] : memref<9x4x16xf32, #tpu.memory_space<vmem>>, vector<1x4x16xf32>
    %32 = vector.shape_cast %31 : vector<1x4x16xf32> to vector<4x16xf32>
    %cst_30 = arith.constant dense<0.000000e+00> : vector<64x16xf32>
    %33 = tpu.matmul %30, %32, %cst_30 {dimension_numbers = #tpu.dot_dimension_numbers<[1], [0], [0], [1], [0, 0, 1, 1], [], []>} : vector<64x4xf32>, vector<4x16xf32>, vector<64x16xf32> -> vector<64x16xf32>
    %34 = arith.addf %26, %33 : vector<64x16xf32>
    %c4 = arith.constant 4 : index
    %c0_31 = arith.constant 0 : index
    %c0_32 = arith.constant 0 : index
    %35 = vector.load %arg2[%c4, %c0_31, %c0_32] : memref<9x64x256xbf16, #tpu.memory_space<vmem>>, vector<1x64x256xbf16>
    %36 = vector.shape_cast %35 : vector<1x64x256xbf16> to vector<64x256xbf16>
    %37 = arith.extf %36 : vector<64x256xbf16> to vector<64x256xf32>
    %cst_33 = arith.constant dense<0.000000e+00> : vector<64x4xf32>
    %38 = tpu.matmul %37, %1, %cst_33 {dimension_numbers = #tpu.dot_dimension_numbers<[1], [0], [0], [1], [0, 0, 1, 1], [], []>} : vector<64x256xf32>, vector<256x4xf32>, vector<64x4xf32> -> vector<64x4xf32>
    %c4_34 = arith.constant 4 : index
    %c0_35 = arith.constant 0 : index
    %c0_36 = arith.constant 0 : index
    %39 = vector.load %arg3[%c4_34, %c0_35, %c0_36] : memref<9x4x16xf32, #tpu.memory_space<vmem>>, vector<1x4x16xf32>
    %40 = vector.shape_cast %39 : vector<1x4x16xf32> to vector<4x16xf32>
    %cst_37 = arith.constant dense<0.000000e+00> : vector<64x16xf32>
    %41 = tpu.matmul %38, %40, %cst_37 {dimension_numbers = #tpu.dot_dimension_numbers<[1], [0], [0], [1], [0, 0, 1, 1], [], []>} : vector<64x4xf32>, vector<4x16xf32>, vector<64x16xf32> -> vector<64x16xf32>
    %42 = arith.addf %34, %41 : vector<64x16xf32>
    %c5 = arith.constant 5 : index
    %c0_38 = arith.constant 0 : index
    %c0_39 = arith.constant 0 : index
    %43 = vector.load %arg2[%c5, %c0_38, %c0_39] : memref<9x64x256xbf16, #tpu.memory_space<vmem>>, vector<1x64x256xbf16>
    %44 = vector.shape_cast %43 : vector<1x64x256xbf16> to vector<64x256xbf16>
    %45 = arith.extf %44 : vector<64x256xbf16> to vector<64x256xf32>
    %cst_40 = arith.constant dense<0.000000e+00> : vector<64x4xf32>
    %46 = tpu.matmul %45, %1, %cst_40 {dimension_numbers = #tpu.dot_dimension_numbers<[1], [0], [0], [1], [0, 0, 1, 1], [], []>} : vector<64x256xf32>, vector<256x4xf32>, vector<64x4xf32> -> vector<64x4xf32>
    %c5_41 = arith.constant 5 : index
    %c0_42 = arith.constant 0 : index
    %c0_43 = arith.constant 0 : index
    %47 = vector.load %arg3[%c5_41, %c0_42, %c0_43] : memref<9x4x16xf32, #tpu.memory_space<vmem>>, vector<1x4x16xf32>
    %48 = vector.shape_cast %47 : vector<1x4x16xf32> to vector<4x16xf32>
    %cst_44 = arith.constant dense<0.000000e+00> : vector<64x16xf32>
    %49 = tpu.matmul %46, %48, %cst_44 {dimension_numbers = #tpu.dot_dimension_numbers<[1], [0], [0], [1], [0, 0, 1, 1], [], []>} : vector<64x4xf32>, vector<4x16xf32>, vector<64x16xf32> -> vector<64x16xf32>
    %50 = arith.addf %42, %49 : vector<64x16xf32>
    %c6 = arith.constant 6 : index
    %c0_45 = arith.constant 0 : index
    %c0_46 = arith.constant 0 : index
    %51 = vector.load %arg2[%c6, %c0_45, %c0_46] : memref<9x64x256xbf16, #tpu.memory_space<vmem>>, vector<1x64x256xbf16>
    %52 = vector.shape_cast %51 : vector<1x64x256xbf16> to vector<64x256xbf16>
    %53 = arith.extf %52 : vector<64x256xbf16> to vector<64x256xf32>
    %cst_47 = arith.constant dense<0.000000e+00> : vector<64x4xf32>
    %54 = tpu.matmul %53, %1, %cst_47 {dimension_numbers = #tpu.dot_dimension_numbers<[1], [0], [0], [1], [0, 0, 1, 1], [], []>} : vector<64x256xf32>, vector<256x4xf32>, vector<64x4xf32> -> vector<64x4xf32>
    %c6_48 = arith.constant 6 : index
    %c0_49 = arith.constant 0 : index
    %c0_50 = arith.constant 0 : index
    %55 = vector.load %arg3[%c6_48, %c0_49, %c0_50] : memref<9x4x16xf32, #tpu.memory_space<vmem>>, vector<1x4x16xf32>
    %56 = vector.shape_cast %55 : vector<1x4x16xf32> to vector<4x16xf32>
    %cst_51 = arith.constant dense<0.000000e+00> : vector<64x16xf32>
    %57 = tpu.matmul %54, %56, %cst_51 {dimension_numbers = #tpu.dot_dimension_numbers<[1], [0], [0], [1], [0, 0, 1, 1], [], []>} : vector<64x4xf32>, vector<4x16xf32>, vector<64x16xf32> -> vector<64x16xf32>
    %58 = arith.addf %50, %57 : vector<64x16xf32>
    %c7 = arith.constant 7 : index
    %c0_52 = arith.constant 0 : index
    %c0_53 = arith.constant 0 : index
    %59 = vector.load %arg2[%c7, %c0_52, %c0_53] : memref<9x64x256xbf16, #tpu.memory_space<vmem>>, vector<1x64x256xbf16>
    %60 = vector.shape_cast %59 : vector<1x64x256xbf16> to vector<64x256xbf16>
    %61 = arith.extf %60 : vector<64x256xbf16> to vector<64x256xf32>
    %cst_54 = arith.constant dense<0.000000e+00> : vector<64x4xf32>
    %62 = tpu.matmul %61, %1, %cst_54 {dimension_numbers = #tpu.dot_dimension_numbers<[1], [0], [0], [1], [0, 0, 1, 1], [], []>} : vector<64x256xf32>, vector<256x4xf32>, vector<64x4xf32> -> vector<64x4xf32>
    %c7_55 = arith.constant 7 : index
    %c0_56 = arith.constant 0 : index
    %c0_57 = arith.constant 0 : index
    %63 = vector.load %arg3[%c7_55, %c0_56, %c0_57] : memref<9x4x16xf32, #tpu.memory_space<vmem>>, vector<1x4x16xf32>
    %64 = vector.shape_cast %63 : vector<1x4x16xf32> to vector<4x16xf32>
    %cst_58 = arith.constant dense<0.000000e+00> : vector<64x16xf32>
    %65 = tpu.matmul %62, %64, %cst_58 {dimension_numbers = #tpu.dot_dimension_numbers<[1], [0], [0], [1], [0, 0, 1, 1], [], []>} : vector<64x4xf32>, vector<4x16xf32>, vector<64x16xf32> -> vector<64x16xf32>
    %66 = arith.addf %58, %65 : vector<64x16xf32>
    %c8 = arith.constant 8 : index
    %c0_59 = arith.constant 0 : index
    %c0_60 = arith.constant 0 : index
    %67 = vector.load %arg2[%c8, %c0_59, %c0_60] : memref<9x64x256xbf16, #tpu.memory_space<vmem>>, vector<1x64x256xbf16>
    %68 = vector.shape_cast %67 : vector<1x64x256xbf16> to vector<64x256xbf16>
    %69 = arith.extf %68 : vector<64x256xbf16> to vector<64x256xf32>
    %cst_61 = arith.constant dense<0.000000e+00> : vector<64x4xf32>
    %70 = tpu.matmul %69, %1, %cst_61 {dimension_numbers = #tpu.dot_dimension_numbers<[1], [0], [0], [1], [0, 0, 1, 1], [], []>} : vector<64x256xf32>, vector<256x4xf32>, vector<64x4xf32> -> vector<64x4xf32>
    %c8_62 = arith.constant 8 : index
    %c0_63 = arith.constant 0 : index
    %c0_64 = arith.constant 0 : index
    %71 = vector.load %arg3[%c8_62, %c0_63, %c0_64] : memref<9x4x16xf32, #tpu.memory_space<vmem>>, vector<1x4x16xf32>
    %72 = vector.shape_cast %71 : vector<1x4x16xf32> to vector<4x16xf32>
    %cst_65 = arith.constant dense<0.000000e+00> : vector<64x16xf32>
    %73 = tpu.matmul %70, %72, %cst_65 {dimension_numbers = #tpu.dot_dimension_numbers<[1], [0], [0], [1], [0, 0, 1, 1], [], []>} : vector<64x4xf32>, vector<4x16xf32>, vector<64x16xf32> -> vector<64x16xf32>
    %74 = arith.addf %66, %73 : vector<64x16xf32>
    %c0_66 = arith.constant 0 : index
    %c0_67 = arith.constant 0 : index
    %75 = vector.load %arg4[%c0_66, %c0_67] : memref<1x16xf32, #tpu.memory_space<vmem>>, vector<1x16xf32>
    %76 = vector.broadcast %75 : vector<1x16xf32> to vector<64x16xf32>
    %77 = arith.addf %74, %76 : vector<64x16xf32>
    %cst_68 = arith.constant 0.000000e+00 : f32
    %78 = vector.broadcast %cst_68 : f32 to vector<64x16xf32>
    %79 = arith.maximumf %77, %78 : vector<64x16xf32>
    %cst_69 = arith.constant 0.000000e+00 : f32
    %80 = vector.broadcast %cst_69 : f32 to vector<16x32xf32>
    %c0_70 = arith.constant 0 : index
    %c0_71 = arith.constant 0 : index
    %c0_72 = arith.constant 0 : index
    %81 = vector.load %arg5[%c0_70, %c0_71, %c0_72] : memref<9x16x64xbf16, #tpu.memory_space<vmem>>, vector<1x16x64xbf16>
    %82 = vector.shape_cast %81 : vector<1x16x64xbf16> to vector<16x64xbf16>
    %83 = arith.extf %82 : vector<16x64xbf16> to vector<16x64xf32>
    %cst_73 = arith.constant dense<0.000000e+00> : vector<16x16xf32>
    %84 = tpu.matmul %83, %79, %cst_73 {dimension_numbers = #tpu.dot_dimension_numbers<[1], [0], [0], [1], [0, 0, 1, 1], [], []>} : vector<16x64xf32>, vector<64x16xf32>, vector<16x16xf32> -> vector<16x16xf32>
    %c0_74 = arith.constant 0 : index
    %c0_75 = arith.constant 0 : index
    %c0_76 = arith.constant 0 : index
    %85 = vector.load %arg6[%c0_74, %c0_75, %c0_76] : memref<9x16x32xf32, #tpu.memory_space<vmem>>, vector<1x16x32xf32>
    %86 = vector.shape_cast %85 : vector<1x16x32xf32> to vector<16x32xf32>
    %cst_77 = arith.constant dense<0.000000e+00> : vector<16x32xf32>
    %87 = tpu.matmul %84, %86, %cst_77 {dimension_numbers = #tpu.dot_dimension_numbers<[1], [0], [0], [1], [0, 0, 1, 1], [], []>} : vector<16x16xf32>, vector<16x32xf32>, vector<16x32xf32> -> vector<16x32xf32>
    %88 = arith.addf %80, %87 : vector<16x32xf32>
    %c1_78 = arith.constant 1 : index
    %c0_79 = arith.constant 0 : index
    %c0_80 = arith.constant 0 : index
    %89 = vector.load %arg5[%c1_78, %c0_79, %c0_80] : memref<9x16x64xbf16, #tpu.memory_space<vmem>>, vector<1x16x64xbf16>
    %90 = vector.shape_cast %89 : vector<1x16x64xbf16> to vector<16x64xbf16>
    %91 = arith.extf %90 : vector<16x64xbf16> to vector<16x64xf32>
    %cst_81 = arith.constant dense<0.000000e+00> : vector<16x16xf32>
    %92 = tpu.matmul %91, %79, %cst_81 {dimension_numbers = #tpu.dot_dimension_numbers<[1], [0], [0], [1], [0, 0, 1, 1], [], []>} : vector<16x64xf32>, vector<64x16xf32>, vector<16x16xf32> -> vector<16x16xf32>
    %c1_82 = arith.constant 1 : index
    %c0_83 = arith.constant 0 : index
    %c0_84 = arith.constant 0 : index
    %93 = vector.load %arg6[%c1_82, %c0_83, %c0_84] : memref<9x16x32xf32, #tpu.memory_space<vmem>>, vector<1x16x32xf32>
    %94 = vector.shape_cast %93 : vector<1x16x32xf32> to vector<16x32xf32>
    %cst_85 = arith.constant dense<0.000000e+00> : vector<16x32xf32>
    %95 = tpu.matmul %92, %94, %cst_85 {dimension_numbers = #tpu.dot_dimension_numbers<[1], [0], [0], [1], [0, 0, 1, 1], [], []>} : vector<16x16xf32>, vector<16x32xf32>, vector<16x32xf32> -> vector<16x32xf32>
    %96 = arith.addf %88, %95 : vector<16x32xf32>
    %c2_86 = arith.constant 2 : index
    %c0_87 = arith.constant 0 : index
    %c0_88 = arith.constant 0 : index
    %97 = vector.load %arg5[%c2_86, %c0_87, %c0_88] : memref<9x16x64xbf16, #tpu.memory_space<vmem>>, vector<1x16x64xbf16>
    %98 = vector.shape_cast %97 : vector<1x16x64xbf16> to vector<16x64xbf16>
    %99 = arith.extf %98 : vector<16x64xbf16> to vector<16x64xf32>
    %cst_89 = arith.constant dense<0.000000e+00> : vector<16x16xf32>
    %100 = tpu.matmul %99, %79, %cst_89 {dimension_numbers = #tpu.dot_dimension_numbers<[1], [0], [0], [1], [0, 0, 1, 1], [], []>} : vector<16x64xf32>, vector<64x16xf32>, vector<16x16xf32> -> vector<16x16xf32>
    %c2_90 = arith.constant 2 : index
    %c0_91 = arith.constant 0 : index
    %c0_92 = arith.constant 0 : index
    %101 = vector.load %arg6[%c2_90, %c0_91, %c0_92] : memref<9x16x32xf32, #tpu.memory_space<vmem>>, vector<1x16x32xf32>
    %102 = vector.shape_cast %101 : vector<1x16x32xf32> to vector<16x32xf32>
    %cst_93 = arith.constant dense<0.000000e+00> : vector<16x32xf32>
    %103 = tpu.matmul %100, %102, %cst_93 {dimension_numbers = #tpu.dot_dimension_numbers<[1], [0], [0], [1], [0, 0, 1, 1], [], []>} : vector<16x16xf32>, vector<16x32xf32>, vector<16x32xf32> -> vector<16x32xf32>
    %104 = arith.addf %96, %103 : vector<16x32xf32>
    %c3_94 = arith.constant 3 : index
    %c0_95 = arith.constant 0 : index
    %c0_96 = arith.constant 0 : index
    %105 = vector.load %arg5[%c3_94, %c0_95, %c0_96] : memref<9x16x64xbf16, #tpu.memory_space<vmem>>, vector<1x16x64xbf16>
    %106 = vector.shape_cast %105 : vector<1x16x64xbf16> to vector<16x64xbf16>
    %107 = arith.extf %106 : vector<16x64xbf16> to vector<16x64xf32>
    %cst_97 = arith.constant dense<0.000000e+00> : vector<16x16xf32>
    %108 = tpu.matmul %107, %79, %cst_97 {dimension_numbers = #tpu.dot_dimension_numbers<[1], [0], [0], [1], [0, 0, 1, 1], [], []>} : vector<16x64xf32>, vector<64x16xf32>, vector<16x16xf32> -> vector<16x16xf32>
    %c3_98 = arith.constant 3 : index
    %c0_99 = arith.constant 0 : index
    %c0_100 = arith.constant 0 : index
    %109 = vector.load %arg6[%c3_98, %c0_99, %c0_100] : memref<9x16x32xf32, #tpu.memory_space<vmem>>, vector<1x16x32xf32>
    %110 = vector.shape_cast %109 : vector<1x16x32xf32> to vector<16x32xf32>
    %cst_101 = arith.constant dense<0.000000e+00> : vector<16x32xf32>
    %111 = tpu.matmul %108, %110, %cst_101 {dimension_numbers = #tpu.dot_dimension_numbers<[1], [0], [0], [1], [0, 0, 1, 1], [], []>} : vector<16x16xf32>, vector<16x32xf32>, vector<16x32xf32> -> vector<16x32xf32>
    %112 = arith.addf %104, %111 : vector<16x32xf32>
    %c4_102 = arith.constant 4 : index
    %c0_103 = arith.constant 0 : index
    %c0_104 = arith.constant 0 : index
    %113 = vector.load %arg5[%c4_102, %c0_103, %c0_104] : memref<9x16x64xbf16, #tpu.memory_space<vmem>>, vector<1x16x64xbf16>
    %114 = vector.shape_cast %113 : vector<1x16x64xbf16> to vector<16x64xbf16>
    %115 = arith.extf %114 : vector<16x64xbf16> to vector<16x64xf32>
    %cst_105 = arith.constant dense<0.000000e+00> : vector<16x16xf32>
    %116 = tpu.matmul %115, %79, %cst_105 {dimension_numbers = #tpu.dot_dimension_numbers<[1], [0], [0], [1], [0, 0, 1, 1], [], []>} : vector<16x64xf32>, vector<64x16xf32>, vector<16x16xf32> -> vector<16x16xf32>
    %c4_106 = arith.constant 4 : index
    %c0_107 = arith.constant 0 : index
    %c0_108 = arith.constant 0 : index
    %117 = vector.load %arg6[%c4_106, %c0_107, %c0_108] : memref<9x16x32xf32, #tpu.memory_space<vmem>>, vector<1x16x32xf32>
    %118 = vector.shape_cast %117 : vector<1x16x32xf32> to vector<16x32xf32>
    %cst_109 = arith.constant dense<0.000000e+00> : vector<16x32xf32>
    %119 = tpu.matmul %116, %118, %cst_109 {dimension_numbers = #tpu.dot_dimension_numbers<[1], [0], [0], [1], [0, 0, 1, 1], [], []>} : vector<16x16xf32>, vector<16x32xf32>, vector<16x32xf32> -> vector<16x32xf32>
    %120 = arith.addf %112, %119 : vector<16x32xf32>
    %c5_110 = arith.constant 5 : index
    %c0_111 = arith.constant 0 : index
    %c0_112 = arith.constant 0 : index
    %121 = vector.load %arg5[%c5_110, %c0_111, %c0_112] : memref<9x16x64xbf16, #tpu.memory_space<vmem>>, vector<1x16x64xbf16>
    %122 = vector.shape_cast %121 : vector<1x16x64xbf16> to vector<16x64xbf16>
    %123 = arith.extf %122 : vector<16x64xbf16> to vector<16x64xf32>
    %cst_113 = arith.constant dense<0.000000e+00> : vector<16x16xf32>
    %124 = tpu.matmul %123, %79, %cst_113 {dimension_numbers = #tpu.dot_dimension_numbers<[1], [0], [0], [1], [0, 0, 1, 1], [], []>} : vector<16x64xf32>, vector<64x16xf32>, vector<16x16xf32> -> vector<16x16xf32>
    %c5_114 = arith.constant 5 : index
    %c0_115 = arith.constant 0 : index
    %c0_116 = arith.constant 0 : index
    %125 = vector.load %arg6[%c5_114, %c0_115, %c0_116] : memref<9x16x32xf32, #tpu.memory_space<vmem>>, vector<1x16x32xf32>
    %126 = vector.shape_cast %125 : vector<1x16x32xf32> to vector<16x32xf32>
    %cst_117 = arith.constant dense<0.000000e+00> : vector<16x32xf32>
    %127 = tpu.matmul %124, %126, %cst_117 {dimension_numbers = #tpu.dot_dimension_numbers<[1], [0], [0], [1], [0, 0, 1, 1], [], []>} : vector<16x16xf32>, vector<16x32xf32>, vector<16x32xf32> -> vector<16x32xf32>
    %128 = arith.addf %120, %127 : vector<16x32xf32>
    %c6_118 = arith.constant 6 : index
    %c0_119 = arith.constant 0 : index
    %c0_120 = arith.constant 0 : index
    %129 = vector.load %arg5[%c6_118, %c0_119, %c0_120] : memref<9x16x64xbf16, #tpu.memory_space<vmem>>, vector<1x16x64xbf16>
    %130 = vector.shape_cast %129 : vector<1x16x64xbf16> to vector<16x64xbf16>
    %131 = arith.extf %130 : vector<16x64xbf16> to vector<16x64xf32>
    %cst_121 = arith.constant dense<0.000000e+00> : vector<16x16xf32>
    %132 = tpu.matmul %131, %79, %cst_121 {dimension_numbers = #tpu.dot_dimension_numbers<[1], [0], [0], [1], [0, 0, 1, 1], [], []>} : vector<16x64xf32>, vector<64x16xf32>, vector<16x16xf32> -> vector<16x16xf32>
    %c6_122 = arith.constant 6 : index
    %c0_123 = arith.constant 0 : index
    %c0_124 = arith.constant 0 : index
    %133 = vector.load %arg6[%c6_122, %c0_123, %c0_124] : memref<9x16x32xf32, #tpu.memory_space<vmem>>, vector<1x16x32xf32>
    %134 = vector.shape_cast %133 : vector<1x16x32xf32> to vector<16x32xf32>
    %cst_125 = arith.constant dense<0.000000e+00> : vector<16x32xf32>
    %135 = tpu.matmul %132, %134, %cst_125 {dimension_numbers = #tpu.dot_dimension_numbers<[1], [0], [0], [1], [0, 0, 1, 1], [], []>} : vector<16x16xf32>, vector<16x32xf32>, vector<16x32xf32> -> vector<16x32xf32>
    %136 = arith.addf %128, %135 : vector<16x32xf32>
    %c7_126 = arith.constant 7 : index
    %c0_127 = arith.constant 0 : index
    %c0_128 = arith.constant 0 : index
    %137 = vector.load %arg5[%c7_126, %c0_127, %c0_128] : memref<9x16x64xbf16, #tpu.memory_space<vmem>>, vector<1x16x64xbf16>
    %138 = vector.shape_cast %137 : vector<1x16x64xbf16> to vector<16x64xbf16>
    %139 = arith.extf %138 : vector<16x64xbf16> to vector<16x64xf32>
    %cst_129 = arith.constant dense<0.000000e+00> : vector<16x16xf32>
    %140 = tpu.matmul %139, %79, %cst_129 {dimension_numbers = #tpu.dot_dimension_numbers<[1], [0], [0], [1], [0, 0, 1, 1], [], []>} : vector<16x64xf32>, vector<64x16xf32>, vector<16x16xf32> -> vector<16x16xf32>
    %c7_130 = arith.constant 7 : index
    %c0_131 = arith.constant 0 : index
    %c0_132 = arith.constant 0 : index
    %141 = vector.load %arg6[%c7_130, %c0_131, %c0_132] : memref<9x16x32xf32, #tpu.memory_space<vmem>>, vector<1x16x32xf32>
    %142 = vector.shape_cast %141 : vector<1x16x32xf32> to vector<16x32xf32>
    %cst_133 = arith.constant dense<0.000000e+00> : vector<16x32xf32>
    %143 = tpu.matmul %140, %142, %cst_133 {dimension_numbers = #tpu.dot_dimension_numbers<[1], [0], [0], [1], [0, 0, 1, 1], [], []>} : vector<16x16xf32>, vector<16x32xf32>, vector<16x32xf32> -> vector<16x32xf32>
    %144 = arith.addf %136, %143 : vector<16x32xf32>
    %c8_134 = arith.constant 8 : index
    %c0_135 = arith.constant 0 : index
    %c0_136 = arith.constant 0 : index
    %145 = vector.load %arg5[%c8_134, %c0_135, %c0_136] : memref<9x16x64xbf16, #tpu.memory_space<vmem>>, vector<1x16x64xbf16>
    %146 = vector.shape_cast %145 : vector<1x16x64xbf16> to vector<16x64xbf16>
    %147 = arith.extf %146 : vector<16x64xbf16> to vector<16x64xf32>
    %cst_137 = arith.constant dense<0.000000e+00> : vector<16x16xf32>
    %148 = tpu.matmul %147, %79, %cst_137 {dimension_numbers = #tpu.dot_dimension_numbers<[1], [0], [0], [1], [0, 0, 1, 1], [], []>} : vector<16x64xf32>, vector<64x16xf32>, vector<16x16xf32> -> vector<16x16xf32>
    %c8_138 = arith.constant 8 : index
    %c0_139 = arith.constant 0 : index
    %c0_140 = arith.constant 0 : index
    %149 = vector.load %arg6[%c8_138, %c0_139, %c0_140] : memref<9x16x32xf32, #tpu.memory_space<vmem>>, vector<1x16x32xf32>
    %150 = vector.shape_cast %149 : vector<1x16x32xf32> to vector<16x32xf32>
    %cst_141 = arith.constant dense<0.000000e+00> : vector<16x32xf32>
    %151 = tpu.matmul %148, %150, %cst_141 {dimension_numbers = #tpu.dot_dimension_numbers<[1], [0], [0], [1], [0, 0, 1, 1], [], []>} : vector<16x16xf32>, vector<16x32xf32>, vector<16x32xf32> -> vector<16x32xf32>
    %152 = arith.addf %144, %151 : vector<16x32xf32>
    %c0_142 = arith.constant 0 : index
    %c0_143 = arith.constant 0 : index
    %153 = vector.load %arg7[%c0_142, %c0_143] : memref<1x32xf32, #tpu.memory_space<vmem>>, vector<1x32xf32>
    %154 = vector.broadcast %153 : vector<1x32xf32> to vector<16x32xf32>
    %155 = arith.addf %152, %154 : vector<16x32xf32>
    %cst_144 = arith.constant 0.000000e+00 : f32
    %156 = vector.broadcast %cst_144 : f32 to vector<16x32xf32>
    %157 = arith.maximumf %155, %156 : vector<16x32xf32>
    %cst_145 = arith.constant 0.000000e+00 : f32
    %158 = vector.broadcast %cst_145 : f32 to vector<4x64xf32>
    %c0_146 = arith.constant 0 : index
    %c0_147 = arith.constant 0 : index
    %c0_148 = arith.constant 0 : index
    %159 = vector.load %arg8[%c0_146, %c0_147, %c0_148] : memref<9x4x16xbf16, #tpu.memory_space<vmem>>, vector<1x4x16xbf16>
    %160 = vector.shape_cast %159 : vector<1x4x16xbf16> to vector<4x16xbf16>
    %161 = arith.extf %160 : vector<4x16xbf16> to vector<4x16xf32>
    %cst_149 = arith.constant dense<0.000000e+00> : vector<4x32xf32>
    %162 = tpu.matmul %161, %157, %cst_149 {dimension_numbers = #tpu.dot_dimension_numbers<[1], [0], [0], [1], [0, 0, 1, 1], [], []>} : vector<4x16xf32>, vector<16x32xf32>, vector<4x32xf32> -> vector<4x32xf32>
    %c0_150 = arith.constant 0 : index
    %c0_151 = arith.constant 0 : index
    %c0_152 = arith.constant 0 : index
    %163 = vector.load %arg9[%c0_150, %c0_151, %c0_152] : memref<9x32x64xf32, #tpu.memory_space<vmem>>, vector<1x32x64xf32>
    %164 = vector.shape_cast %163 : vector<1x32x64xf32> to vector<32x64xf32>
    %cst_153 = arith.constant dense<0.000000e+00> : vector<4x64xf32>
    %165 = tpu.matmul %162, %164, %cst_153 {dimension_numbers = #tpu.dot_dimension_numbers<[1], [0], [0], [1], [0, 0, 1, 1], [], []>} : vector<4x32xf32>, vector<32x64xf32>, vector<4x64xf32> -> vector<4x64xf32>
    %166 = arith.addf %158, %165 : vector<4x64xf32>
    %c1_154 = arith.constant 1 : index
    %c0_155 = arith.constant 0 : index
    %c0_156 = arith.constant 0 : index
    %167 = vector.load %arg8[%c1_154, %c0_155, %c0_156] : memref<9x4x16xbf16, #tpu.memory_space<vmem>>, vector<1x4x16xbf16>
    %168 = vector.shape_cast %167 : vector<1x4x16xbf16> to vector<4x16xbf16>
    %169 = arith.extf %168 : vector<4x16xbf16> to vector<4x16xf32>
    %cst_157 = arith.constant dense<0.000000e+00> : vector<4x32xf32>
    %170 = tpu.matmul %169, %157, %cst_157 {dimension_numbers = #tpu.dot_dimension_numbers<[1], [0], [0], [1], [0, 0, 1, 1], [], []>} : vector<4x16xf32>, vector<16x32xf32>, vector<4x32xf32> -> vector<4x32xf32>
    %c1_158 = arith.constant 1 : index
    %c0_159 = arith.constant 0 : index
    %c0_160 = arith.constant 0 : index
    %171 = vector.load %arg9[%c1_158, %c0_159, %c0_160] : memref<9x32x64xf32, #tpu.memory_space<vmem>>, vector<1x32x64xf32>
    %172 = vector.shape_cast %171 : vector<1x32x64xf32> to vector<32x64xf32>
    %cst_161 = arith.constant dense<0.000000e+00> : vector<4x64xf32>
    %173 = tpu.matmul %170, %172, %cst_161 {dimension_numbers = #tpu.dot_dimension_numbers<[1], [0], [0], [1], [0, 0, 1, 1], [], []>} : vector<4x32xf32>, vector<32x64xf32>, vector<4x64xf32> -> vector<4x64xf32>
    %174 = arith.addf %166, %173 : vector<4x64xf32>
    %c2_162 = arith.constant 2 : index
    %c0_163 = arith.constant 0 : index
    %c0_164 = arith.constant 0 : index
    %175 = vector.load %arg8[%c2_162, %c0_163, %c0_164] : memref<9x4x16xbf16, #tpu.memory_space<vmem>>, vector<1x4x16xbf16>
    %176 = vector.shape_cast %175 : vector<1x4x16xbf16> to vector<4x16xbf16>
    %177 = arith.extf %176 : vector<4x16xbf16> to vector<4x16xf32>
    %cst_165 = arith.constant dense<0.000000e+00> : vector<4x32xf32>
    %178 = tpu.matmul %177, %157, %cst_165 {dimension_numbers = #tpu.dot_dimension_numbers<[1], [0], [0], [1], [0, 0, 1, 1], [], []>} : vector<4x16xf32>, vector<16x32xf32>, vector<4x32xf32> -> vector<4x32xf32>
    %c2_166 = arith.constant 2 : index
    %c0_167 = arith.constant 0 : index
    %c0_168 = arith.constant 0 : index
    %179 = vector.load %arg9[%c2_166, %c0_167, %c0_168] : memref<9x32x64xf32, #tpu.memory_space<vmem>>, vector<1x32x64xf32>
    %180 = vector.shape_cast %179 : vector<1x32x64xf32> to vector<32x64xf32>
    %cst_169 = arith.constant dense<0.000000e+00> : vector<4x64xf32>
    %181 = tpu.matmul %178, %180, %cst_169 {dimension_numbers = #tpu.dot_dimension_numbers<[1], [0], [0], [1], [0, 0, 1, 1], [], []>} : vector<4x32xf32>, vector<32x64xf32>, vector<4x64xf32> -> vector<4x64xf32>
    %182 = arith.addf %174, %181 : vector<4x64xf32>
    %c3_170 = arith.constant 3 : index
    %c0_171 = arith.constant 0 : index
    %c0_172 = arith.constant 0 : index
    %183 = vector.load %arg8[%c3_170, %c0_171, %c0_172] : memref<9x4x16xbf16, #tpu.memory_space<vmem>>, vector<1x4x16xbf16>
    %184 = vector.shape_cast %183 : vector<1x4x16xbf16> to vector<4x16xbf16>
    %185 = arith.extf %184 : vector<4x16xbf16> to vector<4x16xf32>
    %cst_173 = arith.constant dense<0.000000e+00> : vector<4x32xf32>
    %186 = tpu.matmul %185, %157, %cst_173 {dimension_numbers = #tpu.dot_dimension_numbers<[1], [0], [0], [1], [0, 0, 1, 1], [], []>} : vector<4x16xf32>, vector<16x32xf32>, vector<4x32xf32> -> vector<4x32xf32>
    %c3_174 = arith.constant 3 : index
    %c0_175 = arith.constant 0 : index
    %c0_176 = arith.constant 0 : index
    %187 = vector.load %arg9[%c3_174, %c0_175, %c0_176] : memref<9x32x64xf32, #tpu.memory_space<vmem>>, vector<1x32x64xf32>
    %188 = vector.shape_cast %187 : vector<1x32x64xf32> to vector<32x64xf32>
    %cst_177 = arith.constant dense<0.000000e+00> : vector<4x64xf32>
    %189 = tpu.matmul %186, %188, %cst_177 {dimension_numbers = #tpu.dot_dimension_numbers<[1], [0], [0], [1], [0, 0, 1, 1], [], []>} : vector<4x32xf32>, vector<32x64xf32>, vector<4x64xf32> -> vector<4x64xf32>
    %190 = arith.addf %182, %189 : vector<4x64xf32>
    %c4_178 = arith.constant 4 : index
    %c0_179 = arith.constant 0 : index
    %c0_180 = arith.constant 0 : index
    %191 = vector.load %arg8[%c4_178, %c0_179, %c0_180] : memref<9x4x16xbf16, #tpu.memory_space<vmem>>, vector<1x4x16xbf16>
    %192 = vector.shape_cast %191 : vector<1x4x16xbf16> to vector<4x16xbf16>
    %193 = arith.extf %192 : vector<4x16xbf16> to vector<4x16xf32>
    %cst_181 = arith.constant dense<0.000000e+00> : vector<4x32xf32>
    %194 = tpu.matmul %193, %157, %cst_181 {dimension_numbers = #tpu.dot_dimension_numbers<[1], [0], [0], [1], [0, 0, 1, 1], [], []>} : vector<4x16xf32>, vector<16x32xf32>, vector<4x32xf32> -> vector<4x32xf32>
    %c4_182 = arith.constant 4 : index
    %c0_183 = arith.constant 0 : index
    %c0_184 = arith.constant 0 : index
    %195 = vector.load %arg9[%c4_182, %c0_183, %c0_184] : memref<9x32x64xf32, #tpu.memory_space<vmem>>, vector<1x32x64xf32>
    %196 = vector.shape_cast %195 : vector<1x32x64xf32> to vector<32x64xf32>
    %cst_185 = arith.constant dense<0.000000e+00> : vector<4x64xf32>
    %197 = tpu.matmul %194, %196, %cst_185 {dimension_numbers = #tpu.dot_dimension_numbers<[1], [0], [0], [1], [0, 0, 1, 1], [], []>} : vector<4x32xf32>, vector<32x64xf32>, vector<4x64xf32> -> vector<4x64xf32>
    %198 = arith.addf %190, %197 : vector<4x64xf32>
    %c5_186 = arith.constant 5 : index
    %c0_187 = arith.constant 0 : index
    %c0_188 = arith.constant 0 : index
    %199 = vector.load %arg8[%c5_186, %c0_187, %c0_188] : memref<9x4x16xbf16, #tpu.memory_space<vmem>>, vector<1x4x16xbf16>
    %200 = vector.shape_cast %199 : vector<1x4x16xbf16> to vector<4x16xbf16>
    %201 = arith.extf %200 : vector<4x16xbf16> to vector<4x16xf32>
    %cst_189 = arith.constant dense<0.000000e+00> : vector<4x32xf32>
    %202 = tpu.matmul %201, %157, %cst_189 {dimension_numbers = #tpu.dot_dimension_numbers<[1], [0], [0], [1], [0, 0, 1, 1], [], []>} : vector<4x16xf32>, vector<16x32xf32>, vector<4x32xf32> -> vector<4x32xf32>
    %c5_190 = arith.constant 5 : index
    %c0_191 = arith.constant 0 : index
    %c0_192 = arith.constant 0 : index
    %203 = vector.load %arg9[%c5_190, %c0_191, %c0_192] : memref<9x32x64xf32, #tpu.memory_space<vmem>>, vector<1x32x64xf32>
    %204 = vector.shape_cast %203 : vector<1x32x64xf32> to vector<32x64xf32>
    %cst_193 = arith.constant dense<0.000000e+00> : vector<4x64xf32>
    %205 = tpu.matmul %202, %204, %cst_193 {dimension_numbers = #tpu.dot_dimension_numbers<[1], [0], [0], [1], [0, 0, 1, 1], [], []>} : vector<4x32xf32>, vector<32x64xf32>, vector<4x64xf32> -> vector<4x64xf32>
    %206 = arith.addf %198, %205 : vector<4x64xf32>
    %c6_194 = arith.constant 6 : index
    %c0_195 = arith.constant 0 : index
    %c0_196 = arith.constant 0 : index
    %207 = vector.load %arg8[%c6_194, %c0_195, %c0_196] : memref<9x4x16xbf16, #tpu.memory_space<vmem>>, vector<1x4x16xbf16>
    %208 = vector.shape_cast %207 : vector<1x4x16xbf16> to vector<4x16xbf16>
    %209 = arith.extf %208 : vector<4x16xbf16> to vector<4x16xf32>
    %cst_197 = arith.constant dense<0.000000e+00> : vector<4x32xf32>
    %210 = tpu.matmul %209, %157, %cst_197 {dimension_numbers = #tpu.dot_dimension_numbers<[1], [0], [0], [1], [0, 0, 1, 1], [], []>} : vector<4x16xf32>, vector<16x32xf32>, vector<4x32xf32> -> vector<4x32xf32>
    %c6_198 = arith.constant 6 : index
    %c0_199 = arith.constant 0 : index
    %c0_200 = arith.constant 0 : index
    %211 = vector.load %arg9[%c6_198, %c0_199, %c0_200] : memref<9x32x64xf32, #tpu.memory_space<vmem>>, vector<1x32x64xf32>
    %212 = vector.shape_cast %211 : vector<1x32x64xf32> to vector<32x64xf32>
    %cst_201 = arith.constant dense<0.000000e+00> : vector<4x64xf32>
    %213 = tpu.matmul %210, %212, %cst_201 {dimension_numbers = #tpu.dot_dimension_numbers<[1], [0], [0], [1], [0, 0, 1, 1], [], []>} : vector<4x32xf32>, vector<32x64xf32>, vector<4x64xf32> -> vector<4x64xf32>
    %214 = arith.addf %206, %213 : vector<4x64xf32>
    %c7_202 = arith.constant 7 : index
    %c0_203 = arith.constant 0 : index
    %c0_204 = arith.constant 0 : index
    %215 = vector.load %arg8[%c7_202, %c0_203, %c0_204] : memref<9x4x16xbf16, #tpu.memory_space<vmem>>, vector<1x4x16xbf16>
    %216 = vector.shape_cast %215 : vector<1x4x16xbf16> to vector<4x16xbf16>
    %217 = arith.extf %216 : vector<4x16xbf16> to vector<4x16xf32>
    %cst_205 = arith.constant dense<0.000000e+00> : vector<4x32xf32>
    %218 = tpu.matmul %217, %157, %cst_205 {dimension_numbers = #tpu.dot_dimension_numbers<[1], [0], [0], [1], [0, 0, 1, 1], [], []>} : vector<4x16xf32>, vector<16x32xf32>, vector<4x32xf32> -> vector<4x32xf32>
    %c7_206 = arith.constant 7 : index
    %c0_207 = arith.constant 0 : index
    %c0_208 = arith.constant 0 : index
    %219 = vector.load %arg9[%c7_206, %c0_207, %c0_208] : memref<9x32x64xf32, #tpu.memory_space<vmem>>, vector<1x32x64xf32>
    %220 = vector.shape_cast %219 : vector<1x32x64xf32> to vector<32x64xf32>
    %cst_209 = arith.constant dense<0.000000e+00> : vector<4x64xf32>
    %221 = tpu.matmul %218, %220, %cst_209 {dimension_numbers = #tpu.dot_dimension_numbers<[1], [0], [0], [1], [0, 0, 1, 1], [], []>} : vector<4x32xf32>, vector<32x64xf32>, vector<4x64xf32> -> vector<4x64xf32>
    %222 = arith.addf %214, %221 : vector<4x64xf32>
    %c8_210 = arith.constant 8 : index
    %c0_211 = arith.constant 0 : index
    %c0_212 = arith.constant 0 : index
    %223 = vector.load %arg8[%c8_210, %c0_211, %c0_212] : memref<9x4x16xbf16, #tpu.memory_space<vmem>>, vector<1x4x16xbf16>
    %224 = vector.shape_cast %223 : vector<1x4x16xbf16> to vector<4x16xbf16>
    %225 = arith.extf %224 : vector<4x16xbf16> to vector<4x16xf32>
    %cst_213 = arith.constant dense<0.000000e+00> : vector<4x32xf32>
    %226 = tpu.matmul %225, %157, %cst_213 {dimension_numbers = #tpu.dot_dimension_numbers<[1], [0], [0], [1], [0, 0, 1, 1], [], []>} : vector<4x16xf32>, vector<16x32xf32>, vector<4x32xf32> -> vector<4x32xf32>
    %c8_214 = arith.constant 8 : index
    %c0_215 = arith.constant 0 : index
    %c0_216 = arith.constant 0 : index
    %227 = vector.load %arg9[%c8_214, %c0_215, %c0_216] : memref<9x32x64xf32, #tpu.memory_space<vmem>>, vector<1x32x64xf32>
    %228 = vector.shape_cast %227 : vector<1x32x64xf32> to vector<32x64xf32>
    %cst_217 = arith.constant dense<0.000000e+00> : vector<4x64xf32>
    %229 = tpu.matmul %226, %228, %cst_217 {dimension_numbers = #tpu.dot_dimension_numbers<[1], [0], [0], [1], [0, 0, 1, 1], [], []>} : vector<4x32xf32>, vector<32x64xf32>, vector<4x64xf32> -> vector<4x64xf32>
    %230 = arith.addf %222, %229 : vector<4x64xf32>
    %c0_218 = arith.constant 0 : index
    %c0_219 = arith.constant 0 : index
    %231 = vector.load %arg10[%c0_218, %c0_219] : memref<1x64xf32, #tpu.memory_space<vmem>>, vector<1x64xf32>
    %232 = vector.broadcast %231 : vector<1x64xf32> to vector<4x64xf32>
    %233 = arith.addf %230, %232 : vector<4x64xf32>
    %cst_220 = arith.constant 0.000000e+00 : f32
    %234 = vector.broadcast %cst_220 : f32 to vector<4x64xf32>
    %235 = arith.maximumf %233, %234 : vector<4x64xf32>
    %cst_221 = arith.constant 0.000000e+00 : f32
    %236 = vector.broadcast %cst_221 : f32 to vector<1x128xf32>
    %c0_222 = arith.constant 0 : index
    %c0_223 = arith.constant 0 : index
    %c0_224 = arith.constant 0 : index
    %237 = vector.load %arg11[%c0_222, %c0_223, %c0_224] : memref<9x1x4xbf16, #tpu.memory_space<vmem>>, vector<1x1x4xbf16>
    %238 = vector.shape_cast %237 : vector<1x1x4xbf16> to vector<1x4xbf16>
    %239 = arith.extf %238 : vector<1x4xbf16> to vector<1x4xf32>
    %cst_225 = arith.constant dense<0.000000e+00> : vector<1x64xf32>
    %240 = tpu.matmul %239, %235, %cst_225 {dimension_numbers = #tpu.dot_dimension_numbers<[1], [0], [0], [1], [0, 0, 1, 1], [], []>} : vector<1x4xf32>, vector<4x64xf32>, vector<1x64xf32> -> vector<1x64xf32>
    %c0_226 = arith.constant 0 : index
    %c0_227 = arith.constant 0 : index
    %c0_228 = arith.constant 0 : index
    %241 = vector.load %arg12[%c0_226, %c0_227, %c0_228] : memref<9x64x128xf32, #tpu.memory_space<vmem>>, vector<1x64x128xf32>
    %242 = vector.shape_cast %241 : vector<1x64x128xf32> to vector<64x128xf32>
    %cst_229 = arith.constant dense<0.000000e+00> : vector<1x128xf32>
    %243 = tpu.matmul %240, %242, %cst_229 {dimension_numbers = #tpu.dot_dimension_numbers<[1], [0], [0], [1], [0, 0, 1, 1], [], []>} : vector<1x64xf32>, vector<64x128xf32>, vector<1x128xf32> -> vector<1x128xf32>
    %244 = arith.addf %236, %243 : vector<1x128xf32>
    %c1_230 = arith.constant 1 : index
    %c0_231 = arith.constant 0 : index
    %c0_232 = arith.constant 0 : index
    %245 = vector.load %arg11[%c1_230, %c0_231, %c0_232] : memref<9x1x4xbf16, #tpu.memory_space<vmem>>, vector<1x1x4xbf16>
    %246 = vector.shape_cast %245 : vector<1x1x4xbf16> to vector<1x4xbf16>
    %247 = arith.extf %246 : vector<1x4xbf16> to vector<1x4xf32>
    %cst_233 = arith.constant dense<0.000000e+00> : vector<1x64xf32>
    %248 = tpu.matmul %247, %235, %cst_233 {dimension_numbers = #tpu.dot_dimension_numbers<[1], [0], [0], [1], [0, 0, 1, 1], [], []>} : vector<1x4xf32>, vector<4x64xf32>, vector<1x64xf32> -> vector<1x64xf32>
    %c1_234 = arith.constant 1 : index
    %c0_235 = arith.constant 0 : index
    %c0_236 = arith.constant 0 : index
    %249 = vector.load %arg12[%c1_234, %c0_235, %c0_236] : memref<9x64x128xf32, #tpu.memory_space<vmem>>, vector<1x64x128xf32>
    %250 = vector.shape_cast %249 : vector<1x64x128xf32> to vector<64x128xf32>
    %cst_237 = arith.constant dense<0.000000e+00> : vector<1x128xf32>
    %251 = tpu.matmul %248, %250, %cst_237 {dimension_numbers = #tpu.dot_dimension_numbers<[1], [0], [0], [1], [0, 0, 1, 1], [], []>} : vector<1x64xf32>, vector<64x128xf32>, vector<1x128xf32> -> vector<1x128xf32>
    %252 = arith.addf %244, %251 : vector<1x128xf32>
    %c2_238 = arith.constant 2 : index
    %c0_239 = arith.constant 0 : index
    %c0_240 = arith.constant 0 : index
    %253 = vector.load %arg11[%c2_238, %c0_239, %c0_240] : memref<9x1x4xbf16, #tpu.memory_space<vmem>>, vector<1x1x4xbf16>
    %254 = vector.shape_cast %253 : vector<1x1x4xbf16> to vector<1x4xbf16>
    %255 = arith.extf %254 : vector<1x4xbf16> to vector<1x4xf32>
    %cst_241 = arith.constant dense<0.000000e+00> : vector<1x64xf32>
    %256 = tpu.matmul %255, %235, %cst_241 {dimension_numbers = #tpu.dot_dimension_numbers<[1], [0], [0], [1], [0, 0, 1, 1], [], []>} : vector<1x4xf32>, vector<4x64xf32>, vector<1x64xf32> -> vector<1x64xf32>
    %c2_242 = arith.constant 2 : index
    %c0_243 = arith.constant 0 : index
    %c0_244 = arith.constant 0 : index
    %257 = vector.load %arg12[%c2_242, %c0_243, %c0_244] : memref<9x64x128xf32, #tpu.memory_space<vmem>>, vector<1x64x128xf32>
    %258 = vector.shape_cast %257 : vector<1x64x128xf32> to vector<64x128xf32>
    %cst_245 = arith.constant dense<0.000000e+00> : vector<1x128xf32>
    %259 = tpu.matmul %256, %258, %cst_245 {dimension_numbers = #tpu.dot_dimension_numbers<[1], [0], [0], [1], [0, 0, 1, 1], [], []>} : vector<1x64xf32>, vector<64x128xf32>, vector<1x128xf32> -> vector<1x128xf32>
    %260 = arith.addf %252, %259 : vector<1x128xf32>
    %c3_246 = arith.constant 3 : index
    %c0_247 = arith.constant 0 : index
    %c0_248 = arith.constant 0 : index
    %261 = vector.load %arg11[%c3_246, %c0_247, %c0_248] : memref<9x1x4xbf16, #tpu.memory_space<vmem>>, vector<1x1x4xbf16>
    %262 = vector.shape_cast %261 : vector<1x1x4xbf16> to vector<1x4xbf16>
    %263 = arith.extf %262 : vector<1x4xbf16> to vector<1x4xf32>
    %cst_249 = arith.constant dense<0.000000e+00> : vector<1x64xf32>
    %264 = tpu.matmul %263, %235, %cst_249 {dimension_numbers = #tpu.dot_dimension_numbers<[1], [0], [0], [1], [0, 0, 1, 1], [], []>} : vector<1x4xf32>, vector<4x64xf32>, vector<1x64xf32> -> vector<1x64xf32>
    %c3_250 = arith.constant 3 : index
    %c0_251 = arith.constant 0 : index
    %c0_252 = arith.constant 0 : index
    %265 = vector.load %arg12[%c3_250, %c0_251, %c0_252] : memref<9x64x128xf32, #tpu.memory_space<vmem>>, vector<1x64x128xf32>
    %266 = vector.shape_cast %265 : vector<1x64x128xf32> to vector<64x128xf32>
    %cst_253 = arith.constant dense<0.000000e+00> : vector<1x128xf32>
    %267 = tpu.matmul %264, %266, %cst_253 {dimension_numbers = #tpu.dot_dimension_numbers<[1], [0], [0], [1], [0, 0, 1, 1], [], []>} : vector<1x64xf32>, vector<64x128xf32>, vector<1x128xf32> -> vector<1x128xf32>
    %268 = arith.addf %260, %267 : vector<1x128xf32>
    %c4_254 = arith.constant 4 : index
    %c0_255 = arith.constant 0 : index
    %c0_256 = arith.constant 0 : index
    %269 = vector.load %arg11[%c4_254, %c0_255, %c0_256] : memref<9x1x4xbf16, #tpu.memory_space<vmem>>, vector<1x1x4xbf16>
    %270 = vector.shape_cast %269 : vector<1x1x4xbf16> to vector<1x4xbf16>
    %271 = arith.extf %270 : vector<1x4xbf16> to vector<1x4xf32>
    %cst_257 = arith.constant dense<0.000000e+00> : vector<1x64xf32>
    %272 = tpu.matmul %271, %235, %cst_257 {dimension_numbers = #tpu.dot_dimension_numbers<[1], [0], [0], [1], [0, 0, 1, 1], [], []>} : vector<1x4xf32>, vector<4x64xf32>, vector<1x64xf32> -> vector<1x64xf32>
    %c4_258 = arith.constant 4 : index
    %c0_259 = arith.constant 0 : index
    %c0_260 = arith.constant 0 : index
    %273 = vector.load %arg12[%c4_258, %c0_259, %c0_260] : memref<9x64x128xf32, #tpu.memory_space<vmem>>, vector<1x64x128xf32>
    %274 = vector.shape_cast %273 : vector<1x64x128xf32> to vector<64x128xf32>
    %cst_261 = arith.constant dense<0.000000e+00> : vector<1x128xf32>
    %275 = tpu.matmul %272, %274, %cst_261 {dimension_numbers = #tpu.dot_dimension_numbers<[1], [0], [0], [1], [0, 0, 1, 1], [], []>} : vector<1x64xf32>, vector<64x128xf32>, vector<1x128xf32> -> vector<1x128xf32>
    %276 = arith.addf %268, %275 : vector<1x128xf32>
    %c5_262 = arith.constant 5 : index
    %c0_263 = arith.constant 0 : index
    %c0_264 = arith.constant 0 : index
    %277 = vector.load %arg11[%c5_262, %c0_263, %c0_264] : memref<9x1x4xbf16, #tpu.memory_space<vmem>>, vector<1x1x4xbf16>
    %278 = vector.shape_cast %277 : vector<1x1x4xbf16> to vector<1x4xbf16>
    %279 = arith.extf %278 : vector<1x4xbf16> to vector<1x4xf32>
    %cst_265 = arith.constant dense<0.000000e+00> : vector<1x64xf32>
    %280 = tpu.matmul %279, %235, %cst_265 {dimension_numbers = #tpu.dot_dimension_numbers<[1], [0], [0], [1], [0, 0, 1, 1], [], []>} : vector<1x4xf32>, vector<4x64xf32>, vector<1x64xf32> -> vector<1x64xf32>
    %c5_266 = arith.constant 5 : index
    %c0_267 = arith.constant 0 : index
    %c0_268 = arith.constant 0 : index
    %281 = vector.load %arg12[%c5_266, %c0_267, %c0_268] : memref<9x64x128xf32, #tpu.memory_space<vmem>>, vector<1x64x128xf32>
    %282 = vector.shape_cast %281 : vector<1x64x128xf32> to vector<64x128xf32>
    %cst_269 = arith.constant dense<0.000000e+00> : vector<1x128xf32>
    %283 = tpu.matmul %280, %282, %cst_269 {dimension_numbers = #tpu.dot_dimension_numbers<[1], [0], [0], [1], [0, 0, 1, 1], [], []>} : vector<1x64xf32>, vector<64x128xf32>, vector<1x128xf32> -> vector<1x128xf32>
    %284 = arith.addf %276, %283 : vector<1x128xf32>
    %c6_270 = arith.constant 6 : index
    %c0_271 = arith.constant 0 : index
    %c0_272 = arith.constant 0 : index
    %285 = vector.load %arg11[%c6_270, %c0_271, %c0_272] : memref<9x1x4xbf16, #tpu.memory_space<vmem>>, vector<1x1x4xbf16>
    %286 = vector.shape_cast %285 : vector<1x1x4xbf16> to vector<1x4xbf16>
    %287 = arith.extf %286 : vector<1x4xbf16> to vector<1x4xf32>
    %cst_273 = arith.constant dense<0.000000e+00> : vector<1x64xf32>
    %288 = tpu.matmul %287, %235, %cst_273 {dimension_numbers = #tpu.dot_dimension_numbers<[1], [0], [0], [1], [0, 0, 1, 1], [], []>} : vector<1x4xf32>, vector<4x64xf32>, vector<1x64xf32> -> vector<1x64xf32>
    %c6_274 = arith.constant 6 : index
    %c0_275 = arith.constant 0 : index
    %c0_276 = arith.constant 0 : index
    %289 = vector.load %arg12[%c6_274, %c0_275, %c0_276] : memref<9x64x128xf32, #tpu.memory_space<vmem>>, vector<1x64x128xf32>
    %290 = vector.shape_cast %289 : vector<1x64x128xf32> to vector<64x128xf32>
    %cst_277 = arith.constant dense<0.000000e+00> : vector<1x128xf32>
    %291 = tpu.matmul %288, %290, %cst_277 {dimension_numbers = #tpu.dot_dimension_numbers<[1], [0], [0], [1], [0, 0, 1, 1], [], []>} : vector<1x64xf32>, vector<64x128xf32>, vector<1x128xf32> -> vector<1x128xf32>
    %292 = arith.addf %284, %291 : vector<1x128xf32>
    %c7_278 = arith.constant 7 : index
    %c0_279 = arith.constant 0 : index
    %c0_280 = arith.constant 0 : index
    %293 = vector.load %arg11[%c7_278, %c0_279, %c0_280] : memref<9x1x4xbf16, #tpu.memory_space<vmem>>, vector<1x1x4xbf16>
    %294 = vector.shape_cast %293 : vector<1x1x4xbf16> to vector<1x4xbf16>
    %295 = arith.extf %294 : vector<1x4xbf16> to vector<1x4xf32>
    %cst_281 = arith.constant dense<0.000000e+00> : vector<1x64xf32>
    %296 = tpu.matmul %295, %235, %cst_281 {dimension_numbers = #tpu.dot_dimension_numbers<[1], [0], [0], [1], [0, 0, 1, 1], [], []>} : vector<1x4xf32>, vector<4x64xf32>, vector<1x64xf32> -> vector<1x64xf32>
    %c7_282 = arith.constant 7 : index
    %c0_283 = arith.constant 0 : index
    %c0_284 = arith.constant 0 : index
    %297 = vector.load %arg12[%c7_282, %c0_283, %c0_284] : memref<9x64x128xf32, #tpu.memory_space<vmem>>, vector<1x64x128xf32>
    %298 = vector.shape_cast %297 : vector<1x64x128xf32> to vector<64x128xf32>
    %cst_285 = arith.constant dense<0.000000e+00> : vector<1x128xf32>
    %299 = tpu.matmul %296, %298, %cst_285 {dimension_numbers = #tpu.dot_dimension_numbers<[1], [0], [0], [1], [0, 0, 1, 1], [], []>} : vector<1x64xf32>, vector<64x128xf32>, vector<1x128xf32> -> vector<1x128xf32>
    %300 = arith.addf %292, %299 : vector<1x128xf32>
    %c8_286 = arith.constant 8 : index
    %c0_287 = arith.constant 0 : index
    %c0_288 = arith.constant 0 : index
    %301 = vector.load %arg11[%c8_286, %c0_287, %c0_288] : memref<9x1x4xbf16, #tpu.memory_space<vmem>>, vector<1x1x4xbf16>
    %302 = vector.shape_cast %301 : vector<1x1x4xbf16> to vector<1x4xbf16>
    %303 = arith.extf %302 : vector<1x4xbf16> to vector<1x4xf32>
    %cst_289 = arith.constant dense<0.000000e+00> : vector<1x64xf32>
    %304 = tpu.matmul %303, %235, %cst_289 {dimension_numbers = #tpu.dot_dimension_numbers<[1], [0], [0], [1], [0, 0, 1, 1], [], []>} : vector<1x4xf32>, vector<4x64xf32>, vector<1x64xf32> -> vector<1x64xf32>
    %c8_290 = arith.constant 8 : index
    %c0_291 = arith.constant 0 : index
    %c0_292 = arith.constant 0 : index
    %305 = vector.load %arg12[%c8_290, %c0_291, %c0_292] : memref<9x64x128xf32, #tpu.memory_space<vmem>>, vector<1x64x128xf32>
    %306 = vector.shape_cast %305 : vector<1x64x128xf32> to vector<64x128xf32>
    %cst_293 = arith.constant dense<0.000000e+00> : vector<1x128xf32>
    %307 = tpu.matmul %304, %306, %cst_293 {dimension_numbers = #tpu.dot_dimension_numbers<[1], [0], [0], [1], [0, 0, 1, 1], [], []>} : vector<1x64xf32>, vector<64x128xf32>, vector<1x128xf32> -> vector<1x128xf32>
    %308 = arith.addf %300, %307 : vector<1x128xf32>
    %c0_294 = arith.constant 0 : index
    %c0_295 = arith.constant 0 : index
    %309 = vector.load %arg13[%c0_294, %c0_295] : memref<1x128xf32, #tpu.memory_space<vmem>>, vector<1x128xf32>
    %310 = arith.addf %308, %309 : vector<1x128xf32>
    %cst_296 = arith.constant 0.000000e+00 : f32
    %311 = vector.broadcast %cst_296 : f32 to vector<1x128xf32>
    %312 = arith.maximumf %310, %311 : vector<1x128xf32>
    %c0_297 = arith.constant 0 : index
    %c0_298 = arith.constant 0 : index
    %313 = vector.load %arg15[%c0_297, %c0_298] : memref<1x8xf32, #tpu.memory_space<vmem>>, vector<1x8xf32>
    %c0_299 = arith.constant 0 : index
    %c0_300 = arith.constant 0 : index
    %c0_301 = arith.constant 0 : index
    %314 = vector.load %arg14[%c0_299, %c0_300, %c0_301] : memref<1x128x8xf32, #tpu.memory_space<vmem>>, vector<1x128x8xf32>
    %315 = vector.shape_cast %314 : vector<1x128x8xf32> to vector<128x8xf32>
    %cst_302 = arith.constant dense<0.000000e+00> : vector<1x8xf32>
    %316 = tpu.matmul %312, %315, %cst_302 {dimension_numbers = #tpu.dot_dimension_numbers<[1], [0], [0], [1], [0, 0, 1, 1], [], []>} : vector<1x128xf32>, vector<128x8xf32>, vector<1x8xf32> -> vector<1x8xf32>
    %317 = arith.addf %313, %316 : vector<1x8xf32>
    %c0_303 = arith.constant 0 : index
    %c0_304 = arith.constant 0 : index
    %c0_305 = arith.constant 0 : index
    %318 = vector.load %arg20[%c0_303, %c0_304, %c0_305] : memref<1x1x8xf32, #tpu.memory_space<vmem>>, vector<1x1x8xf32>
    %319 = vector.shape_cast %318 : vector<1x1x8xf32> to vector<1x8xf32>
    %320 = vector.shape_cast %317 : vector<1x8xf32> to vector<1x1x8xf32>
    tpu.vector_store %arg20[%c0_303, %c0_304, %c0_305], %320 {strides = array<i32>} : memref<1x1x8xf32, #tpu.memory_space<vmem>>, vector<1x1x8xf32>,
    %c0_306 = arith.constant 0 : index
    %c0_307 = arith.constant 0 : index
    %321 = vector.load %arg16[%c0_306, %c0_307] : memref<8x16xf32, #tpu.memory_space<vmem>>, vector<8x16xf32>
    %cst_308 = arith.constant dense<0.000000e+00> : vector<1x16xf32>
    %322 = tpu.matmul %317, %321, %cst_308 {dimension_numbers = #tpu.dot_dimension_numbers<[1], [0], [0], [1], [0, 0, 1, 1], [], []>} : vector<1x8xf32>, vector<8x16xf32>, vector<1x16xf32> -> vector<1x16xf32>
    %c0_309 = arith.constant 0 : index
    %c0_310 = arith.constant 0 : index
    %323 = vector.load %arg17[%c0_309, %c0_310] : memref<1x16xf32, #tpu.memory_space<vmem>>, vector<1x16xf32>
    %324 = arith.addf %322, %323 : vector<1x16xf32>
    %cst_311 = arith.constant 0.000000e+00 : f32
    %325 = vector.broadcast %cst_311 : f32 to vector<1x16xf32>
    %326 = arith.cmpf oge, %324, %325 : vector<1x16xf32>
    %cst_312 = arith.constant 0.00999999977 : f32
    %327 = vector.broadcast %cst_312 : f32 to vector<1x16xf32>
    %328 = arith.mulf %327, %324 : vector<1x16xf32>
    %329 = arith.select %326, %324, %328 : vector<1x16xi1>, vector<1x16xf32>
    %c0_313 = arith.constant 0 : index
    %c0_314 = arith.constant 0 : index
    %330 = vector.load %arg18[%c0_313, %c0_314] : memref<16x5xf32, #tpu.memory_space<vmem>>, vector<16x5xf32>
    %cst_315 = arith.constant dense<0.000000e+00> : vector<1x5xf32>
    %331 = tpu.matmul %329, %330, %cst_315 {dimension_numbers = #tpu.dot_dimension_numbers<[1], [0], [0], [1], [0, 0, 1, 1], [], []>} : vector<1x16xf32>, vector<16x5xf32>, vector<1x5xf32> -> vector<1x5xf32>
    %c0_316 = arith.constant 0 : index
    %c0_317 = arith.constant 0 : index
    %332 = vector.load %arg19[%c0_316, %c0_317] : memref<1x5xf32, #tpu.memory_space<vmem>>, vector<1x5xf32>
    %333 = arith.addf %331, %332 : vector<1x5xf32>
    %c0_318 = arith.constant 0 : index
    %c0_319 = arith.constant 0 : index
    %c0_320 = arith.constant 0 : index
    %334 = vector.load %arg21[%c0_318, %c0_319, %c0_320] : memref<1x1x5xf32, #tpu.memory_space<vmem>>, vector<1x1x5xf32>
    %335 = vector.shape_cast %334 : vector<1x1x5xf32> to vector<1x5xf32>
    %336 = vector.shape_cast %333 : vector<1x5xf32> to vector<1x1x5xf32>
    tpu.vector_store %arg21[%c0_318, %c0_319, %c0_320], %336 {strides = array<i32>} : memref<1x1x5xf32, #tpu.memory_space<vmem>>, vector<1x1x5xf32>,
    return
  }
  func.func @transform_0(%arg0: i32) -> (i32, i32, i32) {
    %c0_i32 = arith.constant 0 : i32
    %c0_i32_0 = arith.constant 0 : i32
    %c0_i32_1 = arith.constant 0 : i32
    return %arg0, %c0_i32, %c0_i32_0 : i32, i32, i32
  }
  func.func @transform_1(%arg0: i32) -> (i32, i32, i32) {
    %c0_i32 = arith.constant 0 : i32
    %c0_i32_0 = arith.constant 0 : i32
    %c0_i32_1 = arith.constant 0 : i32
    %c0_i32_2 = arith.constant 0 : i32
    return %c0_i32, %c0_i32_0, %c0_i32_1 : i32, i32, i32
  }
  func.func @transform_2(%arg0: i32) -> (i32, i32, i32) {
    %c0_i32 = arith.constant 0 : i32
    %c0_i32_0 = arith.constant 0 : i32
    %c0_i32_1 = arith.constant 0 : i32
    %c0_i32_2 = arith.constant 0 : i32
    return %c0_i32, %c0_i32_0, %c0_i32_1 : i32, i32, i32
  }
  func.func @transform_3(%arg0: i32) -> (i32, i32) {
    %c0_i32 = arith.constant 0 : i32
    %c0_i32_0 = arith.constant 0 : i32
    %c0_i32_1 = arith.constant 0 : i32
    return %c0_i32, %c0_i32_0 : i32, i32
  }
  func.func @transform_4(%arg0: i32) -> (i32, i32, i32) {
    %c0_i32 = arith.constant 0 : i32
    %c0_i32_0 = arith.constant 0 : i32
    %c0_i32_1 = arith.constant 0 : i32
    %c0_i32_2 = arith.constant 0 : i32
    return %c0_i32, %c0_i32_0, %c0_i32_1 : i32, i32, i32
  }
  func.func @transform_5(%arg0: i32) -> (i32, i32, i32) {
    %c0_i32 = arith.constant 0 : i32
    %c0_i32_0 = arith.constant 0 : i32
    %c0_i32_1 = arith.constant 0 : i32
    %c0_i32_2 = arith.constant 0 : i32
    return %c0_i32, %c0_i32_0, %c0_i32_1 : i32, i32, i32
  }
  func.func @transform_6(%arg0: i32) -> (i32, i32) {
    %c0_i32 = arith.constant 0 : i32
    %c0_i32_0 = arith.constant 0 : i32
    %c0_i32_1 = arith.constant 0 : i32
    return %c0_i32, %c0_i32_0 : i32, i32
  }
  func.func @transform_7(%arg0: i32) -> (i32, i32, i32) {
    %c0_i32 = arith.constant 0 : i32
    %c0_i32_0 = arith.constant 0 : i32
    %c0_i32_1 = arith.constant 0 : i32
    %c0_i32_2 = arith.constant 0 : i32
    return %c0_i32, %c0_i32_0, %c0_i32_1 : i32, i32, i32
  }
  func.func @transform_8(%arg0: i32) -> (i32, i32, i32) {
    %c0_i32 = arith.constant 0 : i32
    %c0_i32_0 = arith.constant 0 : i32
    %c0_i32_1 = arith.constant 0 : i32
    %c0_i32_2 = arith.constant 0 : i32
    return %c0_i32, %c0_i32_0, %c0_i32_1 : i32, i32, i32
  }
  func.func @transform_9(%arg0: i32) -> (i32, i32) {
    %c0_i32 = arith.constant 0 : i32
    %c0_i32_0 = arith.constant 0 : i32
    %c0_i32_1 = arith.constant 0 : i32
    return %c0_i32, %c0_i32_0 : i32, i32
  }
  func.func @transform_10(%arg0: i32) -> (i32, i32, i32) {
    %c0_i32 = arith.constant 0 : i32
    %c0_i32_0 = arith.constant 0 : i32
    %c0_i32_1 = arith.constant 0 : i32
    %c0_i32_2 = arith.constant 0 : i32
    return %c0_i32, %c0_i32_0, %c0_i32_1 : i32, i32, i32
  }
  func.func @transform_11(%arg0: i32) -> (i32, i32, i32) {
    %c0_i32 = arith.constant 0 : i32
    %c0_i32_0 = arith.constant 0 : i32
    %c0_i32_1 = arith.constant 0 : i32
    %c0_i32_2 = arith.constant 0 : i32
    return %c0_i32, %c0_i32_0, %c0_i32_1 : i32, i32, i32
  }
  func.func @transform_12(%arg0: i32) -> (i32, i32) {
    %c0_i32 = arith.constant 0 : i32
    %c0_i32_0 = arith.constant 0 : i32
    %c0_i32_1 = arith.constant 0 : i32
    return %c0_i32, %c0_i32_0 : i32, i32
  }
  func.func @transform_13(%arg0: i32) -> (i32, i32, i32) {
    %c0_i32 = arith.constant 0 : i32
    %c0_i32_0 = arith.constant 0 : i32
    %c0_i32_1 = arith.constant 0 : i32
    %c0_i32_2 = arith.constant 0 : i32
    return %c0_i32, %c0_i32_0, %c0_i32_1 : i32, i32, i32
  }
  func.func @transform_14(%arg0: i32) -> (i32, i32) {
    %c0_i32 = arith.constant 0 : i32
    %c0_i32_0 = arith.constant 0 : i32
    %c0_i32_1 = arith.constant 0 : i32
    return %c0_i32, %c0_i32_0 : i32, i32
  }
  func.func @transform_15(%arg0: i32) -> (i32, i32) {
    %c0_i32 = arith.constant 0 : i32
    %c0_i32_0 = arith.constant 0 : i32
    %c0_i32_1 = arith.constant 0 : i32
    return %c0_i32, %c0_i32_0 : i32, i32
  }
  func.func @transform_16(%arg0: i32) -> (i32, i32) {
    %c0_i32 = arith.constant 0 : i32
    %c0_i32_0 = arith.constant 0 : i32
    %c0_i32_1 = arith.constant 0 : i32
    return %c0_i32, %c0_i32_0 : i32, i32
  }
  func.func @transform_17(%arg0: i32) -> (i32, i32) {
    %c0_i32 = arith.constant 0 : i32
    %c0_i32_0 = arith.constant 0 : i32
    %c0_i32_1 = arith.constant 0 : i32
    return %c0_i32, %c0_i32_0 : i32, i32
  }
  func.func @transform_18(%arg0: i32) -> (i32, i32) {
    %c0_i32 = arith.constant 0 : i32
    %c0_i32_0 = arith.constant 0 : i32
    %c0_i32_1 = arith.constant 0 : i32
    return %c0_i32, %c0_i32_0 : i32, i32
  }
  func.func @transform_19(%arg0: i32) -> (i32, i32, i32) {
    %c0_i32 = arith.constant 0 : i32
    %c0_i32_0 = arith.constant 0 : i32
    %c0_i32_1 = arith.constant 0 : i32
    return %arg0, %c0_i32, %c0_i32_0 : i32, i32, i32
  }
  func.func @transform_20(%arg0: i32) -> (i32, i32, i32) {
    %c0_i32 = arith.constant 0 : i32
    %c0_i32_0 = arith.constant 0 : i32
    %c0_i32_1 = arith.constant 0 : i32
    return %arg0, %c0_i32, %c0_i32_0 : i32, i32, i32
  }
}

</mosaic_0001>

<llo_original>
// kernel: independent_mlp_forward.1
$region0: #{independent_mlp_forward.1}
  #allocation0 [shape = 'u32[]', space=smem, size = 0x4, offset = 0x4, fixed_abs, tag = 'smem constant byte address 0x4 - core index']
  #allocation1 [shape = 'u32[144,128]{1,0:T(1,128)}', space=vmem, size = 0x12000, scoped, tag = 'internal scratch']
  %s0 = inlined_call_operand.vmem [shape: f32[2,256,4], index: 0, kind: input, shape index: {}]
  %s1 = inlined_call_operand.vmem [shape: bf16[9,64,256], index: 1, kind: input, shape index: {}]
  %s2 = inlined_call_operand.vmem [shape: f32[9,4,16], index: 2, kind: input, shape index: {}]
  %s3 = inlined_call_operand.vmem [shape: f32[1,16], index: 3, kind: input, shape index: {}]
  %s4 = inlined_call_operand.vmem [shape: bf16[9,16,64], index: 4, kind: input, shape index: {}]
  %s5 = inlined_call_operand.vmem [shape: f32[9,16,32], index: 5, kind: input, shape index: {}]
  %s6 = inlined_call_operand.hbm [shape: f32[1,32], index: 6, kind: input, shape index: {}]
  %s7 = inlined_call_operand.vmem [shape: bf16[9,4,16], index: 7, kind: input, shape index: {}]
  %s8 = inlined_call_operand.hbm [shape: f32[9,32,64], index: 8, kind: input, shape index: {}]
  %s9 = inlined_call_operand.hbm [shape: f32[1,64], index: 9, kind: input, shape index: {}]
  %s10 = inlined_call_operand.vmem [shape: bf16[9,1,4], index: 10, kind: input, shape index: {}]
  %s11 = inlined_call_operand.hbm [shape: f32[9,64,128], index: 11, kind: input, shape index: {}]
  %s12 = inlined_call_operand.hbm [shape: f32[1,128], index: 12, kind: input, shape index: {}]
  %s13 = inlined_call_operand.vmem [shape: f32[1,128,8], index: 13, kind: input, shape index: {}]
  %s14 = inlined_call_operand.hbm [shape: f32[1,8], index: 14, kind: input, shape index: {}]
  %s15 = inlined_call_operand.vmem [shape: f32[8,16], index: 15, kind: input, shape index: {}]
  %s16 = inlined_call_operand.hbm [shape: f32[1,16], index: 16, kind: input, shape index: {}]
  %s17 = inlined_call_operand.vmem [shape: f32[16,5], index: 17, kind: input, shape index: {}]
  %s18 = inlined_call_operand.hbm [shape: f32[1,5], index: 18, kind: input, shape index: {}]
  %s19 = inlined_call_operand.hbm [shape: f32[2,1,8], index: 19, kind: output, shape index: {0}]
  %s20 = inlined_call_operand.hbm [shape: f32[2,1,5], index: 20, kind: output, shape index: {1}]
  %21 = xla_tuple %s19, %s20
  %s22 = sld [smem:[#allocation0]]
  $region149: #{independent_mlp_forward.1} parent=0
    _
  %s24 = ssub.s32 1, %s22
  %s25 = scalar_select 0, %s24, %s22
  $region1: #{independent_mlp_forward.1} parent=0
    #allocation2 [shape = 'u8[512]{0}', space=vmem, size = 0x400, scoped, tag = 'input window, operand 6, single buffered']
    #allocation3 [shape = 's32[2]{0}', space=sflag, size = 0x8, scoped, tag = 'scoped memory for independent_mlp_forward.1']
    #allocation4 [shape = 's32[2]{0}', space=sflag, size = 0x8, scoped, tag = 'scoped memory for independent_mlp_forward.1']
    #allocation5 [shape = 'u8[147456]{0}', space=vmem, size = 0x24000, scoped, tag = 'input window, operand 8, single buffered']
    #allocation6 [shape = 's32[1]{0}', space=sflag, size = 0x4, scoped, tag = 'scoped memory for independent_mlp_forward.1']
    #allocation7 [shape = 'u8[512]{0}', space=vmem, size = 0x400, scoped, tag = 'input window, operand 9, single buffered']
    #allocation8 [shape = 'u8[294912]{0}', space=vmem, size = 0x48000, scoped, tag = 'input window, operand 11, single buffered']
    #allocation9 [shape = 's32[1]{0}', space=sflag, size = 0x4, scoped, tag = 'scoped memory for independent_mlp_forward.1']
    #allocation10 [shape = 'u8[512]{0}', space=vmem, size = 0x400, scoped, tag = 'input window, operand 12, single buffered']
    #allocation11 [shape = 'u8[512]{0}', space=vmem, size = 0x400, scoped, tag = 'input window, operand 14, single buffered']
    #allocation12 [shape = 's32[1]{0}', space=sflag, size = 0x4, scoped, tag = 'scoped memory for independent_mlp_forward.1']
    #allocation13 [shape = 'u8[512]{0}', space=vmem, size = 0x400, scoped, tag = 'input window, operand 16, single buffered']
    #allocation14 [shape = 'u8[512]{0}', space=vmem, size = 0x400, scoped, tag = 'input window, operand 18, single buffered']
    #allocation15 [shape = 's32[1]{0}', space=sflag, size = 0x4, scoped, tag = 'scoped memory for independent_mlp_forward.1']
    #allocation16 [shape = 'u8[1024]{0}', space=vmem, size = 0x400, scoped, tag = 'output window, operand 0']
    #allocation17 [shape = 'u8[1024]{0}', space=vmem, size = 0x400, scoped, tag = 'output window, operand 1']
    #allocation18 [shape = 's32[2]{0}', space=sflag, size = 0x8, scoped, tag = 'scoped memory for independent_mlp_forward.1']
    %26 = vsyncpa [#allocation3], 0
    %27 = vsyncpa [#allocation6], 0
    %28 = vsyncpa [#allocation9], 0
    %29 = vsyncpa [#allocation12], 0
    %30 = vsyncpa [#allocation15], 0
    %31 = vsyncpa [#allocation4], 0
    %s32 = scalar_lea.sflag [#allocation4], 1
    %33 = vsyncpa %s32, 0
    %34 = vsyncpa [#allocation18], 0
    %s35 = scalar_lea.sflag [#allocation18], 1
    %36 = vsyncpa %s35, 0
    loop: start=0, step=1, limit=4
    $region2: #{independent_mlp_forward.1} parent=1 // loop_pre_header
      _
    $region3: #{independent_mlp_forward.1} parent=1 // loop_header
      %s38 = sphi 0, %s42
      %p39 = scmp.ge.s32.totalorder %s38, 4
      %s48 = sphi 0, %s50
      %s51 = sphi 0, %s48
      %s52 = sphi 0, %s51
      %s68 = sphi 0, %s52
      %s72 = sphi 0, %s72
      %s74 = sphi 0, %s72
      %s75 = sphi 0, %s74
      %s89 = sphi 0, %s75
      %s93 = sphi 0, %s93
      %s95 = sphi 0, %s93
      %s96 = sphi 0, %s95
      %s110 = sphi 0, %s96
      %s114 = sphi 0, %s114
      %s116 = sphi 0, %s114
      %s117 = sphi 0, %s116
      %s131 = sphi 0, %s117
      %s135 = sphi 0, %s135
      %s137 = sphi 0, %s135
      %s138 = sphi 0, %s137
      %s152 = sphi 0, %s138
      %s156 = sphi 0, %s156
      %s158 = sphi 0, %s156
      %s159 = sphi 0, %s158
      %s173 = sphi 0, %s159
      %s177 = sphi 0, %s177
      %s179 = sphi 0, %s177
      %s180 = sphi 0, %s179
      %s194 = sphi 0, %s180
      %s198 = sphi 0, %s198
      %s200 = sphi 0, %s198
      %s201 = sphi 0, %s200
      %s215 = sphi 0, %s201
      %s219 = sphi 0, %s219
      %s221 = sphi 0, %s219
      %s222 = sphi 0, %s221
      %s236 = sphi 0, %s222
      %s240 = sphi 0, %s240
      %s242 = sphi 0, %s240
      %s243 = sphi 0, %s242
      %s257 = sphi 0, %s243
      %s261 = sphi 0, %s261
      %s263 = sphi 0, %s261
      %s264 = sphi 0, %s263
      %s278 = sphi 0, %s264
      %s282 = sphi 0, %s282
      %s284 = sphi 0, %s282
      %s285 = sphi 0, %s284
      %s299 = sphi 0, %s285
      %s303 = sphi 0, %s303
      %s305 = sphi 0, %s303
      %s306 = sphi 0, %s305
      %s320 = sphi 0, %s306
      %s324 = sphi 0, %s324
      %s326 = sphi 0, %s324
      %s327 = sphi 0, %s326
      %s341 = sphi 0, %s327
      %s345 = sphi 0, %s345
      %s347 = sphi 0, %s345
      %s348 = sphi 0, %s347
      %s362 = sphi 0, %s348
      %s366 = sphi 0, %s366
      %s368 = sphi 0, %s366
      %s369 = sphi 0, %s368
      %s383 = sphi 0, %s369
      %s387 = sphi 0, %s387
      %s389 = sphi 0, %s387
      %s390 = sphi 0, %s389
      %s404 = sphi 0, %s390
      %s408 = sphi 0, %s408
      %s410 = sphi 0, %s408
      %s411 = sphi 0, %s410
      %s425 = sphi 0, %s411
      %s429 = sphi 0, %s429
      %s431 = sphi 0, %s429
      %s432 = sphi 0, %s431
      %s446 = sphi 0, %s432
      %s452 = sphi 0, %s454
      %s455 = sphi 0, %s452
      %s456 = sphi 0, %s455
      %s472 = sphi 0, %s456
      %s478 = sphi 0, %s480
      %s481 = sphi 0, %s478
      %s482 = sphi 0, %s481
      %s498 = sphi 0, %s482
    $region4: #{independent_mlp_forward.1} parent=1 // loop_header_branch
      %41 = sbr.rel (%p39) target = $region8
    $region5: #{independent_mlp_forward.1} parent=1 // loop_body
      %s43 = ssub.s32 %s38, 1
      %s44 = ssub.s32 %s38, 2
      %s45 = sadd.s32 %s38, 1
      %s46 = ssub.s32 %s38, %s45
      %p47 = scmp.eq.s32.totalorder %s46, 0
      %s49 = sadd.s32 %s48, 1
      %s50 = scalar_select %p47, %s48, %s49
      %p53 = pneg %p47
      %p54 = scmp.eq.s32.totalorder %s38, 1
      %p55 = por %p53, %p54
      %p56 = scmp.ne.s32.totalorder %s48, %s51
      %p57 = scmp.eq.s32.totalorder %s38, 0
      %p58 = por %p56, %p57
      %p59 = scmp.ne.s32.totalorder %s48, %s51
      %p60 = scmp.eq.s32.totalorder %s43, 1
      %p61 = por %p59, %p60
      %p62 = scmp.ne.s32.totalorder %s51, %s52
      %p63 = scmp.eq.s32.totalorder %s43, 0
      %p64 = por %p62, %p63
      %p65 = scmp.ne.s32.totalorder %s51, %s52
      %p66 = scmp.eq.s32.totalorder %s44, 1
      %p67 = por %p65, %p66
      %p69 = scmp.ne.s32.totalorder %s52, %s68
      %p70 = scmp.eq.s32.totalorder %s44, 0
      %p71 = por %p69, %p70
      %s73 = sadd.s32 %s72, 1
      %p76 = scmp.eq.s32.totalorder %s38, 1
      %p77 = scmp.ne.s32.totalorder %s72, %s74
      %p78 = scmp.eq.s32.totalorder %s38, 0
      %p79 = por %p77, %p78
      %p80 = scmp.ne.s32.totalorder %s72, %s74
      %p81 = scmp.eq.s32.totalorder %s43, 1
      %p82 = por %p80, %p81
      %p83 = scmp.ne.s32.totalorder %s74, %s75
      %p84 = scmp.eq.s32.totalorder %s43, 0
      %p85 = por %p83, %p84
      %p86 = scmp.ne.s32.totalorder %s74, %s75
      %p87 = scmp.eq.s32.totalorder %s44, 1
      %p88 = por %p86, %p87
      %p90 = scmp.ne.s32.totalorder %s75, %s89
      %p91 = scmp.eq.s32.totalorder %s44, 0
      %p92 = por %p90, %p91
      %s94 = sadd.s32 %s93, 1
      %p97 = scmp.eq.s32.totalorder %s38, 1
      %p98 = scmp.ne.s32.totalorder %s93, %s95
      %p99 = scmp.eq.s32.totalorder %s38, 0
      %p100 = por %p98, %p99
      %p101 = scmp.ne.s32.totalorder %s93, %s95
      %p102 = scmp.eq.s32.totalorder %s43, 1
      %p103 = por %p101, %p102
      %p104 = scmp.ne.s32.totalorder %s95, %s96
      %p105 = scmp.eq.s32.totalorder %s43, 0
      %p106 = por %p104, %p105
      %p107 = scmp.ne.s32.totalorder %s95, %s96
      %p108 = scmp.eq.s32.totalorder %s44, 1
      %p109 = por %p107, %p108
      %p111 = scmp.ne.s32.totalorder %s96, %s110
      %p112 = scmp.eq.s32.totalorder %s44, 0
      %p113 = por %p111, %p112
      %s115 = sadd.s32 %s114, 1
      %p118 = scmp.eq.s32.totalorder %s38, 1
      %p119 = scmp.ne.s32.totalorder %s114, %s116
      %p120 = scmp.eq.s32.totalorder %s38, 0
      %p121 = por %p119, %p120
      %p122 = scmp.ne.s32.totalorder %s114, %s116
      %p123 = scmp.eq.s32.totalorder %s43, 1
      %p124 = por %p122, %p123
      %p125 = scmp.ne.s32.totalorder %s116, %s117
      %p126 = scmp.eq.s32.totalorder %s43, 0
      %p127 = por %p125, %p126
      %p128 = scmp.ne.s32.totalorder %s116, %s117
      %p129 = scmp.eq.s32.totalorder %s44, 1
      %p130 = por %p128, %p129
      %p132 = scmp.ne.s32.totalorder %s117, %s131
      %p133 = scmp.eq.s32.totalorder %s44, 0
      %p134 = por %p132, %p133
      %s136 = sadd.s32 %s135, 1
      %p139 = scmp.eq.s32.totalorder %s38, 1
      %p140 = scmp.ne.s32.totalorder %s135, %s137
      %p141 = scmp.eq.s32.totalorder %s38, 0
      %p142 = por %p140, %p141
      %p143 = scmp.ne.s32.totalorder %s135, %s137
      %p144 = scmp.eq.s32.totalorder %s43, 1
      %p145 = por %p143, %p144
      %p146 = scmp.ne.s32.totalorder %s137, %s138
      %p147 = scmp.eq.s32.totalorder %s43, 0
      %p148 = por %p146, %p147
      %p149 = scmp.ne.s32.totalorder %s137, %s138
      %p150 = scmp.eq.s32.totalorder %s44, 1
      %p151 = por %p149, %p150
      %p153 = scmp.ne.s32.totalorder %s138, %s152
      %p154 = scmp.eq.s32.totalorder %s44, 0
      %p155 = por %p153, %p154
      %s157 = sadd.s32 %s156, 1
      %p160 = scmp.eq.s32.totalorder %s38, 1
      %p161 = scmp.ne.s32.totalorder %s156, %s158
      %p162 = scmp.eq.s32.totalorder %s38, 0
      %p163 = por %p161, %p162
      %p164 = scmp.ne.s32.totalorder %s156, %s158
      %p165 = scmp.eq.s32.totalorder %s43, 1
      %p166 = por %p164, %p165
      %p167 = scmp.ne.s32.totalorder %s158, %s159
      %p168 = scmp.eq.s32.totalorder %s43, 0
      %p169 = por %p167, %p168
      %p170 = scmp.ne.s32.totalorder %s158, %s159
      %p171 = scmp.eq.s32.totalorder %s44, 1
      %p172 = por %p170, %p171
      %p174 = scmp.ne.s32.totalorder %s159, %s173
      %p175 = scmp.eq.s32.totalorder %s44, 0
      %p176 = por %p174, %p175
      %s178 = sadd.s32 %s177, 1
      %p181 = scmp.eq.s32.totalorder %s38, 1
      %p182 = scmp.ne.s32.totalorder %s177, %s179
      %p183 = scmp.eq.s32.totalorder %s38, 0
      %p184 = por %p182, %p183
      %p185 = scmp.ne.s32.totalorder %s177, %s179
      %p186 = scmp.eq.s32.totalorder %s43, 1
      %p187 = por %p185, %p186
      %p188 = scmp.ne.s32.totalorder %s179, %s180
      %p189 = scmp.eq.s32.totalorder %s43, 0
      %p190 = por %p188, %p189
      %p191 = scmp.ne.s32.totalorder %s179, %s180
      %p192 = scmp.eq.s32.totalorder %s44, 1
      %p193 = por %p191, %p192
      %p195 = scmp.ne.s32.totalorder %s180, %s194
      %p196 = scmp.eq.s32.totalorder %s44, 0
      %p197 = por %p195, %p196
      %s199 = sadd.s32 %s198, 1
      %p202 = scmp.eq.s32.totalorder %s38, 1
      %p203 = scmp.ne.s32.totalorder %s198, %s200
      %p204 = scmp.eq.s32.totalorder %s38, 0
      %p205 = por %p203, %p204
      %p206 = scmp.ne.s32.totalorder %s198, %s200
      %p207 = scmp.eq.s32.totalorder %s43, 1
      %p208 = por %p206, %p207
      %p209 = scmp.ne.s32.totalorder %s200, %s201
      %p210 = scmp.eq.s32.totalorder %s43, 0
      %p211 = por %p209, %p210
      %p212 = scmp.ne.s32.totalorder %s200, %s201
      %p213 = scmp.eq.s32.totalorder %s44, 1
      %p214 = por %p212, %p213
      %p216 = scmp.ne.s32.totalorder %s201, %s215
      %p217 = scmp.eq.s32.totalorder %s44, 0
      %p218 = por %p216, %p217
      %s220 = sadd.s32 %s219, 1
      %p223 = scmp.eq.s32.totalorder %s38, 1
      %p224 = scmp.ne.s32.totalorder %s219, %s221
      %p225 = scmp.eq.s32.totalorder %s38, 0
      %p226 = por %p224, %p225
      %p227 = scmp.ne.s32.totalorder %s219, %s221
      %p228 = scmp.eq.s32.totalorder %s43, 1
      %p229 = por %p227, %p228
      %p230 = scmp.ne.s32.totalorder %s221, %s222
      %p231 = scmp.eq.s32.totalorder %s43, 0
      %p232 = por %p230, %p231
      %p233 = scmp.ne.s32.totalorder %s221, %s222
      %p234 = scmp.eq.s32.totalorder %s44, 1
      %p235 = por %p233, %p234
      %p237 = scmp.ne.s32.totalorder %s222, %s236
      %p238 = scmp.eq.s32.totalorder %s44, 0
      %p239 = por %p237, %p238
      %s241 = sadd.s32 %s240, 1
      %p244 = scmp.eq.s32.totalorder %s38, 1
      %p245 = scmp.ne.s32.totalorder %s240, %s242
      %p246 = scmp.eq.s32.totalorder %s38, 0
      %p247 = por %p245, %p246
      %p248 = scmp.ne.s32.totalorder %s240, %s242
      %p249 = scmp.eq.s32.totalorder %s43, 1
      %p250 = por %p248, %p249
      %p251 = scmp.ne.s32.totalorder %s242, %s243
      %p252 = scmp.eq.s32.totalorder %s43, 0
      %p253 = por %p251, %p252
      %p254 = scmp.ne.s32.totalorder %s242, %s243
      %p255 = scmp.eq.s32.totalorder %s44, 1
      %p256 = por %p254, %p255
      %p258 = scmp.ne.s32.totalorder %s243, %s257
      %p259 = scmp.eq.s32.totalorder %s44, 0
      %p260 = por %p258, %p259
      %s262 = sadd.s32 %s261, 1
      %p265 = scmp.eq.s32.totalorder %s38, 1
      %p266 = scmp.ne.s32.totalorder %s261, %s263
      %p267 = scmp.eq.s32.totalorder %s38, 0
      %p268 = por %p266, %p267
      %p269 = scmp.ne.s32.totalorder %s261, %s263
      %p270 = scmp.eq.s32.totalorder %s43, 1
      %p271 = por %p269, %p270
      %p272 = scmp.ne.s32.totalorder %s263, %s264
      %p273 = scmp.eq.s32.totalorder %s43, 0
      %p274 = por %p272, %p273
      %p275 = scmp.ne.s32.totalorder %s263, %s264
      %p276 = scmp.eq.s32.totalorder %s44, 1
      %p277 = por %p275, %p276
      %p279 = scmp.ne.s32.totalorder %s264, %s278
      %p280 = scmp.eq.s32.totalorder %s44, 0
      %p281 = por %p279, %p280
      %s283 = sadd.s32 %s282, 1
      %p286 = scmp.eq.s32.totalorder %s38, 1
      %p287 = scmp.ne.s32.totalorder %s282, %s284
      %p288 = scmp.eq.s32.totalorder %s38, 0
      %p289 = por %p287, %p288
      %p290 = scmp.ne.s32.totalorder %s282, %s284
      %p291 = scmp.eq.s32.totalorder %s43, 1
      %p292 = por %p290, %p291
      %p293 = scmp.ne.s32.totalorder %s284, %s285
      %p294 = scmp.eq.s32.totalorder %s43, 0
      %p295 = por %p293, %p294
      %p296 = scmp.ne.s32.totalorder %s284, %s285
      %p297 = scmp.eq.s32.totalorder %s44, 1
      %p298 = por %p296, %p297
      %p300 = scmp.ne.s32.totalorder %s285, %s299
      %p301 = scmp.eq.s32.totalorder %s44, 0
      %p302 = por %p300, %p301
      %s304 = sadd.s32 %s303, 1
      %p307 = scmp.eq.s32.totalorder %s38, 1
      %p308 = scmp.ne.s32.totalorder %s303, %s305
      %p309 = scmp.eq.s32.totalorder %s38, 0
      %p310 = por %p308, %p309
      %p311 = scmp.ne.s32.totalorder %s303, %s305
      %p312 = scmp.eq.s32.totalorder %s43, 1
      %p313 = por %p311, %p312
      %p314 = scmp.ne.s32.totalorder %s305, %s306
      %p315 = scmp.eq.s32.totalorder %s43, 0
      %p316 = por %p314, %p315
      %p317 = scmp.ne.s32.totalorder %s305, %s306
      %p318 = scmp.eq.s32.totalorder %s44, 1
      %p319 = por %p317, %p318
      %p321 = scmp.ne.s32.totalorder %s306, %s320
      %p322 = scmp.eq.s32.totalorder %s44, 0
      %p323 = por %p321, %p322
      %s325 = sadd.s32 %s324, 1
      %p328 = scmp.eq.s32.totalorder %s38, 1
      %p329 = scmp.ne.s32.totalorder %s324, %s326
      %p330 = scmp.eq.s32.totalorder %s38, 0
      %p331 = por %p329, %p330
      %p332 = scmp.ne.s32.totalorder %s324, %s326
      %p333 = scmp.eq.s32.totalorder %s43, 1
      %p334 = por %p332, %p333
      %p335 = scmp.ne.s32.totalorder %s326, %s327
      %p336 = scmp.eq.s32.totalorder %s43, 0
      %p337 = por %p335, %p336
      %p338 = scmp.ne.s32.totalorder %s326, %s327
      %p339 = scmp.eq.s32.totalorder %s44, 1
      %p340 = por %p338, %p339
      %p342 = scmp.ne.s32.totalorder %s327, %s341
      %p343 = scmp.eq.s32.totalorder %s44, 0
      %p344 = por %p342, %p343
      %s346 = sadd.s32 %s345, 1
      %p349 = scmp.eq.s32.totalorder %s38, 1
      %p350 = scmp.ne.s32.totalorder %s345, %s347
      %p351 = scmp.eq.s32.totalorder %s38, 0
      %p352 = por %p350, %p351
      %p353 = scmp.ne.s32.totalorder %s345, %s347
      %p354 = scmp.eq.s32.totalorder %s43, 1
      %p355 = por %p353, %p354
      %p356 = scmp.ne.s32.totalorder %s347, %s348
      %p357 = scmp.eq.s32.totalorder %s43, 0
      %p358 = por %p356, %p357
      %p359 = scmp.ne.s32.totalorder %s347, %s348
      %p360 = scmp.eq.s32.totalorder %s44, 1
      %p361 = por %p359, %p360
      %p363 = scmp.ne.s32.totalorder %s348, %s362
      %p364 = scmp.eq.s32.totalorder %s44, 0
      %p365 = por %p363, %p364
      %s367 = sadd.s32 %s366, 1
      %p370 = scmp.eq.s32.totalorder %s38, 1
      %p371 = scmp.ne.s32.totalorder %s366, %s368
      %p372 = scmp.eq.s32.totalorder %s38, 0
      %p373 = por %p371, %p372
      %p374 = scmp.ne.s32.totalorder %s366, %s368
      %p375 = scmp.eq.s32.totalorder %s43, 1
      %p376 = por %p374, %p375
      %p377 = scmp.ne.s32.totalorder %s368, %s369
      %p378 = scmp.eq.s32.totalorder %s43, 0
      %p379 = por %p377, %p378
      %p380 = scmp.ne.s32.totalorder %s368, %s369
      %p381 = scmp.eq.s32.totalorder %s44, 1
      %p382 = por %p380, %p381
      %p384 = scmp.ne.s32.totalorder %s369, %s383
      %p385 = scmp.eq.s32.totalorder %s44, 0
      %p386 = por %p384, %p385
      %s388 = sadd.s32 %s387, 1
      %p391 = scmp.eq.s32.totalorder %s38, 1
      %p392 = scmp.ne.s32.totalorder %s387, %s389
      %p393 = scmp.eq.s32.totalorder %s38, 0
      %p394 = por %p392, %p393
      %p395 = scmp.ne.s32.totalorder %s387, %s389
      %p396 = scmp.eq.s32.totalorder %s43, 1
      %p397 = por %p395, %p396
      %p398 = scmp.ne.s32.totalorder %s389, %s390
      %p399 = scmp.eq.s32.totalorder %s43, 0
      %p400 = por %p398, %p399
      %p401 = scmp.ne.s32.totalorder %s389, %s390
      %p402 = scmp.eq.s32.totalorder %s44, 1
      %p403 = por %p401, %p402
      %p405 = scmp.ne.s32.totalorder %s390, %s404
      %p406 = scmp.eq.s32.totalorder %s44, 0
      %p407 = por %p405, %p406
      %s409 = sadd.s32 %s408, 1
      %p412 = scmp.eq.s32.totalorder %s38, 1
      %p413 = scmp.ne.s32.totalorder %s408, %s410
      %p414 = scmp.eq.s32.totalorder %s38, 0
      %p415 = por %p413, %p414
      %p416 = scmp.ne.s32.totalorder %s408, %s410
      %p417 = scmp.eq.s32.totalorder %s43, 1
      %p418 = por %p416, %p417
      %p419 = scmp.ne.s32.totalorder %s410, %s411
      %p420 = scmp.eq.s32.totalorder %s43, 0
      %p421 = por %p419, %p420
      %p422 = scmp.ne.s32.totalorder %s410, %s411
      %p423 = scmp.eq.s32.totalorder %s44, 1
      %p424 = por %p422, %p423
      %p426 = scmp.ne.s32.totalorder %s411, %s425
      %p427 = scmp.eq.s32.totalorder %s44, 0
      %p428 = por %p426, %p427
      %s430 = sadd.s32 %s429, 1
      %p433 = scmp.eq.s32.totalorder %s38, 1
      %p434 = scmp.ne.s32.totalorder %s429, %s431
      %p435 = scmp.eq.s32.totalorder %s38, 0
      %p436 = por %p434, %p435
      %p437 = scmp.ne.s32.totalorder %s429, %s431
      %p438 = scmp.eq.s32.totalorder %s43, 1
      %p439 = por %p437, %p438
      %p440 = scmp.ne.s32.totalorder %s431, %s432
      %p441 = scmp.eq.s32.totalorder %s43, 0
      %p442 = por %p440, %p441
      %p443 = scmp.ne.s32.totalorder %s431, %s432
      %p444 = scmp.eq.s32.totalorder %s44, 1
      %p445 = por %p443, %p444
      %p447 = scmp.ne.s32.totalorder %s432, %s446
      %p448 = scmp.eq.s32.totalorder %s44, 0
      %p449 = por %p447, %p448
      %s450 = ssub.s32 %s38, %s45
      %p451 = scmp.eq.s32.totalorder %s450, 0
      %s453 = sadd.s32 %s452, 1
      %s454 = scalar_select %p451, %s452, %s453
      %p457 = pneg %p451
      %p458 = scmp.eq.s32.totalorder %s38, 1
      %p459 = por %p457, %p458
      %p460 = scmp.ne.s32.totalorder %s452, %s455
      %p461 = scmp.eq.s32.totalorder %s38, 0
      %p462 = por %p460, %p461
      %p463 = scmp.ne.s32.totalorder %s452, %s455
      %p464 = scmp.eq.s32.totalorder %s43, 1
      %p465 = por %p463, %p464
      %p466 = scmp.ne.s32.totalorder %s455, %s456
      %p467 = scmp.eq.s32.totalorder %s43, 0
      %p468 = por %p466, %p467
      %p469 = scmp.ne.s32.totalorder %s455, %s456
      %p470 = scmp.eq.s32.totalorder %s44, 1
      %p471 = por %p469, %p470
      %p473 = scmp.ne.s32.totalorder %s456, %s472
      %p474 = scmp.eq.s32.totalorder %s44, 0
      %p475 = por %p473, %p474
      %s476 = ssub.s32 %s38, %s45
      %p477 = scmp.eq.s32.totalorder %s476, 0
      %s479 = sadd.s32 %s478, 1
      %s480 = scalar_select %p477, %s478, %s479
      %p483 = pneg %p477
      %p484 = scmp.eq.s32.totalorder %s38, 1
      %p485 = por %p483, %p484
      %p486 = scmp.ne.s32.totalorder %s478, %s481
      %p487 = scmp.eq.s32.totalorder %s38, 0
      %p488 = por %p486, %p487
      %p489 = scmp.ne.s32.totalorder %s478, %s481
      %p490 = scmp.eq.s32.totalorder %s43, 1
      %p491 = por %p489, %p490
      %p492 = scmp.ne.s32.totalorder %s481, %s482
      %p493 = scmp.eq.s32.totalorder %s43, 0
      %p494 = por %p492, %p493
      %p495 = scmp.ne.s32.totalorder %s481, %s482
      %p496 = scmp.eq.s32.totalorder %s44, 1
      %p497 = por %p495, %p496
      %p499 = scmp.ne.s32.totalorder %s482, %s498
      %p500 = scmp.eq.s32.totalorder %s44, 0
      %p501 = por %p499, %p500
      %p502 = scmp.le.s32.totalorder 1, %s38
      %p503 = scmp.lt.s32.totalorder %s38, 3
      %p504 = pnand %p502, %p503
      %p505 = pneg %p504
      // Predicated region
      $region9: #{independent_mlp_forward.1} parent=5 // pred_check
        _
      $region10: #{independent_mlp_forward.1} parent=5 // pred_check_branch
        %507 = sbr.rel (%p504) target = $region12
      $region11: #{independent_mlp_forward.1} parent=5 // pred_region
        %s508 = ssub.s32 %s38, 1
        // Predicated region
        $region13: #{independent_mlp_forward.1} parent=11 // pred_check
          %p509 = pneg %p85
        $region14: #{independent_mlp_forward.1} parent=11 // pred_check_branch
          %511 = sbr.rel (%p509) target = $region16
        $region15: #{independent_mlp_forward.1} parent=11 // pred_region
          _
        $region16: #{independent_mlp_forward.1} parent=11 // pred_fallthru
          _
        // Predicated region
        $region17: #{independent_mlp_forward.1} parent=11 // pred_check
          %p512 = pneg %p106
        $region18: #{independent_mlp_forward.1} parent=11 // pred_check_branch
          %514 = sbr.rel (%p512) target = $region20
        $region19: #{independent_mlp_forward.1} parent=11 // pred_region
          _
        $region20: #{independent_mlp_forward.1} parent=11 // pred_fallthru
          _
        // Predicated region
        $region21: #{independent_mlp_forward.1} parent=11 // pred_check
          %p515 = pneg %p127
        $region22: #{independent_mlp_forward.1} parent=11 // pred_check_branch
          %517 = sbr.rel (%p515) target = $region24
        $region23: #{independent_mlp_forward.1} parent=11 // pred_region
          _
        $region24: #{independent_mlp_forward.1} parent=11 // pred_fallthru
          _
        // Predicated region
        $region25: #{independent_mlp_forward.1} parent=11 // pred_check
          %p518 = pneg %p148
        $region26: #{independent_mlp_forward.1} parent=11 // pred_check_branch
          %520 = sbr.rel (%p518) target = $region28
        $region27: #{independent_mlp_forward.1} parent=11 // pred_region
          _
        $region28: #{independent_mlp_forward.1} parent=11 // pred_fallthru
          _
        // Predicated region
        $region29: #{independent_mlp_forward.1} parent=11 // pred_check
          %p521 = pneg %p169
        $region30: #{independent_mlp_forward.1} parent=11 // pred_check_branch
          %523 = sbr.rel (%p521) target = $region32
        $region31: #{independent_mlp_forward.1} parent=11 // pred_region
          _
        $region32: #{independent_mlp_forward.1} parent=11 // pred_fallthru
          _
        // Predicated region
        $region33: #{independent_mlp_forward.1} parent=11 // pred_check
          %p524 = pneg %p190
        $region34: #{independent_mlp_forward.1} parent=11 // pred_check_branch
          %526 = sbr.rel (%p524) target = $region36
        $region35: #{independent_mlp_forward.1} parent=11 // pred_region
          %s528 = ssub.s32 16, 16
          %529 = vsyncadd [#allocation3], %s528
          %s531 = sshll.u32 [#allocation2], 4
          %s532 = int_to_ptr.vmem [resolvable:$true] %s531
          %534 = dma.hbm_to_vmem [thread:$0]  %s6, 16, %s532, [#allocation3]
        $region36: #{independent_mlp_forward.1} parent=11 // pred_fallthru
          _
        // Predicated region
        $region37: #{independent_mlp_forward.1} parent=11 // pred_check
          %p535 = pneg %p211
        $region38: #{independent_mlp_forward.1} parent=11 // pred_check_branch
          %537 = sbr.rel (%p535) target = $region40
        $region39: #{independent_mlp_forward.1} parent=11 // pred_region
          _
        $region40: #{independent_mlp_forward.1} parent=11 // pred_fallthru
          _
        // Predicated region
        $region41: #{independent_mlp_forward.1} parent=11 // pred_check
          %p538 = pneg %p232
        $region42: #{independent_mlp_forward.1} parent=11 // pred_check_branch
          %540 = sbr.rel (%p538) target = $region44
        $region43: #{independent_mlp_forward.1} parent=11 // pred_region
          %s542 = ssub.s32 4608, 4608
          %543 = vsyncadd [#allocation6], %s542
          %s544 = sshll.u32 [#allocation5], 4
          %s545 = int_to_ptr.vmem [resolvable:$true] %s544
          %550 = dma.hbm_to_vmem [thread:$0]  %s8, 4608, %s545, [#allocation6], 128, 128, 8
        $region44: #{independent_mlp_forward.1} parent=11 // pred_fallthru
          _
        // Predicated region
        $region45: #{independent_mlp_forward.1} parent=11 // pred_check
          %p551 = pneg %p253
        $region46: #{independent_mlp_forward.1} parent=11 // pred_check_branch
          %553 = sbr.rel (%p551) target = $region48
        $region47: #{independent_mlp_forward.1} parent=11 // pred_region
          %s555 = ssub.s32 16, 16
          %556 = vsyncadd [#allocation6], %s555
          %s558 = sshll.u32 [#allocation7], 4
          %s559 = int_to_ptr.vmem [resolvable:$true] %s558
          %561 = dma.hbm_to_vmem [thread:$0]  %s9, 16, %s559, [#allocation6]
        $region48: #{independent_mlp_forward.1} parent=11 // pred_fallthru
          _
        // Predicated region
        $region49: #{independent_mlp_forward.1} parent=11 // pred_check
          %p562 = pneg %p274
        $region50: #{independent_mlp_forward.1} parent=11 // pred_check_branch
          %564 = sbr.rel (%p562) target = $region52
        $region51: #{independent_mlp_forward.1} parent=11 // pred_region
          _
        $region52: #{independent_mlp_forward.1} parent=11 // pred_fallthru
          _
        // Predicated region
        $region53: #{independent_mlp_forward.1} parent=11 // pred_check
          %p565 = pneg %p295
        $region54: #{independent_mlp_forward.1} parent=11 // pred_check_branch
          %567 = sbr.rel (%p565) target = $region56
        $region55: #{independent_mlp_forward.1} parent=11 // pred_region
          %s569 = ssub.s32 9216, 9216
          %570 = vsyncadd [#allocation9], %s569
          %s571 = sshll.u32 [#allocation8], 4
          %s572 = int_to_ptr.vmem [resolvable:$true] %s571
          %577 = dma.hbm_to_vmem [thread:$0]  %s11, 9216, %s572, [#allocation9], 128, 128, 8
        $region56: #{independent_mlp_forward.1} parent=11 // pred_fallthru
          _
        // Predicated region
        $region57: #{independent_mlp_forward.1} parent=11 // pred_check
          %p578 = pneg %p316
        $region58: #{independent_mlp_forward.1} parent=11 // pred_check_branch
          %580 = sbr.rel (%p578) target = $region60
        $region59: #{independent_mlp_forward.1} parent=11 // pred_region
          %s582 = ssub.s32 16, 16
          %583 = vsyncadd [#allocation9], %s582
          %s585 = sshll.u32 [#allocation10], 4
          %s586 = int_to_ptr.vmem [resolvable:$true] %s585
          %588 = dma.hbm_to_vmem [thread:$0]  %s12, 16, %s586, [#allocation9]
        $region60: #{independent_mlp_forward.1} parent=11 // pred_fallthru
          _
        // Predicated region
        $region61: #{independent_mlp_forward.1} parent=11 // pred_check
          %p589 = pneg %p337
        $region62: #{independent_mlp_forward.1} parent=11 // pred_check_branch
          %591 = sbr.rel (%p589) target = $region64
        $region63: #{independent_mlp_forward.1} parent=11 // pred_region
          _
        $region64: #{independent_mlp_forward.1} parent=11 // pred_fallthru
          _
        // Predicated region
        $region65: #{independent_mlp_forward.1} parent=11 // pred_check
          %p592 = pneg %p358
        $region66: #{independent_mlp_forward.1} parent=11 // pred_check_branch
          %594 = sbr.rel (%p592) target = $region68
        $region67: #{independent_mlp_forward.1} parent=11 // pred_region
          %s596 = ssub.s32 16, 16
          %597 = vsyncadd [#allocation12], %s596
          %s599 = sshll.u32 [#allocation11], 4
          %s600 = int_to_ptr.vmem [resolvable:$true] %s599
          %602 = dma.hbm_to_vmem [thread:$0]  %s14, 16, %s600, [#allocation12]
        $region68: #{independent_mlp_forward.1} parent=11 // pred_fallthru
          _
        // Predicated region
        $region69: #{independent_mlp_forward.1} parent=11 // pred_check
          %p603 = pneg %p379
        $region70: #{independent_mlp_forward.1} parent=11 // pred_check_branch
          %605 = sbr.rel (%p603) target = $region72
        $region71: #{independent_mlp_forward.1} parent=11 // pred_region
          _
        $region72: #{independent_mlp_forward.1} parent=11 // pred_fallthru
          _
        // Predicated region
        $region73: #{independent_mlp_forward.1} parent=11 // pred_check
          %p606 = pneg %p400
        $region74: #{independent_mlp_forward.1} parent=11 // pred_check_branch
          %608 = sbr.rel (%p606) target = $region76
        $region75: #{independent_mlp_forward.1} parent=11 // pred_region
          %s610 = ssub.s32 16, 16
          %611 = vsyncadd [#allocation12], %s610
          %s613 = sshll.u32 [#allocation13], 4
          %s614 = int_to_ptr.vmem [resolvable:$true] %s613
          %616 = dma.hbm_to_vmem [thread:$0]  %s16, 16, %s614, [#allocation12]
        $region76: #{independent_mlp_forward.1} parent=11 // pred_fallthru
          _
        // Predicated region
        $region77: #{independent_mlp_forward.1} parent=11 // pred_check
          %p617 = pneg %p421
        $region78: #{independent_mlp_forward.1} parent=11 // pred_check_branch
          %619 = sbr.rel (%p617) target = $region80
        $region79: #{independent_mlp_forward.1} parent=11 // pred_region
          _
        $region80: #{independent_mlp_forward.1} parent=11 // pred_fallthru
          _
        // Predicated region
        $region81: #{independent_mlp_forward.1} parent=11 // pred_check
          %p620 = pneg %p442
        $region82: #{independent_mlp_forward.1} parent=11 // pred_check_branch
          %622 = sbr.rel (%p620) target = $region84
        $region83: #{independent_mlp_forward.1} parent=11 // pred_region
          %s624 = ssub.s32 16, 16
          %625 = vsyncadd [#allocation15], %s624
          %s627 = sshll.u32 [#allocation14], 4
          %s628 = int_to_ptr.vmem [resolvable:$true] %s627
          %630 = dma.hbm_to_vmem [thread:$0]  %s18, 16, %s628, [#allocation15]
        $region84: #{independent_mlp_forward.1} parent=11 // pred_fallthru
          _
      $region12: #{independent_mlp_forward.1} parent=5 // pred_fallthru
        _
      %p631 = scmp.lt.s32.totalorder %s38, 2
      // Predicated region
      $region85: #{independent_mlp_forward.1} parent=5 // pred_check
        %p632 = pneg %p631
      $region86: #{independent_mlp_forward.1} parent=5 // pred_check_branch
        %634 = sbr.rel (%p632) target = $region88
      $region87: #{independent_mlp_forward.1} parent=5 // pred_region
        // Predicated region
        $region89: #{independent_mlp_forward.1} parent=87 // pred_check
          %p635 = pneg %p58
        $region90: #{independent_mlp_forward.1} parent=87 // pred_check_branch
          %637 = sbr.rel (%p635) target = $region92
        $region91: #{independent_mlp_forward.1} parent=87 // pred_region
          %p638 = scmp.lt.s32.totalorder %s38, 1
          %s639 = scalar_select %p638, %s38, 1
          %s640 = smul.addr %s639, 32
          %s641 = smul.addr %s640, 8
          %s642 = scalar_lea.vmem %s0, %s641
        $region92: #{independent_mlp_forward.1} parent=87 // pred_fallthru
          _
      $region88: #{independent_mlp_forward.1} parent=5 // pred_fallthru
        _
      %p643 = scmp.le.s32.totalorder 1, %s38
      %p644 = scmp.lt.s32.totalorder %s38, 3
      %p645 = pnand %p643, %p644
      %p646 = pneg %p645
      // Predicated region
      $region93: #{independent_mlp_forward.1} parent=5 // pred_check
        _
      $region94: #{independent_mlp_forward.1} parent=5 // pred_check_branch
        %648 = sbr.rel (%p645) target = $region96
      $region95: #{independent_mlp_forward.1} parent=5 // pred_region
        %s649 = ssub.s32 %s38, 1
        // Predicated region
        $region97: #{independent_mlp_forward.1} parent=95 // pred_check
          %p650 = pneg %p190
        $region98: #{independent_mlp_forward.1} parent=95 // pred_check_branch
          %652 = sbr.rel (%p650) target = $region100
        $region99: #{independent_mlp_forward.1} parent=95 // pred_region
          %653 = dma.done [#allocation3], 16
        $region100: #{independent_mlp_forward.1} parent=95 // pred_fallthru
          _
        // Predicated region
        $region101: #{independent_mlp_forward.1} parent=95 // pred_check
          %p654 = pneg %p232
        $region102: #{independent_mlp_forward.1} parent=95 // pred_check_branch
          %656 = sbr.rel (%p654) target = $region104
        $region103: #{independent_mlp_forward.1} parent=95 // pred_region
          %657 = dma.done [#allocation6], 4608
        $region104: #{independent_mlp_forward.1} parent=95 // pred_fallthru
          _
        // Predicated region
        $region105: #{independent_mlp_forward.1} parent=95 // pred_check
          %p658 = pneg %p253
        $region106: #{independent_mlp_forward.1} parent=95 // pred_check_branch
          %660 = sbr.rel (%p658) target = $region108
        $region107: #{independent_mlp_forward.1} parent=95 // pred_region
          %661 = dma.done [#allocation6], 16
        $region108: #{independent_mlp_forward.1} parent=95 // pred_fallthru
          _
        // Predicated region
        $region109: #{independent_mlp_forward.1} parent=95 // pred_check
          %p662 = pneg %p295
        $region110: #{independent_mlp_forward.1} parent=95 // pred_check_branch
          %664 = sbr.rel (%p662) target = $region112
        $region111: #{independent_mlp_forward.1} parent=95 // pred_region
          %665 = dma.done [#allocation9], 9216
        $region112: #{independent_mlp_forward.1} parent=95 // pred_fallthru
          _
        // Predicated region
        $region113: #{independent_mlp_forward.1} parent=95 // pred_check
          %p666 = pneg %p316
        $region114: #{independent_mlp_forward.1} parent=95 // pred_check_branch
          %668 = sbr.rel (%p666) target = $region116
        $region115: #{independent_mlp_forward.1} parent=95 // pred_region
          %669 = dma.done [#allocation9], 16
        $region116: #{independent_mlp_forward.1} parent=95 // pred_fallthru
          _
        // Predicated region
        $region117: #{independent_mlp_forward.1} parent=95 // pred_check
          %p670 = pneg %p358
        $region118: #{independent_mlp_forward.1} parent=95 // pred_check_branch
          %672 = sbr.rel (%p670) target = $region120
        $region119: #{independent_mlp_forward.1} parent=95 // pred_region
          %673 = dma.done [#allocation12], 16
        $region120: #{independent_mlp_forward.1} parent=95 // pred_fallthru
          _
        // Predicated region
        $region121: #{independent_mlp_forward.1} parent=95 // pred_check
          %p674 = pneg %p400
        $region122: #{independent_mlp_forward.1} parent=95 // pred_check_branch
          %676 = sbr.rel (%p674) target = $region124
        $region123: #{independent_mlp_forward.1} parent=95 // pred_region
          %677 = dma.done [#allocation12], 16
        $region124: #{independent_mlp_forward.1} parent=95 // pred_fallthru
          _
        // Predicated region
        $region125: #{independent_mlp_forward.1} parent=95 // pred_check
          %p678 = pneg %p442
        $region126: #{independent_mlp_forward.1} parent=95 // pred_check_branch
          %680 = sbr.rel (%p678) target = $region128
        $region127: #{independent_mlp_forward.1} parent=95 // pred_region
          %681 = dma.done [#allocation15], 16
        $region128: #{independent_mlp_forward.1} parent=95 // pred_fallthru
          _
        %p682 = scmp.lt.s32.totalorder %s43, 1
        %s683 = scalar_select %p682, %s43, 1
        %s684 = smul.addr %s683, 32
        %s685 = smul.addr %s684, 8
        %s686 = scalar_lea.vmem %s0, %s685
        %p687 = pneg %p64
        %p688 = pneg %p61
        %p689 = pneg %p85
        %p690 = pneg %p82
        %p691 = pneg %p106
        %p692 = pneg %p103
        %p693 = pneg %p127
        %p694 = pneg %p124
        %p695 = pneg %p148
        %p696 = pneg %p145
        %p697 = pneg %p169
        %p698 = pneg %p166
        %p699 = pneg %p190
        %p700 = pneg %p187
        %p701 = pneg %p211
        %p702 = pneg %p208
        %p703 = pneg %p232
        %p704 = pneg %p229
        %p705 = pneg %p253
        %p706 = pneg %p250
        %p707 = pneg %p274
        %p708 = pneg %p271
        %p709 = pneg %p295
        %p710 = pneg %p292
        %p711 = pneg %p316
        %p712 = pneg %p313
        %p713 = pneg %p337
        %p714 = pneg %p334
        %p715 = pneg %p358
        %p716 = pneg %p355
        %p717 = pneg %p379
        %p718 = pneg %p376
        %p719 = pneg %p400
        %p720 = pneg %p397
        %p721 = pneg %p421
        %p722 = pneg %p418
        %p723 = pneg %p442
        %p724 = pneg %p439
        %p725 = pneg %p468
        %p726 = pneg %p465
        %s727 = sand.u32 %s455, 1
        %s728 = scalar_lea.sflag [#allocation4], %s727
        %s729 = sand.u32 %s455, 1
        %s730 = scalar_lea.vmem [#allocation16], %s729
        %p731 = pneg %p494
        %p732 = pneg %p491
        %s733 = sand.u32 %s481, 1
        %s734 = scalar_lea.sflag [#allocation18], %s733
        %s735 = sand.u32 %s481, 1
        %s736 = scalar_lea.vmem [#allocation17], %s735
        %p737 = scmp.lt.s32.totalorder %s43, 1
        %s738 = scalar_select %p737, %s43, 1
        %s739 = smul.addr %s738, 32
        %s740 = smul.addr %s739, 8
        %s741 = scalar_lea.vmem %s0, %s740
        %v742 = vld [vmem:[%s741] sm:$0xff]
        %v743 = vld [vmem:[%s741 + $0x8] sm:$0xff]
        %v744 = vld [vmem:[%s741 + $0x10] sm:$0xff]
        %v745 = vld [vmem:[%s741 + $0x18] sm:$0xff]
        %v746 = vld [vmem:[%s741 + $0x20] sm:$0xff]
        %v747 = vld [vmem:[%s741 + $0x28] sm:$0xff]
        %v748 = vld [vmem:[%s741 + $0x30] sm:$0xff]
        %v749 = vld [vmem:[%s741 + $0x38] sm:$0xff]
        %v750 = vld [vmem:[%s741 + $0x40] sm:$0xff]
        %v751 = vld [vmem:[%s741 + $0x48] sm:$0xff]
        %v752 = vld [vmem:[%s741 + $0x50] sm:$0xff]
        %v753 = vld [vmem:[%s741 + $0x58] sm:$0xff]
        %v754 = vld [vmem:[%s741 + $0x60] sm:$0xff]
        %v755 = vld [vmem:[%s741 + $0x68] sm:$0xff]
        %v756 = vld [vmem:[%s741 + $0x70] sm:$0xff]
        %v757 = vld [vmem:[%s741 + $0x78] sm:$0xff]
        %v758 = vld [vmem:[%s741 + $0x80] sm:$0xff]
        %v759 = vld [vmem:[%s741 + $0x88] sm:$0xff]
        %v760 = vld [vmem:[%s741 + $0x90] sm:$0xff]
        %v761 = vld [vmem:[%s741 + $0x98] sm:$0xff]
        %v762 = vld [vmem:[%s741 + $0xa0] sm:$0xff]
        %v763 = vld [vmem:[%s741 + $0xa8] sm:$0xff]
        %v764 = vld [vmem:[%s741 + $0xb0] sm:$0xff]
        %v765 = vld [vmem:[%s741 + $0xb8] sm:$0xff]
        %v766 = vld [vmem:[%s741 + $0xc0] sm:$0xff]
        %v767 = vld [vmem:[%s741 + $0xc8] sm:$0xff]
        %v768 = vld [vmem:[%s741 + $0xd0] sm:$0xff]
        %v769 = vld [vmem:[%s741 + $0xd8] sm:$0xff]
        %v770 = vld [vmem:[%s741 + $0xe0] sm:$0xff]
        %v771 = vld [vmem:[%s741 + $0xe8] sm:$0xff]
        %v772 = vld [vmem:[%s741 + $0xf0] sm:$0xff]
        %v773 = vld [vmem:[%s741 + $0xf8] sm:$0xff]
        %v774 = vld [vmem:[%s1] sm:$0xff]
        %v775 = vld [vmem:[%s1 + $0x8] sm:$0xff]
        %v776 = vld [vmem:[%s1 + $0x10] sm:$0xff]
        %v777 = vld [vmem:[%s1 + $0x18] sm:$0xff]
        %v778 = vld [vmem:[%s1 + $0x20] sm:$0xff]
        %v779 = vld [vmem:[%s1 + $0x28] sm:$0xff]
        %v780 = vld [vmem:[%s1 + $0x30] sm:$0xff]
        %v781 = vld [vmem:[%s1 + $0x38] sm:$0xff]
        %v782 = vunpack.c.l.bf16 %v774
        %v783 = vunpack.c.h.bf16 %v774
        %v784 = vunpack.c.l.bf16 %v775
        %v785 = vunpack.c.h.bf16 %v775
        %v786 = vunpack.c.l.bf16 %v776
        %v787 = vunpack.c.h.bf16 %v776
        %v788 = vunpack.c.l.bf16 %v777
        %v789 = vunpack.c.h.bf16 %v777
        %v790 = vunpack.c.l.bf16 %v778
        %v791 = vunpack.c.h.bf16 %v778
        %v792 = vunpack.c.l.bf16 %v779
        %v793 = vunpack.c.h.bf16 %v779
        %v794 = vunpack.c.l.bf16 %v780
        %v795 = vunpack.c.h.bf16 %v780
        %v796 = vunpack.c.l.bf16 %v781
        %v797 = vunpack.c.h.bf16 %v781
        %798 = vmatprep.subr.mxu0 0.0
        %799 = vmatpush1.msra.mxu0 %v742
        %800 = vmatprep.subr.mxu0 0.0
        %801 = vmatpush1.msra.mxu0 %v743
        %802 = vmatprep.subr.mxu0 0.0
        %803 = vmatpush1.msra.mxu0 %v744
        %804 = vmatprep.subr.mxu0 0.0
        %805 = vmatpush1.msra.mxu0 %v745
        %806 = vmatprep.subr.mxu0 0.0
        %807 = vmatpush1.msra.mxu0 %v746
        %808 = vmatprep.subr.mxu0 0.0
        %809 = vmatpush1.msra.mxu0 %v747
        %810 = vmatprep.subr.mxu0 0.0
        %811 = vmatpush1.msra.mxu0 %v748
        %812 = vmatprep.subr.mxu0 0.0
        %813 = vmatpush1.msra.mxu0 %v749
        %814 = vmatprep.subr.mxu0 0.0
        %815 = vmatpush1.msra.mxu0 %v750
        %816 = vmatprep.subr.mxu0 0.0
        %817 = vmatpush1.msra.mxu0 %v751
        %818 = vmatprep.subr.mxu0 0.0
        %819 = vmatpush1.msra.mxu0 %v752
        %820 = vmatprep.subr.mxu0 0.0
        %821 = vmatpush1.msra.mxu0 %v753
        %822 = vmatprep.subr.mxu0 0.0
        %823 = vmatpush1.msra.mxu0 %v754
        %824 = vmatprep.subr.mxu0 0.0
        %825 = vmatpush1.msra.mxu0 %v755
        %826 = vmatprep.subr.mxu0 0.0
        %827 = vmatpush1.msra.mxu0 %v756
        %828 = vmatprep.subr.mxu0 0.0
        %829 = vmatpush1.msra.mxu0 %v757
        %830 = vmatprep.subr.mxu0 0.0
        %831 = vmatpush1.msra.mxu0 %v758
        %832 = vmatprep.subr.mxu0 0.0
        %833 = vmatpush1.msra.mxu0 %v759
        %834 = vmatprep.subr.mxu0 0.0
        %835 = vmatpush1.msra.mxu0 %v760
        %836 = vmatprep.subr.mxu0 0.0
        %837 = vmatpush1.msra.mxu0 %v761
        %838 = vmatprep.subr.mxu0 0.0
        %839 = vmatpush1.msra.mxu0 %v762
        %840 = vmatprep.subr.mxu0 0.0
        %841 = vmatpush1.msra.mxu0 %v763
        %842 = vmatprep.subr.mxu0 0.0
        %843 = vmatpush1.msra.mxu0 %v764
        %844 = vmatprep.subr.mxu0 0.0
        %845 = vmatpush1.msra.mxu0 %v765
        %846 = vmatprep.subr.mxu0 0.0
        %847 = vmatpush1.msra.mxu0 %v766
        %848 = vmatprep.subr.mxu0 0.0
        %849 = vmatpush1.msra.mxu0 %v767
        %850 = vmatprep.subr.mxu0 0.0
        %851 = vmatpush1.msra.mxu0 %v768
        %852 = vmatprep.subr.mxu0 0.0
        %853 = vmatpush1.msra.mxu0 %v769
        %854 = vmatprep.subr.mxu0 0.0
        %855 = vmatpush1.msra.mxu0 %v770
        %856 = vmatprep.subr.mxu0 0.0
        %857 = vmatpush1.msra.mxu0 %v771
        %858 = vmatprep.subr.mxu0 0.0
        %859 = vmatpush1.msra.mxu0 %v772
        %860 = vmatprep.subr.mxu0 0.0
        %861 = vmatpush1.msra.mxu0 %v773
        %862 = vmatprep.mubr.f32.mxu0 %v783
        %863 = vmatmul.mubr.f32.gmra.mrb[0].mxu0 %v782
        %v864 = vpop.f32.mrb[0].mxu0
        %v865 = vadd.f32 0.0, %v864
        %v866 = vpop.f32.mrb[0].mxu0
        %867 = vmatprep.mubr.f32.mxu0 %v785
        %868 = vmatmul.mubr.f32.gmra.mrb[0].mxu0 %v784
        %v869 = vpop.f32.mrb[0].mxu0
        %v870 = vadd.f32 0.0, %v869
        %v871 = vpop.f32.mrb[0].mxu0
        %872 = vmatprep.mubr.f32.mxu0 %v787
        %873 = vmatmul.mubr.f32.gmra.mrb[0].mxu0 %v786
        %v874 = vpop.f32.mrb[0].mxu0
        %v875 = vadd.f32 0.0, %v874
        %v876 = vpop.f32.mrb[0].mxu0
        %877 = vmatprep.mubr.f32.mxu0 %v789
        %878 = vmatmul.mubr.f32.gmra.mrb[0].mxu0 %v788
        %v879 = vpop.f32.mrb[0].mxu0
        %v880 = vadd.f32 0.0, %v879
        %v881 = vpop.f32.mrb[0].mxu0
        %882 = vmatprep.mubr.f32.mxu0 %v791
        %883 = vmatmul.mubr.f32.gmra.mrb[0].mxu0 %v790
        %v884 = vpop.f32.mrb[0].mxu0
        %v885 = vadd.f32 0.0, %v884
        %v886 = vpop.f32.mrb[0].mxu0
        %887 = vmatprep.mubr.f32.mxu0 %v793
        %888 = vmatmul.mubr.f32.gmra.mrb[0].mxu0 %v792
        %v889 = vpop.f32.mrb[0].mxu0
        %v890 = vadd.f32 0.0, %v889
        %v891 = vpop.f32.mrb[0].mxu0
        %892 = vmatprep.mubr.f32.mxu0 %v795
        %893 = vmatmul.mubr.f32.gmra.mrb[0].mxu0 %v794
        %v894 = vpop.f32.mrb[0].mxu0
        %v895 = vadd.f32 0.0, %v894
        %v896 = vpop.f32.mrb[0].mxu0
        %897 = vmatprep.mubr.f32.mxu0 %v797
        %898 = vmatmul.mubr.f32.gmra.mrb[0].mxu0 %v796
        %v899 = vpop.f32.mrb[0].mxu0
        %v900 = vadd.f32 0.0, %v899
        %v901 = vpop.f32.mrb[0].mxu0
        %902 = vdwg.mxu0
        %v903 = vld [vmem:[%s2] sm:$0xf]
        %s904 = scalar_lea.vmem %s1, 64
        %v905 = vld [vmem:[%s904] sm:$0xff]
        %v906 = vld [vmem:[%s904 + $0x8] sm:$0xff]
        %v907 = vld [vmem:[%s904 + $0x10] sm:$0xff]
        %v908 = vld [vmem:[%s904 + $0x18] sm:$0xff]
        %v909 = vld [vmem:[%s904 + $0x20] sm:$0xff]
        %v910 = vld [vmem:[%s904 + $0x28] sm:$0xff]
        %v911 = vld [vmem:[%s904 + $0x30] sm:$0xff]
        %v912 = vld [vmem:[%s904 + $0x38] sm:$0xff]
        %v913 = vunpack.c.l.bf16 %v905
        %v914 = vunpack.c.h.bf16 %v905
        %v915 = vunpack.c.l.bf16 %v906
        %v916 = vunpack.c.h.bf16 %v906
        %v917 = vunpack.c.l.bf16 %v907
        %v918 = vunpack.c.h.bf16 %v907
        %v919 = vunpack.c.l.bf16 %v908
        %v920 = vunpack.c.h.bf16 %v908
        %v921 = vunpack.c.l.bf16 %v909
        %v922 = vunpack.c.h.bf16 %v909
        %v923 = vunpack.c.l.bf16 %v910
        %v924 = vunpack.c.h.bf16 %v910
        %v925 = vunpack.c.l.bf16 %v911
        %v926 = vunpack.c.h.bf16 %v911
        %v927 = vunpack.c.l.bf16 %v912
        %v928 = vunpack.c.h.bf16 %v912
        %929 = vmatprep.subr.mxu0 0.0
        %930 = vmatpush1.msra.mxu0 %v742
        %931 = vmatprep.subr.mxu0 0.0
        %932 = vmatpush1.msra.mxu0 %v743
        %933 = vmatprep.subr.mxu0 0.0
        %934 = vmatpush1.msra.mxu0 %v744
        %935 = vmatprep.subr.mxu0 0.0
        %936 = vmatpush1.msra.mxu0 %v745
        %937 = vmatprep.subr.mxu0 0.0
        %938 = vmatpush1.msra.mxu0 %v746
        %939 = vmatprep.subr.mxu0 0.0
        %940 = vmatpush1.msra.mxu0 %v747
        %941 = vmatprep.subr.mxu0 0.0
        %942 = vmatpush1.msra.mxu0 %v748
        %943 = vmatprep.subr.mxu0 0.0
        %944 = vmatpush1.msra.mxu0 %v749
        %945 = vmatprep.subr.mxu0 0.0
        %946 = vmatpush1.msra.mxu0 %v750
        %947 = vmatprep.subr.mxu0 0.0
        %948 = vmatpush1.msra.mxu0 %v751
        %949 = vmatprep.subr.mxu0 0.0
        %950 = vmatpush1.msra.mxu0 %v752
        %951 = vmatprep.subr.mxu0 0.0
        %952 = vmatpush1.msra.mxu0 %v753
        %953 = vmatprep.subr.mxu0 0.0
        %954 = vmatpush1.msra.mxu0 %v754
        %955 = vmatprep.subr.mxu0 0.0
        %956 = vmatpush1.msra.mxu0 %v755
        %957 = vmatprep.subr.mxu0 0.0
        %958 = vmatpush1.msra.mxu0 %v756
        %959 = vmatprep.subr.mxu0 0.0
        %960 = vmatpush1.msra.mxu0 %v757
        %961 = vmatprep.subr.mxu0 0.0
        %962 = vmatpush1.msra.mxu0 %v758
        %963 = vmatprep.subr.mxu0 0.0
        %964 = vmatpush1.msra.mxu0 %v759
        %965 = vmatprep.subr.mxu0 0.0
        %966 = vmatpush1.msra.mxu0 %v760
        %967 = vmatprep.subr.mxu0 0.0
        %968 = vmatpush1.msra.mxu0 %v761
        %969 = vmatprep.subr.mxu0 0.0
        %970 = vmatpush1.msra.mxu0 %v762
        %971 = vmatprep.subr.mxu0 0.0
        %972 = vmatpush1.msra.mxu0 %v763
        %973 = vmatprep.subr.mxu0 0.0
        %974 = vmatpush1.msra.mxu0 %v764
        %975 = vmatprep.subr.mxu0 0.0
        %976 = vmatpush1.msra.mxu0 %v765
        %977 = vmatprep.subr.mxu0 0.0
        %978 = vmatpush1.msra.mxu0 %v766
        %979 = vmatprep.subr.mxu0 0.0
        %980 = vmatpush1.msra.mxu0 %v767
        %981 = vmatprep.subr.mxu0 0.0
        %982 = vmatpush1.msra.mxu0 %v768
        %983 = vmatprep.subr.mxu0 0.0
        %984 = vmatpush1.msra.mxu0 %v769
        %985 = vmatprep.subr.mxu0 0.0
        %986 = vmatpush1.msra.mxu0 %v770
        %987 = vmatprep.subr.mxu0 0.0
        %988 = vmatpush1.msra.mxu0 %v771
        %989 = vmatprep.subr.mxu0 0.0
        %990 = vmatpush1.msra.mxu0 %v772
        %991 = vmatprep.subr.mxu0 0.0
        %992 = vmatpush1.msra.mxu0 %v773
        %993 = vmatprep.mubr.f32.mxu0 %v914
        %994 = vmatmul.mubr.f32.gmra.mrb[0].mxu0 %v913
        %v995 = vpop.f32.mrb[0].mxu0
        %v996 = vadd.f32 0.0, %v995
        %v997 = vpop.f32.mrb[0].mxu0
        %998 = vmatprep.mubr.f32.mxu0 %v916
        %999 = vmatmul.mubr.f32.gmra.mrb[0].mxu0 %v915
        %v1000 = vpop.f32.mrb[0].mxu0
        %v1001 = vadd.f32 0.0, %v1000
        %v1002 = vpop.f32.mrb[0].mxu0
        %1003 = vmatprep.mubr.f32.mxu0 %v918
        %1004 = vmatmul.mubr.f32.gmra.mrb[0].mxu0 %v917
        %v1005 = vpop.f32.mrb[0].mxu0
        %v1006 = vadd.f32 0.0, %v1005
        %v1007 = vpop.f32.mrb[0].mxu0
        %1008 = vmatprep.mubr.f32.mxu0 %v920
        %1009 = vmatmul.mubr.f32.gmra.mrb[0].mxu0 %v919
        %v1010 = vpop.f32.mrb[0].mxu0
        %v1011 = vadd.f32 0.0, %v1010
        %v1012 = vpop.f32.mrb[0].mxu0
        %1013 = vmatprep.mubr.f32.mxu0 %v922
        %1014 = vmatmul.mubr.f32.gmra.mrb[0].mxu0 %v921
        %v1015 = vpop.f32.mrb[0].mxu0
        %v1016 = vadd.f32 0.0, %v1015
        %v1017 = vpop.f32.mrb[0].mxu0
        %1018 = vmatprep.mubr.f32.mxu0 %v924
        %1019 = vmatmul.mubr.f32.gmra.mrb[0].mxu0 %v923
        %v1020 = vpop.f32.mrb[0].mxu0
        %v1021 = vadd.f32 0.0, %v1020
        %v1022 = vpop.f32.mrb[0].mxu0
        %1023 = vmatprep.mubr.f32.mxu0 %v926
        %1024 = vmatmul.mubr.f32.gmra.mrb[0].mxu0 %v925
        %v1025 = vpop.f32.mrb[0].mxu0
        %v1026 = vadd.f32 0.0, %v1025
        %v1027 = vpop.f32.mrb[0].mxu0
        %1028 = vmatprep.mubr.f32.mxu0 %v928
        %1029 = vmatmul.mubr.f32.gmra.mrb[0].mxu0 %v927
        %v1030 = vpop.f32.mrb[0].mxu0
        %v1031 = vadd.f32 0.0, %v1030
        %v1032 = vpop.f32.mrb[0].mxu0
        %1033 = vdwg.mxu0
        %s1034 = scalar_lea.vmem %s2, 4
        %v1035 = vld [vmem:[%s1034] sm:$0xf]
        %vm1036 = vcmask 31744
        %v1038 = vsel %vm1036, %v996, 0
        %v1041 = vsel %vm1036, %v1001, 0
        %v1044 = vsel %vm1036, %v1006, 0
        %v1047 = vsel %vm1036, %v1011, 0
        %v1050 = vsel %vm1036, %v1016, 0
        %v1053 = vsel %vm1036, %v1021, 0
        %v1056 = vsel %vm1036, %v1026, 0
        %v1059 = vsel %vm1036, %v1031, 0
        %vm1061 = vcmask 1043456
        %v1063 = vsel %vm1061, %v1035, 0
        %1065 = vmatprep.subr.mxu0 0.0
        %1066 = vmatpush1.msra.mxu0 %v1063
        %1067 = vmatprep.subr.mxu0 0.0
        %1068 = vmatpush1.msra.mxu0 0.0
        %1069 = vmatprep.subr.mxu0 0.0
        %1070 = vmatpush1.msra.mxu0 0.0
        %1071 = vmatprep.subr.mxu0 0.0
        %1072 = vmatpush1.msra.mxu0 0.0
        %1073 = vmatprep.subr.mxu0 0.0
        %1074 = vmatpush1.msra.mxu0 0.0
        %1075 = vmatprep.subr.mxu0 0.0
        %1076 = vmatpush1.msra.mxu0 0.0
        %1077 = vmatprep.subr.mxu0 0.0
        %1078 = vmatpush1.msra.mxu0 0.0
        %1079 = vmatprep.subr.mxu0 0.0
        %1080 = vmatpush1.msra.mxu0 0.0
        %1081 = vmatprep.subr.mxu0 0.0
        %1082 = vmatpush1.msra.mxu0 0.0
        %1083 = vmatprep.subr.mxu0 0.0
        %1084 = vmatpush1.msra.mxu0 0.0
        %1085 = vmatprep.subr.mxu0 0.0
        %1086 = vmatpush1.msra.mxu0 0.0
        %1087 = vmatprep.subr.mxu0 0.0
        %1088 = vmatpush1.msra.mxu0 0.0
        %1089 = vmatprep.subr.mxu0 0.0
        %1090 = vmatpush1.msra.mxu0 0.0
        %1091 = vmatprep.subr.mxu0 0.0
        %1092 = vmatpush1.msra.mxu0 0.0
        %1093 = vmatprep.subr.mxu0 0.0
        %1094 = vmatpush1.msra.mxu0 0.0
        %1095 = vmatprep.subr.mxu0 0.0
        %1096 = vmatpush1.msra.mxu0 0.0
        %1097 = vmatprep.subr.mxu0 0.0
        %1098 = vmatpush1.msra.mxu0 0.0
        %1099 = vmatprep.subr.mxu0 0.0
        %1100 = vmatpush1.msra.mxu0 0.0
        %1101 = vmatprep.subr.mxu0 0.0
        %1102 = vmatpush1.msra.mxu0 0.0
        %1103 = vmatprep.subr.mxu0 0.0
        %1104 = vmatpush1.msra.mxu0 0.0
        %1105 = vmatprep.subr.mxu0 0.0
        %1106 = vmatpush1.msra.mxu0 0.0
        %1107 = vmatprep.subr.mxu0 0.0
        %1108 = vmatpush1.msra.mxu0 0.0
        %1109 = vmatprep.subr.mxu0 0.0
        %1110 = vmatpush1.msra.mxu0 0.0
        %1111 = vmatprep.subr.mxu0 0.0
        %1112 = vmatpush1.msra.mxu0 0.0
        %1113 = vmatprep.subr.mxu0 0.0
        %1114 = vmatpush1.msra.mxu0 0.0
        %1115 = vmatprep.subr.mxu0 0.0
        %1116 = vmatpush1.msra.mxu0 0.0
        %1117 = vmatprep.subr.mxu0 0.0
        %1118 = vmatpush1.msra.mxu0 0.0
        %1119 = vmatprep.subr.mxu0 0.0
        %1120 = vmatpush1.msra.mxu0 0.0
        %1121 = vmatprep.subr.mxu0 0.0
        %1122 = vmatpush1.msra.mxu0 0.0
        %1123 = vmatprep.subr.mxu0 0.0
        %1124 = vmatpush1.msra.mxu0 0.0
        %1125 = vmatprep.subr.mxu0 0.0
        %1126 = vmatpush1.msra.mxu0 0.0
        %1127 = vmatprep.subr.mxu0 0.0
        %1128 = vmatpush1.msra.mxu0 0.0
        %1129 = vmatprep.mubr.f32.mxu0 0.0
        %1130 = vmatmul.mubr.f32.gmra.mrb[0].mxu0 %v1038
        %v1131 = vpop.f32.mrb[0].mxu0
        %v1132 = vadd.f32 0.0, %v1131
        %v1133 = vpop.f32.mrb[0].mxu0
        %1134 = vmatprep.mubr.f32.mxu0 0.0
        %1135 = vmatmul.mubr.f32.gmra.mrb[0].mxu0 %v1041
        %v1136 = vpop.f32.mrb[0].mxu0
        %v1137 = vadd.f32 0.0, %v1136
        %v1138 = vpop.f32.mrb[0].mxu0
        %1139 = vmatprep.mubr.f32.mxu0 0.0
        %1140 = vmatmul.mubr.f32.gmra.mrb[0].mxu0 %v1044
        %v1141 = vpop.f32.mrb[0].mxu0
        %v1142 = vadd.f32 0.0, %v1141
        %v1143 = vpop.f32.mrb[0].mxu0
        %1144 = vmatprep.mubr.f32.mxu0 0.0
        %1145 = vmatmul.mubr.f32.gmra.mrb[0].mxu0 %v1047
        %v1146 = vpop.f32.mrb[0].mxu0
        %v1147 = vadd.f32 0.0, %v1146
        %v1148 = vpop.f32.mrb[0].mxu0
        %1149 = vmatprep.mubr.f32.mxu0 0.0
        %1150 = vmatmul.mubr.f32.gmra.mrb[0].mxu0 %v1050
        %v1151 = vpop.f32.mrb[0].mxu0
        %v1152 = vadd.f32 0.0, %v1151
        %v1153 = vpop.f32.mrb[0].mxu0
        %1154 = vmatprep.mubr.f32.mxu0 0.0
        %1155 = vmatmul.mubr.f32.gmra.mrb[0].mxu0 %v1053
        %v1156 = vpop.f32.mrb[0].mxu0
        %v1157 = vadd.f32 0.0, %v1156
        %v1158 = vpop.f32.mrb[0].mxu0
        %1159 = vmatprep.mubr.f32.mxu0 0.0
        %1160 = vmatmul.mubr.f32.gmra.mrb[0].mxu0 %v1056
        %v1161 = vpop.f32.mrb[0].mxu0
        %v1162 = vadd.f32 0.0, %v1161
        %v1163 = vpop.f32.mrb[0].mxu0
        %1164 = vmatprep.mubr.f32.mxu0 0.0
        %1165 = vmatmul.mubr.f32.gmra.mrb[0].mxu0 %v1059
        %v1166 = vpop.f32.mrb[0].mxu0
        %v1167 = vadd.f32 0.0, %v1166
        %v1168 = vpop.f32.mrb[0].mxu0
        %1169 = vdwg.mxu0
        %v1171 = vsel %vm1036, %v865, 0
        %v1174 = vsel %vm1036, %v870, 0
        %v1177 = vsel %vm1036, %v875, 0
        %v1180 = vsel %vm1036, %v880, 0
        %v1183 = vsel %vm1036, %v885, 0
        %v1186 = vsel %vm1036, %v890, 0
        %v1189 = vsel %vm1036, %v895, 0
        %v1192 = vsel %vm1036, %v900, 0
        %v1195 = vsel %vm1061, %v903, 0
        %1197 = vmatprep.subr.mxu0 0.0
        %1198 = vmatpush1.msra.mxu0 %v1195
        %1199 = vmatprep.subr.mxu0 0.0
        %1200 = vmatpush1.msra.mxu0 0.0
        %1201 = vmatprep.subr.mxu0 0.0
        %1202 = vmatpush1.msra.mxu0 0.0
        %1203 = vmatprep.subr.mxu0 0.0
        %1204 = vmatpush1.msra.mxu0 0.0
        %1205 = vmatprep.subr.mxu0 0.0
        %1206 = vmatpush1.msra.mxu0 0.0
        %1207 = vmatprep.subr.mxu0 0.0
        %1208 = vmatpush1.msra.mxu0 0.0
        %1209 = vmatprep.subr.mxu0 0.0
        %1210 = vmatpush1.msra.mxu0 0.0
        %1211 = vmatprep.subr.mxu0 0.0
        %1212 = vmatpush1.msra.mxu0 0.0
        %1213 = vmatprep.subr.mxu0 0.0
        %1214 = vmatpush1.msra.mxu0 0.0
        %1215 = vmatprep.subr.mxu0 0.0
        %1216 = vmatpush1.msra.mxu0 0.0
        %1217 = vmatprep.subr.mxu0 0.0
        %1218 = vmatpush1.msra.mxu0 0.0
        %1219 = vmatprep.subr.mxu0 0.0
        %1220 = vmatpush1.msra.mxu0 0.0
        %1221 = vmatprep.subr.mxu0 0.0
        %1222 = vmatpush1.msra.mxu0 0.0
        %1223 = vmatprep.subr.mxu0 0.0
        %1224 = vmatpush1.msra.mxu0 0.0
        %1225 = vmatprep.subr.mxu0 0.0
        %1226 = vmatpush1.msra.mxu0 0.0
        %1227 = vmatprep.subr.mxu0 0.0
        %1228 = vmatpush1.msra.mxu0 0.0
        %1229 = vmatprep.subr.mxu0 0.0
        %1230 = vmatpush1.msra.mxu0 0.0
        %1231 = vmatprep.subr.mxu0 0.0
        %1232 = vmatpush1.msra.mxu0 0.0
        %1233 = vmatprep.subr.mxu0 0.0
        %1234 = vmatpush1.msra.mxu0 0.0
        %1235 = vmatprep.subr.mxu0 0.0
        %1236 = vmatpush1.msra.mxu0 0.0
        %1237 = vmatprep.subr.mxu0 0.0
        %1238 = vmatpush1.msra.mxu0 0.0
        %1239 = vmatprep.subr.mxu0 0.0
        %1240 = vmatpush1.msra.mxu0 0.0
        %1241 = vmatprep.subr.mxu0 0.0
        %1242 = vmatpush1.msra.mxu0 0.0
        %1243 = vmatprep.subr.mxu0 0.0
        %1244 = vmatpush1.msra.mxu0 0.0
        %1245 = vmatprep.subr.mxu0 0.0
        %1246 = vmatpush1.msra.mxu0 0.0
        %1247 = vmatprep.subr.mxu0 0.0
        %1248 = vmatpush1.msra.mxu0 0.0
        %1249 = vmatprep.subr.mxu0 0.0
        %1250 = vmatpush1.msra.mxu0 0.0
        %1251 = vmatprep.subr.mxu0 0.0
        %1252 = vmatpush1.msra.mxu0 0.0
        %1253 = vmatprep.subr.mxu0 0.0
        %1254 = vmatpush1.msra.mxu0 0.0
        %1255 = vmatprep.subr.mxu0 0.0
        %1256 = vmatpush1.msra.mxu0 0.0
        %1257 = vmatprep.subr.mxu0 0.0
        %1258 = vmatpush1.msra.mxu0 0.0
        %1259 = vmatprep.subr.mxu0 0.0
        %1260 = vmatpush1.msra.mxu0 0.0
        %1261 = vmatprep.mubr.f32.mxu0 0.0
        %1262 = vmatmul.mubr.f32.gmra.mrb[0].mxu0 %v1171
        %v1263 = vpop.f32.mrb[0].mxu0
        %v1264 = vadd.f32 %v1132, %v1263
        %v1265 = vpop.f32.mrb[0].mxu0
        %1266 = vmatprep.mubr.f32.mxu0 0.0
        %1267 = vmatmul.mubr.f32.gmra.mrb[0].mxu0 %v1174
        %v1268 = vpop.f32.mrb[0].mxu0
        %v1269 = vadd.f32 %v1137, %v1268
        %v1270 = vpop.f32.mrb[0].mxu0
        %1271 = vmatprep.mubr.f32.mxu0 0.0
        %1272 = vmatmul.mubr.f32.gmra.mrb[0].mxu0 %v1177
        %v1273 = vpop.f32.mrb[0].mxu0
        %v1274 = vadd.f32 %v1142, %v1273
        %v1275 = vpop.f32.mrb[0].mxu0
        %1276 = vmatprep.mubr.f32.mxu0 0.0
        %1277 = vmatmul.mubr.f32.gmra.mrb[0].mxu0 %v1180
        %v1278 = vpop.f32.mrb[0].mxu0
        %v1279 = vadd.f32 %v1147, %v1278
        %v1280 = vpop.f32.mrb[0].mxu0
        %1281 = vmatprep.mubr.f32.mxu0 0.0
        %1282 = vmatmul.mubr.f32.gmra.mrb[0].mxu0 %v1183
        %v1283 = vpop.f32.mrb[0].mxu0
        %v1284 = vadd.f32 %v1152, %v1283
        %v1285 = vpop.f32.mrb[0].mxu0
        %1286 = vmatprep.mubr.f32.mxu0 0.0
        %1287 = vmatmul.mubr.f32.gmra.mrb[0].mxu0 %v1186
        %v1288 = vpop.f32.mrb[0].mxu0
        %v1289 = vadd.f32 %v1157, %v1288
        %v1290 = vpop.f32.mrb[0].mxu0
        %1291 = vmatprep.mubr.f32.mxu0 0.0
        %1292 = vmatmul.mubr.f32.gmra.mrb[0].mxu0 %v1189
        %v1293 = vpop.f32.mrb[0].mxu0
        %v1294 = vadd.f32 %v1162, %v1293
        %v1295 = vpop.f32.mrb[0].mxu0
        %1296 = vmatprep.mubr.f32.mxu0 0.0
        %1297 = vmatmul.mubr.f32.gmra.mrb[0].mxu0 %v1192
        %v1298 = vpop.f32.mrb[0].mxu0
        %v1299 = vadd.f32 %v1167, %v1298
        %v1300 = vpop.f32.mrb[0].mxu0
        %1301 = vdwg.mxu0
        %s1302 = scalar_lea.vmem %s1, 128
        %v1303 = vld [vmem:[%s1302] sm:$0xff]
        %v1304 = vld [vmem:[%s1302 + $0x8] sm:$0xff]
        %v1305 = vld [vmem:[%s1302 + $0x10] sm:$0xff]
        %v1306 = vld [vmem:[%s1302 + $0x18] sm:$0xff]
        %v1307 = vld [vmem:[%s1302 + $0x20] sm:$0xff]
        %v1308 = vld [vmem:[%s1302 + $0x28] sm:$0xff]
        %v1309 = vld [vmem:[%s1302 + $0x30] sm:$0xff]
        %v1310 = vld [vmem:[%s1302 + $0x38] sm:$0xff]
        %v1311 = vunpack.c.l.bf16 %v1303
        %v1312 = vunpack.c.h.bf16 %v1303
        %v1313 = vunpack.c.l.bf16 %v1304
        %v1314 = vunpack.c.h.bf16 %v1304
        %v1315 = vunpack.c.l.bf16 %v1305
        %v1316 = vunpack.c.h.bf16 %v1305
        %v1317 = vunpack.c.l.bf16 %v1306
        %v1318 = vunpack.c.h.bf16 %v1306
        %v1319 = vunpack.c.l.bf16 %v1307
        %v1320 = vunpack.c.h.bf16 %v1307
        %v1321 = vunpack.c.l.bf16 %v1308
        %v1322 = vunpack.c.h.bf16 %v1308
        %v1323 = vunpack.c.l.bf16 %v1309
        %v1324 = vunpack.c.h.bf16 %v1309
        %v1325 = vunpack.c.l.bf16 %v1310
        %v1326 = vunpack.c.h.bf16 %v1310
        %1327 = vmatprep.subr.mxu0 0.0
        %1328 = vmatpush1.msra.mxu0 %v742
        %1329 = vmatprep.subr.mxu0 0.0
        %1330 = vmatpush1.msra.mxu0 %v743
        %1331 = vmatprep.subr.mxu0 0.0
        %1332 = vmatpush1.msra.mxu0 %v744
        %1333 = vmatprep.subr.mxu0 0.0
        %1334 = vmatpush1.msra.mxu0 %v745
        %1335 = vmatprep.subr.mxu0 0.0
        %1336 = vmatpush1.msra.mxu0 %v746
        %1337 = vmatprep.subr.mxu0 0.0
        %1338 = vmatpush1.msra.mxu0 %v747
        %1339 = vmatprep.subr.mxu0 0.0
        %1340 = vmatpush1.msra.mxu0 %v748
        %1341 = vmatprep.subr.mxu0 0.0
        %1342 = vmatpush1.msra.mxu0 %v749
        %1343 = vmatprep.subr.mxu0 0.0
        %1344 = vmatpush1.msra.mxu0 %v750
        %1345 = vmatprep.subr.mxu0 0.0
        %1346 = vmatpush1.msra.mxu0 %v751
        %1347 = vmatprep.subr.mxu0 0.0
        %1348 = vmatpush1.msra.mxu0 %v752
        %1349 = vmatprep.subr.mxu0 0.0
        %1350 = vmatpush1.msra.mxu0 %v753
        %1351 = vmatprep.subr.mxu0 0.0
        %1352 = vmatpush1.msra.mxu0 %v754
        %1353 = vmatprep.subr.mxu0 0.0
        %1354 = vmatpush1.msra.mxu0 %v755
        %1355 = vmatprep.subr.mxu0 0.0
        %1356 = vmatpush1.msra.mxu0 %v756
        %1357 = vmatprep.subr.mxu0 0.0
        %1358 = vmatpush1.msra.mxu0 %v757
        %1359 = vmatprep.subr.mxu0 0.0
        %1360 = vmatpush1.msra.mxu0 %v758
        %1361 = vmatprep.subr.mxu0 0.0
        %1362 = vmatpush1.msra.mxu0 %v759
        %1363 = vmatprep.subr.mxu0 0.0
        %1364 = vmatpush1.msra.mxu0 %v760
        %1365 = vmatprep.subr.mxu0 0.0
        %1366 = vmatpush1.msra.mxu0 %v761
        %1367 = vmatprep.subr.mxu0 0.0
        %1368 = vmatpush1.msra.mxu0 %v762
        %1369 = vmatprep.subr.mxu0 0.0
        %1370 = vmatpush1.msra.mxu0 %v763
        %1371 = vmatprep.subr.mxu0 0.0
        %1372 = vmatpush1.msra.mxu0 %v764
        %1373 = vmatprep.subr.mxu0 0.0
        %1374 = vmatpush1.msra.mxu0 %v765
        %1375 = vmatprep.subr.mxu0 0.0
        %1376 = vmatpush1.msra.mxu0 %v766
        %1377 = vmatprep.subr.mxu0 0.0
        %1378 = vmatpush1.msra.mxu0 %v767
        %1379 = vmatprep.subr.mxu0 0.0
        %1380 = vmatpush1.msra.mxu0 %v768
        %1381 = vmatprep.subr.mxu0 0.0
        %1382 = vmatpush1.msra.mxu0 %v769
        %1383 = vmatprep.subr.mxu0 0.0
        %1384 = vmatpush1.msra.mxu0 %v770
        %1385 = vmatprep.subr.mxu0 0.0
        %1386 = vmatpush1.msra.mxu0 %v771
        %1387 = vmatprep.subr.mxu0 0.0
        %1388 = vmatpush1.msra.mxu0 %v772
        %1389 = vmatprep.subr.mxu0 0.0
        %1390 = vmatpush1.msra.mxu0 %v773
        %1391 = vmatprep.mubr.f32.mxu0 %v1312
        %1392 = vmatmul.mubr.f32.gmra.mrb[0].mxu0 %v1311
        %v1393 = vpop.f32.mrb[0].mxu0
        %v1394 = vadd.f32 0.0, %v1393
        %v1395 = vpop.f32.mrb[0].mxu0
        %1396 = vmatprep.mubr.f32.mxu0 %v1314
        %1397 = vmatmul.mubr.f32.gmra.mrb[0].mxu0 %v1313
        %v1398 = vpop.f32.mrb[0].mxu0
        %v1399 = vadd.f32 0.0, %v1398
        %v1400 = vpop.f32.mrb[0].mxu0
        %1401 = vmatprep.mubr.f32.mxu0 %v1316
        %1402 = vmatmul.mubr.f32.gmra.mrb[0].mxu0 %v1315
        %v1403 = vpop.f32.mrb[0].mxu0
        %v1404 = vadd.f32 0.0, %v1403
        %v1405 = vpop.f32.mrb[0].mxu0
        %1406 = vmatprep.mubr.f32.mxu0 %v1318
        %1407 = vmatmul.mubr.f32.gmra.mrb[0].mxu0 %v1317
        %v1408 = vpop.f32.mrb[0].mxu0
        %v1409 = vadd.f32 0.0, %v1408
        %v1410 = vpop.f32.mrb[0].mxu0
        %1411 = vmatprep.mubr.f32.mxu0 %v1320
        %1412 = vmatmul.mubr.f32.gmra.mrb[0].mxu0 %v1319
        %v1413 = vpop.f32.mrb[0].mxu0
        %v1414 = vadd.f32 0.0, %v1413
        %v1415 = vpop.f32.mrb[0].mxu0
        %1416 = vmatprep.mubr.f32.mxu0 %v1322
        %1417 = vmatmul.mubr.f32.gmra.mrb[0].mxu0 %v1321
        %v1418 = vpop.f32.mrb[0].mxu0
        %v1419 = vadd.f32 0.0, %v1418
        %v1420 = vpop.f32.mrb[0].mxu0
        %1421 = vmatprep.mubr.f32.mxu0 %v1324
        %1422 = vmatmul.mubr.f32.gmra.mrb[0].mxu0 %v1323
        %v1423 = vpop.f32.mrb[0].mxu0
        %v1424 = vadd.f32 0.0, %v1423
        %v1425 = vpop.f32.mrb[0].mxu0
        %1426 = vmatprep.mubr.f32.mxu0 %v1326
        %1427 = vmatmul.mubr.f32.gmra.mrb[0].mxu0 %v1325
        %v1428 = vpop.f32.mrb[0].mxu0
        %v1429 = vadd.f32 0.0, %v1428
        %v1430 = vpop.f32.mrb[0].mxu0
        %1431 = vdwg.mxu0
        %s1432 = scalar_lea.vmem %s2, 8
        %v1433 = vld [vmem:[%s1432] sm:$0xf]
        %v1435 = vsel %vm1036, %v1394, 0
        %v1438 = vsel %vm1036, %v1399, 0
        %v1441 = vsel %vm1036, %v1404, 0
        %v1444 = vsel %vm1036, %v1409, 0
        %v1447 = vsel %vm1036, %v1414, 0
        %v1450 = vsel %vm1036, %v1419, 0
        %v1453 = vsel %vm1036, %v1424, 0
        %v1456 = vsel %vm1036, %v1429, 0
        %v1459 = vsel %vm1061, %v1433, 0
        %1461 = vmatprep.subr.mxu0 0.0
        %1462 = vmatpush1.msra.mxu0 %v1459
        %1463 = vmatprep.subr.mxu0 0.0
        %1464 = vmatpush1.msra.mxu0 0.0
        %1465 = vmatprep.subr.mxu0 0.0
        %1466 = vmatpush1.msra.mxu0 0.0
        %1467 = vmatprep.subr.mxu0 0.0
        %1468 = vmatpush1.msra.mxu0 0.0
        %1469 = vmatprep.subr.mxu0 0.0
        %1470 = vmatpush1.msra.mxu0 0.0
        %1471 = vmatprep.subr.mxu0 0.0
        %1472 = vmatpush1.msra.mxu0 0.0
        %1473 = vmatprep.subr.mxu0 0.0
        %1474 = vmatpush1.msra.mxu0 0.0
        %1475 = vmatprep.subr.mxu0 0.0
        %1476 = vmatpush1.msra.mxu0 0.0
        %1477 = vmatprep.subr.mxu0 0.0
        %1478 = vmatpush1.msra.mxu0 0.0
        %1479 = vmatprep.subr.mxu0 0.0
        %1480 = vmatpush1.msra.mxu0 0.0
        %1481 = vmatprep.subr.mxu0 0.0
        %1482 = vmatpush1.msra.mxu0 0.0
        %1483 = vmatprep.subr.mxu0 0.0
        %1484 = vmatpush1.msra.mxu0 0.0
        %1485 = vmatprep.subr.mxu0 0.0
        %1486 = vmatpush1.msra.mxu0 0.0
        %1487 = vmatprep.subr.mxu0 0.0
        %1488 = vmatpush1.msra.mxu0 0.0
        %1489 = vmatprep.subr.mxu0 0.0
        %1490 = vmatpush1.msra.mxu0 0.0
        %1491 = vmatprep.subr.mxu0 0.0
        %1492 = vmatpush1.msra.mxu0 0.0
        %1493 = vmatprep.subr.mxu0 0.0
        %1494 = vmatpush1.msra.mxu0 0.0
        %1495 = vmatprep.subr.mxu0 0.0
        %1496 = vmatpush1.msra.mxu0 0.0
        %1497 = vmatprep.subr.mxu0 0.0
        %1498 = vmatpush1.msra.mxu0 0.0
        %1499 = vmatprep.subr.mxu0 0.0
        %1500 = vmatpush1.msra.mxu0 0.0
        %1501 = vmatprep.subr.mxu0 0.0
        %1502 = vmatpush1.msra.mxu0 0.0
        %1503 = vmatprep.subr.mxu0 0.0
        %1504 = vmatpush1.msra.mxu0 0.0
        %1505 = vmatprep.subr.mxu0 0.0
        %1506 = vmatpush1.msra.mxu0 0.0
        %1507 = vmatprep.subr.mxu0 0.0
        %1508 = vmatpush1.msra.mxu0 0.0
        %1509 = vmatprep.subr.mxu0 0.0
        %1510 = vmatpush1.msra.mxu0 0.0
        %1511 = vmatprep.subr.mxu0 0.0
        %1512 = vmatpush1.msra.mxu0 0.0
        %1513 = vmatprep.subr.mxu0 0.0
        %1514 = vmatpush1.msra.mxu0 0.0
        %1515 = vmatprep.subr.mxu0 0.0
        %1516 = vmatpush1.msra.mxu0 0.0
        %1517 = vmatprep.subr.mxu0 0.0
        %1518 = vmatpush1.msra.mxu0 0.0
        %1519 = vmatprep.subr.mxu0 0.0
        %1520 = vmatpush1.msra.mxu0 0.0
        %1521 = vmatprep.subr.mxu0 0.0
        %1522 = vmatpush1.msra.mxu0 0.0
        %1523 = vmatprep.subr.mxu0 0.0
        %1524 = vmatpush1.msra.mxu0 0.0
        %1525 = vmatprep.mubr.f32.mxu0 0.0
        %1526 = vmatmul.mubr.f32.gmra.mrb[0].mxu0 %v1435
        %v1527 = vpop.f32.mrb[0].mxu0
        %v1528 = vadd.f32 0.0, %v1527
        %v1529 = vpop.f32.mrb[0].mxu0
        %1530 = vmatprep.mubr.f32.mxu0 0.0
        %1531 = vmatmul.mubr.f32.gmra.mrb[0].mxu0 %v1438
        %v1532 = vpop.f32.mrb[0].mxu0
        %v1533 = vadd.f32 0.0, %v1532
        %v1534 = vpop.f32.mrb[0].mxu0
        %1535 = vmatprep.mubr.f32.mxu0 0.0
        %1536 = vmatmul.mubr.f32.gmra.mrb[0].mxu0 %v1441
        %v1537 = vpop.f32.mrb[0].mxu0
        %v1538 = vadd.f32 0.0, %v1537
        %v1539 = vpop.f32.mrb[0].mxu0
        %1540 = vmatprep.mubr.f32.mxu0 0.0
        %1541 = vmatmul.mubr.f32.gmra.mrb[0].mxu0 %v1444
        %v1542 = vpop.f32.mrb[0].mxu0
        %v1543 = vadd.f32 0.0, %v1542
        %v1544 = vpop.f32.mrb[0].mxu0
        %1545 = vmatprep.mubr.f32.mxu0 0.0
        %1546 = vmatmul.mubr.f32.gmra.mrb[0].mxu0 %v1447
        %v1547 = vpop.f32.mrb[0].mxu0
        %v1548 = vadd.f32 0.0, %v1547
        %v1549 = vpop.f32.mrb[0].mxu0
        %1550 = vmatprep.mubr.f32.mxu0 0.0
        %1551 = vmatmul.mubr.f32.gmra.mrb[0].mxu0 %v1450
        %v1552 = vpop.f32.mrb[0].mxu0
        %v1553 = vadd.f32 0.0, %v1552
        %v1554 = vpop.f32.mrb[0].mxu0
        %1555 = vmatprep.mubr.f32.mxu0 0.0
        %1556 = vmatmul.mubr.f32.gmra.mrb[0].mxu0 %v1453
        %v1557 = vpop.f32.mrb[0].mxu0
        %v1558 = vadd.f32 0.0, %v1557
        %v1559 = vpop.f32.mrb[0].mxu0
        %1560 = vmatprep.mubr.f32.mxu0 0.0
        %1561 = vmatmul.mubr.f32.gmra.mrb[0].mxu0 %v1456
        %v1562 = vpop.f32.mrb[0].mxu0
        %v1563 = vadd.f32 0.0, %v1562
        %v1564 = vpop.f32.mrb[0].mxu0
        %1565 = vdwg.mxu0
        %v1566 = vadd.f32 %v1264, %v1528
        %v1567 = vadd.f32 %v1269, %v1533
        %v1568 = vadd.f32 %v1274, %v1538
        %v1569 = vadd.f32 %v1279, %v1543
        %v1570 = vadd.f32 %v1284, %v1548
        %v1571 = vadd.f32 %v1289, %v1553
        %v1572 = vadd.f32 %v1294, %v1558
        %v1573 = vadd.f32 %v1299, %v1563
        %s1574 = scalar_lea.vmem %s1, 192
        %v1575 = vld [vmem:[%s1574] sm:$0xff]
        %v1576 = vld [vmem:[%s1574 + $0x8] sm:$0xff]
        %v1577 = vld [vmem:[%s1574 + $0x10] sm:$0xff]
        %v1578 = vld [vmem:[%s1574 + $0x18] sm:$0xff]
        %v1579 = vld [vmem:[%s1574 + $0x20] sm:$0xff]
        %v1580 = vld [vmem:[%s1574 + $0x28] sm:$0xff]
        %v1581 = vld [vmem:[%s1574 + $0x30] sm:$0xff]
        %v1582 = vld [vmem:[%s1574 + $0x38] sm:$0xff]
        %v1583 = vunpack.c.l.bf16 %v1575
        %v1584 = vunpack.c.h.bf16 %v1575
        %v1585 = vunpack.c.l.bf16 %v1576
        %v1586 = vunpack.c.h.bf16 %v1576
        %v1587 = vunpack.c.l.bf16 %v1577
        %v1588 = vunpack.c.h.bf16 %v1577
        %v1589 = vunpack.c.l.bf16 %v1578
        %v1590 = vunpack.c.h.bf16 %v1578
        %v1591 = vunpack.c.l.bf16 %v1579
        %v1592 = vunpack.c.h.bf16 %v1579
        %v1593 = vunpack.c.l.bf16 %v1580
        %v1594 = vunpack.c.h.bf16 %v1580
        %v1595 = vunpack.c.l.bf16 %v1581
        %v1596 = vunpack.c.h.bf16 %v1581
        %v1597 = vunpack.c.l.bf16 %v1582
        %v1598 = vunpack.c.h.bf16 %v1582
        %1599 = vmatprep.subr.mxu0 0.0
        %1600 = vmatpush1.msra.mxu0 %v742
        %1601 = vmatprep.subr.mxu0 0.0
        %1602 = vmatpush1.msra.mxu0 %v743
        %1603 = vmatprep.subr.mxu0 0.0
        %1604 = vmatpush1.msra.mxu0 %v744
        %1605 = vmatprep.subr.mxu0 0.0
        %1606 = vmatpush1.msra.mxu0 %v745
        %1607 = vmatprep.subr.mxu0 0.0
        %1608 = vmatpush1.msra.mxu0 %v746
        %1609 = vmatprep.subr.mxu0 0.0
        %1610 = vmatpush1.msra.mxu0 %v747
        %1611 = vmatprep.subr.mxu0 0.0
        %1612 = vmatpush1.msra.mxu0 %v748
        %1613 = vmatprep.subr.mxu0 0.0
        %1614 = vmatpush1.msra.mxu0 %v749
        %1615 = vmatprep.subr.mxu0 0.0
        %1616 = vmatpush1.msra.mxu0 %v750
        %1617 = vmatprep.subr.mxu0 0.0
        %1618 = vmatpush1.msra.mxu0 %v751
        %1619 = vmatprep.subr.mxu0 0.0
        %1620 = vmatpush1.msra.mxu0 %v752
        %1621 = vmatprep.subr.mxu0 0.0
        %1622 = vmatpush1.msra.mxu0 %v753
        %1623 = vmatprep.subr.mxu0 0.0
        %1624 = vmatpush1.msra.mxu0 %v754
        %1625 = vmatprep.subr.mxu0 0.0
        %1626 = vmatpush1.msra.mxu0 %v755
        %1627 = vmatprep.subr.mxu0 0.0
        %1628 = vmatpush1.msra.mxu0 %v756
        %1629 = vmatprep.subr.mxu0 0.0
        %1630 = vmatpush1.msra.mxu0 %v757
        %1631 = vmatprep.subr.mxu0 0.0
        %1632 = vmatpush1.msra.mxu0 %v758
        %1633 = vmatprep.subr.mxu0 0.0
        %1634 = vmatpush1.msra.mxu0 %v759
        %1635 = vmatprep.subr.mxu0 0.0
        %1636 = vmatpush1.msra.mxu0 %v760
        %1637 = vmatprep.subr.mxu0 0.0
        %1638 = vmatpush1.msra.mxu0 %v761
        %1639 = vmatprep.subr.mxu0 0.0
        %1640 = vmatpush1.msra.mxu0 %v762
        %1641 = vmatprep.subr.mxu0 0.0
        %1642 = vmatpush1.msra.mxu0 %v763
        %1643 = vmatprep.subr.mxu0 0.0
        %1644 = vmatpush1.msra.mxu0 %v764
        %1645 = vmatprep.subr.mxu0 0.0
        %1646 = vmatpush1.msra.mxu0 %v765
        %1647 = vmatprep.subr.mxu0 0.0
        %1648 = vmatpush1.msra.mxu0 %v766
        %1649 = vmatprep.subr.mxu0 0.0
        %1650 = vmatpush1.msra.mxu0 %v767
        %1651 = vmatprep.subr.mxu0 0.0
        %1652 = vmatpush1.msra.mxu0 %v768
        %1653 = vmatprep.subr.mxu0 0.0
        %1654 = vmatpush1.msra.mxu0 %v769
        %1655 = vmatprep.subr.mxu0 0.0
        %1656 = vmatpush1.msra.mxu0 %v770
        %1657 = vmatprep.subr.mxu0 0.0
        %1658 = vmatpush1.msra.mxu0 %v771
        %1659 = vmatprep.subr.mxu0 0.0
        %1660 = vmatpush1.msra.mxu0 %v772
        %1661 = vmatprep.subr.mxu0 0.0
        %1662 = vmatpush1.msra.mxu0 %v773
        %1663 = vmatprep.mubr.f32.mxu0 %v1584
        %1664 = vmatmul.mubr.f32.gmra.mrb[0].mxu0 %v1583
        %v1665 = vpop.f32.mrb[0].mxu0
        %v1666 = vadd.f32 0.0, %v1665
        %v1667 = vpop.f32.mrb[0].mxu0
        %1668 = vmatprep.mubr.f32.mxu0 %v1586
        %1669 = vmatmul.mubr.f32.gmra.mrb[0].mxu0 %v1585
        %v1670 = vpop.f32.mrb[0].mxu0
        %v1671 = vadd.f32 0.0, %v1670
        %v1672 = vpop.f32.mrb[0].mxu0
        %1673 = vmatprep.mubr.f32.mxu0 %v1588
        %1674 = vmatmul.mubr.f32.gmra.mrb[0].mxu0 %v1587
        %v1675 = vpop.f32.mrb[0].mxu0
        %v1676 = vadd.f32 0.0, %v1675
        %v1677 = vpop.f32.mrb[0].mxu0
        %1678 = vmatprep.mubr.f32.mxu0 %v1590
        %1679 = vmatmul.mubr.f32.gmra.mrb[0].mxu0 %v1589
        %v1680 = vpop.f32.mrb[0].mxu0
        %v1681 = vadd.f32 0.0, %v1680
        %v1682 = vpop.f32.mrb[0].mxu0
        %1683 = vmatprep.mubr.f32.mxu0 %v1592
        %1684 = vmatmul.mubr.f32.gmra.mrb[0].mxu0 %v1591
        %v1685 = vpop.f32.mrb[0].mxu0
        %v1686 = vadd.f32 0.0, %v1685
        %v1687 = vpop.f32.mrb[0].mxu0
        %1688 = vmatprep.mubr.f32.mxu0 %v1594
        %1689 = vmatmul.mubr.f32.gmra.mrb[0].mxu0 %v1593
        %v1690 = vpop.f32.mrb[0].mxu0
        %v1691 = vadd.f32 0.0, %v1690
        %v1692 = vpop.f32.mrb[0].mxu0
        %1693 = vmatprep.mubr.f32.mxu0 %v1596
        %1694 = vmatmul.mubr.f32.gmra.mrb[0].mxu0 %v1595
        %v1695 = vpop.f32.mrb[0].mxu0
        %v1696 = vadd.f32 0.0, %v1695
        %v1697 = vpop.f32.mrb[0].mxu0
        %1698 = vmatprep.mubr.f32.mxu0 %v1598
        %1699 = vmatmul.mubr.f32.gmra.mrb[0].mxu0 %v1597
        %v1700 = vpop.f32.mrb[0].mxu0
        %v1701 = vadd.f32 0.0, %v1700
        %v1702 = vpop.f32.mrb[0].mxu0
        %1703 = vdwg.mxu0
        %s1704 = scalar_lea.vmem %s2, 12
        %v1705 = vld [vmem:[%s1704] sm:$0xf]
        %v1707 = vsel %vm1036, %v1666, 0
        %v1710 = vsel %vm1036, %v1671, 0
        %v1713 = vsel %vm1036, %v1676, 0
        %v1716 = vsel %vm1036, %v1681, 0
        %v1719 = vsel %vm1036, %v1686, 0
        %v1722 = vsel %vm1036, %v1691, 0
        %v1725 = vsel %vm1036, %v1696, 0
        %v1728 = vsel %vm1036, %v1701, 0
        %v1731 = vsel %vm1061, %v1705, 0
        %1733 = vmatprep.subr.mxu0 0.0
        %1734 = vmatpush1.msra.mxu0 %v1731
        %1735 = vmatprep.subr.mxu0 0.0
        %1736 = vmatpush1.msra.mxu0 0.0
        %1737 = vmatprep.subr.mxu0 0.0
        %1738 = vmatpush1.msra.mxu0 0.0
        %1739 = vmatprep.subr.mxu0 0.0
        %1740 = vmatpush1.msra.mxu0 0.0
        %1741 = vmatprep.subr.mxu0 0.0
        %1742 = vmatpush1.msra.mxu0 0.0
        %1743 = vmatprep.subr.mxu0 0.0
        %1744 = vmatpush1.msra.mxu0 0.0
        %1745 = vmatprep.subr.mxu0 0.0
        %1746 = vmatpush1.msra.mxu0 0.0
        %1747 = vmatprep.subr.mxu0 0.0
        %1748 = vmatpush1.msra.mxu0 0.0
        %1749 = vmatprep.subr.mxu0 0.0
        %1750 = vmatpush1.msra.mxu0 0.0
        %1751 = vmatprep.subr.mxu0 0.0
        %1752 = vmatpush1.msra.mxu0 0.0
        %1753 = vmatprep.subr.mxu0 0.0
        %1754 = vmatpush1.msra.mxu0 0.0
        %1755 = vmatprep.subr.mxu0 0.0
        %1756 = vmatpush1.msra.mxu0 0.0
        %1757 = vmatprep.subr.mxu0 0.0
        %1758 = vmatpush1.msra.mxu0 0.0
        %1759 = vmatprep.subr.mxu0 0.0
        %1760 = vmatpush1.msra.mxu0 0.0
        %1761 = vmatprep.subr.mxu0 0.0
        %1762 = vmatpush1.msra.mxu0 0.0
        %1763 = vmatprep.subr.mxu0 0.0
        %1764 = vmatpush1.msra.mxu0 0.0
        %1765 = vmatprep.subr.mxu0 0.0
        %1766 = vmatpush1.msra.mxu0 0.0
        %1767 = vmatprep.subr.mxu0 0.0
        %1768 = vmatpush1.msra.mxu0 0.0
        %1769 = vmatprep.subr.mxu0 0.0
        %1770 = vmatpush1.msra.mxu0 0.0
        %1771 = vmatprep.subr.mxu0 0.0
        %1772 = vmatpush1.msra.mxu0 0.0
        %1773 = vmatprep.subr.mxu0 0.0
        %1774 = vmatpush1.msra.mxu0 0.0
        %1775 = vmatprep.subr.mxu0 0.0
        %1776 = vmatpush1.msra.mxu0 0.0
        %1777 = vmatprep.subr.mxu0 0.0
        %1778 = vmatpush1.msra.mxu0 0.0
        %1779 = vmatprep.subr.mxu0 0.0
        %1780 = vmatpush1.msra.mxu0 0.0
        %1781 = vmatprep.subr.mxu0 0.0
        %1782 = vmatpush1.msra.mxu0 0.0
        %1783 = vmatprep.subr.mxu0 0.0
        %1784 = vmatpush1.msra.mxu0 0.0
        %1785 = vmatprep.subr.mxu0 0.0
        %1786 = vmatpush1.msra.mxu0 0.0
        %1787 = vmatprep.subr.mxu0 0.0
        %1788 = vmatpush1.msra.mxu0 0.0
        %1789 = vmatprep.subr.mxu0 0.0
        %1790 = vmatpush1.msra.mxu0 0.0
        %1791 = vmatprep.subr.mxu0 0.0
        %1792 = vmatpush1.msra.mxu0 0.0
        %1793 = vmatprep.subr.mxu0 0.0
        %1794 = vmatpush1.msra.mxu0 0.0
        %1795 = vmatprep.subr.mxu0 0.0
        %1796 = vmatpush1.msra.mxu0 0.0
        %1797 = vmatprep.mubr.f32.mxu0 0.0
        %1798 = vmatmul.mubr.f32.gmra.mrb[0].mxu0 %v1707
        %v1799 = vpop.f32.mrb[0].mxu0
        %v1800 = vadd.f32 0.0, %v1799
        %v1801 = vpop.f32.mrb[0].mxu0
        %1802 = vmatprep.mubr.f32.mxu0 0.0
        %1803 = vmatmul.mubr.f32.gmra.mrb[0].mxu0 %v1710
        %v1804 = vpop.f32.mrb[0].mxu0
        %v1805 = vadd.f32 0.0, %v1804
        %v1806 = vpop.f32.mrb[0].mxu0
        %1807 = vmatprep.mubr.f32.mxu0 0.0
        %1808 = vmatmul.mubr.f32.gmra.mrb[0].mxu0 %v1713
        %v1809 = vpop.f32.mrb[0].mxu0
        %v1810 = vadd.f32 0.0, %v1809
        %v1811 = vpop.f32.mrb[0].mxu0
        %1812 = vmatprep.mubr.f32.mxu0 0.0
        %1813 = vmatmul.mubr.f32.gmra.mrb[0].mxu0 %v1716
        %v1814 = vpop.f32.mrb[0].mxu0
        %v1815 = vadd.f32 0.0, %v1814
        %v1816 = vpop.f32.mrb[0].mxu0
        %1817 = vmatprep.mubr.f32.mxu0 0.0
        %1818 = vmatmul.mubr.f32.gmra.mrb[0].mxu0 %v1719
        %v1819 = vpop.f32.mrb[0].mxu0
        %v1820 = vadd.f32 0.0, %v1819
        %v1821 = vpop.f32.mrb[0].mxu0
        %1822 = vmatprep.mubr.f32.mxu0 0.0
        %1823 = vmatmul.mubr.f32.gmra.mrb[0].mxu0 %v1722
        %v1824 = vpop.f32.mrb[0].mxu0
        %v1825 = vadd.f32 0.0, %v1824
        %v1826 = vpop.f32.mrb[0].mxu0
        %1827 = vmatprep.mubr.f32.mxu0 0.0
        %1828 = vmatmul.mubr.f32.gmra.mrb[0].mxu0 %v1725
        %v1829 = vpop.f32.mrb[0].mxu0
        %v1830 = vadd.f32 0.0, %v1829
        %v1831 = vpop.f32.mrb[0].mxu0
        %1832 = vmatprep.mubr.f32.mxu0 0.0
        %1833 = vmatmul.mubr.f32.gmra.mrb[0].mxu0 %v1728
        %v1834 = vpop.f32.mrb[0].mxu0
        %v1835 = vadd.f32 0.0, %v1834
        %v1836 = vpop.f32.mrb[0].mxu0
        %1837 = vdwg.mxu0
        %v1838 = vadd.f32 %v1566, %v1800
        %v1839 = vadd.f32 %v1567, %v1805
        %v1840 = vadd.f32 %v1568, %v1810
        %v1841 = vadd.f32 %v1569, %v1815
        %v1842 = vadd.f32 %v1570, %v1820
        %v1843 = vadd.f32 %v1571, %v1825
        %v1844 = vadd.f32 %v1572, %v1830
        %v1845 = vadd.f32 %v1573, %v1835
        %s1846 = scalar_lea.vmem %s1, 256
        %v1847 = vld [vmem:[%s1846] sm:$0xff]
        %v1848 = vld [vmem:[%s1846 + $0x8] sm:$0xff]
        %v1849 = vld [vmem:[%s1846 + $0x10] sm:$0xff]
        %v1850 = vld [vmem:[%s1846 + $0x18] sm:$0xff]
        %v1851 = vld [vmem:[%s1846 + $0x20] sm:$0xff]
        %v1852 = vld [vmem:[%s1846 + $0x28] sm:$0xff]
        %v1853 = vld [vmem:[%s1846 + $0x30] sm:$0xff]
        %v1854 = vld [vmem:[%s1846 + $0x38] sm:$0xff]
        %v1855 = vunpack.c.l.bf16 %v1847
        %v1856 = vunpack.c.h.bf16 %v1847
        %v1857 = vunpack.c.l.bf16 %v1848
        %v1858 = vunpack.c.h.bf16 %v1848
        %v1859 = vunpack.c.l.bf16 %v1849
        %v1860 = vunpack.c.h.bf16 %v1849
        %v1861 = vunpack.c.l.bf16 %v1850
        %v1862 = vunpack.c.h.bf16 %v1850
        %v1863 = vunpack.c.l.bf16 %v1851
        %v1864 = vunpack.c.h.bf16 %v1851
        %v1865 = vunpack.c.l.bf16 %v1852
        %v1866 = vunpack.c.h.bf16 %v1852
        %v1867 = vunpack.c.l.bf16 %v1853
        %v1868 = vunpack.c.h.bf16 %v1853
        %v1869 = vunpack.c.l.bf16 %v1854
        %v1870 = vunpack.c.h.bf16 %v1854
        %1871 = vmatprep.subr.mxu0 0.0
        %1872 = vmatpush1.msra.mxu0 %v742
        %1873 = vmatprep.subr.mxu0 0.0
        %1874 = vmatpush1.msra.mxu0 %v743
        %1875 = vmatprep.subr.mxu0 0.0
        %1876 = vmatpush1.msra.mxu0 %v744
        %1877 = vmatprep.subr.mxu0 0.0
        %1878 = vmatpush1.msra.mxu0 %v745
        %1879 = vmatprep.subr.mxu0 0.0
        %1880 = vmatpush1.msra.mxu0 %v746
        %1881 = vmatprep.subr.mxu0 0.0
        %1882 = vmatpush1.msra.mxu0 %v747
        %1883 = vmatprep.subr.mxu0 0.0
        %1884 = vmatpush1.msra.mxu0 %v748
        %1885 = vmatprep.subr.mxu0 0.0
        %1886 = vmatpush1.msra.mxu0 %v749
        %1887 = vmatprep.subr.mxu0 0.0
        %1888 = vmatpush1.msra.mxu0 %v750
        %1889 = vmatprep.subr.mxu0 0.0
        %1890 = vmatpush1.msra.mxu0 %v751
        %1891 = vmatprep.subr.mxu0 0.0
        %1892 = vmatpush1.msra.mxu0 %v752
        %1893 = vmatprep.subr.mxu0 0.0
        %1894 = vmatpush1.msra.mxu0 %v753
        %1895 = vmatprep.subr.mxu0 0.0
        %1896 = vmatpush1.msra.mxu0 %v754
        %1897 = vmatprep.subr.mxu0 0.0
        %1898 = vmatpush1.msra.mxu0 %v755
        %1899 = vmatprep.subr.mxu0 0.0
        %1900 = vmatpush1.msra.mxu0 %v756
        %1901 = vmatprep.subr.mxu0 0.0
        %1902 = vmatpush1.msra.mxu0 %v757
        %1903 = vmatprep.subr.mxu0 0.0
        %1904 = vmatpush1.msra.mxu0 %v758
        %1905 = vmatprep.subr.mxu0 0.0
        %1906 = vmatpush1.msra.mxu0 %v759
        %1907 = vmatprep.subr.mxu0 0.0
        %1908 = vmatpush1.msra.mxu0 %v760
        %1909 = vmatprep.subr.mxu0 0.0
        %1910 = vmatpush1.msra.mxu0 %v761
        %1911 = vmatprep.subr.mxu0 0.0
        %1912 = vmatpush1.msra.mxu0 %v762
        %1913 = vmatprep.subr.mxu0 0.0
        %1914 = vmatpush1.msra.mxu0 %v763
        %1915 = vmatprep.subr.mxu0 0.0
        %1916 = vmatpush1.msra.mxu0 %v764
        %1917 = vmatprep.subr.mxu0 0.0
        %1918 = vmatpush1.msra.mxu0 %v765
        %1919 = vmatprep.subr.mxu0 0.0
        %1920 = vmatpush1.msra.mxu0 %v766
        %1921 = vmatprep.subr.mxu0 0.0
        %1922 = vmatpush1.msra.mxu0 %v767
        %1923 = vmatprep.subr.mxu0 0.0
        %1924 = vmatpush1.msra.mxu0 %v768
        %1925 = vmatprep.subr.mxu0 0.0
        %1926 = vmatpush1.msra.mxu0 %v769
        %1927 = vmatprep.subr.mxu0 0.0
        %1928 = vmatpush1.msra.mxu0 %v770
        %1929 = vmatprep.subr.mxu0 0.0
        %1930 = vmatpush1.msra.mxu0 %v771
        %1931 = vmatprep.subr.mxu0 0.0
        %1932 = vmatpush1.msra.mxu0 %v772
        %1933 = vmatprep.subr.mxu0 0.0
        %1934 = vmatpush1.msra.mxu0 %v773
        %1935 = vmatprep.mubr.f32.mxu0 %v1856
        %1936 = vmatmul.mubr.f32.gmra.mrb[0].mxu0 %v1855
        %v1937 = vpop.f32.mrb[0].mxu0
        %v1938 = vadd.f32 0.0, %v1937
        %v1939 = vpop.f32.mrb[0].mxu0
        %1940 = vmatprep.mubr.f32.mxu0 %v1858
        %1941 = vmatmul.mubr.f32.gmra.mrb[0].mxu0 %v1857
        %v1942 = vpop.f32.mrb[0].mxu0
        %v1943 = vadd.f32 0.0, %v1942
        %v1944 = vpop.f32.mrb[0].mxu0
        %1945 = vmatprep.mubr.f32.mxu0 %v1860
        %1946 = vmatmul.mubr.f32.gmra.mrb[0].mxu0 %v1859
        %v1947 = vpop.f32.mrb[0].mxu0
        %v1948 = vadd.f32 0.0, %v1947
        %v1949 = vpop.f32.mrb[0].mxu0
        %1950 = vmatprep.mubr.f32.mxu0 %v1862
        %1951 = vmatmul.mubr.f32.gmra.mrb[0].mxu0 %v1861
        %v1952 = vpop.f32.mrb[0].mxu0
        %v1953 = vadd.f32 0.0, %v1952
        %v1954 = vpop.f32.mrb[0].mxu0
        %1955 = vmatprep.mubr.f32.mxu0 %v1864
        %1956 = vmatmul.mubr.f32.gmra.mrb[0].mxu0 %v1863
        %v1957 = vpop.f32.mrb[0].mxu0
        %v1958 = vadd.f32 0.0, %v1957
        %v1959 = vpop.f32.mrb[0].mxu0
        %1960 = vmatprep.mubr.f32.mxu0 %v1866
        %1961 = vmatmul.mubr.f32.gmra.mrb[0].mxu0 %v1865
        %v1962 = vpop.f32.mrb[0].mxu0
        %v1963 = vadd.f32 0.0, %v1962
        %v1964 = vpop.f32.mrb[0].mxu0
        %1965 = vmatprep.mubr.f32.mxu0 %v1868
        %1966 = vmatmul.mubr.f32.gmra.mrb[0].mxu0 %v1867
        %v1967 = vpop.f32.mrb[0].mxu0
        %v1968 = vadd.f32 0.0, %v1967
        %v1969 = vpop.f32.mrb[0].mxu0
        %1970 = vmatprep.mubr.f32.mxu0 %v1870
        %1971 = vmatmul.mubr.f32.gmra.mrb[0].mxu0 %v1869
        %v1972 = vpop.f32.mrb[0].mxu0
        %v1973 = vadd.f32 0.0, %v1972
        %v1974 = vpop.f32.mrb[0].mxu0
        %1975 = vdwg.mxu0
        %s1976 = scalar_lea.vmem %s2, 16
        %v1977 = vld [vmem:[%s1976] sm:$0xf]
        %v1979 = vsel %vm1036, %v1938, 0
        %v1982 = vsel %vm1036, %v1943, 0
        %v1985 = vsel %vm1036, %v1948, 0
        %v1988 = vsel %vm1036, %v1953, 0
        %v1991 = vsel %vm1036, %v1958, 0
        %v1994 = vsel %vm1036, %v1963, 0
        %v1997 = vsel %vm1036, %v1968, 0
        %v2000 = vsel %vm1036, %v1973, 0
        %v2003 = vsel %vm1061, %v1977, 0
        %2005 = vmatprep.subr.mxu0 0.0
        %2006 = vmatpush1.msra.mxu0 %v2003
        %2007 = vmatprep.subr.mxu0 0.0
        %2008 = vmatpush1.msra.mxu0 0.0
        %2009 = vmatprep.subr.mxu0 0.0
        %2010 = vmatpush1.msra.mxu0 0.0
        %2011 = vmatprep.subr.mxu0 0.0
        %2012 = vmatpush1.msra.mxu0 0.0
        %2013 = vmatprep.subr.mxu0 0.0
        %2014 = vmatpush1.msra.mxu0 0.0
        %2015 = vmatprep.subr.mxu0 0.0
        %2016 = vmatpush1.msra.mxu0 0.0
        %2017 = vmatprep.subr.mxu0 0.0
        %2018 = vmatpush1.msra.mxu0 0.0
        %2019 = vmatprep.subr.mxu0 0.0
        %2020 = vmatpush1.msra.mxu0 0.0
        %2021 = vmatprep.subr.mxu0 0.0
        %2022 = vmatpush1.msra.mxu0 0.0
        %2023 = vmatprep.subr.mxu0 0.0
        %2024 = vmatpush1.msra.mxu0 0.0
        %2025 = vmatprep.subr.mxu0 0.0
        %2026 = vmatpush1.msra.mxu0 0.0
        %2027 = vmatprep.subr.mxu0 0.0
        %2028 = vmatpush1.msra.mxu0 0.0
        %2029 = vmatprep.subr.mxu0 0.0
        %2030 = vmatpush1.msra.mxu0 0.0
        %2031 = vmatprep.subr.mxu0 0.0
        %2032 = vmatpush1.msra.mxu0 0.0
        %2033 = vmatprep.subr.mxu0 0.0
        %2034 = vmatpush1.msra.mxu0 0.0
        %2035 = vmatprep.subr.mxu0 0.0
        %2036 = vmatpush1.msra.mxu0 0.0
        %2037 = vmatprep.subr.mxu0 0.0
        %2038 = vmatpush1.msra.mxu0 0.0
        %2039 = vmatprep.subr.mxu0 0.0
        %2040 = vmatpush1.msra.mxu0 0.0
        %2041 = vmatprep.subr.mxu0 0.0
        %2042 = vmatpush1.msra.mxu0 0.0
        %2043 = vmatprep.subr.mxu0 0.0
        %2044 = vmatpush1.msra.mxu0 0.0
        %2045 = vmatprep.subr.mxu0 0.0
        %2046 = vmatpush1.msra.mxu0 0.0
        %2047 = vmatprep.subr.mxu0 0.0
        %2048 = vmatpush1.msra.mxu0 0.0
        %2049 = vmatprep.subr.mxu0 0.0
        %2050 = vmatpush1.msra.mxu0 0.0
        %2051 = vmatprep.subr.mxu0 0.0
        %2052 = vmatpush1.msra.mxu0 0.0
        %2053 = vmatprep.subr.mxu0 0.0
        %2054 = vmatpush1.msra.mxu0 0.0
        %2055 = vmatprep.subr.mxu0 0.0
        %2056 = vmatpush1.msra.mxu0 0.0
        %2057 = vmatprep.subr.mxu0 0.0
        %2058 = vmatpush1.msra.mxu0 0.0
        %2059 = vmatprep.subr.mxu0 0.0
        %2060 = vmatpush1.msra.mxu0 0.0
        %2061 = vmatprep.subr.mxu0 0.0
        %2062 = vmatpush1.msra.mxu0 0.0
        %2063 = vmatprep.subr.mxu0 0.0
        %2064 = vmatpush1.msra.mxu0 0.0
        %2065 = vmatprep.subr.mxu0 0.0
        %2066 = vmatpush1.msra.mxu0 0.0
        %2067 = vmatprep.subr.mxu0 0.0
        %2068 = vmatpush1.msra.mxu0 0.0
        %2069 = vmatprep.mubr.f32.mxu0 0.0
        %2070 = vmatmul.mubr.f32.gmra.mrb[0].mxu0 %v1979
        %v2071 = vpop.f32.mrb[0].mxu0
        %v2072 = vadd.f32 0.0, %v2071
        %v2073 = vpop.f32.mrb[0].mxu0
        %2074 = vmatprep.mubr.f32.mxu0 0.0
        %2075 = vmatmul.mubr.f32.gmra.mrb[0].mxu0 %v1982
        %v2076 = vpop.f32.mrb[0].mxu0
        %v2077 = vadd.f32 0.0, %v2076
        %v2078 = vpop.f32.mrb[0].mxu0
        %2079 = vmatprep.mubr.f32.mxu0 0.0
        %2080 = vmatmul.mubr.f32.gmra.mrb[0].mxu0 %v1985
        %v2081 = vpop.f32.mrb[0].mxu0
        %v2082 = vadd.f32 0.0, %v2081
        %v2083 = vpop.f32.mrb[0].mxu0
        %2084 = vmatprep.mubr.f32.mxu0 0.0
        %2085 = vmatmul.mubr.f32.gmra.mrb[0].mxu0 %v1988
        %v2086 = vpop.f32.mrb[0].mxu0
        %v2087 = vadd.f32 0.0, %v2086
        %v2088 = vpop.f32.mrb[0].mxu0
        %2089 = vmatprep.mubr.f32.mxu0 0.0
        %2090 = vmatmul.mubr.f32.gmra.mrb[0].mxu0 %v1991
        %v2091 = vpop.f32.mrb[0].mxu0
        %v2092 = vadd.f32 0.0, %v2091
        %v2093 = vpop.f32.mrb[0].mxu0
        %2094 = vmatprep.mubr.f32.mxu0 0.0
        %2095 = vmatmul.mubr.f32.gmra.mrb[0].mxu0 %v1994
        %v2096 = vpop.f32.mrb[0].mxu0
        %v2097 = vadd.f32 0.0, %v2096
        %v2098 = vpop.f32.mrb[0].mxu0
        %2099 = vmatprep.mubr.f32.mxu0 0.0
        %2100 = vmatmul.mubr.f32.gmra.mrb[0].mxu0 %v1997
        %v2101 = vpop.f32.mrb[0].mxu0
        %v2102 = vadd.f32 0.0, %v2101
        %v2103 = vpop.f32.mrb[0].mxu0
        %2104 = vmatprep.mubr.f32.mxu0 0.0
        %2105 = vmatmul.mubr.f32.gmra.mrb[0].mxu0 %v2000
        %v2106 = vpop.f32.mrb[0].mxu0
        %v2107 = vadd.f32 0.0, %v2106
        %v2108 = vpop.f32.mrb[0].mxu0
        %2109 = vdwg.mxu0
        %v2110 = vadd.f32 %v1838, %v2072
        %v2111 = vadd.f32 %v1839, %v2077
        %v2112 = vadd.f32 %v1840, %v2082
        %v2113 = vadd.f32 %v1841, %v2087
        %v2114 = vadd.f32 %v1842, %v2092
        %v2115 = vadd.f32 %v1843, %v2097
        %v2116 = vadd.f32 %v1844, %v2102
        %v2117 = vadd.f32 %v1845, %v2107
        %s2118 = scalar_lea.vmem %s1, 320
        %v2119 = vld [vmem:[%s2118] sm:$0xff]
        %v2120 = vld [vmem:[%s2118 + $0x8] sm:$0xff]
        %v2121 = vld [vmem:[%s2118 + $0x10] sm:$0xff]
        %v2122 = vld [vmem:[%s2118 + $0x18] sm:$0xff]
        %v2123 = vld [vmem:[%s2118 + $0x20] sm:$0xff]
        %v2124 = vld [vmem:[%s2118 + $0x28] sm:$0xff]
        %v2125 = vld [vmem:[%s2118 + $0x30] sm:$0xff]
        %v2126 = vld [vmem:[%s2118 + $0x38] sm:$0xff]
        %v2127 = vunpack.c.l.bf16 %v2119
        %v2128 = vunpack.c.h.bf16 %v2119
        %v2129 = vunpack.c.l.bf16 %v2120
        %v2130 = vunpack.c.h.bf16 %v2120
        %v2131 = vunpack.c.l.bf16 %v2121
        %v2132 = vunpack.c.h.bf16 %v2121
        %v2133 = vunpack.c.l.bf16 %v2122
        %v2134 = vunpack.c.h.bf16 %v2122
        %v2135 = vunpack.c.l.bf16 %v2123
        %v2136 = vunpack.c.h.bf16 %v2123
        %v2137 = vunpack.c.l.bf16 %v2124
        %v2138 = vunpack.c.h.bf16 %v2124
        %v2139 = vunpack.c.l.bf16 %v2125
        %v2140 = vunpack.c.h.bf16 %v2125
        %v2141 = vunpack.c.l.bf16 %v2126
        %v2142 = vunpack.c.h.bf16 %v2126
        %2143 = vmatprep.subr.mxu0 0.0
        %2144 = vmatpush1.msra.mxu0 %v742
        %2145 = vmatprep.subr.mxu0 0.0
        %2146 = vmatpush1.msra.mxu0 %v743
        %2147 = vmatprep.subr.mxu0 0.0
        %2148 = vmatpush1.msra.mxu0 %v744
        %2149 = vmatprep.subr.mxu0 0.0
        %2150 = vmatpush1.msra.mxu0 %v745
        %2151 = vmatprep.subr.mxu0 0.0
        %2152 = vmatpush1.msra.mxu0 %v746
        %2153 = vmatprep.subr.mxu0 0.0
        %2154 = vmatpush1.msra.mxu0 %v747
        %2155 = vmatprep.subr.mxu0 0.0
        %2156 = vmatpush1.msra.mxu0 %v748
        %2157 = vmatprep.subr.mxu0 0.0
        %2158 = vmatpush1.msra.mxu0 %v749
        %2159 = vmatprep.subr.mxu0 0.0
        %2160 = vmatpush1.msra.mxu0 %v750
        %2161 = vmatprep.subr.mxu0 0.0
        %2162 = vmatpush1.msra.mxu0 %v751
        %2163 = vmatprep.subr.mxu0 0.0
        %2164 = vmatpush1.msra.mxu0 %v752
        %2165 = vmatprep.subr.mxu0 0.0
        %2166 = vmatpush1.msra.mxu0 %v753
        %2167 = vmatprep.subr.mxu0 0.0
        %2168 = vmatpush1.msra.mxu0 %v754
        %2169 = vmatprep.subr.mxu0 0.0
        %2170 = vmatpush1.msra.mxu0 %v755
        %2171 = vmatprep.subr.mxu0 0.0
        %2172 = vmatpush1.msra.mxu0 %v756
        %2173 = vmatprep.subr.mxu0 0.0
        %2174 = vmatpush1.msra.mxu0 %v757
        %2175 = vmatprep.subr.mxu0 0.0
        %2176 = vmatpush1.msra.mxu0 %v758
        %2177 = vmatprep.subr.mxu0 0.0
        %2178 = vmatpush1.msra.mxu0 %v759
        %2179 = vmatprep.subr.mxu0 0.0
        %2180 = vmatpush1.msra.mxu0 %v760
        %2181 = vmatprep.subr.mxu0 0.0
        %2182 = vmatpush1.msra.mxu0 %v761
        %2183 = vmatprep.subr.mxu0 0.0
        %2184 = vmatpush1.msra.mxu0 %v762
        %2185 = vmatprep.subr.mxu0 0.0
        %2186 = vmatpush1.msra.mxu0 %v763
        %2187 = vmatprep.subr.mxu0 0.0
        %2188 = vmatpush1.msra.mxu0 %v764
        %2189 = vmatprep.subr.mxu0 0.0
        %2190 = vmatpush1.msra.mxu0 %v765
        %2191 = vmatprep.subr.mxu0 0.0
        %2192 = vmatpush1.msra.mxu0 %v766
        %2193 = vmatprep.subr.mxu0 0.0
        %2194 = vmatpush1.msra.mxu0 %v767
        %2195 = vmatprep.subr.mxu0 0.0
        %2196 = vmatpush1.msra.mxu0 %v768
        %2197 = vmatprep.subr.mxu0 0.0
        %2198 = vmatpush1.msra.mxu0 %v769
        %2199 = vmatprep.subr.mxu0 0.0
        %2200 = vmatpush1.msra.mxu0 %v770
        %2201 = vmatprep.subr.mxu0 0.0
        %2202 = vmatpush1.msra.mxu0 %v771
        %2203 = vmatprep.subr.mxu0 0.0
        %2204 = vmatpush1.msra.mxu0 %v772
        %2205 = vmatprep.subr.mxu0 0.0
        %2206 = vmatpush1.msra.mxu0 %v773
        %2207 = vmatprep.mubr.f32.mxu0 %v2128
        %2208 = vmatmul.mubr.f32.gmra.mrb[0].mxu0 %v2127
        %v2209 = vpop.f32.mrb[0].mxu0
        %v2210 = vadd.f32 0.0, %v2209
        %v2211 = vpop.f32.mrb[0].mxu0
        %2212 = vmatprep.mubr.f32.mxu0 %v2130
        %2213 = vmatmul.mubr.f32.gmra.mrb[0].mxu0 %v2129
        %v2214 = vpop.f32.mrb[0].mxu0
        %v2215 = vadd.f32 0.0, %v2214
        %v2216 = vpop.f32.mrb[0].mxu0
        %2217 = vmatprep.mubr.f32.mxu0 %v2132
        %2218 = vmatmul.mubr.f32.gmra.mrb[0].mxu0 %v2131
        %v2219 = vpop.f32.mrb[0].mxu0
        %v2220 = vadd.f32 0.0, %v2219
        %v2221 = vpop.f32.mrb[0].mxu0
        %2222 = vmatprep.mubr.f32.mxu0 %v2134
        %2223 = vmatmul.mubr.f32.gmra.mrb[0].mxu0 %v2133
        %v2224 = vpop.f32.mrb[0].mxu0
        %v2225 = vadd.f32 0.0, %v2224
        %v2226 = vpop.f32.mrb[0].mxu0
        %2227 = vmatprep.mubr.f32.mxu0 %v2136
        %2228 = vmatmul.mubr.f32.gmra.mrb[0].mxu0 %v2135
        %v2229 = vpop.f32.mrb[0].mxu0
        %v2230 = vadd.f32 0.0, %v2229
        %v2231 = vpop.f32.mrb[0].mxu0
        %2232 = vmatprep.mubr.f32.mxu0 %v2138
        %2233 = vmatmul.mubr.f32.gmra.mrb[0].mxu0 %v2137
        %v2234 = vpop.f32.mrb[0].mxu0
        %v2235 = vadd.f32 0.0, %v2234
        %v2236 = vpop.f32.mrb[0].mxu0
        %2237 = vmatprep.mubr.f32.mxu0 %v2140
        %2238 = vmatmul.mubr.f32.gmra.mrb[0].mxu0 %v2139
        %v2239 = vpop.f32.mrb[0].mxu0
        %v2240 = vadd.f32 0.0, %v2239
        %v2241 = vpop.f32.mrb[0].mxu0
        %2242 = vmatprep.mubr.f32.mxu0 %v2142
        %2243 = vmatmul.mubr.f32.gmra.mrb[0].mxu0 %v2141
        %v2244 = vpop.f32.mrb[0].mxu0
        %v2245 = vadd.f32 0.0, %v2244
        %v2246 = vpop.f32.mrb[0].mxu0
        %2247 = vdwg.mxu0
        %s2248 = scalar_lea.vmem %s2, 20
        %v2249 = vld [vmem:[%s2248] sm:$0xf]
        %v2251 = vsel %vm1036, %v2210, 0
        %v2254 = vsel %vm1036, %v2215, 0
        %v2257 = vsel %vm1036, %v2220, 0
        %v2260 = vsel %vm1036, %v2225, 0
        %v2263 = vsel %vm1036, %v2230, 0
        %v2266 = vsel %vm1036, %v2235, 0
        %v2269 = vsel %vm1036, %v2240, 0
        %v2272 = vsel %vm1036, %v2245, 0
        %v2275 = vsel %vm1061, %v2249, 0
        %2277 = vmatprep.subr.mxu0 0.0
        %2278 = vmatpush1.msra.mxu0 %v2275
        %2279 = vmatprep.subr.mxu0 0.0
        %2280 = vmatpush1.msra.mxu0 0.0
        %2281 = vmatprep.subr.mxu0 0.0
        %2282 = vmatpush1.msra.mxu0 0.0
        %2283 = vmatprep.subr.mxu0 0.0
        %2284 = vmatpush1.msra.mxu0 0.0
        %2285 = vmatprep.subr.mxu0 0.0
        %2286 = vmatpush1.msra.mxu0 0.0
        %2287 = vmatprep.subr.mxu0 0.0
        %2288 = vmatpush1.msra.mxu0 0.0
        %2289 = vmatprep.subr.mxu0 0.0
        %2290 = vmatpush1.msra.mxu0 0.0
        %2291 = vmatprep.subr.mxu0 0.0
        %2292 = vmatpush1.msra.mxu0 0.0
        %2293 = vmatprep.subr.mxu0 0.0
        %2294 = vmatpush1.msra.mxu0 0.0
        %2295 = vmatprep.subr.mxu0 0.0
        %2296 = vmatpush1.msra.mxu0 0.0
        %2297 = vmatprep.subr.mxu0 0.0
        %2298 = vmatpush1.msra.mxu0 0.0
        %2299 = vmatprep.subr.mxu0 0.0
        %2300 = vmatpush1.msra.mxu0 0.0
        %2301 = vmatprep.subr.mxu0 0.0
        %2302 = vmatpush1.msra.mxu0 0.0
        %2303 = vmatprep.subr.mxu0 0.0
        %2304 = vmatpush1.msra.mxu0 0.0
        %2305 = vmatprep.subr.mxu0 0.0
        %2306 = vmatpush1.msra.mxu0 0.0
        %2307 = vmatprep.subr.mxu0 0.0
        %2308 = vmatpush1.msra.mxu0 0.0
        %2309 = vmatprep.subr.mxu0 0.0
        %2310 = vmatpush1.msra.mxu0 0.0
        %2311 = vmatprep.subr.mxu0 0.0
        %2312 = vmatpush1.msra.mxu0 0.0
        %2313 = vmatprep.subr.mxu0 0.0
        %2314 = vmatpush1.msra.mxu0 0.0
        %2315 = vmatprep.subr.mxu0 0.0
        %2316 = vmatpush1.msra.mxu0 0.0
        %2317 = vmatprep.subr.mxu0 0.0
        %2318 = vmatpush1.msra.mxu0 0.0
        %2319 = vmatprep.subr.mxu0 0.0
        %2320 = vmatpush1.msra.mxu0 0.0
        %2321 = vmatprep.subr.mxu0 0.0
        %2322 = vmatpush1.msra.mxu0 0.0
        %2323 = vmatprep.subr.mxu0 0.0
        %2324 = vmatpush1.msra.mxu0 0.0
        %2325 = vmatprep.subr.mxu0 0.0
        %2326 = vmatpush1.msra.mxu0 0.0
        %2327 = vmatprep.subr.mxu0 0.0
        %2328 = vmatpush1.msra.mxu0 0.0
        %2329 = vmatprep.subr.mxu0 0.0
        %2330 = vmatpush1.msra.mxu0 0.0
        %2331 = vmatprep.subr.mxu0 0.0
        %2332 = vmatpush1.msra.mxu0 0.0
        %2333 = vmatprep.subr.mxu0 0.0
        %2334 = vmatpush1.msra.mxu0 0.0
        %2335 = vmatprep.subr.mxu0 0.0
        %2336 = vmatpush1.msra.mxu0 0.0
        %2337 = vmatprep.subr.mxu0 0.0
        %2338 = vmatpush1.msra.mxu0 0.0
        %2339 = vmatprep.subr.mxu0 0.0
        %2340 = vmatpush1.msra.mxu0 0.0
        %2341 = vmatprep.mubr.f32.mxu0 0.0
        %2342 = vmatmul.mubr.f32.gmra.mrb[0].mxu0 %v2251
        %v2343 = vpop.f32.mrb[0].mxu0
        %v2344 = vadd.f32 0.0, %v2343
        %v2345 = vpop.f32.mrb[0].mxu0
        %2346 = vmatprep.mubr.f32.mxu0 0.0
        %2347 = vmatmul.mubr.f32.gmra.mrb[0].mxu0 %v2254
        %v2348 = vpop.f32.mrb[0].mxu0
        %v2349 = vadd.f32 0.0, %v2348
        %v2350 = vpop.f32.mrb[0].mxu0
        %2351 = vmatprep.mubr.f32.mxu0 0.0
        %2352 = vmatmul.mubr.f32.gmra.mrb[0].mxu0 %v2257
        %v2353 = vpop.f32.mrb[0].mxu0
        %v2354 = vadd.f32 0.0, %v2353
        %v2355 = vpop.f32.mrb[0].mxu0
        %2356 = vmatprep.mubr.f32.mxu0 0.0
        %2357 = vmatmul.mubr.f32.gmra.mrb[0].mxu0 %v2260
        %v2358 = vpop.f32.mrb[0].mxu0
        %v2359 = vadd.f32 0.0, %v2358
        %v2360 = vpop.f32.mrb[0].mxu0
        %2361 = vmatprep.mubr.f32.mxu0 0.0
        %2362 = vmatmul.mubr.f32.gmra.mrb[0].mxu0 %v2263
        %v2363 = vpop.f32.mrb[0].mxu0
        %v2364 = vadd.f32 0.0, %v2363
        %v2365 = vpop.f32.mrb[0].mxu0
        %2366 = vmatprep.mubr.f32.mxu0 0.0
        %2367 = vmatmul.mubr.f32.gmra.mrb[0].mxu0 %v2266
        %v2368 = vpop.f32.mrb[0].mxu0
        %v2369 = vadd.f32 0.0, %v2368
        %v2370 = vpop.f32.mrb[0].mxu0
        %2371 = vmatprep.mubr.f32.mxu0 0.0
        %2372 = vmatmul.mubr.f32.gmra.mrb[0].mxu0 %v2269
        %v2373 = vpop.f32.mrb[0].mxu0
        %v2374 = vadd.f32 0.0, %v2373
        %v2375 = vpop.f32.mrb[0].mxu0
        %2376 = vmatprep.mubr.f32.mxu0 0.0
        %2377 = vmatmul.mubr.f32.gmra.mrb[0].mxu0 %v2272
        %v2378 = vpop.f32.mrb[0].mxu0
        %v2379 = vadd.f32 0.0, %v2378
        %v2380 = vpop.f32.mrb[0].mxu0
        %2381 = vdwg.mxu0
        %v2382 = vadd.f32 %v2110, %v2344
        %v2383 = vadd.f32 %v2111, %v2349
        %v2384 = vadd.f32 %v2112, %v2354
        %v2385 = vadd.f32 %v2113, %v2359
        %v2386 = vadd.f32 %v2114, %v2364
        %v2387 = vadd.f32 %v2115, %v2369
        %v2388 = vadd.f32 %v2116, %v2374
        %v2389 = vadd.f32 %v2117, %v2379
        %s2390 = scalar_lea.vmem %s1, 384
        %v2391 = vld [vmem:[%s2390] sm:$0xff]
        %v2392 = vld [vmem:[%s2390 + $0x8] sm:$0xff]
        %v2393 = vld [vmem:[%s2390 + $0x10] sm:$0xff]
        %v2394 = vld [vmem:[%s2390 + $0x18] sm:$0xff]
        %v2395 = vld [vmem:[%s2390 + $0x20] sm:$0xff]
        %v2396 = vld [vmem:[%s2390 + $0x28] sm:$0xff]
        %v2397 = vld [vmem:[%s2390 + $0x30] sm:$0xff]
        %v2398 = vld [vmem:[%s2390 + $0x38] sm:$0xff]
        %v2399 = vunpack.c.l.bf16 %v2391
        %v2400 = vunpack.c.h.bf16 %v2391
        %v2401 = vunpack.c.l.bf16 %v2392
        %v2402 = vunpack.c.h.bf16 %v2392
        %v2403 = vunpack.c.l.bf16 %v2393
        %v2404 = vunpack.c.h.bf16 %v2393
        %v2405 = vunpack.c.l.bf16 %v2394
        %v2406 = vunpack.c.h.bf16 %v2394
        %v2407 = vunpack.c.l.bf16 %v2395
        %v2408 = vunpack.c.h.bf16 %v2395
        %v2409 = vunpack.c.l.bf16 %v2396
        %v2410 = vunpack.c.h.bf16 %v2396
        %v2411 = vunpack.c.l.bf16 %v2397
        %v2412 = vunpack.c.h.bf16 %v2397
        %v2413 = vunpack.c.l.bf16 %v2398
        %v2414 = vunpack.c.h.bf16 %v2398
        %2415 = vmatprep.subr.mxu0 0.0
        %2416 = vmatpush1.msra.mxu0 %v742
        %2417 = vmatprep.subr.mxu0 0.0
        %2418 = vmatpush1.msra.mxu0 %v743
        %2419 = vmatprep.subr.mxu0 0.0
        %2420 = vmatpush1.msra.mxu0 %v744
        %2421 = vmatprep.subr.mxu0 0.0
        %2422 = vmatpush1.msra.mxu0 %v745
        %2423 = vmatprep.subr.mxu0 0.0
        %2424 = vmatpush1.msra.mxu0 %v746
        %2425 = vmatprep.subr.mxu0 0.0
        %2426 = vmatpush1.msra.mxu0 %v747
        %2427 = vmatprep.subr.mxu0 0.0
        %2428 = vmatpush1.msra.mxu0 %v748
        %2429 = vmatprep.subr.mxu0 0.0
        %2430 = vmatpush1.msra.mxu0 %v749
        %2431 = vmatprep.subr.mxu0 0.0
        %2432 = vmatpush1.msra.mxu0 %v750
        %2433 = vmatprep.subr.mxu0 0.0
        %2434 = vmatpush1.msra.mxu0 %v751
        %2435 = vmatprep.subr.mxu0 0.0
        %2436 = vmatpush1.msra.mxu0 %v752
        %2437 = vmatprep.subr.mxu0 0.0
        %2438 = vmatpush1.msra.mxu0 %v753
        %2439 = vmatprep.subr.mxu0 0.0
        %2440 = vmatpush1.msra.mxu0 %v754
        %2441 = vmatprep.subr.mxu0 0.0
        %2442 = vmatpush1.msra.mxu0 %v755
        %2443 = vmatprep.subr.mxu0 0.0
        %2444 = vmatpush1.msra.mxu0 %v756
        %2445 = vmatprep.subr.mxu0 0.0
        %2446 = vmatpush1.msra.mxu0 %v757
        %2447 = vmatprep.subr.mxu0 0.0
        %2448 = vmatpush1.msra.mxu0 %v758
        %2449 = vmatprep.subr.mxu0 0.0
        %2450 = vmatpush1.msra.mxu0 %v759
        %2451 = vmatprep.subr.mxu0 0.0
        %2452 = vmatpush1.msra.mxu0 %v760
        %2453 = vmatprep.subr.mxu0 0.0
        %2454 = vmatpush1.msra.mxu0 %v761
        %2455 = vmatprep.subr.mxu0 0.0
        %2456 = vmatpush1.msra.mxu0 %v762
        %2457 = vmatprep.subr.mxu0 0.0
        %2458 = vmatpush1.msra.mxu0 %v763
        %2459 = vmatprep.subr.mxu0 0.0
        %2460 = vmatpush1.msra.mxu0 %v764
        %2461 = vmatprep.subr.mxu0 0.0
        %2462 = vmatpush1.msra.mxu0 %v765
        %2463 = vmatprep.subr.mxu0 0.0
        %2464 = vmatpush1.msra.mxu0 %v766
        %2465 = vmatprep.subr.mxu0 0.0
        %2466 = vmatpush1.msra.mxu0 %v767
        %2467 = vmatprep.subr.mxu0 0.0
        %2468 = vmatpush1.msra.mxu0 %v768
        %2469 = vmatprep.subr.mxu0 0.0
        %2470 = vmatpush1.msra.mxu0 %v769
        %2471 = vmatprep.subr.mxu0 0.0
        %2472 = vmatpush1.msra.mxu0 %v770
        %2473 = vmatprep.subr.mxu0 0.0
        %2474 = vmatpush1.msra.mxu0 %v771
        %2475 = vmatprep.subr.mxu0 0.0
        %2476 = vmatpush1.msra.mxu0 %v772
        %2477 = vmatprep.subr.mxu0 0.0
        %2478 = vmatpush1.msra.mxu0 %v773
        %2479 = vmatprep.mubr.f32.mxu0 %v2400
        %2480 = vmatmul.mubr.f32.gmra.mrb[0].mxu0 %v2399
        %v2481 = vpop.f32.mrb[0].mxu0
        %v2482 = vadd.f32 0.0, %v2481
        %v2483 = vpop.f32.mrb[0].mxu0
        %2484 = vmatprep.mubr.f32.mxu0 %v2402
        %2485 = vmatmul.mubr.f32.gmra.mrb[0].mxu0 %v2401
        %v2486 = vpop.f32.mrb[0].mxu0
        %v2487 = vadd.f32 0.0, %v2486
        %v2488 = vpop.f32.mrb[0].mxu0
        %2489 = vmatprep.mubr.f32.mxu0 %v2404
        %2490 = vmatmul.mubr.f32.gmra.mrb[0].mxu0 %v2403
        %v2491 = vpop.f32.mrb[0].mxu0
        %v2492 = vadd.f32 0.0, %v2491
        %v2493 = vpop.f32.mrb[0].mxu0
        %2494 = vmatprep.mubr.f32.mxu0 %v2406
        %2495 = vmatmul.mubr.f32.gmra.mrb[0].mxu0 %v2405
        %v2496 = vpop.f32.mrb[0].mxu0
        %v2497 = vadd.f32 0.0, %v2496
        %v2498 = vpop.f32.mrb[0].mxu0
        %2499 = vmatprep.mubr.f32.mxu0 %v2408
        %2500 = vmatmul.mubr.f32.gmra.mrb[0].mxu0 %v2407
        %v2501 = vpop.f32.mrb[0].mxu0
        %v2502 = vadd.f32 0.0, %v2501
        %v2503 = vpop.f32.mrb[0].mxu0
        %2504 = vmatprep.mubr.f32.mxu0 %v2410
        %2505 = vmatmul.mubr.f32.gmra.mrb[0].mxu0 %v2409
        %v2506 = vpop.f32.mrb[0].mxu0
        %v2507 = vadd.f32 0.0, %v2506
        %v2508 = vpop.f32.mrb[0].mxu0
        %2509 = vmatprep.mubr.f32.mxu0 %v2412
        %2510 = vmatmul.mubr.f32.gmra.mrb[0].mxu0 %v2411
        %v2511 = vpop.f32.mrb[0].mxu0
        %v2512 = vadd.f32 0.0, %v2511
        %v2513 = vpop.f32.mrb[0].mxu0
        %2514 = vmatprep.mubr.f32.mxu0 %v2414
        %2515 = vmatmul.mubr.f32.gmra.mrb[0].mxu0 %v2413
        %v2516 = vpop.f32.mrb[0].mxu0
        %v2517 = vadd.f32 0.0, %v2516
        %v2518 = vpop.f32.mrb[0].mxu0
        %2519 = vdwg.mxu0
        %s2520 = scalar_lea.vmem %s2, 24
        %v2521 = vld [vmem:[%s2520] sm:$0xf]
        %v2523 = vsel %vm1036, %v2482, 0
        %v2526 = vsel %vm1036, %v2487, 0
        %v2529 = vsel %vm1036, %v2492, 0
        %v2532 = vsel %vm1036, %v2497, 0
        %v2535 = vsel %vm1036, %v2502, 0
        %v2538 = vsel %vm1036, %v2507, 0
        %v2541 = vsel %vm1036, %v2512, 0
        %v2544 = vsel %vm1036, %v2517, 0
        %v2547 = vsel %vm1061, %v2521, 0
        %2549 = vmatprep.subr.mxu0 0.0
        %2550 = vmatpush1.msra.mxu0 %v2547
        %2551 = vmatprep.subr.mxu0 0.0
        %2552 = vmatpush1.msra.mxu0 0.0
        %2553 = vmatprep.subr.mxu0 0.0
        %2554 = vmatpush1.msra.mxu0 0.0
        %2555 = vmatprep.subr.mxu0 0.0
        %2556 = vmatpush1.msra.mxu0 0.0
        %2557 = vmatprep.subr.mxu0 0.0
        %2558 = vmatpush1.msra.mxu0 0.0
        %2559 = vmatprep.subr.mxu0 0.0
        %2560 = vmatpush1.msra.mxu0 0.0
        %2561 = vmatprep.subr.mxu0 0.0
        %2562 = vmatpush1.msra.mxu0 0.0
        %2563 = vmatprep.subr.mxu0 0.0
        %2564 = vmatpush1.msra.mxu0 0.0
        %2565 = vmatprep.subr.mxu0 0.0
        %2566 = vmatpush1.msra.mxu0 0.0
        %2567 = vmatprep.subr.mxu0 0.0
        %2568 = vmatpush1.msra.mxu0 0.0
        %2569 = vmatprep.subr.mxu0 0.0
        %2570 = vmatpush1.msra.mxu0 0.0
        %2571 = vmatprep.subr.mxu0 0.0
        %2572 = vmatpush1.msra.mxu0 0.0
        %2573 = vmatprep.subr.mxu0 0.0
        %2574 = vmatpush1.msra.mxu0 0.0
        %2575 = vmatprep.subr.mxu0 0.0
        %2576 = vmatpush1.msra.mxu0 0.0
        %2577 = vmatprep.subr.mxu0 0.0
        %2578 = vmatpush1.msra.mxu0 0.0
        %2579 = vmatprep.subr.mxu0 0.0
        %2580 = vmatpush1.msra.mxu0 0.0
        %2581 = vmatprep.subr.mxu0 0.0
        %2582 = vmatpush1.msra.mxu0 0.0
        %2583 = vmatprep.subr.mxu0 0.0
        %2584 = vmatpush1.msra.mxu0 0.0
        %2585 = vmatprep.subr.mxu0 0.0
        %2586 = vmatpush1.msra.mxu0 0.0
        %2587 = vmatprep.subr.mxu0 0.0
        %2588 = vmatpush1.msra.mxu0 0.0
        %2589 = vmatprep.subr.mxu0 0.0
        %2590 = vmatpush1.msra.mxu0 0.0
        %2591 = vmatprep.subr.mxu0 0.0
        %2592 = vmatpush1.msra.mxu0 0.0
        %2593 = vmatprep.subr.mxu0 0.0
        %2594 = vmatpush1.msra.mxu0 0.0
        %2595 = vmatprep.subr.mxu0 0.0
        %2596 = vmatpush1.msra.mxu0 0.0
        %2597 = vmatprep.subr.mxu0 0.0
        %2598 = vmatpush1.msra.mxu0 0.0
        %2599 = vmatprep.subr.mxu0 0.0
        %2600 = vmatpush1.msra.mxu0 0.0
        %2601 = vmatprep.subr.mxu0 0.0
        %2602 = vmatpush1.msra.mxu0 0.0
        %2603 = vmatprep.subr.mxu0 0.0
        %2604 = vmatpush1.msra.mxu0 0.0
        %2605 = vmatprep.subr.mxu0 0.0
        %2606 = vmatpush1.msra.mxu0 0.0
        %2607 = vmatprep.subr.mxu0 0.0
        %2608 = vmatpush1.msra.mxu0 0.0
        %2609 = vmatprep.subr.mxu0 0.0
        %2610 = vmatpush1.msra.mxu0 0.0
        %2611 = vmatprep.subr.mxu0 0.0
        %2612 = vmatpush1.msra.mxu0 0.0
        %2613 = vmatprep.mubr.f32.mxu0 0.0
        %2614 = vmatmul.mubr.f32.gmra.mrb[0].mxu0 %v2523
        %v2615 = vpop.f32.mrb[0].mxu0
        %v2616 = vadd.f32 0.0, %v2615
        %v2617 = vpop.f32.mrb[0].mxu0
        %2618 = vmatprep.mubr.f32.mxu0 0.0
        %2619 = vmatmul.mubr.f32.gmra.mrb[0].mxu0 %v2526
        %v2620 = vpop.f32.mrb[0].mxu0
        %v2621 = vadd.f32 0.0, %v2620
        %v2622 = vpop.f32.mrb[0].mxu0
        %2623 = vmatprep.mubr.f32.mxu0 0.0
        %2624 = vmatmul.mubr.f32.gmra.mrb[0].mxu0 %v2529
        %v2625 = vpop.f32.mrb[0].mxu0
        %v2626 = vadd.f32 0.0, %v2625
        %v2627 = vpop.f32.mrb[0].mxu0
        %2628 = vmatprep.mubr.f32.mxu0 0.0
        %2629 = vmatmul.mubr.f32.gmra.mrb[0].mxu0 %v2532
        %v2630 = vpop.f32.mrb[0].mxu0
        %v2631 = vadd.f32 0.0, %v2630
        %v2632 = vpop.f32.mrb[0].mxu0
        %2633 = vmatprep.mubr.f32.mxu0 0.0
        %2634 = vmatmul.mubr.f32.gmra.mrb[0].mxu0 %v2535
        %v2635 = vpop.f32.mrb[0].mxu0
        %v2636 = vadd.f32 0.0, %v2635
        %v2637 = vpop.f32.mrb[0].mxu0
        %2638 = vmatprep.mubr.f32.mxu0 0.0
        %2639 = vmatmul.mubr.f32.gmra.mrb[0].mxu0 %v2538
        %v2640 = vpop.f32.mrb[0].mxu0
        %v2641 = vadd.f32 0.0, %v2640
        %v2642 = vpop.f32.mrb[0].mxu0
        %2643 = vmatprep.mubr.f32.mxu0 0.0
        %2644 = vmatmul.mubr.f32.gmra.mrb[0].mxu0 %v2541
        %v2645 = vpop.f32.mrb[0].mxu0
        %v2646 = vadd.f32 0.0, %v2645
        %v2647 = vpop.f32.mrb[0].mxu0
        %2648 = vmatprep.mubr.f32.mxu0 0.0
        %2649 = vmatmul.mubr.f32.gmra.mrb[0].mxu0 %v2544
        %v2650 = vpop.f32.mrb[0].mxu0
        %v2651 = vadd.f32 0.0, %v2650
        %v2652 = vpop.f32.mrb[0].mxu0
        %2653 = vdwg.mxu0
        %v2654 = vadd.f32 %v2382, %v2616
        %v2655 = vadd.f32 %v2383, %v2621
        %v2656 = vadd.f32 %v2384, %v2626
        %v2657 = vadd.f32 %v2385, %v2631
        %v2658 = vadd.f32 %v2386, %v2636
        %v2659 = vadd.f32 %v2387, %v2641
        %v2660 = vadd.f32 %v2388, %v2646
        %v2661 = vadd.f32 %v2389, %v2651
        %s2662 = scalar_lea.vmem %s1, 448
        %v2663 = vld [vmem:[%s2662] sm:$0xff]
        %v2664 = vld [vmem:[%s2662 + $0x8] sm:$0xff]
        %v2665 = vld [vmem:[%s2662 + $0x10] sm:$0xff]
        %v2666 = vld [vmem:[%s2662 + $0x18] sm:$0xff]
        %v2667 = vld [vmem:[%s2662 + $0x20] sm:$0xff]
        %v2668 = vld [vmem:[%s2662 + $0x28] sm:$0xff]
        %v2669 = vld [vmem:[%s2662 + $0x30] sm:$0xff]
        %v2670 = vld [vmem:[%s2662 + $0x38] sm:$0xff]
        %v2671 = vunpack.c.l.bf16 %v2663
        %v2672 = vunpack.c.h.bf16 %v2663
        %v2673 = vunpack.c.l.bf16 %v2664
        %v2674 = vunpack.c.h.bf16 %v2664
        %v2675 = vunpack.c.l.bf16 %v2665
        %v2676 = vunpack.c.h.bf16 %v2665
        %v2677 = vunpack.c.l.bf16 %v2666
        %v2678 = vunpack.c.h.bf16 %v2666
        %v2679 = vunpack.c.l.bf16 %v2667
        %v2680 = vunpack.c.h.bf16 %v2667
        %v2681 = vunpack.c.l.bf16 %v2668
        %v2682 = vunpack.c.h.bf16 %v2668
        %v2683 = vunpack.c.l.bf16 %v2669
        %v2684 = vunpack.c.h.bf16 %v2669
        %v2685 = vunpack.c.l.bf16 %v2670
        %v2686 = vunpack.c.h.bf16 %v2670
        %2687 = vmatprep.subr.mxu0 0.0
        %2688 = vmatpush1.msra.mxu0 %v742
        %2689 = vmatprep.subr.mxu0 0.0
        %2690 = vmatpush1.msra.mxu0 %v743
        %2691 = vmatprep.subr.mxu0 0.0
        %2692 = vmatpush1.msra.mxu0 %v744
        %2693 = vmatprep.subr.mxu0 0.0
        %2694 = vmatpush1.msra.mxu0 %v745
        %2695 = vmatprep.subr.mxu0 0.0
        %2696 = vmatpush1.msra.mxu0 %v746
        %2697 = vmatprep.subr.mxu0 0.0
        %2698 = vmatpush1.msra.mxu0 %v747
        %2699 = vmatprep.subr.mxu0 0.0
        %2700 = vmatpush1.msra.mxu0 %v748
        %2701 = vmatprep.subr.mxu0 0.0
        %2702 = vmatpush1.msra.mxu0 %v749
        %2703 = vmatprep.subr.mxu0 0.0
        %2704 = vmatpush1.msra.mxu0 %v750
        %2705 = vmatprep.subr.mxu0 0.0
        %2706 = vmatpush1.msra.mxu0 %v751
        %2707 = vmatprep.subr.mxu0 0.0
        %2708 = vmatpush1.msra.mxu0 %v752
        %2709 = vmatprep.subr.mxu0 0.0
        %2710 = vmatpush1.msra.mxu0 %v753
        %2711 = vmatprep.subr.mxu0 0.0
        %2712 = vmatpush1.msra.mxu0 %v754
        %2713 = vmatprep.subr.mxu0 0.0
        %2714 = vmatpush1.msra.mxu0 %v755
        %2715 = vmatprep.subr.mxu0 0.0
        %2716 = vmatpush1.msra.mxu0 %v756
        %2717 = vmatprep.subr.mxu0 0.0
        %2718 = vmatpush1.msra.mxu0 %v757
        %2719 = vmatprep.subr.mxu0 0.0
        %2720 = vmatpush1.msra.mxu0 %v758
        %2721 = vmatprep.subr.mxu0 0.0
        %2722 = vmatpush1.msra.mxu0 %v759
        %2723 = vmatprep.subr.mxu0 0.0
        %2724 = vmatpush1.msra.mxu0 %v760
        %2725 = vmatprep.subr.mxu0 0.0
        %2726 = vmatpush1.msra.mxu0 %v761
        %2727 = vmatprep.subr.mxu0 0.0
        %2728 = vmatpush1.msra.mxu0 %v762
        %2729 = vmatprep.subr.mxu0 0.0
        %2730 = vmatpush1.msra.mxu0 %v763
        %2731 = vmatprep.subr.mxu0 0.0
        %2732 = vmatpush1.msra.mxu0 %v764
        %2733 = vmatprep.subr.mxu0 0.0
        %2734 = vmatpush1.msra.mxu0 %v765
        %2735 = vmatprep.subr.mxu0 0.0
        %2736 = vmatpush1.msra.mxu0 %v766
        %2737 = vmatprep.subr.mxu0 0.0
        %2738 = vmatpush1.msra.mxu0 %v767
        %2739 = vmatprep.subr.mxu0 0.0
        %2740 = vmatpush1.msra.mxu0 %v768
        %2741 = vmatprep.subr.mxu0 0.0
        %2742 = vmatpush1.msra.mxu0 %v769
        %2743 = vmatprep.subr.mxu0 0.0
        %2744 = vmatpush1.msra.mxu0 %v770
        %2745 = vmatprep.subr.mxu0 0.0
        %2746 = vmatpush1.msra.mxu0 %v771
        %2747 = vmatprep.subr.mxu0 0.0
        %2748 = vmatpush1.msra.mxu0 %v772
        %2749 = vmatprep.subr.mxu0 0.0
        %2750 = vmatpush1.msra.mxu0 %v773
        %2751 = vmatprep.mubr.f32.mxu0 %v2672
        %2752 = vmatmul.mubr.f32.gmra.mrb[0].mxu0 %v2671
        %v2753 = vpop.f32.mrb[0].mxu0
        %v2754 = vadd.f32 0.0, %v2753
        %v2755 = vpop.f32.mrb[0].mxu0
        %2756 = vmatprep.mubr.f32.mxu0 %v2674
        %2757 = vmatmul.mubr.f32.gmra.mrb[0].mxu0 %v2673
        %v2758 = vpop.f32.mrb[0].mxu0
        %v2759 = vadd.f32 0.0, %v2758
        %v2760 = vpop.f32.mrb[0].mxu0
        %2761 = vmatprep.mubr.f32.mxu0 %v2676
        %2762 = vmatmul.mubr.f32.gmra.mrb[0].mxu0 %v2675
        %v2763 = vpop.f32.mrb[0].mxu0
        %v2764 = vadd.f32 0.0, %v2763
        %v2765 = vpop.f32.mrb[0].mxu0
        %2766 = vmatprep.mubr.f32.mxu0 %v2678
        %2767 = vmatmul.mubr.f32.gmra.mrb[0].mxu0 %v2677
        %v2768 = vpop.f32.mrb[0].mxu0
        %v2769 = vadd.f32 0.0, %v2768
        %v2770 = vpop.f32.mrb[0].mxu0
        %2771 = vmatprep.mubr.f32.mxu0 %v2680
        %2772 = vmatmul.mubr.f32.gmra.mrb[0].mxu0 %v2679
        %v2773 = vpop.f32.mrb[0].mxu0
        %v2774 = vadd.f32 0.0, %v2773
        %v2775 = vpop.f32.mrb[0].mxu0
        %2776 = vmatprep.mubr.f32.mxu0 %v2682
        %2777 = vmatmul.mubr.f32.gmra.mrb[0].mxu0 %v2681
        %v2778 = vpop.f32.mrb[0].mxu0
        %v2779 = vadd.f32 0.0, %v2778
        %v2780 = vpop.f32.mrb[0].mxu0
        %2781 = vmatprep.mubr.f32.mxu0 %v2684
        %2782 = vmatmul.mubr.f32.gmra.mrb[0].mxu0 %v2683
        %v2783 = vpop.f32.mrb[0].mxu0
        %v2784 = vadd.f32 0.0, %v2783
        %v2785 = vpop.f32.mrb[0].mxu0
        %2786 = vmatprep.mubr.f32.mxu0 %v2686
        %2787 = vmatmul.mubr.f32.gmra.mrb[0].mxu0 %v2685
        %v2788 = vpop.f32.mrb[0].mxu0
        %v2789 = vadd.f32 0.0, %v2788
        %v2790 = vpop.f32.mrb[0].mxu0
        %2791 = vdwg.mxu0
        %s2792 = scalar_lea.vmem %s2, 28
        %v2793 = vld [vmem:[%s2792] sm:$0xf]
        %v2795 = vsel %vm1036, %v2754, 0
        %v2798 = vsel %vm1036, %v2759, 0
        %v2801 = vsel %vm1036, %v2764, 0
        %v2804 = vsel %vm1036, %v2769, 0
        %v2807 = vsel %vm1036, %v2774, 0
        %v2810 = vsel %vm1036, %v2779, 0
        %v2813 = vsel %vm1036, %v2784, 0
        %v2816 = vsel %vm1036, %v2789, 0
        %v2819 = vsel %vm1061, %v2793, 0
        %2821 = vmatprep.subr.mxu0 0.0
        %2822 = vmatpush1.msra.mxu0 %v2819
        %2823 = vmatprep.subr.mxu0 0.0
        %2824 = vmatpush1.msra.mxu0 0.0
        %2825 = vmatprep.subr.mxu0 0.0
        %2826 = vmatpush1.msra.mxu0 0.0
        %2827 = vmatprep.subr.mxu0 0.0
        %2828 = vmatpush1.msra.mxu0 0.0
        %2829 = vmatprep.subr.mxu0 0.0
        %2830 = vmatpush1.msra.mxu0 0.0
        %2831 = vmatprep.subr.mxu0 0.0
        %2832 = vmatpush1.msra.mxu0 0.0
        %2833 = vmatprep.subr.mxu0 0.0
        %2834 = vmatpush1.msra.mxu0 0.0
        %2835 = vmatprep.subr.mxu0 0.0
        %2836 = vmatpush1.msra.mxu0 0.0
        %2837 = vmatprep.subr.mxu0 0.0
        %2838 = vmatpush1.msra.mxu0 0.0
        %2839 = vmatprep.subr.mxu0 0.0
        %2840 = vmatpush1.msra.mxu0 0.0
        %2841 = vmatprep.subr.mxu0 0.0
        %2842 = vmatpush1.msra.mxu0 0.0
        %2843 = vmatprep.subr.mxu0 0.0
        %2844 = vmatpush1.msra.mxu0 0.0
        %2845 = vmatprep.subr.mxu0 0.0
        %2846 = vmatpush1.msra.mxu0 0.0
        %2847 = vmatprep.subr.mxu0 0.0
        %2848 = vmatpush1.msra.mxu0 0.0
        %2849 = vmatprep.subr.mxu0 0.0
        %2850 = vmatpush1.msra.mxu0 0.0
        %2851 = vmatprep.subr.mxu0 0.0
        %2852 = vmatpush1.msra.mxu0 0.0
        %2853 = vmatprep.subr.mxu0 0.0
        %2854 = vmatpush1.msra.mxu0 0.0
        %2855 = vmatprep.subr.mxu0 0.0
        %2856 = vmatpush1.msra.mxu0 0.0
        %2857 = vmatprep.subr.mxu0 0.0
        %2858 = vmatpush1.msra.mxu0 0.0
        %2859 = vmatprep.subr.mxu0 0.0
        %2860 = vmatpush1.msra.mxu0 0.0
        %2861 = vmatprep.subr.mxu0 0.0
        %2862 = vmatpush1.msra.mxu0 0.0
        %2863 = vmatprep.subr.mxu0 0.0
        %2864 = vmatpush1.msra.mxu0 0.0
        %2865 = vmatprep.subr.mxu0 0.0
        %2866 = vmatpush1.msra.mxu0 0.0
        %2867 = vmatprep.subr.mxu0 0.0
        %2868 = vmatpush1.msra.mxu0 0.0
        %2869 = vmatprep.subr.mxu0 0.0
        %2870 = vmatpush1.msra.mxu0 0.0
        %2871 = vmatprep.subr.mxu0 0.0
        %2872 = vmatpush1.msra.mxu0 0.0
        %2873 = vmatprep.subr.mxu0 0.0
        %2874 = vmatpush1.msra.mxu0 0.0
        %2875 = vmatprep.subr.mxu0 0.0
        %2876 = vmatpush1.msra.mxu0 0.0
        %2877 = vmatprep.subr.mxu0 0.0
        %2878 = vmatpush1.msra.mxu0 0.0
        %2879 = vmatprep.subr.mxu0 0.0
        %2880 = vmatpush1.msra.mxu0 0.0
        %2881 = vmatprep.subr.mxu0 0.0
        %2882 = vmatpush1.msra.mxu0 0.0
        %2883 = vmatprep.subr.mxu0 0.0
        %2884 = vmatpush1.msra.mxu0 0.0
        %2885 = vmatprep.mubr.f32.mxu0 0.0
        %2886 = vmatmul.mubr.f32.gmra.mrb[0].mxu0 %v2795
        %v2887 = vpop.f32.mrb[0].mxu0
        %v2888 = vadd.f32 0.0, %v2887
        %v2889 = vpop.f32.mrb[0].mxu0
        %2890 = vmatprep.mubr.f32.mxu0 0.0
        %2891 = vmatmul.mubr.f32.gmra.mrb[0].mxu0 %v2798
        %v2892 = vpop.f32.mrb[0].mxu0
        %v2893 = vadd.f32 0.0, %v2892
        %v2894 = vpop.f32.mrb[0].mxu0
        %2895 = vmatprep.mubr.f32.mxu0 0.0
        %2896 = vmatmul.mubr.f32.gmra.mrb[0].mxu0 %v2801
        %v2897 = vpop.f32.mrb[0].mxu0
        %v2898 = vadd.f32 0.0, %v2897
        %v2899 = vpop.f32.mrb[0].mxu0
        %2900 = vmatprep.mubr.f32.mxu0 0.0
        %2901 = vmatmul.mubr.f32.gmra.mrb[0].mxu0 %v2804
        %v2902 = vpop.f32.mrb[0].mxu0
        %v2903 = vadd.f32 0.0, %v2902
        %v2904 = vpop.f32.mrb[0].mxu0
        %2905 = vmatprep.mubr.f32.mxu0 0.0
        %2906 = vmatmul.mubr.f32.gmra.mrb[0].mxu0 %v2807
        %v2907 = vpop.f32.mrb[0].mxu0
        %v2908 = vadd.f32 0.0, %v2907
        %v2909 = vpop.f32.mrb[0].mxu0
        %2910 = vmatprep.mubr.f32.mxu0 0.0
        %2911 = vmatmul.mubr.f32.gmra.mrb[0].mxu0 %v2810
        %v2912 = vpop.f32.mrb[0].mxu0
        %v2913 = vadd.f32 0.0, %v2912
        %v2914 = vpop.f32.mrb[0].mxu0
        %2915 = vmatprep.mubr.f32.mxu0 0.0
        %2916 = vmatmul.mubr.f32.gmra.mrb[0].mxu0 %v2813
        %v2917 = vpop.f32.mrb[0].mxu0
        %v2918 = vadd.f32 0.0, %v2917
        %v2919 = vpop.f32.mrb[0].mxu0
        %2920 = vmatprep.mubr.f32.mxu0 0.0
        %2921 = vmatmul.mubr.f32.gmra.mrb[0].mxu0 %v2816
        %v2922 = vpop.f32.mrb[0].mxu0
        %v2923 = vadd.f32 0.0, %v2922
        %v2924 = vpop.f32.mrb[0].mxu0
        %2925 = vdwg.mxu0
        %v2926 = vadd.f32 %v2654, %v2888
        %v2927 = vadd.f32 %v2655, %v2893
        %v2928 = vadd.f32 %v2656, %v2898
        %v2929 = vadd.f32 %v2657, %v2903
        %v2930 = vadd.f32 %v2658, %v2908
        %v2931 = vadd.f32 %v2659, %v2913
        %v2932 = vadd.f32 %v2660, %v2918
        %v2933 = vadd.f32 %v2661, %v2923
        %s2934 = scalar_lea.vmem %s1, 512
        %v2935 = vld [vmem:[%s2934] sm:$0xff]
        %v2936 = vld [vmem:[%s2934 + $0x8] sm:$0xff]
        %v2937 = vld [vmem:[%s2934 + $0x10] sm:$0xff]
        %v2938 = vld [vmem:[%s2934 + $0x18] sm:$0xff]
        %v2939 = vld [vmem:[%s2934 + $0x20] sm:$0xff]
        %v2940 = vld [vmem:[%s2934 + $0x28] sm:$0xff]
        %v2941 = vld [vmem:[%s2934 + $0x30] sm:$0xff]
        %v2942 = vld [vmem:[%s2934 + $0x38] sm:$0xff]
        %v2943 = vunpack.c.l.bf16 %v2935
        %v2944 = vunpack.c.h.bf16 %v2935
        %v2945 = vunpack.c.l.bf16 %v2936
        %v2946 = vunpack.c.h.bf16 %v2936
        %v2947 = vunpack.c.l.bf16 %v2937
        %v2948 = vunpack.c.h.bf16 %v2937
        %v2949 = vunpack.c.l.bf16 %v2938
        %v2950 = vunpack.c.h.bf16 %v2938
        %v2951 = vunpack.c.l.bf16 %v2939
        %v2952 = vunpack.c.h.bf16 %v2939
        %v2953 = vunpack.c.l.bf16 %v2940
        %v2954 = vunpack.c.h.bf16 %v2940
        %v2955 = vunpack.c.l.bf16 %v2941
        %v2956 = vunpack.c.h.bf16 %v2941
        %v2957 = vunpack.c.l.bf16 %v2942
        %v2958 = vunpack.c.h.bf16 %v2942
        %2959 = vmatprep.subr.mxu0 0.0
        %2960 = vmatpush1.msra.mxu0 %v742
        %2961 = vmatprep.subr.mxu0 0.0
        %2962 = vmatpush1.msra.mxu0 %v743
        %2963 = vmatprep.subr.mxu0 0.0
        %2964 = vmatpush1.msra.mxu0 %v744
        %2965 = vmatprep.subr.mxu0 0.0
        %2966 = vmatpush1.msra.mxu0 %v745
        %2967 = vmatprep.subr.mxu0 0.0
        %2968 = vmatpush1.msra.mxu0 %v746
        %2969 = vmatprep.subr.mxu0 0.0
        %2970 = vmatpush1.msra.mxu0 %v747
        %2971 = vmatprep.subr.mxu0 0.0
        %2972 = vmatpush1.msra.mxu0 %v748
        %2973 = vmatprep.subr.mxu0 0.0
        %2974 = vmatpush1.msra.mxu0 %v749
        %2975 = vmatprep.subr.mxu0 0.0
        %2976 = vmatpush1.msra.mxu0 %v750
        %2977 = vmatprep.subr.mxu0 0.0
        %2978 = vmatpush1.msra.mxu0 %v751
        %2979 = vmatprep.subr.mxu0 0.0
        %2980 = vmatpush1.msra.mxu0 %v752
        %2981 = vmatprep.subr.mxu0 0.0
        %2982 = vmatpush1.msra.mxu0 %v753
        %2983 = vmatprep.subr.mxu0 0.0
        %2984 = vmatpush1.msra.mxu0 %v754
        %2985 = vmatprep.subr.mxu0 0.0
        %2986 = vmatpush1.msra.mxu0 %v755
        %2987 = vmatprep.subr.mxu0 0.0
        %2988 = vmatpush1.msra.mxu0 %v756
        %2989 = vmatprep.subr.mxu0 0.0
        %2990 = vmatpush1.msra.mxu0 %v757
        %2991 = vmatprep.subr.mxu0 0.0
        %2992 = vmatpush1.msra.mxu0 %v758
        %2993 = vmatprep.subr.mxu0 0.0
        %2994 = vmatpush1.msra.mxu0 %v759
        %2995 = vmatprep.subr.mxu0 0.0
        %2996 = vmatpush1.msra.mxu0 %v760
        %2997 = vmatprep.subr.mxu0 0.0
        %2998 = vmatpush1.msra.mxu0 %v761
        %2999 = vmatprep.subr.mxu0 0.0
        %3000 = vmatpush1.msra.mxu0 %v762
        %3001 = vmatprep.subr.mxu0 0.0
        %3002 = vmatpush1.msra.mxu0 %v763
        %3003 = vmatprep.subr.mxu0 0.0
        %3004 = vmatpush1.msra.mxu0 %v764
        %3005 = vmatprep.subr.mxu0 0.0
        %3006 = vmatpush1.msra.mxu0 %v765
        %3007 = vmatprep.subr.mxu0 0.0
        %3008 = vmatpush1.msra.mxu0 %v766
        %3009 = vmatprep.subr.mxu0 0.0
        %3010 = vmatpush1.msra.mxu0 %v767
        %3011 = vmatprep.subr.mxu0 0.0
        %3012 = vmatpush1.msra.mxu0 %v768
        %3013 = vmatprep.subr.mxu0 0.0
        %3014 = vmatpush1.msra.mxu0 %v769
        %3015 = vmatprep.subr.mxu0 0.0
        %3016 = vmatpush1.msra.mxu0 %v770
        %3017 = vmatprep.subr.mxu0 0.0
        %3018 = vmatpush1.msra.mxu0 %v771
        %3019 = vmatprep.subr.mxu0 0.0
        %3020 = vmatpush1.msra.mxu0 %v772
        %3021 = vmatprep.subr.mxu0 0.0
        %3022 = vmatpush1.msra.mxu0 %v773
        %3023 = vmatprep.mubr.f32.mxu0 %v2944
        %3024 = vmatmul.mubr.f32.gmra.mrb[0].mxu0 %v2943
        %v3025 = vpop.f32.mrb[0].mxu0
        %v3026 = vadd.f32 0.0, %v3025
        %v3027 = vpop.f32.mrb[0].mxu0
        %3028 = vmatprep.mubr.f32.mxu0 %v2946
        %3029 = vmatmul.mubr.f32.gmra.mrb[0].mxu0 %v2945
        %v3030 = vpop.f32.mrb[0].mxu0
        %v3031 = vadd.f32 0.0, %v3030
        %v3032 = vpop.f32.mrb[0].mxu0
        %3033 = vmatprep.mubr.f32.mxu0 %v2948
        %3034 = vmatmul.mubr.f32.gmra.mrb[0].mxu0 %v2947
        %v3035 = vpop.f32.mrb[0].mxu0
        %v3036 = vadd.f32 0.0, %v3035
        %v3037 = vpop.f32.mrb[0].mxu0
        %3038 = vmatprep.mubr.f32.mxu0 %v2950
        %3039 = vmatmul.mubr.f32.gmra.mrb[0].mxu0 %v2949
        %v3040 = vpop.f32.mrb[0].mxu0
        %v3041 = vadd.f32 0.0, %v3040
        %v3042 = vpop.f32.mrb[0].mxu0
        %3043 = vmatprep.mubr.f32.mxu0 %v2952
        %3044 = vmatmul.mubr.f32.gmra.mrb[0].mxu0 %v2951
        %v3045 = vpop.f32.mrb[0].mxu0
        %v3046 = vadd.f32 0.0, %v3045
        %v3047 = vpop.f32.mrb[0].mxu0
        %3048 = vmatprep.mubr.f32.mxu0 %v2954
        %3049 = vmatmul.mubr.f32.gmra.mrb[0].mxu0 %v2953
        %v3050 = vpop.f32.mrb[0].mxu0
        %v3051 = vadd.f32 0.0, %v3050
        %v3052 = vpop.f32.mrb[0].mxu0
        %3053 = vmatprep.mubr.f32.mxu0 %v2956
        %3054 = vmatmul.mubr.f32.gmra.mrb[0].mxu0 %v2955
        %v3055 = vpop.f32.mrb[0].mxu0
        %v3056 = vadd.f32 0.0, %v3055
        %v3057 = vpop.f32.mrb[0].mxu0
        %3058 = vmatprep.mubr.f32.mxu0 %v2958
        %3059 = vmatmul.mubr.f32.gmra.mrb[0].mxu0 %v2957
        %v3060 = vpop.f32.mrb[0].mxu0
        %v3061 = vadd.f32 0.0, %v3060
        %v3062 = vpop.f32.mrb[0].mxu0
        %3063 = vdwg.mxu0
        %s3064 = scalar_lea.vmem %s2, 32
        %v3065 = vld [vmem:[%s3064] sm:$0xf]
        %v3067 = vsel %vm1036, %v3026, 0
        %v3070 = vsel %vm1036, %v3031, 0
        %v3073 = vsel %vm1036, %v3036, 0
        %v3076 = vsel %vm1036, %v3041, 0
        %v3079 = vsel %vm1036, %v3046, 0
        %v3082 = vsel %vm1036, %v3051, 0
        %v3085 = vsel %vm1036, %v3056, 0
        %v3088 = vsel %vm1036, %v3061, 0
        %v3091 = vsel %vm1061, %v3065, 0
        %3093 = vmatprep.subr.mxu0 0.0
        %3094 = vmatpush1.msra.mxu0 %v3091
        %3095 = vmatprep.subr.mxu0 0.0
        %3096 = vmatpush1.msra.mxu0 0.0
        %3097 = vmatprep.subr.mxu0 0.0
        %3098 = vmatpush1.msra.mxu0 0.0
        %3099 = vmatprep.subr.mxu0 0.0
        %3100 = vmatpush1.msra.mxu0 0.0
        %3101 = vmatprep.subr.mxu0 0.0
        %3102 = vmatpush1.msra.mxu0 0.0
        %3103 = vmatprep.subr.mxu0 0.0
        %3104 = vmatpush1.msra.mxu0 0.0
        %3105 = vmatprep.subr.mxu0 0.0
        %3106 = vmatpush1.msra.mxu0 0.0
        %3107 = vmatprep.subr.mxu0 0.0
        %3108 = vmatpush1.msra.mxu0 0.0
        %3109 = vmatprep.subr.mxu0 0.0
        %3110 = vmatpush1.msra.mxu0 0.0
        %3111 = vmatprep.subr.mxu0 0.0
        %3112 = vmatpush1.msra.mxu0 0.0
        %3113 = vmatprep.subr.mxu0 0.0
        %3114 = vmatpush1.msra.mxu0 0.0
        %3115 = vmatprep.subr.mxu0 0.0
        %3116 = vmatpush1.msra.mxu0 0.0
        %3117 = vmatprep.subr.mxu0 0.0
        %3118 = vmatpush1.msra.mxu0 0.0
        %3119 = vmatprep.subr.mxu0 0.0
        %3120 = vmatpush1.msra.mxu0 0.0
        %3121 = vmatprep.subr.mxu0 0.0
        %3122 = vmatpush1.msra.mxu0 0.0
        %3123 = vmatprep.subr.mxu0 0.0
        %3124 = vmatpush1.msra.mxu0 0.0
        %3125 = vmatprep.subr.mxu0 0.0
        %3126 = vmatpush1.msra.mxu0 0.0
        %3127 = vmatprep.subr.mxu0 0.0
        %3128 = vmatpush1.msra.mxu0 0.0
        %3129 = vmatprep.subr.mxu0 0.0
        %3130 = vmatpush1.msra.mxu0 0.0
        %3131 = vmatprep.subr.mxu0 0.0
        %3132 = vmatpush1.msra.mxu0 0.0
        %3133 = vmatprep.subr.mxu0 0.0
        %3134 = vmatpush1.msra.mxu0 0.0
        %3135 = vmatprep.subr.mxu0 0.0
        %3136 = vmatpush1.msra.mxu0 0.0
        %3137 = vmatprep.subr.mxu0 0.0
        %3138 = vmatpush1.msra.mxu0 0.0
        %3139 = vmatprep.subr.mxu0 0.0
        %3140 = vmatpush1.msra.mxu0 0.0
        %3141 = vmatprep.subr.mxu0 0.0
        %3142 = vmatpush1.msra.mxu0 0.0
        %3143 = vmatprep.subr.mxu0 0.0
        %3144 = vmatpush1.msra.mxu0 0.0
        %3145 = vmatprep.subr.mxu0 0.0
        %3146 = vmatpush1.msra.mxu0 0.0
        %3147 = vmatprep.subr.mxu0 0.0
        %3148 = vmatpush1.msra.mxu0 0.0
        %3149 = vmatprep.subr.mxu0 0.0
        %3150 = vmatpush1.msra.mxu0 0.0
        %3151 = vmatprep.subr.mxu0 0.0
        %3152 = vmatpush1.msra.mxu0 0.0
        %3153 = vmatprep.subr.mxu0 0.0
        %3154 = vmatpush1.msra.mxu0 0.0
        %3155 = vmatprep.subr.mxu0 0.0
        %3156 = vmatpush1.msra.mxu0 0.0
        %3157 = vmatprep.mubr.f32.mxu0 0.0
        %3158 = vmatmul.mubr.f32.gmra.mrb[0].mxu0 %v3067
        %v3159 = vpop.f32.mrb[0].mxu0
        %v3160 = vadd.f32 0.0, %v3159
        %v3161 = vpop.f32.mrb[0].mxu0
        %3162 = vmatprep.mubr.f32.mxu0 0.0
        %3163 = vmatmul.mubr.f32.gmra.mrb[0].mxu0 %v3070
        %v3164 = vpop.f32.mrb[0].mxu0
        %v3165 = vadd.f32 0.0, %v3164
        %v3166 = vpop.f32.mrb[0].mxu0
        %3167 = vmatprep.mubr.f32.mxu0 0.0
        %3168 = vmatmul.mubr.f32.gmra.mrb[0].mxu0 %v3073
        %v3169 = vpop.f32.mrb[0].mxu0
        %v3170 = vadd.f32 0.0, %v3169
        %v3171 = vpop.f32.mrb[0].mxu0
        %3172 = vmatprep.mubr.f32.mxu0 0.0
        %3173 = vmatmul.mubr.f32.gmra.mrb[0].mxu0 %v3076
        %v3174 = vpop.f32.mrb[0].mxu0
        %v3175 = vadd.f32 0.0, %v3174
        %v3176 = vpop.f32.mrb[0].mxu0
        %3177 = vmatprep.mubr.f32.mxu0 0.0
        %3178 = vmatmul.mubr.f32.gmra.mrb[0].mxu0 %v3079
        %v3179 = vpop.f32.mrb[0].mxu0
        %v3180 = vadd.f32 0.0, %v3179
        %v3181 = vpop.f32.mrb[0].mxu0
        %3182 = vmatprep.mubr.f32.mxu0 0.0
        %3183 = vmatmul.mubr.f32.gmra.mrb[0].mxu0 %v3082
        %v3184 = vpop.f32.mrb[0].mxu0
        %v3185 = vadd.f32 0.0, %v3184
        %v3186 = vpop.f32.mrb[0].mxu0
        %3187 = vmatprep.mubr.f32.mxu0 0.0
        %3188 = vmatmul.mubr.f32.gmra.mrb[0].mxu0 %v3085
        %v3189 = vpop.f32.mrb[0].mxu0
        %v3190 = vadd.f32 0.0, %v3189
        %v3191 = vpop.f32.mrb[0].mxu0
        %3192 = vmatprep.mubr.f32.mxu0 0.0
        %3193 = vmatmul.mubr.f32.gmra.mrb[0].mxu0 %v3088
        %v3194 = vpop.f32.mrb[0].mxu0
        %v3195 = vadd.f32 0.0, %v3194
        %v3196 = vpop.f32.mrb[0].mxu0
        %3197 = vdwg.mxu0
        %v3198 = vadd.f32 %v2926, %v3160
        %v3199 = vadd.f32 %v2927, %v3165
        %v3200 = vadd.f32 %v2928, %v3170
        %v3201 = vadd.f32 %v2929, %v3175
        %v3202 = vadd.f32 %v2930, %v3180
        %v3203 = vadd.f32 %v2931, %v3185
        %v3204 = vadd.f32 %v2932, %v3190
        %v3205 = vadd.f32 %v2933, %v3195
        %v3206 = vld [vmem:[%s3] sm:$0x1]
        %v3208 = vlaneseq
        %v3209 = vshrl.u32 %v3208, 7
        %v3210 = vsub.s32 0, %v3209
        %v3211 = vrot.slane %v3206, %v3210
        %v3213 = vadd.f32 %v3198, %v3211
        %v3214 = vadd.f32 %v3199, %v3211
        %v3215 = vadd.f32 %v3200, %v3211
        %v3216 = vadd.f32 %v3201, %v3211
        %v3217 = vadd.f32 %v3202, %v3211
        %v3218 = vadd.f32 %v3203, %v3211
        %v3219 = vadd.f32 %v3204, %v3211
        %v3220 = vadd.f32 %v3205, %v3211
        %v3221 = vmax.f32 %v3213, 0.0
        %v3222 = vmax.f32 %v3214, 0.0
        %v3223 = vmax.f32 %v3215, 0.0
        %v3224 = vmax.f32 %v3216, 0.0
        %v3225 = vmax.f32 %v3217, 0.0
        %v3226 = vmax.f32 %v3218, 0.0
        %v3227 = vmax.f32 %v3219, 0.0
        %v3228 = vmax.f32 %v3220, 0.0
        %v3229 = vld [vmem:[%s4] sm:$0xf]
        %v3230 = vld [vmem:[%s4 + $0x4] sm:$0xf]
        %v3231 = vunpack.c.l.bf16 %v3229
        %v3232 = vunpack.c.l.bf16 %v3230
        %vm3233 = vcmask 523264
        %v3235 = vsel %vm3233, %v3231, 0
        %v3238 = vsel %vm3233, %v3232, 0
        %3240 = vmatprep.subr.mxu0 0.0
        %3241 = vmatpush1.msra.mxu0 %v3221
        %3242 = vmatprep.subr.mxu0 0.0
        %3243 = vmatpush1.msra.mxu0 %v3222
        %3244 = vmatprep.subr.mxu0 0.0
        %3245 = vmatpush1.msra.mxu0 %v3223
        %3246 = vmatprep.subr.mxu0 0.0
        %3247 = vmatpush1.msra.mxu0 %v3224
        %3248 = vmatprep.subr.mxu0 0.0
        %3249 = vmatpush1.msra.mxu0 %v3225
        %3250 = vmatprep.subr.mxu0 0.0
        %3251 = vmatpush1.msra.mxu0 %v3226
        %3252 = vmatprep.subr.mxu0 0.0
        %3253 = vmatpush1.msra.mxu0 %v3227
        %3254 = vmatprep.subr.mxu0 0.0
        %3255 = vmatpush1.msra.mxu0 %v3228
        %3256 = vmatprep.subr.mxu0 0.0
        %3257 = vmatpush1.msra.mxu0 0.0
        %3258 = vmatprep.subr.mxu0 0.0
        %3259 = vmatpush1.msra.mxu0 0.0
        %3260 = vmatprep.subr.mxu0 0.0
        %3261 = vmatpush1.msra.mxu0 0.0
        %3262 = vmatprep.subr.mxu0 0.0
        %3263 = vmatpush1.msra.mxu0 0.0
        %3264 = vmatprep.subr.mxu0 0.0
        %3265 = vmatpush1.msra.mxu0 0.0
        %3266 = vmatprep.subr.mxu0 0.0
        %3267 = vmatpush1.msra.mxu0 0.0
        %3268 = vmatprep.subr.mxu0 0.0
        %3269 = vmatpush1.msra.mxu0 0.0
        %3270 = vmatprep.subr.mxu0 0.0
        %3271 = vmatpush1.msra.mxu0 0.0
        %3272 = vmatprep.subr.mxu0 0.0
        %3273 = vmatpush1.msra.mxu0 0.0
        %3274 = vmatprep.subr.mxu0 0.0
        %3275 = vmatpush1.msra.mxu0 0.0
        %3276 = vmatprep.subr.mxu0 0.0
        %3277 = vmatpush1.msra.mxu0 0.0
        %3278 = vmatprep.subr.mxu0 0.0
        %3279 = vmatpush1.msra.mxu0 0.0
        %3280 = vmatprep.subr.mxu0 0.0
        %3281 = vmatpush1.msra.mxu0 0.0
        %3282 = vmatprep.subr.mxu0 0.0
        %3283 = vmatpush1.msra.mxu0 0.0
        %3284 = vmatprep.subr.mxu0 0.0
        %3285 = vmatpush1.msra.mxu0 0.0
        %3286 = vmatprep.subr.mxu0 0.0
        %3287 = vmatpush1.msra.mxu0 0.0
        %3288 = vmatprep.subr.mxu0 0.0
        %3289 = vmatpush1.msra.mxu0 0.0
        %3290 = vmatprep.subr.mxu0 0.0
        %3291 = vmatpush1.msra.mxu0 0.0
        %3292 = vmatprep.subr.mxu0 0.0
        %3293 = vmatpush1.msra.mxu0 0.0
        %3294 = vmatprep.subr.mxu0 0.0
        %3295 = vmatpush1.msra.mxu0 0.0
        %3296 = vmatprep.subr.mxu0 0.0
        %3297 = vmatpush1.msra.mxu0 0.0
        %3298 = vmatprep.subr.mxu0 0.0
        %3299 = vmatpush1.msra.mxu0 0.0
        %3300 = vmatprep.subr.mxu0 0.0
        %3301 = vmatpush1.msra.mxu0 0.0
        %3302 = vmatprep.subr.mxu0 0.0
        %3303 = vmatpush1.msra.mxu0 0.0
        %3304 = vmatprep.mubr.f32.mxu0 0.0
        %3305 = vmatmul.mubr.f32.gmra.mrb[0].mxu0 %v3235
        %v3306 = vpop.f32.mrb[0].mxu0
        %v3307 = vadd.f32 0.0, %v3306
        %v3308 = vpop.f32.mrb[0].mxu0
        %3309 = vmatprep.mubr.f32.mxu0 0.0
        %3310 = vmatmul.mubr.f32.gmra.mrb[0].mxu0 %v3238
        %v3311 = vpop.f32.mrb[0].mxu0
        %v3312 = vadd.f32 0.0, %v3311
        %v3313 = vpop.f32.mrb[0].mxu0
        %3314 = vdwg.mxu0
        %v3315 = vld [vmem:[%s5] sm:$0xff]
        %v3316 = vld [vmem:[%s5 + $0x8] sm:$0xff]
        %s3317 = scalar_lea.vmem %s4, 8
        %v3318 = vld [vmem:[%s3317] sm:$0xf]
        %v3319 = vld [vmem:[%s3317 + $0x4] sm:$0xf]
        %v3320 = vunpack.c.l.bf16 %v3318
        %v3321 = vunpack.c.l.bf16 %v3319
        %v3323 = vsel %vm3233, %v3320, 0
        %v3326 = vsel %vm3233, %v3321, 0
        %3328 = vmatprep.subr.mxu0 0.0
        %3329 = vmatpush1.msra.mxu0 %v3221
        %3330 = vmatprep.subr.mxu0 0.0
        %3331 = vmatpush1.msra.mxu0 %v3222
        %3332 = vmatprep.subr.mxu0 0.0
        %3333 = vmatpush1.msra.mxu0 %v3223
        %3334 = vmatprep.subr.mxu0 0.0
        %3335 = vmatpush1.msra.mxu0 %v3224
        %3336 = vmatprep.subr.mxu0 0.0
        %3337 = vmatpush1.msra.mxu0 %v3225
        %3338 = vmatprep.subr.mxu0 0.0
        %3339 = vmatpush1.msra.mxu0 %v3226
        %3340 = vmatprep.subr.mxu0 0.0
        %3341 = vmatpush1.msra.mxu0 %v3227
        %3342 = vmatprep.subr.mxu0 0.0
        %3343 = vmatpush1.msra.mxu0 %v3228
        %3344 = vmatprep.subr.mxu0 0.0
        %3345 = vmatpush1.msra.mxu0 0.0
        %3346 = vmatprep.subr.mxu0 0.0
        %3347 = vmatpush1.msra.mxu0 0.0
        %3348 = vmatprep.subr.mxu0 0.0
        %3349 = vmatpush1.msra.mxu0 0.0
        %3350 = vmatprep.subr.mxu0 0.0
        %3351 = vmatpush1.msra.mxu0 0.0
        %3352 = vmatprep.subr.mxu0 0.0
        %3353 = vmatpush1.msra.mxu0 0.0
        %3354 = vmatprep.subr.mxu0 0.0
        %3355 = vmatpush1.msra.mxu0 0.0
        %3356 = vmatprep.subr.mxu0 0.0
        %3357 = vmatpush1.msra.mxu0 0.0
        %3358 = vmatprep.subr.mxu0 0.0
        %3359 = vmatpush1.msra.mxu0 0.0
        %3360 = vmatprep.subr.mxu0 0.0
        %3361 = vmatpush1.msra.mxu0 0.0
        %3362 = vmatprep.subr.mxu0 0.0
        %3363 = vmatpush1.msra.mxu0 0.0
        %3364 = vmatprep.subr.mxu0 0.0
        %3365 = vmatpush1.msra.mxu0 0.0
        %3366 = vmatprep.subr.mxu0 0.0
        %3367 = vmatpush1.msra.mxu0 0.0
        %3368 = vmatprep.subr.mxu0 0.0
        %3369 = vmatpush1.msra.mxu0 0.0
        %3370 = vmatprep.subr.mxu0 0.0
        %3371 = vmatpush1.msra.mxu0 0.0
        %3372 = vmatprep.subr.mxu0 0.0
        %3373 = vmatpush1.msra.mxu0 0.0
        %3374 = vmatprep.subr.mxu0 0.0
        %3375 = vmatpush1.msra.mxu0 0.0
        %3376 = vmatprep.subr.mxu0 0.0
        %3377 = vmatpush1.msra.mxu0 0.0
        %3378 = vmatprep.subr.mxu0 0.0
        %3379 = vmatpush1.msra.mxu0 0.0
        %3380 = vmatprep.subr.mxu0 0.0
        %3381 = vmatpush1.msra.mxu0 0.0
        %3382 = vmatprep.subr.mxu0 0.0
        %3383 = vmatpush1.msra.mxu0 0.0
        %3384 = vmatprep.subr.mxu0 0.0
        %3385 = vmatpush1.msra.mxu0 0.0
        %3386 = vmatprep.subr.mxu0 0.0
        %3387 = vmatpush1.msra.mxu0 0.0
        %3388 = vmatprep.subr.mxu0 0.0
        %3389 = vmatpush1.msra.mxu0 0.0
        %3390 = vmatprep.subr.mxu0 0.0
        %3391 = vmatpush1.msra.mxu0 0.0
        %3392 = vmatprep.mubr.f32.mxu0 0.0
        %3393 = vmatmul.mubr.f32.gmra.mrb[0].mxu0 %v3323
        %v3394 = vpop.f32.mrb[0].mxu0
        %v3395 = vadd.f32 0.0, %v3394
        %v3396 = vpop.f32.mrb[0].mxu0
        %3397 = vmatprep.mubr.f32.mxu0 0.0
        %3398 = vmatmul.mubr.f32.gmra.mrb[0].mxu0 %v3326
        %v3399 = vpop.f32.mrb[0].mxu0
        %v3400 = vadd.f32 0.0, %v3399
        %v3401 = vpop.f32.mrb[0].mxu0
        %3402 = vdwg.mxu0
        %s3403 = scalar_lea.vmem %s5, 16
        %v3404 = vld [vmem:[%s3403] sm:$0xff]
        %v3405 = vld [vmem:[%s3403 + $0x8] sm:$0xff]
        %vm3406 = vcmask 130048
        %v3408 = vsel %vm3406, %v3395, 0
        %v3411 = vsel %vm3406, %v3400, 0
        %3413 = vmatprep.subr.mxu0 0.0
        %3414 = vmatpush1.msra.mxu0 %v3404
        %3415 = vmatprep.subr.mxu0 0.0
        %3416 = vmatpush1.msra.mxu0 %v3405
        %3417 = vmatprep.subr.mxu0 0.0
        %3418 = vmatpush1.msra.mxu0 0.0
        %3419 = vmatprep.subr.mxu0 0.0
        %3420 = vmatpush1.msra.mxu0 0.0
        %3421 = vmatprep.subr.mxu0 0.0
        %3422 = vmatpush1.msra.mxu0 0.0
        %3423 = vmatprep.subr.mxu0 0.0
        %3424 = vmatpush1.msra.mxu0 0.0
        %3425 = vmatprep.subr.mxu0 0.0
        %3426 = vmatpush1.msra.mxu0 0.0
        %3427 = vmatprep.subr.mxu0 0.0
        %3428 = vmatpush1.msra.mxu0 0.0
        %3429 = vmatprep.subr.mxu0 0.0
        %3430 = vmatpush1.msra.mxu0 0.0
        %3431 = vmatprep.subr.mxu0 0.0
        %3432 = vmatpush1.msra.mxu0 0.0
        %3433 = vmatprep.subr.mxu0 0.0
        %3434 = vmatpush1.msra.mxu0 0.0
        %3435 = vmatprep.subr.mxu0 0.0
        %3436 = vmatpush1.msra.mxu0 0.0
        %3437 = vmatprep.subr.mxu0 0.0
        %3438 = vmatpush1.msra.mxu0 0.0
        %3439 = vmatprep.subr.mxu0 0.0
        %3440 = vmatpush1.msra.mxu0 0.0
        %3441 = vmatprep.subr.mxu0 0.0
        %3442 = vmatpush1.msra.mxu0 0.0
        %3443 = vmatprep.subr.mxu0 0.0
        %3444 = vmatpush1.msra.mxu0 0.0
        %3445 = vmatprep.subr.mxu0 0.0
        %3446 = vmatpush1.msra.mxu0 0.0
        %3447 = vmatprep.subr.mxu0 0.0
        %3448 = vmatpush1.msra.mxu0 0.0
        %3449 = vmatprep.subr.mxu0 0.0
        %3450 = vmatpush1.msra.mxu0 0.0
        %3451 = vmatprep.subr.mxu0 0.0
        %3452 = vmatpush1.msra.mxu0 0.0
        %3453 = vmatprep.subr.mxu0 0.0
        %3454 = vmatpush1.msra.mxu0 0.0
        %3455 = vmatprep.subr.mxu0 0.0
        %3456 = vmatpush1.msra.mxu0 0.0
        %3457 = vmatprep.subr.mxu0 0.0
        %3458 = vmatpush1.msra.mxu0 0.0
        %3459 = vmatprep.subr.mxu0 0.0
        %3460 = vmatpush1.msra.mxu0 0.0
        %3461 = vmatprep.subr.mxu0 0.0
        %3462 = vmatpush1.msra.mxu0 0.0
        %3463 = vmatprep.subr.mxu0 0.0
        %3464 = vmatpush1.msra.mxu0 0.0
        %3465 = vmatprep.subr.mxu0 0.0
        %3466 = vmatpush1.msra.mxu0 0.0
        %3467 = vmatprep.subr.mxu0 0.0
        %3468 = vmatpush1.msra.mxu0 0.0
        %3469 = vmatprep.subr.mxu0 0.0
        %3470 = vmatpush1.msra.mxu0 0.0
        %3471 = vmatprep.subr.mxu0 0.0
        %3472 = vmatpush1.msra.mxu0 0.0
        %3473 = vmatprep.subr.mxu0 0.0
        %3474 = vmatpush1.msra.mxu0 0.0
        %3475 = vmatprep.subr.mxu0 0.0
        %3476 = vmatpush1.msra.mxu0 0.0
        %3477 = vmatprep.mubr.f32.mxu0 0.0
        %3478 = vmatmul.mubr.f32.gmra.mrb[0].mxu0 %v3408
        %v3479 = vpop.f32.mrb[0].mxu0
        %v3480 = vadd.f32 0.0, %v3479
        %v3481 = vpop.f32.mrb[0].mxu0
        %3482 = vmatprep.mubr.f32.mxu0 0.0
        %3483 = vmatmul.mubr.f32.gmra.mrb[0].mxu0 %v3411
        %v3484 = vpop.f32.mrb[0].mxu0
        %v3485 = vadd.f32 0.0, %v3484
        %v3486 = vpop.f32.mrb[0].mxu0
        %3487 = vdwg.mxu0
        %v3489 = vsel %vm3406, %v3307, 0
        %v3492 = vsel %vm3406, %v3312, 0
        %3494 = vmatprep.subr.mxu0 0.0
        %3495 = vmatpush1.msra.mxu0 %v3315
        %3496 = vmatprep.subr.mxu0 0.0
        %3497 = vmatpush1.msra.mxu0 %v3316
        %3498 = vmatprep.subr.mxu0 0.0
        %3499 = vmatpush1.msra.mxu0 0.0
        %3500 = vmatprep.subr.mxu0 0.0
        %3501 = vmatpush1.msra.mxu0 0.0
        %3502 = vmatprep.subr.mxu0 0.0
        %3503 = vmatpush1.msra.mxu0 0.0
        %3504 = vmatprep.subr.mxu0 0.0
        %3505 = vmatpush1.msra.mxu0 0.0
        %3506 = vmatprep.subr.mxu0 0.0
        %3507 = vmatpush1.msra.mxu0 0.0
        %3508 = vmatprep.subr.mxu0 0.0
        %3509 = vmatpush1.msra.mxu0 0.0
        %3510 = vmatprep.subr.mxu0 0.0
        %3511 = vmatpush1.msra.mxu0 0.0
        %3512 = vmatprep.subr.mxu0 0.0
        %3513 = vmatpush1.msra.mxu0 0.0
        %3514 = vmatprep.subr.mxu0 0.0
        %3515 = vmatpush1.msra.mxu0 0.0
        %3516 = vmatprep.subr.mxu0 0.0
        %3517 = vmatpush1.msra.mxu0 0.0
        %3518 = vmatprep.subr.mxu0 0.0
        %3519 = vmatpush1.msra.mxu0 0.0
        %3520 = vmatprep.subr.mxu0 0.0
        %3521 = vmatpush1.msra.mxu0 0.0
        %3522 = vmatprep.subr.mxu0 0.0
        %3523 = vmatpush1.msra.mxu0 0.0
        %3524 = vmatprep.subr.mxu0 0.0
        %3525 = vmatpush1.msra.mxu0 0.0
        %3526 = vmatprep.subr.mxu0 0.0
        %3527 = vmatpush1.msra.mxu0 0.0
        %3528 = vmatprep.subr.mxu0 0.0
        %3529 = vmatpush1.msra.mxu0 0.0
        %3530 = vmatprep.subr.mxu0 0.0
        %3531 = vmatpush1.msra.mxu0 0.0
        %3532 = vmatprep.subr.mxu0 0.0
        %3533 = vmatpush1.msra.mxu0 0.0
        %3534 = vmatprep.subr.mxu0 0.0
        %3535 = vmatpush1.msra.mxu0 0.0
        %3536 = vmatprep.subr.mxu0 0.0
        %3537 = vmatpush1.msra.mxu0 0.0
        %3538 = vmatprep.subr.mxu0 0.0
        %3539 = vmatpush1.msra.mxu0 0.0
        %3540 = vmatprep.subr.mxu0 0.0
        %3541 = vmatpush1.msra.mxu0 0.0
        %3542 = vmatprep.subr.mxu0 0.0
        %3543 = vmatpush1.msra.mxu0 0.0
        %3544 = vmatprep.subr.mxu0 0.0
        %3545 = vmatpush1.msra.mxu0 0.0
        %3546 = vmatprep.subr.mxu0 0.0
        %3547 = vmatpush1.msra.mxu0 0.0
        %3548 = vmatprep.subr.mxu0 0.0
        %3549 = vmatpush1.msra.mxu0 0.0
        %3550 = vmatprep.subr.mxu0 0.0
        %3551 = vmatpush1.msra.mxu0 0.0
        %3552 = vmatprep.subr.mxu0 0.0
        %3553 = vmatpush1.msra.mxu0 0.0
        %3554 = vmatprep.subr.mxu0 0.0
        %3555 = vmatpush1.msra.mxu0 0.0
        %3556 = vmatprep.subr.mxu0 0.0
        %3557 = vmatpush1.msra.mxu0 0.0
        %3558 = vmatprep.mubr.f32.mxu0 0.0
        %3559 = vmatmul.mubr.f32.gmra.mrb[0].mxu0 %v3489
        %v3560 = vpop.f32.mrb[0].mxu0
        %v3561 = vadd.f32 %v3480, %v3560
        %v3562 = vpop.f32.mrb[0].mxu0
        %3563 = vmatprep.mubr.f32.mxu0 0.0
        %3564 = vmatmul.mubr.f32.gmra.mrb[0].mxu0 %v3492
        %v3565 = vpop.f32.mrb[0].mxu0
        %v3566 = vadd.f32 %v3485, %v3565
        %v3567 = vpop.f32.mrb[0].mxu0
        %3568 = vdwg.mxu0
        %s3569 = scalar_lea.vmem %s4, 16
        %v3570 = vld [vmem:[%s3569] sm:$0xf]
        %v3571 = vld [vmem:[%s3569 + $0x4] sm:$0xf]
        %v3572 = vunpack.c.l.bf16 %v3570
        %v3573 = vunpack.c.l.bf16 %v3571
        %v3575 = vsel %vm3233, %v3572, 0
        %v3578 = vsel %vm3233, %v3573, 0
        %3580 = vmatprep.subr.mxu0 0.0
        %3581 = vmatpush1.msra.mxu0 %v3221
        %3582 = vmatprep.subr.mxu0 0.0
        %3583 = vmatpush1.msra.mxu0 %v3222
        %3584 = vmatprep.subr.mxu0 0.0
        %3585 = vmatpush1.msra.mxu0 %v3223
        %3586 = vmatprep.subr.mxu0 0.0
        %3587 = vmatpush1.msra.mxu0 %v3224
        %3588 = vmatprep.subr.mxu0 0.0
        %3589 = vmatpush1.msra.mxu0 %v3225
        %3590 = vmatprep.subr.mxu0 0.0
        %3591 = vmatpush1.msra.mxu0 %v3226
        %3592 = vmatprep.subr.mxu0 0.0
        %3593 = vmatpush1.msra.mxu0 %v3227
        %3594 = vmatprep.subr.mxu0 0.0
        %3595 = vmatpush1.msra.mxu0 %v3228
        %3596 = vmatprep.subr.mxu0 0.0
        %3597 = vmatpush1.msra.mxu0 0.0
        %3598 = vmatprep.subr.mxu0 0.0
        %3599 = vmatpush1.msra.mxu0 0.0
        %3600 = vmatprep.subr.mxu0 0.0
        %3601 = vmatpush1.msra.mxu0 0.0
        %3602 = vmatprep.subr.mxu0 0.0
        %3603 = vmatpush1.msra.mxu0 0.0
        %3604 = vmatprep.subr.mxu0 0.0
        %3605 = vmatpush1.msra.mxu0 0.0
        %3606 = vmatprep.subr.mxu0 0.0
        %3607 = vmatpush1.msra.mxu0 0.0
        %3608 = vmatprep.subr.mxu0 0.0
        %3609 = vmatpush1.msra.mxu0 0.0
        %3610 = vmatprep.subr.mxu0 0.0
        %3611 = vmatpush1.msra.mxu0 0.0
        %3612 = vmatprep.subr.mxu0 0.0
        %3613 = vmatpush1.msra.mxu0 0.0
        %3614 = vmatprep.subr.mxu0 0.0
        %3615 = vmatpush1.msra.mxu0 0.0
        %3616 = vmatprep.subr.mxu0 0.0
        %3617 = vmatpush1.msra.mxu0 0.0
        %3618 = vmatprep.subr.mxu0 0.0
        %3619 = vmatpush1.msra.mxu0 0.0
        %3620 = vmatprep.subr.mxu0 0.0
        %3621 = vmatpush1.msra.mxu0 0.0
        %3622 = vmatprep.subr.mxu0 0.0
        %3623 = vmatpush1.msra.mxu0 0.0
        %3624 = vmatprep.subr.mxu0 0.0
        %3625 = vmatpush1.msra.mxu0 0.0
        %3626 = vmatprep.subr.mxu0 0.0
        %3627 = vmatpush1.msra.mxu0 0.0
        %3628 = vmatprep.subr.mxu0 0.0
        %3629 = vmatpush1.msra.mxu0 0.0
        %3630 = vmatprep.subr.mxu0 0.0
        %3631 = vmatpush1.msra.mxu0 0.0
        %3632 = vmatprep.subr.mxu0 0.0
        %3633 = vmatpush1.msra.mxu0 0.0
        %3634 = vmatprep.subr.mxu0 0.0
        %3635 = vmatpush1.msra.mxu0 0.0
        %3636 = vmatprep.subr.mxu0 0.0
        %3637 = vmatpush1.msra.mxu0 0.0
        %3638 = vmatprep.subr.mxu0 0.0
        %3639 = vmatpush1.msra.mxu0 0.0
        %3640 = vmatprep.subr.mxu0 0.0
        %3641 = vmatpush1.msra.mxu0 0.0
        %3642 = vmatprep.subr.mxu0 0.0
        %3643 = vmatpush1.msra.mxu0 0.0
        %3644 = vmatprep.mubr.f32.mxu0 0.0
        %3645 = vmatmul.mubr.f32.gmra.mrb[0].mxu0 %v3575
        %v3646 = vpop.f32.mrb[0].mxu0
        %v3647 = vadd.f32 0.0, %v3646
        %v3648 = vpop.f32.mrb[0].mxu0
        %3649 = vmatprep.mubr.f32.mxu0 0.0
        %3650 = vmatmul.mubr.f32.gmra.mrb[0].mxu0 %v3578
        %v3651 = vpop.f32.mrb[0].mxu0
        %v3652 = vadd.f32 0.0, %v3651
        %v3653 = vpop.f32.mrb[0].mxu0
        %3654 = vdwg.mxu0
        %s3655 = scalar_lea.vmem %s5, 32
        %v3656 = vld [vmem:[%s3655] sm:$0xff]
        %v3657 = vld [vmem:[%s3655 + $0x8] sm:$0xff]
        %v3659 = vsel %vm3406, %v3647, 0
        %v3662 = vsel %vm3406, %v3652, 0
        %3664 = vmatprep.subr.mxu0 0.0
        %3665 = vmatpush1.msra.mxu0 %v3656
        %3666 = vmatprep.subr.mxu0 0.0
        %3667 = vmatpush1.msra.mxu0 %v3657
        %3668 = vmatprep.subr.mxu0 0.0
        %3669 = vmatpush1.msra.mxu0 0.0
        %3670 = vmatprep.subr.mxu0 0.0
        %3671 = vmatpush1.msra.mxu0 0.0
        %3672 = vmatprep.subr.mxu0 0.0
        %3673 = vmatpush1.msra.mxu0 0.0
        %3674 = vmatprep.subr.mxu0 0.0
        %3675 = vmatpush1.msra.mxu0 0.0
        %3676 = vmatprep.subr.mxu0 0.0
        %3677 = vmatpush1.msra.mxu0 0.0
        %3678 = vmatprep.subr.mxu0 0.0
        %3679 = vmatpush1.msra.mxu0 0.0
        %3680 = vmatprep.subr.mxu0 0.0
        %3681 = vmatpush1.msra.mxu0 0.0
        %3682 = vmatprep.subr.mxu0 0.0
        %3683 = vmatpush1.msra.mxu0 0.0
        %3684 = vmatprep.subr.mxu0 0.0
        %3685 = vmatpush1.msra.mxu0 0.0
        %3686 = vmatprep.subr.mxu0 0.0
        %3687 = vmatpush1.msra.mxu0 0.0
        %3688 = vmatprep.subr.mxu0 0.0
        %3689 = vmatpush1.msra.mxu0 0.0
        %3690 = vmatprep.subr.mxu0 0.0
        %3691 = vmatpush1.msra.mxu0 0.0
        %3692 = vmatprep.subr.mxu0 0.0
        %3693 = vmatpush1.msra.mxu0 0.0
        %3694 = vmatprep.subr.mxu0 0.0
        %3695 = vmatpush1.msra.mxu0 0.0
        %3696 = vmatprep.subr.mxu0 0.0
        %3697 = vmatpush1.msra.mxu0 0.0
        %3698 = vmatprep.subr.mxu0 0.0
        %3699 = vmatpush1.msra.mxu0 0.0
        %3700 = vmatprep.subr.mxu0 0.0
        %3701 = vmatpush1.msra.mxu0 0.0
        %3702 = vmatprep.subr.mxu0 0.0
        %3703 = vmatpush1.msra.mxu0 0.0
        %3704 = vmatprep.subr.mxu0 0.0
        %3705 = vmatpush1.msra.mxu0 0.0
        %3706 = vmatprep.subr.mxu0 0.0
        %3707 = vmatpush1.msra.mxu0 0.0
        %3708 = vmatprep.subr.mxu0 0.0
        %3709 = vmatpush1.msra.mxu0 0.0
        %3710 = vmatprep.subr.mxu0 0.0
        %3711 = vmatpush1.msra.mxu0 0.0
        %3712 = vmatprep.subr.mxu0 0.0
        %3713 = vmatpush1.msra.mxu0 0.0
        %3714 = vmatprep.subr.mxu0 0.0
        %3715 = vmatpush1.msra.mxu0 0.0
        %3716 = vmatprep.subr.mxu0 0.0
        %3717 = vmatpush1.msra.mxu0 0.0
        %3718 = vmatprep.subr.mxu0 0.0
        %3719 = vmatpush1.msra.mxu0 0.0
        %3720 = vmatprep.subr.mxu0 0.0
        %3721 = vmatpush1.msra.mxu0 0.0
        %3722 = vmatprep.subr.mxu0 0.0
        %3723 = vmatpush1.msra.mxu0 0.0
        %3724 = vmatprep.subr.mxu0 0.0
        %3725 = vmatpush1.msra.mxu0 0.0
        %3726 = vmatprep.subr.mxu0 0.0
        %3727 = vmatpush1.msra.mxu0 0.0
        %3728 = vmatprep.mubr.f32.mxu0 0.0
        %3729 = vmatmul.mubr.f32.gmra.mrb[0].mxu0 %v3659
        %v3730 = vpop.f32.mrb[0].mxu0
        %v3731 = vadd.f32 0.0, %v3730
        %v3732 = vpop.f32.mrb[0].mxu0
        %3733 = vmatprep.mubr.f32.mxu0 0.0
        %3734 = vmatmul.mubr.f32.gmra.mrb[0].mxu0 %v3662
        %v3735 = vpop.f32.mrb[0].mxu0
        %v3736 = vadd.f32 0.0, %v3735
        %v3737 = vpop.f32.mrb[0].mxu0
        %3738 = vdwg.mxu0
        %v3739 = vadd.f32 %v3561, %v3731
        %v3740 = vadd.f32 %v3566, %v3736
        %s3741 = scalar_lea.vmem %s4, 24
        %v3742 = vld [vmem:[%s3741] sm:$0xf]
        %v3743 = vld [vmem:[%s3741 + $0x4] sm:$0xf]
        %v3744 = vunpack.c.l.bf16 %v3742
        %v3745 = vunpack.c.l.bf16 %v3743
        %v3747 = vsel %vm3233, %v3744, 0
        %v3750 = vsel %vm3233, %v3745, 0
        %3752 = vmatprep.subr.mxu0 0.0
        %3753 = vmatpush1.msra.mxu0 %v3221
        %3754 = vmatprep.subr.mxu0 0.0
        %3755 = vmatpush1.msra.mxu0 %v3222
        %3756 = vmatprep.subr.mxu0 0.0
        %3757 = vmatpush1.msra.mxu0 %v3223
        %3758 = vmatprep.subr.mxu0 0.0
        %3759 = vmatpush1.msra.mxu0 %v3224
        %3760 = vmatprep.subr.mxu0 0.0
        %3761 = vmatpush1.msra.mxu0 %v3225
        %3762 = vmatprep.subr.mxu0 0.0
        %3763 = vmatpush1.msra.mxu0 %v3226
        %3764 = vmatprep.subr.mxu0 0.0
        %3765 = vmatpush1.msra.mxu0 %v3227
        %3766 = vmatprep.subr.mxu0 0.0
        %3767 = vmatpush1.msra.mxu0 %v3228
        %3768 = vmatprep.subr.mxu0 0.0
        %3769 = vmatpush1.msra.mxu0 0.0
        %3770 = vmatprep.subr.mxu0 0.0
        %3771 = vmatpush1.msra.mxu0 0.0
        %3772 = vmatprep.subr.mxu0 0.0
        %3773 = vmatpush1.msra.mxu0 0.0
        %3774 = vmatprep.subr.mxu0 0.0
        %3775 = vmatpush1.msra.mxu0 0.0
        %3776 = vmatprep.subr.mxu0 0.0
        %3777 = vmatpush1.msra.mxu0 0.0
        %3778 = vmatprep.subr.mxu0 0.0
        %3779 = vmatpush1.msra.mxu0 0.0
        %3780 = vmatprep.subr.mxu0 0.0
        %3781 = vmatpush1.msra.mxu0 0.0
        %3782 = vmatprep.subr.mxu0 0.0
        %3783 = vmatpush1.msra.mxu0 0.0
        %3784 = vmatprep.subr.mxu0 0.0
        %3785 = vmatpush1.msra.mxu0 0.0
        %3786 = vmatprep.subr.mxu0 0.0
        %3787 = vmatpush1.msra.mxu0 0.0
        %3788 = vmatprep.subr.mxu0 0.0
        %3789 = vmatpush1.msra.mxu0 0.0
        %3790 = vmatprep.subr.mxu0 0.0
        %3791 = vmatpush1.msra.mxu0 0.0
        %3792 = vmatprep.subr.mxu0 0.0
        %3793 = vmatpush1.msra.mxu0 0.0
        %3794 = vmatprep.subr.mxu0 0.0
        %3795 = vmatpush1.msra.mxu0 0.0
        %3796 = vmatprep.subr.mxu0 0.0
        %3797 = vmatpush1.msra.mxu0 0.0
        %3798 = vmatprep.subr.mxu0 0.0
        %3799 = vmatpush1.msra.mxu0 0.0
        %3800 = vmatprep.subr.mxu0 0.0
        %3801 = vmatpush1.msra.mxu0 0.0
        %3802 = vmatprep.subr.mxu0 0.0
        %3803 = vmatpush1.msra.mxu0 0.0
        %3804 = vmatprep.subr.mxu0 0.0
        %3805 = vmatpush1.msra.mxu0 0.0
        %3806 = vmatprep.subr.mxu0 0.0
        %3807 = vmatpush1.msra.mxu0 0.0
        %3808 = vmatprep.subr.mxu0 0.0
        %3809 = vmatpush1.msra.mxu0 0.0
        %3810 = vmatprep.subr.mxu0 0.0
        %3811 = vmatpush1.msra.mxu0 0.0
        %3812 = vmatprep.subr.mxu0 0.0
        %3813 = vmatpush1.msra.mxu0 0.0
        %3814 = vmatprep.subr.mxu0 0.0
        %3815 = vmatpush1.msra.mxu0 0.0
        %3816 = vmatprep.mubr.f32.mxu0 0.0
        %3817 = vmatmul.mubr.f32.gmra.mrb[0].mxu0 %v3747
        %v3818 = vpop.f32.mrb[0].mxu0
        %v3819 = vadd.f32 0.0, %v3818
        %v3820 = vpop.f32.mrb[0].mxu0
        %3821 = vmatprep.mubr.f32.mxu0 0.0
        %3822 = vmatmul.mubr.f32.gmra.mrb[0].mxu0 %v3750
        %v3823 = vpop.f32.mrb[0].mxu0
        %v3824 = vadd.f32 0.0, %v3823
        %v3825 = vpop.f32.mrb[0].mxu0
        %3826 = vdwg.mxu0
        %s3827 = scalar_lea.vmem %s5, 48
        %v3828 = vld [vmem:[%s3827] sm:$0xff]
        %v3829 = vld [vmem:[%s3827 + $0x8] sm:$0xff]
        %v3831 = vsel %vm3406, %v3819, 0
        %v3834 = vsel %vm3406, %v3824, 0
        %3836 = vmatprep.subr.mxu0 0.0
        %3837 = vmatpush1.msra.mxu0 %v3828
        %3838 = vmatprep.subr.mxu0 0.0
        %3839 = vmatpush1.msra.mxu0 %v3829
        %3840 = vmatprep.subr.mxu0 0.0
        %3841 = vmatpush1.msra.mxu0 0.0
        %3842 = vmatprep.subr.mxu0 0.0
        %3843 = vmatpush1.msra.mxu0 0.0
        %3844 = vmatprep.subr.mxu0 0.0
        %3845 = vmatpush1.msra.mxu0 0.0
        %3846 = vmatprep.subr.mxu0 0.0
        %3847 = vmatpush1.msra.mxu0 0.0
        %3848 = vmatprep.subr.mxu0 0.0
        %3849 = vmatpush1.msra.mxu0 0.0
        %3850 = vmatprep.subr.mxu0 0.0
        %3851 = vmatpush1.msra.mxu0 0.0
        %3852 = vmatprep.subr.mxu0 0.0
        %3853 = vmatpush1.msra.mxu0 0.0
        %3854 = vmatprep.subr.mxu0 0.0
        %3855 = vmatpush1.msra.mxu0 0.0
        %3856 = vmatprep.subr.mxu0 0.0
        %3857 = vmatpush1.msra.mxu0 0.0
        %3858 = vmatprep.subr.mxu0 0.0
        %3859 = vmatpush1.msra.mxu0 0.0
        %3860 = vmatprep.subr.mxu0 0.0
        %3861 = vmatpush1.msra.mxu0 0.0
        %3862 = vmatprep.subr.mxu0 0.0
        %3863 = vmatpush1.msra.mxu0 0.0
        %3864 = vmatprep.subr.mxu0 0.0
        %3865 = vmatpush1.msra.mxu0 0.0
        %3866 = vmatprep.subr.mxu0 0.0
        %3867 = vmatpush1.msra.mxu0 0.0
        %3868 = vmatprep.subr.mxu0 0.0
        %3869 = vmatpush1.msra.mxu0 0.0
        %3870 = vmatprep.subr.mxu0 0.0
        %3871 = vmatpush1.msra.mxu0 0.0
        %3872 = vmatprep.subr.mxu0 0.0
        %3873 = vmatpush1.msra.mxu0 0.0
        %3874 = vmatprep.subr.mxu0 0.0
        %3875 = vmatpush1.msra.mxu0 0.0
        %3876 = vmatprep.subr.mxu0 0.0
        %3877 = vmatpush1.msra.mxu0 0.0
        %3878 = vmatprep.subr.mxu0 0.0
        %3879 = vmatpush1.msra.mxu0 0.0
        %3880 = vmatprep.subr.mxu0 0.0
        %3881 = vmatpush1.msra.mxu0 0.0
        %3882 = vmatprep.subr.mxu0 0.0
        %3883 = vmatpush1.msra.mxu0 0.0
        %3884 = vmatprep.subr.mxu0 0.0
        %3885 = vmatpush1.msra.mxu0 0.0
        %3886 = vmatprep.subr.mxu0 0.0
        %3887 = vmatpush1.msra.mxu0 0.0
        %3888 = vmatprep.subr.mxu0 0.0
        %3889 = vmatpush1.msra.mxu0 0.0
        %3890 = vmatprep.subr.mxu0 0.0
        %3891 = vmatpush1.msra.mxu0 0.0
        %3892 = vmatprep.subr.mxu0 0.0
        %3893 = vmatpush1.msra.mxu0 0.0
        %3894 = vmatprep.subr.mxu0 0.0
        %3895 = vmatpush1.msra.mxu0 0.0
        %3896 = vmatprep.subr.mxu0 0.0
        %3897 = vmatpush1.msra.mxu0 0.0
        %3898 = vmatprep.subr.mxu0 0.0
        %3899 = vmatpush1.msra.mxu0 0.0
        %3900 = vmatprep.mubr.f32.mxu0 0.0
        %3901 = vmatmul.mubr.f32.gmra.mrb[0].mxu0 %v3831
        %v3902 = vpop.f32.mrb[0].mxu0
        %v3903 = vadd.f32 0.0, %v3902
        %v3904 = vpop.f32.mrb[0].mxu0
        %3905 = vmatprep.mubr.f32.mxu0 0.0
        %3906 = vmatmul.mubr.f32.gmra.mrb[0].mxu0 %v3834
        %v3907 = vpop.f32.mrb[0].mxu0
        %v3908 = vadd.f32 0.0, %v3907
        %v3909 = vpop.f32.mrb[0].mxu0
        %3910 = vdwg.mxu0
        %v3911 = vadd.f32 %v3739, %v3903
        %v3912 = vadd.f32 %v3740, %v3908
        %s3913 = scalar_lea.vmem %s4, 32
        %v3914 = vld [vmem:[%s3913] sm:$0xf]
        %v3915 = vld [vmem:[%s3913 + $0x4] sm:$0xf]
        %v3916 = vunpack.c.l.bf16 %v3914
        %v3917 = vunpack.c.l.bf16 %v3915
        %v3919 = vsel %vm3233, %v3916, 0
        %v3922 = vsel %vm3233, %v3917, 0
        %3924 = vmatprep.subr.mxu0 0.0
        %3925 = vmatpush1.msra.mxu0 %v3221
        %3926 = vmatprep.subr.mxu0 0.0
        %3927 = vmatpush1.msra.mxu0 %v3222
        %3928 = vmatprep.subr.mxu0 0.0
        %3929 = vmatpush1.msra.mxu0 %v3223
        %3930 = vmatprep.subr.mxu0 0.0
        %3931 = vmatpush1.msra.mxu0 %v3224
        %3932 = vmatprep.subr.mxu0 0.0
        %3933 = vmatpush1.msra.mxu0 %v3225
        %3934 = vmatprep.subr.mxu0 0.0
        %3935 = vmatpush1.msra.mxu0 %v3226
        %3936 = vmatprep.subr.mxu0 0.0
        %3937 = vmatpush1.msra.mxu0 %v3227
        %3938 = vmatprep.subr.mxu0 0.0
        %3939 = vmatpush1.msra.mxu0 %v3228
        %3940 = vmatprep.subr.mxu0 0.0
        %3941 = vmatpush1.msra.mxu0 0.0
        %3942 = vmatprep.subr.mxu0 0.0
        %3943 = vmatpush1.msra.mxu0 0.0
        %3944 = vmatprep.subr.mxu0 0.0
        %3945 = vmatpush1.msra.mxu0 0.0
        %3946 = vmatprep.subr.mxu0 0.0
        %3947 = vmatpush1.msra.mxu0 0.0
        %3948 = vmatprep.subr.mxu0 0.0
        %3949 = vmatpush1.msra.mxu0 0.0
        %3950 = vmatprep.subr.mxu0 0.0
        %3951 = vmatpush1.msra.mxu0 0.0
        %3952 = vmatprep.subr.mxu0 0.0
        %3953 = vmatpush1.msra.mxu0 0.0
        %3954 = vmatprep.subr.mxu0 0.0
        %3955 = vmatpush1.msra.mxu0 0.0
        %3956 = vmatprep.subr.mxu0 0.0
        %3957 = vmatpush1.msra.mxu0 0.0
        %3958 = vmatprep.subr.mxu0 0.0
        %3959 = vmatpush1.msra.mxu0 0.0
        %3960 = vmatprep.subr.mxu0 0.0
        %3961 = vmatpush1.msra.mxu0 0.0
        %3962 = vmatprep.subr.mxu0 0.0
        %3963 = vmatpush1.msra.mxu0 0.0
        %3964 = vmatprep.subr.mxu0 0.0
        %3965 = vmatpush1.msra.mxu0 0.0
        %3966 = vmatprep.subr.mxu0 0.0
        %3967 = vmatpush1.msra.mxu0 0.0
        %3968 = vmatprep.subr.mxu0 0.0
        %3969 = vmatpush1.msra.mxu0 0.0
        %3970 = vmatprep.subr.mxu0 0.0
        %3971 = vmatpush1.msra.mxu0 0.0
        %3972 = vmatprep.subr.mxu0 0.0
        %3973 = vmatpush1.msra.mxu0 0.0
        %3974 = vmatprep.subr.mxu0 0.0
        %3975 = vmatpush1.msra.mxu0 0.0
        %3976 = vmatprep.subr.mxu0 0.0
        %3977 = vmatpush1.msra.mxu0 0.0
        %3978 = vmatprep.subr.mxu0 0.0
        %3979 = vmatpush1.msra.mxu0 0.0
        %3980 = vmatprep.subr.mxu0 0.0
        %3981 = vmatpush1.msra.mxu0 0.0
        %3982 = vmatprep.subr.mxu0 0.0
        %3983 = vmatpush1.msra.mxu0 0.0
        %3984 = vmatprep.subr.mxu0 0.0
        %3985 = vmatpush1.msra.mxu0 0.0
        %3986 = vmatprep.subr.mxu0 0.0
        %3987 = vmatpush1.msra.mxu0 0.0
        %3988 = vmatprep.mubr.f32.mxu0 0.0
        %3989 = vmatmul.mubr.f32.gmra.mrb[0].mxu0 %v3919
        %v3990 = vpop.f32.mrb[0].mxu0
        %v3991 = vadd.f32 0.0, %v3990
        %v3992 = vpop.f32.mrb[0].mxu0
        %3993 = vmatprep.mubr.f32.mxu0 0.0
        %3994 = vmatmul.mubr.f32.gmra.mrb[0].mxu0 %v3922
        %v3995 = vpop.f32.mrb[0].mxu0
        %v3996 = vadd.f32 0.0, %v3995
        %v3997 = vpop.f32.mrb[0].mxu0
        %3998 = vdwg.mxu0
        %s3999 = scalar_lea.vmem %s5, 64
        %v4000 = vld [vmem:[%s3999] sm:$0xff]
        %v4001 = vld [vmem:[%s3999 + $0x8] sm:$0xff]
        %v4003 = vsel %vm3406, %v3991, 0
        %v4006 = vsel %vm3406, %v3996, 0
        %4008 = vmatprep.subr.mxu0 0.0
        %4009 = vmatpush1.msra.mxu0 %v4000
        %4010 = vmatprep.subr.mxu0 0.0
        %4011 = vmatpush1.msra.mxu0 %v4001
        %4012 = vmatprep.subr.mxu0 0.0
        %4013 = vmatpush1.msra.mxu0 0.0
        %4014 = vmatprep.subr.mxu0 0.0
        %4015 = vmatpush1.msra.mxu0 0.0
        %4016 = vmatprep.subr.mxu0 0.0
        %4017 = vmatpush1.msra.mxu0 0.0
        %4018 = vmatprep.subr.mxu0 0.0
        %4019 = vmatpush1.msra.mxu0 0.0
        %4020 = vmatprep.subr.mxu0 0.0
        %4021 = vmatpush1.msra.mxu0 0.0
        %4022 = vmatprep.subr.mxu0 0.0
        %4023 = vmatpush1.msra.mxu0 0.0
        %4024 = vmatprep.subr.mxu0 0.0
        %4025 = vmatpush1.msra.mxu0 0.0
        %4026 = vmatprep.subr.mxu0 0.0
        %4027 = vmatpush1.msra.mxu0 0.0
        %4028 = vmatprep.subr.mxu0 0.0
        %4029 = vmatpush1.msra.mxu0 0.0
        %4030 = vmatprep.subr.mxu0 0.0
        %4031 = vmatpush1.msra.mxu0 0.0
        %4032 = vmatprep.subr.mxu0 0.0
        %4033 = vmatpush1.msra.mxu0 0.0
        %4034 = vmatprep.subr.mxu0 0.0
        %4035 = vmatpush1.msra.mxu0 0.0
        %4036 = vmatprep.subr.mxu0 0.0
        %4037 = vmatpush1.msra.mxu0 0.0
        %4038 = vmatprep.subr.mxu0 0.0
        %4039 = vmatpush1.msra.mxu0 0.0
        %4040 = vmatprep.subr.mxu0 0.0
        %4041 = vmatpush1.msra.mxu0 0.0
        %4042 = vmatprep.subr.mxu0 0.0
        %4043 = vmatpush1.msra.mxu0 0.0
        %4044 = vmatprep.subr.mxu0 0.0
        %4045 = vmatpush1.msra.mxu0 0.0
        %4046 = vmatprep.subr.mxu0 0.0
        %4047 = vmatpush1.msra.mxu0 0.0
        %4048 = vmatprep.subr.mxu0 0.0
        %4049 = vmatpush1.msra.mxu0 0.0
        %4050 = vmatprep.subr.mxu0 0.0
        %4051 = vmatpush1.msra.mxu0 0.0
        %4052 = vmatprep.subr.mxu0 0.0
        %4053 = vmatpush1.msra.mxu0 0.0
        %4054 = vmatprep.subr.mxu0 0.0
        %4055 = vmatpush1.msra.mxu0 0.0
        %4056 = vmatprep.subr.mxu0 0.0
        %4057 = vmatpush1.msra.mxu0 0.0
        %4058 = vmatprep.subr.mxu0 0.0
        %4059 = vmatpush1.msra.mxu0 0.0
        %4060 = vmatprep.subr.mxu0 0.0
        %4061 = vmatpush1.msra.mxu0 0.0
        %4062 = vmatprep.subr.mxu0 0.0
        %4063 = vmatpush1.msra.mxu0 0.0
        %4064 = vmatprep.subr.mxu0 0.0
        %4065 = vmatpush1.msra.mxu0 0.0
        %4066 = vmatprep.subr.mxu0 0.0
        %4067 = vmatpush1.msra.mxu0 0.0
        %4068 = vmatprep.subr.mxu0 0.0
        %4069 = vmatpush1.msra.mxu0 0.0
        %4070 = vmatprep.subr.mxu0 0.0
        %4071 = vmatpush1.msra.mxu0 0.0
        %4072 = vmatprep.mubr.f32.mxu0 0.0
        %4073 = vmatmul.mubr.f32.gmra.mrb[0].mxu0 %v4003
        %v4074 = vpop.f32.mrb[0].mxu0
        %v4075 = vadd.f32 0.0, %v4074
        %v4076 = vpop.f32.mrb[0].mxu0
        %4077 = vmatprep.mubr.f32.mxu0 0.0
        %4078 = vmatmul.mubr.f32.gmra.mrb[0].mxu0 %v4006
        %v4079 = vpop.f32.mrb[0].mxu0
        %v4080 = vadd.f32 0.0, %v4079
        %v4081 = vpop.f32.mrb[0].mxu0
        %4082 = vdwg.mxu0
        %v4083 = vadd.f32 %v3911, %v4075
        %v4084 = vadd.f32 %v3912, %v4080
        %s4085 = scalar_lea.vmem %s4, 40
        %v4086 = vld [vmem:[%s4085] sm:$0xf]
        %v4087 = vld [vmem:[%s4085 + $0x4] sm:$0xf]
        %v4088 = vunpack.c.l.bf16 %v4086
        %v4089 = vunpack.c.l.bf16 %v4087
        %v4091 = vsel %vm3233, %v4088, 0
        %v4094 = vsel %vm3233, %v4089, 0
        %4096 = vmatprep.subr.mxu0 0.0
        %4097 = vmatpush1.msra.mxu0 %v3221
        %4098 = vmatprep.subr.mxu0 0.0
        %4099 = vmatpush1.msra.mxu0 %v3222
        %4100 = vmatprep.subr.mxu0 0.0
        %4101 = vmatpush1.msra.mxu0 %v3223
        %4102 = vmatprep.subr.mxu0 0.0
        %4103 = vmatpush1.msra.mxu0 %v3224
        %4104 = vmatprep.subr.mxu0 0.0
        %4105 = vmatpush1.msra.mxu0 %v3225
        %4106 = vmatprep.subr.mxu0 0.0
        %4107 = vmatpush1.msra.mxu0 %v3226
        %4108 = vmatprep.subr.mxu0 0.0
        %4109 = vmatpush1.msra.mxu0 %v3227
        %4110 = vmatprep.subr.mxu0 0.0
        %4111 = vmatpush1.msra.mxu0 %v3228
        %4112 = vmatprep.subr.mxu0 0.0
        %4113 = vmatpush1.msra.mxu0 0.0
        %4114 = vmatprep.subr.mxu0 0.0
        %4115 = vmatpush1.msra.mxu0 0.0
        %4116 = vmatprep.subr.mxu0 0.0
        %4117 = vmatpush1.msra.mxu0 0.0
        %4118 = vmatprep.subr.mxu0 0.0
        %4119 = vmatpush1.msra.mxu0 0.0
        %4120 = vmatprep.subr.mxu0 0.0
        %4121 = vmatpush1.msra.mxu0 0.0
        %4122 = vmatprep.subr.mxu0 0.0
        %4123 = vmatpush1.msra.mxu0 0.0
        %4124 = vmatprep.subr.mxu0 0.0
        %4125 = vmatpush1.msra.mxu0 0.0
        %4126 = vmatprep.subr.mxu0 0.0
        %4127 = vmatpush1.msra.mxu0 0.0
        %4128 = vmatprep.subr.mxu0 0.0
        %4129 = vmatpush1.msra.mxu0 0.0
        %4130 = vmatprep.subr.mxu0 0.0
        %4131 = vmatpush1.msra.mxu0 0.0
        %4132 = vmatprep.subr.mxu0 0.0
        %4133 = vmatpush1.msra.mxu0 0.0
        %4134 = vmatprep.subr.mxu0 0.0
        %4135 = vmatpush1.msra.mxu0 0.0
        %4136 = vmatprep.subr.mxu0 0.0
        %4137 = vmatpush1.msra.mxu0 0.0
        %4138 = vmatprep.subr.mxu0 0.0
        %4139 = vmatpush1.msra.mxu0 0.0
        %4140 = vmatprep.subr.mxu0 0.0
        %4141 = vmatpush1.msra.mxu0 0.0
        %4142 = vmatprep.subr.mxu0 0.0
        %4143 = vmatpush1.msra.mxu0 0.0
        %4144 = vmatprep.subr.mxu0 0.0
        %4145 = vmatpush1.msra.mxu0 0.0
        %4146 = vmatprep.subr.mxu0 0.0
        %4147 = vmatpush1.msra.mxu0 0.0
        %4148 = vmatprep.subr.mxu0 0.0
        %4149 = vmatpush1.msra.mxu0 0.0
        %4150 = vmatprep.subr.mxu0 0.0
        %4151 = vmatpush1.msra.mxu0 0.0
        %4152 = vmatprep.subr.mxu0 0.0
        %4153 = vmatpush1.msra.mxu0 0.0
        %4154 = vmatprep.subr.mxu0 0.0
        %4155 = vmatpush1.msra.mxu0 0.0
        %4156 = vmatprep.subr.mxu0 0.0
        %4157 = vmatpush1.msra.mxu0 0.0
        %4158 = vmatprep.subr.mxu0 0.0
        %4159 = vmatpush1.msra.mxu0 0.0
        %4160 = vmatprep.mubr.f32.mxu0 0.0
        %4161 = vmatmul.mubr.f32.gmra.mrb[0].mxu0 %v4091
        %v4162 = vpop.f32.mrb[0].mxu0
        %v4163 = vadd.f32 0.0, %v4162
        %v4164 = vpop.f32.mrb[0].mxu0
        %4165 = vmatprep.mubr.f32.mxu0 0.0
        %4166 = vmatmul.mubr.f32.gmra.mrb[0].mxu0 %v4094
        %v4167 = vpop.f32.mrb[0].mxu0
        %v4168 = vadd.f32 0.0, %v4167
        %v4169 = vpop.f32.mrb[0].mxu0
        %4170 = vdwg.mxu0
        %s4171 = scalar_lea.vmem %s5, 80
        %v4172 = vld [vmem:[%s4171] sm:$0xff]
        %v4173 = vld [vmem:[%s4171 + $0x8] sm:$0xff]
        %v4175 = vsel %vm3406, %v4163, 0
        %v4178 = vsel %vm3406, %v4168, 0
        %4180 = vmatprep.subr.mxu0 0.0
        %4181 = vmatpush1.msra.mxu0 %v4172
        %4182 = vmatprep.subr.mxu0 0.0
        %4183 = vmatpush1.msra.mxu0 %v4173
        %4184 = vmatprep.subr.mxu0 0.0
        %4185 = vmatpush1.msra.mxu0 0.0
        %4186 = vmatprep.subr.mxu0 0.0
        %4187 = vmatpush1.msra.mxu0 0.0
        %4188 = vmatprep.subr.mxu0 0.0
        %4189 = vmatpush1.msra.mxu0 0.0
        %4190 = vmatprep.subr.mxu0 0.0
        %4191 = vmatpush1.msra.mxu0 0.0
        %4192 = vmatprep.subr.mxu0 0.0
        %4193 = vmatpush1.msra.mxu0 0.0
        %4194 = vmatprep.subr.mxu0 0.0
        %4195 = vmatpush1.msra.mxu0 0.0
        %4196 = vmatprep.subr.mxu0 0.0
        %4197 = vmatpush1.msra.mxu0 0.0
        %4198 = vmatprep.subr.mxu0 0.0
        %4199 = vmatpush1.msra.mxu0 0.0
        %4200 = vmatprep.subr.mxu0 0.0
        %4201 = vmatpush1.msra.mxu0 0.0
        %4202 = vmatprep.subr.mxu0 0.0
        %4203 = vmatpush1.msra.mxu0 0.0
        %4204 = vmatprep.subr.mxu0 0.0
        %4205 = vmatpush1.msra.mxu0 0.0
        %4206 = vmatprep.subr.mxu0 0.0
        %4207 = vmatpush1.msra.mxu0 0.0
        %4208 = vmatprep.subr.mxu0 0.0
        %4209 = vmatpush1.msra.mxu0 0.0
        %4210 = vmatprep.subr.mxu0 0.0
        %4211 = vmatpush1.msra.mxu0 0.0
        %4212 = vmatprep.subr.mxu0 0.0
        %4213 = vmatpush1.msra.mxu0 0.0
        %4214 = vmatprep.subr.mxu0 0.0
        %4215 = vmatpush1.msra.mxu0 0.0
        %4216 = vmatprep.subr.mxu0 0.0
        %4217 = vmatpush1.msra.mxu0 0.0
        %4218 = vmatprep.subr.mxu0 0.0
        %4219 = vmatpush1.msra.mxu0 0.0
        %4220 = vmatprep.subr.mxu0 0.0
        %4221 = vmatpush1.msra.mxu0 0.0
        %4222 = vmatprep.subr.mxu0 0.0
        %4223 = vmatpush1.msra.mxu0 0.0
        %4224 = vmatprep.subr.mxu0 0.0
        %4225 = vmatpush1.msra.mxu0 0.0
        %4226 = vmatprep.subr.mxu0 0.0
        %4227 = vmatpush1.msra.mxu0 0.0
        %4228 = vmatprep.subr.mxu0 0.0
        %4229 = vmatpush1.msra.mxu0 0.0
        %4230 = vmatprep.subr.mxu0 0.0
        %4231 = vmatpush1.msra.mxu0 0.0
        %4232 = vmatprep.subr.mxu0 0.0
        %4233 = vmatpush1.msra.mxu0 0.0
        %4234 = vmatprep.subr.mxu0 0.0
        %4235 = vmatpush1.msra.mxu0 0.0
        %4236 = vmatprep.subr.mxu0 0.0
        %4237 = vmatpush1.msra.mxu0 0.0
        %4238 = vmatprep.subr.mxu0 0.0
        %4239 = vmatpush1.msra.mxu0 0.0
        %4240 = vmatprep.subr.mxu0 0.0
        %4241 = vmatpush1.msra.mxu0 0.0
        %4242 = vmatprep.subr.mxu0 0.0
        %4243 = vmatpush1.msra.mxu0 0.0
        %4244 = vmatprep.mubr.f32.mxu0 0.0
        %4245 = vmatmul.mubr.f32.gmra.mrb[0].mxu0 %v4175
        %v4246 = vpop.f32.mrb[0].mxu0
        %v4247 = vadd.f32 0.0, %v4246
        %v4248 = vpop.f32.mrb[0].mxu0
        %4249 = vmatprep.mubr.f32.mxu0 0.0
        %4250 = vmatmul.mubr.f32.gmra.mrb[0].mxu0 %v4178
        %v4251 = vpop.f32.mrb[0].mxu0
        %v4252 = vadd.f32 0.0, %v4251
        %v4253 = vpop.f32.mrb[0].mxu0
        %4254 = vdwg.mxu0
        %v4255 = vadd.f32 %v4083, %v4247
        %v4256 = vadd.f32 %v4084, %v4252
        %s4257 = scalar_lea.vmem %s4, 48
        %v4258 = vld [vmem:[%s4257] sm:$0xf]
        %v4259 = vld [vmem:[%s4257 + $0x4] sm:$0xf]
        %v4260 = vunpack.c.l.bf16 %v4258
        %v4261 = vunpack.c.l.bf16 %v4259
        %v4263 = vsel %vm3233, %v4260, 0
        %v4266 = vsel %vm3233, %v4261, 0
        %4268 = vmatprep.subr.mxu0 0.0
        %4269 = vmatpush1.msra.mxu0 %v3221
        %4270 = vmatprep.subr.mxu0 0.0
        %4271 = vmatpush1.msra.mxu0 %v3222
        %4272 = vmatprep.subr.mxu0 0.0
        %4273 = vmatpush1.msra.mxu0 %v3223
        %4274 = vmatprep.subr.mxu0 0.0
        %4275 = vmatpush1.msra.mxu0 %v3224
        %4276 = vmatprep.subr.mxu0 0.0
        %4277 = vmatpush1.msra.mxu0 %v3225
        %4278 = vmatprep.subr.mxu0 0.0
        %4279 = vmatpush1.msra.mxu0 %v3226
        %4280 = vmatprep.subr.mxu0 0.0
        %4281 = vmatpush1.msra.mxu0 %v3227
        %4282 = vmatprep.subr.mxu0 0.0
        %4283 = vmatpush1.msra.mxu0 %v3228
        %4284 = vmatprep.subr.mxu0 0.0
        %4285 = vmatpush1.msra.mxu0 0.0
        %4286 = vmatprep.subr.mxu0 0.0
        %4287 = vmatpush1.msra.mxu0 0.0
        %4288 = vmatprep.subr.mxu0 0.0
        %4289 = vmatpush1.msra.mxu0 0.0
        %4290 = vmatprep.subr.mxu0 0.0
        %4291 = vmatpush1.msra.mxu0 0.0
        %4292 = vmatprep.subr.mxu0 0.0
        %4293 = vmatpush1.msra.mxu0 0.0
        %4294 = vmatprep.subr.mxu0 0.0
        %4295 = vmatpush1.msra.mxu0 0.0
        %4296 = vmatprep.subr.mxu0 0.0
        %4297 = vmatpush1.msra.mxu0 0.0
        %4298 = vmatprep.subr.mxu0 0.0
        %4299 = vmatpush1.msra.mxu0 0.0
        %4300 = vmatprep.subr.mxu0 0.0
        %4301 = vmatpush1.msra.mxu0 0.0
        %4302 = vmatprep.subr.mxu0 0.0
        %4303 = vmatpush1.msra.mxu0 0.0
        %4304 = vmatprep.subr.mxu0 0.0
        %4305 = vmatpush1.msra.mxu0 0.0
        %4306 = vmatprep.subr.mxu0 0.0
        %4307 = vmatpush1.msra.mxu0 0.0
        %4308 = vmatprep.subr.mxu0 0.0
        %4309 = vmatpush1.msra.mxu0 0.0
        %4310 = vmatprep.subr.mxu0 0.0
        %4311 = vmatpush1.msra.mxu0 0.0
        %4312 = vmatprep.subr.mxu0 0.0
        %4313 = vmatpush1.msra.mxu0 0.0
        %4314 = vmatprep.subr.mxu0 0.0
        %4315 = vmatpush1.msra.mxu0 0.0
        %4316 = vmatprep.subr.mxu0 0.0
        %4317 = vmatpush1.msra.mxu0 0.0
        %4318 = vmatprep.subr.mxu0 0.0
        %4319 = vmatpush1.msra.mxu0 0.0
        %4320 = vmatprep.subr.mxu0 0.0
        %4321 = vmatpush1.msra.mxu0 0.0
        %4322 = vmatprep.subr.mxu0 0.0
        %4323 = vmatpush1.msra.mxu0 0.0
        %4324 = vmatprep.subr.mxu0 0.0
        %4325 = vmatpush1.msra.mxu0 0.0
        %4326 = vmatprep.subr.mxu0 0.0
        %4327 = vmatpush1.msra.mxu0 0.0
        %4328 = vmatprep.subr.mxu0 0.0
        %4329 = vmatpush1.msra.mxu0 0.0
        %4330 = vmatprep.subr.mxu0 0.0
        %4331 = vmatpush1.msra.mxu0 0.0
        %4332 = vmatprep.mubr.f32.mxu0 0.0
        %4333 = vmatmul.mubr.f32.gmra.mrb[0].mxu0 %v4263
        %v4334 = vpop.f32.mrb[0].mxu0
        %v4335 = vadd.f32 0.0, %v4334
        %v4336 = vpop.f32.mrb[0].mxu0
        %4337 = vmatprep.mubr.f32.mxu0 0.0
        %4338 = vmatmul.mubr.f32.gmra.mrb[0].mxu0 %v4266
        %v4339 = vpop.f32.mrb[0].mxu0
        %v4340 = vadd.f32 0.0, %v4339
        %v4341 = vpop.f32.mrb[0].mxu0
        %4342 = vdwg.mxu0
        %s4343 = scalar_lea.vmem %s5, 96
        %v4344 = vld [vmem:[%s4343] sm:$0xff]
        %v4345 = vld [vmem:[%s4343 + $0x8] sm:$0xff]
        %v4347 = vsel %vm3406, %v4335, 0
        %v4350 = vsel %vm3406, %v4340, 0
        %4352 = vmatprep.subr.mxu0 0.0
        %4353 = vmatpush1.msra.mxu0 %v4344
        %4354 = vmatprep.subr.mxu0 0.0
        %4355 = vmatpush1.msra.mxu0 %v4345
        %4356 = vmatprep.subr.mxu0 0.0
        %4357 = vmatpush1.msra.mxu0 0.0
        %4358 = vmatprep.subr.mxu0 0.0
        %4359 = vmatpush1.msra.mxu0 0.0
        %4360 = vmatprep.subr.mxu0 0.0
        %4361 = vmatpush1.msra.mxu0 0.0
        %4362 = vmatprep.subr.mxu0 0.0
        %4363 = vmatpush1.msra.mxu0 0.0
        %4364 = vmatprep.subr.mxu0 0.0
        %4365 = vmatpush1.msra.mxu0 0.0
        %4366 = vmatprep.subr.mxu0 0.0
        %4367 = vmatpush1.msra.mxu0 0.0
        %4368 = vmatprep.subr.mxu0 0.0
        %4369 = vmatpush1.msra.mxu0 0.0
        %4370 = vmatprep.subr.mxu0 0.0
        %4371 = vmatpush1.msra.mxu0 0.0
        %4372 = vmatprep.subr.mxu0 0.0
        %4373 = vmatpush1.msra.mxu0 0.0
        %4374 = vmatprep.subr.mxu0 0.0
        %4375 = vmatpush1.msra.mxu0 0.0
        %4376 = vmatprep.subr.mxu0 0.0
        %4377 = vmatpush1.msra.mxu0 0.0
        %4378 = vmatprep.subr.mxu0 0.0
        %4379 = vmatpush1.msra.mxu0 0.0
        %4380 = vmatprep.subr.mxu0 0.0
        %4381 = vmatpush1.msra.mxu0 0.0
        %4382 = vmatprep.subr.mxu0 0.0
        %4383 = vmatpush1.msra.mxu0 0.0
        %4384 = vmatprep.subr.mxu0 0.0
        %4385 = vmatpush1.msra.mxu0 0.0
        %4386 = vmatprep.subr.mxu0 0.0
        %4387 = vmatpush1.msra.mxu0 0.0
        %4388 = vmatprep.subr.mxu0 0.0
        %4389 = vmatpush1.msra.mxu0 0.0
        %4390 = vmatprep.subr.mxu0 0.0
        %4391 = vmatpush1.msra.mxu0 0.0
        %4392 = vmatprep.subr.mxu0 0.0
        %4393 = vmatpush1.msra.mxu0 0.0
        %4394 = vmatprep.subr.mxu0 0.0
        %4395 = vmatpush1.msra.mxu0 0.0
        %4396 = vmatprep.subr.mxu0 0.0
        %4397 = vmatpush1.msra.mxu0 0.0
        %4398 = vmatprep.subr.mxu0 0.0
        %4399 = vmatpush1.msra.mxu0 0.0
        %4400 = vmatprep.subr.mxu0 0.0
        %4401 = vmatpush1.msra.mxu0 0.0
        %4402 = vmatprep.subr.mxu0 0.0
        %4403 = vmatpush1.msra.mxu0 0.0
        %4404 = vmatprep.subr.mxu0 0.0
        %4405 = vmatpush1.msra.mxu0 0.0
        %4406 = vmatprep.subr.mxu0 0.0
        %4407 = vmatpush1.msra.mxu0 0.0
        %4408 = vmatprep.subr.mxu0 0.0
        %4409 = vmatpush1.msra.mxu0 0.0
        %4410 = vmatprep.subr.mxu0 0.0
        %4411 = vmatpush1.msra.mxu0 0.0
        %4412 = vmatprep.subr.mxu0 0.0
        %4413 = vmatpush1.msra.mxu0 0.0
        %4414 = vmatprep.subr.mxu0 0.0
        %4415 = vmatpush1.msra.mxu0 0.0
        %4416 = vmatprep.mubr.f32.mxu0 0.0
        %4417 = vmatmul.mubr.f32.gmra.mrb[0].mxu0 %v4347
        %v4418 = vpop.f32.mrb[0].mxu0
        %v4419 = vadd.f32 0.0, %v4418
        %v4420 = vpop.f32.mrb[0].mxu0
        %4421 = vmatprep.mubr.f32.mxu0 0.0
        %4422 = vmatmul.mubr.f32.gmra.mrb[0].mxu0 %v4350
        %v4423 = vpop.f32.mrb[0].mxu0
        %v4424 = vadd.f32 0.0, %v4423
        %v4425 = vpop.f32.mrb[0].mxu0
        %4426 = vdwg.mxu0
        %v4427 = vadd.f32 %v4255, %v4419
        %v4428 = vadd.f32 %v4256, %v4424
        %s4429 = scalar_lea.vmem %s4, 56
        %v4430 = vld [vmem:[%s4429] sm:$0xf]
        %v4431 = vld [vmem:[%s4429 + $0x4] sm:$0xf]
        %v4432 = vunpack.c.l.bf16 %v4430
        %v4433 = vunpack.c.l.bf16 %v4431
        %v4435 = vsel %vm3233, %v4432, 0
        %v4438 = vsel %vm3233, %v4433, 0
        %4440 = vmatprep.subr.mxu0 0.0
        %4441 = vmatpush1.msra.mxu0 %v3221
        %4442 = vmatprep.subr.mxu0 0.0
        %4443 = vmatpush1.msra.mxu0 %v3222
        %4444 = vmatprep.subr.mxu0 0.0
        %4445 = vmatpush1.msra.mxu0 %v3223
        %4446 = vmatprep.subr.mxu0 0.0
        %4447 = vmatpush1.msra.mxu0 %v3224
        %4448 = vmatprep.subr.mxu0 0.0
        %4449 = vmatpush1.msra.mxu0 %v3225
        %4450 = vmatprep.subr.mxu0 0.0
        %4451 = vmatpush1.msra.mxu0 %v3226
        %4452 = vmatprep.subr.mxu0 0.0
        %4453 = vmatpush1.msra.mxu0 %v3227
        %4454 = vmatprep.subr.mxu0 0.0
        %4455 = vmatpush1.msra.mxu0 %v3228
        %4456 = vmatprep.subr.mxu0 0.0
        %4457 = vmatpush1.msra.mxu0 0.0
        %4458 = vmatprep.subr.mxu0 0.0
        %4459 = vmatpush1.msra.mxu0 0.0
        %4460 = vmatprep.subr.mxu0 0.0
        %4461 = vmatpush1.msra.mxu0 0.0
        %4462 = vmatprep.subr.mxu0 0.0
        %4463 = vmatpush1.msra.mxu0 0.0
        %4464 = vmatprep.subr.mxu0 0.0
        %4465 = vmatpush1.msra.mxu0 0.0
        %4466 = vmatprep.subr.mxu0 0.0
        %4467 = vmatpush1.msra.mxu0 0.0
        %4468 = vmatprep.subr.mxu0 0.0
        %4469 = vmatpush1.msra.mxu0 0.0
        %4470 = vmatprep.subr.mxu0 0.0
        %4471 = vmatpush1.msra.mxu0 0.0
        %4472 = vmatprep.subr.mxu0 0.0
        %4473 = vmatpush1.msra.mxu0 0.0
        %4474 = vmatprep.subr.mxu0 0.0
        %4475 = vmatpush1.msra.mxu0 0.0
        %4476 = vmatprep.subr.mxu0 0.0
        %4477 = vmatpush1.msra.mxu0 0.0
        %4478 = vmatprep.subr.mxu0 0.0
        %4479 = vmatpush1.msra.mxu0 0.0
        %4480 = vmatprep.subr.mxu0 0.0
        %4481 = vmatpush1.msra.mxu0 0.0
        %4482 = vmatprep.subr.mxu0 0.0
        %4483 = vmatpush1.msra.mxu0 0.0
        %4484 = vmatprep.subr.mxu0 0.0
        %4485 = vmatpush1.msra.mxu0 0.0
        %4486 = vmatprep.subr.mxu0 0.0
        %4487 = vmatpush1.msra.mxu0 0.0
        %4488 = vmatprep.subr.mxu0 0.0
        %4489 = vmatpush1.msra.mxu0 0.0
        %4490 = vmatprep.subr.mxu0 0.0
        %4491 = vmatpush1.msra.mxu0 0.0
        %4492 = vmatprep.subr.mxu0 0.0
        %4493 = vmatpush1.msra.mxu0 0.0
        %4494 = vmatprep.subr.mxu0 0.0
        %4495 = vmatpush1.msra.mxu0 0.0
        %4496 = vmatprep.subr.mxu0 0.0
        %4497 = vmatpush1.msra.mxu0 0.0
        %4498 = vmatprep.subr.mxu0 0.0
        %4499 = vmatpush1.msra.mxu0 0.0
        %4500 = vmatprep.subr.mxu0 0.0
        %4501 = vmatpush1.msra.mxu0 0.0
        %4502 = vmatprep.subr.mxu0 0.0
        %4503 = vmatpush1.msra.mxu0 0.0
        %4504 = vmatprep.mubr.f32.mxu0 0.0
        %4505 = vmatmul.mubr.f32.gmra.mrb[0].mxu0 %v4435
        %v4506 = vpop.f32.mrb[0].mxu0
        %v4507 = vadd.f32 0.0, %v4506
        %v4508 = vpop.f32.mrb[0].mxu0
        %4509 = vmatprep.mubr.f32.mxu0 0.0
        %4510 = vmatmul.mubr.f32.gmra.mrb[0].mxu0 %v4438
        %v4511 = vpop.f32.mrb[0].mxu0
        %v4512 = vadd.f32 0.0, %v4511
        %v4513 = vpop.f32.mrb[0].mxu0
        %4514 = vdwg.mxu0
        %s4515 = scalar_lea.vmem %s5, 112
        %v4516 = vld [vmem:[%s4515] sm:$0xff]
        %v4517 = vld [vmem:[%s4515 + $0x8] sm:$0xff]
        %v4519 = vsel %vm3406, %v4507, 0
        %v4522 = vsel %vm3406, %v4512, 0
        %4524 = vmatprep.subr.mxu0 0.0
        %4525 = vmatpush1.msra.mxu0 %v4516
        %4526 = vmatprep.subr.mxu0 0.0
        %4527 = vmatpush1.msra.mxu0 %v4517
        %4528 = vmatprep.subr.mxu0 0.0
        %4529 = vmatpush1.msra.mxu0 0.0
        %4530 = vmatprep.subr.mxu0 0.0
        %4531 = vmatpush1.msra.mxu0 0.0
        %4532 = vmatprep.subr.mxu0 0.0
        %4533 = vmatpush1.msra.mxu0 0.0
        %4534 = vmatprep.subr.mxu0 0.0
        %4535 = vmatpush1.msra.mxu0 0.0
        %4536 = vmatprep.subr.mxu0 0.0
        %4537 = vmatpush1.msra.mxu0 0.0
        %4538 = vmatprep.subr.mxu0 0.0
        %4539 = vmatpush1.msra.mxu0 0.0
        %4540 = vmatprep.subr.mxu0 0.0
        %4541 = vmatpush1.msra.mxu0 0.0
        %4542 = vmatprep.subr.mxu0 0.0
        %4543 = vmatpush1.msra.mxu0 0.0
        %4544 = vmatprep.subr.mxu0 0.0
        %4545 = vmatpush1.msra.mxu0 0.0
        %4546 = vmatprep.subr.mxu0 0.0
        %4547 = vmatpush1.msra.mxu0 0.0
        %4548 = vmatprep.subr.mxu0 0.0
        %4549 = vmatpush1.msra.mxu0 0.0
        %4550 = vmatprep.subr.mxu0 0.0
        %4551 = vmatpush1.msra.mxu0 0.0
        %4552 = vmatprep.subr.mxu0 0.0
        %4553 = vmatpush1.msra.mxu0 0.0
        %4554 = vmatprep.subr.mxu0 0.0
        %4555 = vmatpush1.msra.mxu0 0.0
        %4556 = vmatprep.subr.mxu0 0.0
        %4557 = vmatpush1.msra.mxu0 0.0
        %4558 = vmatprep.subr.mxu0 0.0
        %4559 = vmatpush1.msra.mxu0 0.0
        %4560 = vmatprep.subr.mxu0 0.0
        %4561 = vmatpush1.msra.mxu0 0.0
        %4562 = vmatprep.subr.mxu0 0.0
        %4563 = vmatpush1.msra.mxu0 0.0
        %4564 = vmatprep.subr.mxu0 0.0
        %4565 = vmatpush1.msra.mxu0 0.0
        %4566 = vmatprep.subr.mxu0 0.0
        %4567 = vmatpush1.msra.mxu0 0.0
        %4568 = vmatprep.subr.mxu0 0.0
        %4569 = vmatpush1.msra.mxu0 0.0
        %4570 = vmatprep.subr.mxu0 0.0
        %4571 = vmatpush1.msra.mxu0 0.0
        %4572 = vmatprep.subr.mxu0 0.0
        %4573 = vmatpush1.msra.mxu0 0.0
        %4574 = vmatprep.subr.mxu0 0.0
        %4575 = vmatpush1.msra.mxu0 0.0
        %4576 = vmatprep.subr.mxu0 0.0
        %4577 = vmatpush1.msra.mxu0 0.0
        %4578 = vmatprep.subr.mxu0 0.0
        %4579 = vmatpush1.msra.mxu0 0.0
        %4580 = vmatprep.subr.mxu0 0.0
        %4581 = vmatpush1.msra.mxu0 0.0
        %4582 = vmatprep.subr.mxu0 0.0
        %4583 = vmatpush1.msra.mxu0 0.0
        %4584 = vmatprep.subr.mxu0 0.0
        %4585 = vmatpush1.msra.mxu0 0.0
        %4586 = vmatprep.subr.mxu0 0.0
        %4587 = vmatpush1.msra.mxu0 0.0
        %4588 = vmatprep.mubr.f32.mxu0 0.0
        %4589 = vmatmul.mubr.f32.gmra.mrb[0].mxu0 %v4519
        %v4590 = vpop.f32.mrb[0].mxu0
        %v4591 = vadd.f32 0.0, %v4590
        %v4592 = vpop.f32.mrb[0].mxu0
        %4593 = vmatprep.mubr.f32.mxu0 0.0
        %4594 = vmatmul.mubr.f32.gmra.mrb[0].mxu0 %v4522
        %v4595 = vpop.f32.mrb[0].mxu0
        %v4596 = vadd.f32 0.0, %v4595
        %v4597 = vpop.f32.mrb[0].mxu0
        %4598 = vdwg.mxu0
        %v4599 = vadd.f32 %v4427, %v4591
        %v4600 = vadd.f32 %v4428, %v4596
        %s4601 = scalar_lea.vmem %s4, 64
        %v4602 = vld [vmem:[%s4601] sm:$0xf]
        %v4603 = vld [vmem:[%s4601 + $0x4] sm:$0xf]
        %v4604 = vunpack.c.l.bf16 %v4602
        %v4605 = vunpack.c.l.bf16 %v4603
        %v4607 = vsel %vm3233, %v4604, 0
        %v4610 = vsel %vm3233, %v4605, 0
        %4612 = vmatprep.subr.mxu0 0.0
        %4613 = vmatpush1.msra.mxu0 %v3221
        %4614 = vmatprep.subr.mxu0 0.0
        %4615 = vmatpush1.msra.mxu0 %v3222
        %4616 = vmatprep.subr.mxu0 0.0
        %4617 = vmatpush1.msra.mxu0 %v3223
        %4618 = vmatprep.subr.mxu0 0.0
        %4619 = vmatpush1.msra.mxu0 %v3224
        %4620 = vmatprep.subr.mxu0 0.0
        %4621 = vmatpush1.msra.mxu0 %v3225
        %4622 = vmatprep.subr.mxu0 0.0
        %4623 = vmatpush1.msra.mxu0 %v3226
        %4624 = vmatprep.subr.mxu0 0.0
        %4625 = vmatpush1.msra.mxu0 %v3227
        %4626 = vmatprep.subr.mxu0 0.0
        %4627 = vmatpush1.msra.mxu0 %v3228
        %4628 = vmatprep.subr.mxu0 0.0
        %4629 = vmatpush1.msra.mxu0 0.0
        %4630 = vmatprep.subr.mxu0 0.0
        %4631 = vmatpush1.msra.mxu0 0.0
        %4632 = vmatprep.subr.mxu0 0.0
        %4633 = vmatpush1.msra.mxu0 0.0
        %4634 = vmatprep.subr.mxu0 0.0
        %4635 = vmatpush1.msra.mxu0 0.0
        %4636 = vmatprep.subr.mxu0 0.0
        %4637 = vmatpush1.msra.mxu0 0.0
        %4638 = vmatprep.subr.mxu0 0.0
        %4639 = vmatpush1.msra.mxu0 0.0
        %4640 = vmatprep.subr.mxu0 0.0
        %4641 = vmatpush1.msra.mxu0 0.0
        %4642 = vmatprep.subr.mxu0 0.0
        %4643 = vmatpush1.msra.mxu0 0.0
        %4644 = vmatprep.subr.mxu0 0.0
        %4645 = vmatpush1.msra.mxu0 0.0
        %4646 = vmatprep.subr.mxu0 0.0
        %4647 = vmatpush1.msra.mxu0 0.0
        %4648 = vmatprep.subr.mxu0 0.0
        %4649 = vmatpush1.msra.mxu0 0.0
        %4650 = vmatprep.subr.mxu0 0.0
        %4651 = vmatpush1.msra.mxu0 0.0
        %4652 = vmatprep.subr.mxu0 0.0
        %4653 = vmatpush1.msra.mxu0 0.0
        %4654 = vmatprep.subr.mxu0 0.0
        %4655 = vmatpush1.msra.mxu0 0.0
        %4656 = vmatprep.subr.mxu0 0.0
        %4657 = vmatpush1.msra.mxu0 0.0
        %4658 = vmatprep.subr.mxu0 0.0
        %4659 = vmatpush1.msra.mxu0 0.0
        %4660 = vmatprep.subr.mxu0 0.0
        %4661 = vmatpush1.msra.mxu0 0.0
        %4662 = vmatprep.subr.mxu0 0.0
        %4663 = vmatpush1.msra.mxu0 0.0
        %4664 = vmatprep.subr.mxu0 0.0
        %4665 = vmatpush1.msra.mxu0 0.0
        %4666 = vmatprep.subr.mxu0 0.0
        %4667 = vmatpush1.msra.mxu0 0.0
        %4668 = vmatprep.subr.mxu0 0.0
        %4669 = vmatpush1.msra.mxu0 0.0
        %4670 = vmatprep.subr.mxu0 0.0
        %4671 = vmatpush1.msra.mxu0 0.0
        %4672 = vmatprep.subr.mxu0 0.0
        %4673 = vmatpush1.msra.mxu0 0.0
        %4674 = vmatprep.subr.mxu0 0.0
        %4675 = vmatpush1.msra.mxu0 0.0
        %4676 = vmatprep.mubr.f32.mxu0 0.0
        %4677 = vmatmul.mubr.f32.gmra.mrb[0].mxu0 %v4607
        %v4678 = vpop.f32.mrb[0].mxu0
        %v4679 = vadd.f32 0.0, %v4678
        %v4680 = vpop.f32.mrb[0].mxu0
        %4681 = vmatprep.mubr.f32.mxu0 0.0
        %4682 = vmatmul.mubr.f32.gmra.mrb[0].mxu0 %v4610
        %v4683 = vpop.f32.mrb[0].mxu0
        %v4684 = vadd.f32 0.0, %v4683
        %v4685 = vpop.f32.mrb[0].mxu0
        %4686 = vdwg.mxu0
        %s4687 = scalar_lea.vmem %s5, 128
        %v4688 = vld [vmem:[%s4687] sm:$0xff]
        %v4689 = vld [vmem:[%s4687 + $0x8] sm:$0xff]
        %v4691 = vsel %vm3406, %v4679, 0
        %v4694 = vsel %vm3406, %v4684, 0
        %4696 = vmatprep.subr.mxu0 0.0
        %4697 = vmatpush1.msra.mxu0 %v4688
        %4698 = vmatprep.subr.mxu0 0.0
        %4699 = vmatpush1.msra.mxu0 %v4689
        %4700 = vmatprep.subr.mxu0 0.0
        %4701 = vmatpush1.msra.mxu0 0.0
        %4702 = vmatprep.subr.mxu0 0.0
        %4703 = vmatpush1.msra.mxu0 0.0
        %4704 = vmatprep.subr.mxu0 0.0
        %4705 = vmatpush1.msra.mxu0 0.0
        %4706 = vmatprep.subr.mxu0 0.0
        %4707 = vmatpush1.msra.mxu0 0.0
        %4708 = vmatprep.subr.mxu0 0.0
        %4709 = vmatpush1.msra.mxu0 0.0
        %4710 = vmatprep.subr.mxu0 0.0
        %4711 = vmatpush1.msra.mxu0 0.0
        %4712 = vmatprep.subr.mxu0 0.0
        %4713 = vmatpush1.msra.mxu0 0.0
        %4714 = vmatprep.subr.mxu0 0.0
        %4715 = vmatpush1.msra.mxu0 0.0
        %4716 = vmatprep.subr.mxu0 0.0
        %4717 = vmatpush1.msra.mxu0 0.0
        %4718 = vmatprep.subr.mxu0 0.0
        %4719 = vmatpush1.msra.mxu0 0.0
        %4720 = vmatprep.subr.mxu0 0.0
        %4721 = vmatpush1.msra.mxu0 0.0
        %4722 = vmatprep.subr.mxu0 0.0
        %4723 = vmatpush1.msra.mxu0 0.0
        %4724 = vmatprep.subr.mxu0 0.0
        %4725 = vmatpush1.msra.mxu0 0.0
        %4726 = vmatprep.subr.mxu0 0.0
        %4727 = vmatpush1.msra.mxu0 0.0
        %4728 = vmatprep.subr.mxu0 0.0
        %4729 = vmatpush1.msra.mxu0 0.0
        %4730 = vmatprep.subr.mxu0 0.0
        %4731 = vmatpush1.msra.mxu0 0.0
        %4732 = vmatprep.subr.mxu0 0.0
        %4733 = vmatpush1.msra.mxu0 0.0
        %4734 = vmatprep.subr.mxu0 0.0
        %4735 = vmatpush1.msra.mxu0 0.0
        %4736 = vmatprep.subr.mxu0 0.0
        %4737 = vmatpush1.msra.mxu0 0.0
        %4738 = vmatprep.subr.mxu0 0.0
        %4739 = vmatpush1.msra.mxu0 0.0
        %4740 = vmatprep.subr.mxu0 0.0
        %4741 = vmatpush1.msra.mxu0 0.0
        %4742 = vmatprep.subr.mxu0 0.0
        %4743 = vmatpush1.msra.mxu0 0.0
        %4744 = vmatprep.subr.mxu0 0.0
        %4745 = vmatpush1.msra.mxu0 0.0
        %4746 = vmatprep.subr.mxu0 0.0
        %4747 = vmatpush1.msra.mxu0 0.0
        %4748 = vmatprep.subr.mxu0 0.0
        %4749 = vmatpush1.msra.mxu0 0.0
        %4750 = vmatprep.subr.mxu0 0.0
        %4751 = vmatpush1.msra.mxu0 0.0
        %4752 = vmatprep.subr.mxu0 0.0
        %4753 = vmatpush1.msra.mxu0 0.0
        %4754 = vmatprep.subr.mxu0 0.0
        %4755 = vmatpush1.msra.mxu0 0.0
        %4756 = vmatprep.subr.mxu0 0.0
        %4757 = vmatpush1.msra.mxu0 0.0
        %4758 = vmatprep.subr.mxu0 0.0
        %4759 = vmatpush1.msra.mxu0 0.0
        %4760 = vmatprep.mubr.f32.mxu0 0.0
        %4761 = vmatmul.mubr.f32.gmra.mrb[0].mxu0 %v4691
        %v4762 = vpop.f32.mrb[0].mxu0
        %v4763 = vadd.f32 0.0, %v4762
        %v4764 = vpop.f32.mrb[0].mxu0
        %4765 = vmatprep.mubr.f32.mxu0 0.0
        %4766 = vmatmul.mubr.f32.gmra.mrb[0].mxu0 %v4694
        %v4767 = vpop.f32.mrb[0].mxu0
        %v4768 = vadd.f32 0.0, %v4767
        %v4769 = vpop.f32.mrb[0].mxu0
        %4770 = vdwg.mxu0
        %v4771 = vadd.f32 %v4599, %v4763
        %v4772 = vadd.f32 %v4600, %v4768
        %v4773 = vld [vmem:[#allocation2] sm:$0x1]
        %v4775 = vlaneseq
        %v4776 = vshrl.u32 %v4775, 7
        %v4777 = vsub.s32 0, %v4776
        %v4778 = vrot.slane %v4773, %v4777
        %v4780 = vadd.f32 %v4771, %v4778
        %v4781 = vadd.f32 %v4772, %v4778
        %v4782 = vmax.f32 %v4780, 0.0
        %v4783 = vmax.f32 %v4781, 0.0
        %v4784 = vld [vmem:[%s7] sm:$0x3]
        %v4785 = vunpack.c.l.bf16 %v4784
        %v4787 = vsel %vm3406, %v4785, 0
        %4789 = vmatprep.subr.mxu0 0.0
        %4790 = vmatpush1.msra.mxu0 %v4782
        %4791 = vmatprep.subr.mxu0 0.0
        %4792 = vmatpush1.msra.mxu0 %v4783
        %4793 = vmatprep.subr.mxu0 0.0
        %4794 = vmatpush1.msra.mxu0 0.0
        %4795 = vmatprep.subr.mxu0 0.0
        %4796 = vmatpush1.msra.mxu0 0.0
        %4797 = vmatprep.subr.mxu0 0.0
        %4798 = vmatpush1.msra.mxu0 0.0
        %4799 = vmatprep.subr.mxu0 0.0
        %4800 = vmatpush1.msra.mxu0 0.0
        %4801 = vmatprep.subr.mxu0 0.0
        %4802 = vmatpush1.msra.mxu0 0.0
        %4803 = vmatprep.subr.mxu0 0.0
        %4804 = vmatpush1.msra.mxu0 0.0
        %4805 = vmatprep.subr.mxu0 0.0
        %4806 = vmatpush1.msra.mxu0 0.0
        %4807 = vmatprep.subr.mxu0 0.0
        %4808 = vmatpush1.msra.mxu0 0.0
        %4809 = vmatprep.subr.mxu0 0.0
        %4810 = vmatpush1.msra.mxu0 0.0
        %4811 = vmatprep.subr.mxu0 0.0
        %4812 = vmatpush1.msra.mxu0 0.0
        %4813 = vmatprep.subr.mxu0 0.0
        %4814 = vmatpush1.msra.mxu0 0.0
        %4815 = vmatprep.subr.mxu0 0.0
        %4816 = vmatpush1.msra.mxu0 0.0
        %4817 = vmatprep.subr.mxu0 0.0
        %4818 = vmatpush1.msra.mxu0 0.0
        %4819 = vmatprep.subr.mxu0 0.0
        %4820 = vmatpush1.msra.mxu0 0.0
        %4821 = vmatprep.subr.mxu0 0.0
        %4822 = vmatpush1.msra.mxu0 0.0
        %4823 = vmatprep.subr.mxu0 0.0
        %4824 = vmatpush1.msra.mxu0 0.0
        %4825 = vmatprep.subr.mxu0 0.0
        %4826 = vmatpush1.msra.mxu0 0.0
        %4827 = vmatprep.subr.mxu0 0.0
        %4828 = vmatpush1.msra.mxu0 0.0
        %4829 = vmatprep.subr.mxu0 0.0
        %4830 = vmatpush1.msra.mxu0 0.0
        %4831 = vmatprep.subr.mxu0 0.0
        %4832 = vmatpush1.msra.mxu0 0.0
        %4833 = vmatprep.subr.mxu0 0.0
        %4834 = vmatpush1.msra.mxu0 0.0
        %4835 = vmatprep.subr.mxu0 0.0
        %4836 = vmatpush1.msra.mxu0 0.0
        %4837 = vmatprep.subr.mxu0 0.0
        %4838 = vmatpush1.msra.mxu0 0.0
        %4839 = vmatprep.subr.mxu0 0.0
        %4840 = vmatpush1.msra.mxu0 0.0
        %4841 = vmatprep.subr.mxu0 0.0
        %4842 = vmatpush1.msra.mxu0 0.0
        %4843 = vmatprep.subr.mxu0 0.0
        %4844 = vmatpush1.msra.mxu0 0.0
        %4845 = vmatprep.subr.mxu0 0.0
        %4846 = vmatpush1.msra.mxu0 0.0
        %4847 = vmatprep.subr.mxu0 0.0
        %4848 = vmatpush1.msra.mxu0 0.0
        %4849 = vmatprep.subr.mxu0 0.0
        %4850 = vmatpush1.msra.mxu0 0.0
        %4851 = vmatprep.subr.mxu0 0.0
        %4852 = vmatpush1.msra.mxu0 0.0
        %4853 = vmatprep.mubr.f32.mxu0 0.0
        %4854 = vmatmul.mubr.f32.gmra.mrb[0].mxu0 %v4787
        %v4855 = vpop.f32.mrb[0].mxu0
        %v4856 = vadd.f32 0.0, %v4855
        %v4857 = vpop.f32.mrb[0].mxu0
        %4858 = vdwg.mxu0
        %v4859 = vld [vmem:[#allocation5] sm:$0xff]
        %v4860 = vld [vmem:[#allocation5 + $0x8] sm:$0xff]
        %v4861 = vld [vmem:[#allocation5 + $0x10] sm:$0xff]
        %v4862 = vld [vmem:[#allocation5 + $0x18] sm:$0xff]
        %s4863 = scalar_lea.vmem %s7, 2
        %v4864 = vld [vmem:[%s4863] sm:$0x3]
        %v4865 = vunpack.c.l.bf16 %v4864
        %v4867 = vsel %vm3406, %v4865, 0
        %4869 = vmatprep.subr.mxu0 0.0
        %4870 = vmatpush1.msra.mxu0 %v4782
        %4871 = vmatprep.subr.mxu0 0.0
        %4872 = vmatpush1.msra.mxu0 %v4783
        %4873 = vmatprep.subr.mxu0 0.0
        %4874 = vmatpush1.msra.mxu0 0.0
        %4875 = vmatprep.subr.mxu0 0.0
        %4876 = vmatpush1.msra.mxu0 0.0
        %4877 = vmatprep.subr.mxu0 0.0
        %4878 = vmatpush1.msra.mxu0 0.0
        %4879 = vmatprep.subr.mxu0 0.0
        %4880 = vmatpush1.msra.mxu0 0.0
        %4881 = vmatprep.subr.mxu0 0.0
        %4882 = vmatpush1.msra.mxu0 0.0
        %4883 = vmatprep.subr.mxu0 0.0
        %4884 = vmatpush1.msra.mxu0 0.0
        %4885 = vmatprep.subr.mxu0 0.0
        %4886 = vmatpush1.msra.mxu0 0.0
        %4887 = vmatprep.subr.mxu0 0.0
        %4888 = vmatpush1.msra.mxu0 0.0
        %4889 = vmatprep.subr.mxu0 0.0
        %4890 = vmatpush1.msra.mxu0 0.0
        %4891 = vmatprep.subr.mxu0 0.0
        %4892 = vmatpush1.msra.mxu0 0.0
        %4893 = vmatprep.subr.mxu0 0.0
        %4894 = vmatpush1.msra.mxu0 0.0
        %4895 = vmatprep.subr.mxu0 0.0
        %4896 = vmatpush1.msra.mxu0 0.0
        %4897 = vmatprep.subr.mxu0 0.0
        %4898 = vmatpush1.msra.mxu0 0.0
        %4899 = vmatprep.subr.mxu0 0.0
        %4900 = vmatpush1.msra.mxu0 0.0
        %4901 = vmatprep.subr.mxu0 0.0
        %4902 = vmatpush1.msra.mxu0 0.0
        %4903 = vmatprep.subr.mxu0 0.0
        %4904 = vmatpush1.msra.mxu0 0.0
        %4905 = vmatprep.subr.mxu0 0.0
        %4906 = vmatpush1.msra.mxu0 0.0
        %4907 = vmatprep.subr.mxu0 0.0
        %4908 = vmatpush1.msra.mxu0 0.0
        %4909 = vmatprep.subr.mxu0 0.0
        %4910 = vmatpush1.msra.mxu0 0.0
        %4911 = vmatprep.subr.mxu0 0.0
        %4912 = vmatpush1.msra.mxu0 0.0
        %4913 = vmatprep.subr.mxu0 0.0
        %4914 = vmatpush1.msra.mxu0 0.0
        %4915 = vmatprep.subr.mxu0 0.0
        %4916 = vmatpush1.msra.mxu0 0.0
        %4917 = vmatprep.subr.mxu0 0.0
        %4918 = vmatpush1.msra.mxu0 0.0
        %4919 = vmatprep.subr.mxu0 0.0
        %4920 = vmatpush1.msra.mxu0 0.0
        %4921 = vmatprep.subr.mxu0 0.0
        %4922 = vmatpush1.msra.mxu0 0.0
        %4923 = vmatprep.subr.mxu0 0.0
        %4924 = vmatpush1.msra.mxu0 0.0
        %4925 = vmatprep.subr.mxu0 0.0
        %4926 = vmatpush1.msra.mxu0 0.0
        %4927 = vmatprep.subr.mxu0 0.0
        %4928 = vmatpush1.msra.mxu0 0.0
        %4929 = vmatprep.subr.mxu0 0.0
        %4930 = vmatpush1.msra.mxu0 0.0
        %4931 = vmatprep.subr.mxu0 0.0
        %4932 = vmatpush1.msra.mxu0 0.0
        %4933 = vmatprep.mubr.f32.mxu0 0.0
        %4934 = vmatmul.mubr.f32.gmra.mrb[0].mxu0 %v4867
        %v4935 = vpop.f32.mrb[0].mxu0
        %v4936 = vadd.f32 0.0, %v4935
        %v4937 = vpop.f32.mrb[0].mxu0
        %4938 = vdwg.mxu0
        %s4939 = scalar_lea.vmem [#allocation5], 32
        %v4940 = vld [vmem:[%s4939] sm:$0xff]
        %v4941 = vld [vmem:[%s4939 + $0x8] sm:$0xff]
        %v4942 = vld [vmem:[%s4939 + $0x10] sm:$0xff]
        %v4943 = vld [vmem:[%s4939 + $0x18] sm:$0xff]
        %vm4944 = vcmask 261120
        %v4946 = vsel %vm4944, %v4936, 0
        %4948 = vmatprep.subr.mxu0 0.0
        %4949 = vmatpush1.msra.mxu0 %v4940
        %4950 = vmatprep.subr.mxu0 0.0
        %4951 = vmatpush1.msra.mxu0 %v4941
        %4952 = vmatprep.subr.mxu0 0.0
        %4953 = vmatpush1.msra.mxu0 %v4942
        %4954 = vmatprep.subr.mxu0 0.0
        %4955 = vmatpush1.msra.mxu0 %v4943
        %4956 = vmatprep.subr.mxu0 0.0
        %4957 = vmatpush1.msra.mxu0 0.0
        %4958 = vmatprep.subr.mxu0 0.0
        %4959 = vmatpush1.msra.mxu0 0.0
        %4960 = vmatprep.subr.mxu0 0.0
        %4961 = vmatpush1.msra.mxu0 0.0
        %4962 = vmatprep.subr.mxu0 0.0
        %4963 = vmatpush1.msra.mxu0 0.0
        %4964 = vmatprep.subr.mxu0 0.0
        %4965 = vmatpush1.msra.mxu0 0.0
        %4966 = vmatprep.subr.mxu0 0.0
        %4967 = vmatpush1.msra.mxu0 0.0
        %4968 = vmatprep.subr.mxu0 0.0
        %4969 = vmatpush1.msra.mxu0 0.0
        %4970 = vmatprep.subr.mxu0 0.0
        %4971 = vmatpush1.msra.mxu0 0.0
        %4972 = vmatprep.subr.mxu0 0.0
        %4973 = vmatpush1.msra.mxu0 0.0
        %4974 = vmatprep.subr.mxu0 0.0
        %4975 = vmatpush1.msra.mxu0 0.0
        %4976 = vmatprep.subr.mxu0 0.0
        %4977 = vmatpush1.msra.mxu0 0.0
        %4978 = vmatprep.subr.mxu0 0.0
        %4979 = vmatpush1.msra.mxu0 0.0
        %4980 = vmatprep.subr.mxu0 0.0
        %4981 = vmatpush1.msra.mxu0 0.0
        %4982 = vmatprep.subr.mxu0 0.0
        %4983 = vmatpush1.msra.mxu0 0.0
        %4984 = vmatprep.subr.mxu0 0.0
        %4985 = vmatpush1.msra.mxu0 0.0
        %4986 = vmatprep.subr.mxu0 0.0
        %4987 = vmatpush1.msra.mxu0 0.0
        %4988 = vmatprep.subr.mxu0 0.0
        %4989 = vmatpush1.msra.mxu0 0.0
        %4990 = vmatprep.subr.mxu0 0.0
        %4991 = vmatpush1.msra.mxu0 0.0
        %4992 = vmatprep.subr.mxu0 0.0
        %4993 = vmatpush1.msra.mxu0 0.0
        %4994 = vmatprep.subr.mxu0 0.0
        %4995 = vmatpush1.msra.mxu0 0.0
        %4996 = vmatprep.subr.mxu0 0.0
        %4997 = vmatpush1.msra.mxu0 0.0
        %4998 = vmatprep.subr.mxu0 0.0
        %4999 = vmatpush1.msra.mxu0 0.0
        %5000 = vmatprep.subr.mxu0 0.0
        %5001 = vmatpush1.msra.mxu0 0.0
        %5002 = vmatprep.subr.mxu0 0.0
        %5003 = vmatpush1.msra.mxu0 0.0
        %5004 = vmatprep.subr.mxu0 0.0
        %5005 = vmatpush1.msra.mxu0 0.0
        %5006 = vmatprep.subr.mxu0 0.0
        %5007 = vmatpush1.msra.mxu0 0.0
        %5008 = vmatprep.subr.mxu0 0.0
        %5009 = vmatpush1.msra.mxu0 0.0
        %5010 = vmatprep.subr.mxu0 0.0
        %5011 = vmatpush1.msra.mxu0 0.0
        %5012 = vmatprep.mubr.f32.mxu0 0.0
        %5013 = vmatmul.mubr.f32.gmra.mrb[0].mxu0 %v4946
        %v5014 = vpop.f32.mrb[0].mxu0
        %v5015 = vadd.f32 0.0, %v5014
        %v5016 = vpop.f32.mrb[0].mxu0
        %5017 = vdwg.mxu0
        %v5019 = vsel %vm4944, %v4856, 0
        %5021 = vmatprep.subr.mxu0 0.0
        %5022 = vmatpush1.msra.mxu0 %v4859
        %5023 = vmatprep.subr.mxu0 0.0
        %5024 = vmatpush1.msra.mxu0 %v4860
        %5025 = vmatprep.subr.mxu0 0.0
        %5026 = vmatpush1.msra.mxu0 %v4861
        %5027 = vmatprep.subr.mxu0 0.0
        %5028 = vmatpush1.msra.mxu0 %v4862
        %5029 = vmatprep.subr.mxu0 0.0
        %5030 = vmatpush1.msra.mxu0 0.0
        %5031 = vmatprep.subr.mxu0 0.0
        %5032 = vmatpush1.msra.mxu0 0.0
        %5033 = vmatprep.subr.mxu0 0.0
        %5034 = vmatpush1.msra.mxu0 0.0
        %5035 = vmatprep.subr.mxu0 0.0
        %5036 = vmatpush1.msra.mxu0 0.0
        %5037 = vmatprep.subr.mxu0 0.0
        %5038 = vmatpush1.msra.mxu0 0.0
        %5039 = vmatprep.subr.mxu0 0.0
        %5040 = vmatpush1.msra.mxu0 0.0
        %5041 = vmatprep.subr.mxu0 0.0
        %5042 = vmatpush1.msra.mxu0 0.0
        %5043 = vmatprep.subr.mxu0 0.0
        %5044 = vmatpush1.msra.mxu0 0.0
        %5045 = vmatprep.subr.mxu0 0.0
        %5046 = vmatpush1.msra.mxu0 0.0
        %5047 = vmatprep.subr.mxu0 0.0
        %5048 = vmatpush1.msra.mxu0 0.0
        %5049 = vmatprep.subr.mxu0 0.0
        %5050 = vmatpush1.msra.mxu0 0.0
        %5051 = vmatprep.subr.mxu0 0.0
        %5052 = vmatpush1.msra.mxu0 0.0
        %5053 = vmatprep.subr.mxu0 0.0
        %5054 = vmatpush1.msra.mxu0 0.0
        %5055 = vmatprep.subr.mxu0 0.0
        %5056 = vmatpush1.msra.mxu0 0.0
        %5057 = vmatprep.subr.mxu0 0.0
        %5058 = vmatpush1.msra.mxu0 0.0
        %5059 = vmatprep.subr.mxu0 0.0
        %5060 = vmatpush1.msra.mxu0 0.0
        %5061 = vmatprep.subr.mxu0 0.0
        %5062 = vmatpush1.msra.mxu0 0.0
        %5063 = vmatprep.subr.mxu0 0.0
        %5064 = vmatpush1.msra.mxu0 0.0
        %5065 = vmatprep.subr.mxu0 0.0
        %5066 = vmatpush1.msra.mxu0 0.0
        %5067 = vmatprep.subr.mxu0 0.0
        %5068 = vmatpush1.msra.mxu0 0.0
        %5069 = vmatprep.subr.mxu0 0.0
        %5070 = vmatpush1.msra.mxu0 0.0
        %5071 = vmatprep.subr.mxu0 0.0
        %5072 = vmatpush1.msra.mxu0 0.0
        %5073 = vmatprep.subr.mxu0 0.0
        %5074 = vmatpush1.msra.mxu0 0.0
        %5075 = vmatprep.subr.mxu0 0.0
        %5076 = vmatpush1.msra.mxu0 0.0
        %5077 = vmatprep.subr.mxu0 0.0
        %5078 = vmatpush1.msra.mxu0 0.0
        %5079 = vmatprep.subr.mxu0 0.0
        %5080 = vmatpush1.msra.mxu0 0.0
        %5081 = vmatprep.subr.mxu0 0.0
        %5082 = vmatpush1.msra.mxu0 0.0
        %5083 = vmatprep.subr.mxu0 0.0
        %5084 = vmatpush1.msra.mxu0 0.0
        %5085 = vmatprep.mubr.f32.mxu0 0.0
        %5086 = vmatmul.mubr.f32.gmra.mrb[0].mxu0 %v5019
        %v5087 = vpop.f32.mrb[0].mxu0
        %v5088 = vadd.f32 %v5015, %v5087
        %v5089 = vpop.f32.mrb[0].mxu0
        %5090 = vdwg.mxu0
        %s5091 = scalar_lea.vmem %s7, 4
        %v5092 = vld [vmem:[%s5091] sm:$0x3]
        %v5093 = vunpack.c.l.bf16 %v5092
        %v5095 = vsel %vm3406, %v5093, 0
        %5097 = vmatprep.subr.mxu0 0.0
        %5098 = vmatpush1.msra.mxu0 %v4782
        %5099 = vmatprep.subr.mxu0 0.0
        %5100 = vmatpush1.msra.mxu0 %v4783
        %5101 = vmatprep.subr.mxu0 0.0
        %5102 = vmatpush1.msra.mxu0 0.0
        %5103 = vmatprep.subr.mxu0 0.0
        %5104 = vmatpush1.msra.mxu0 0.0
        %5105 = vmatprep.subr.mxu0 0.0
        %5106 = vmatpush1.msra.mxu0 0.0
        %5107 = vmatprep.subr.mxu0 0.0
        %5108 = vmatpush1.msra.mxu0 0.0
        %5109 = vmatprep.subr.mxu0 0.0
        %5110 = vmatpush1.msra.mxu0 0.0
        %5111 = vmatprep.subr.mxu0 0.0
        %5112 = vmatpush1.msra.mxu0 0.0
        %5113 = vmatprep.subr.mxu0 0.0
        %5114 = vmatpush1.msra.mxu0 0.0
        %5115 = vmatprep.subr.mxu0 0.0
        %5116 = vmatpush1.msra.mxu0 0.0
        %5117 = vmatprep.subr.mxu0 0.0
        %5118 = vmatpush1.msra.mxu0 0.0
        %5119 = vmatprep.subr.mxu0 0.0
        %5120 = vmatpush1.msra.mxu0 0.0
        %5121 = vmatprep.subr.mxu0 0.0
        %5122 = vmatpush1.msra.mxu0 0.0
        %5123 = vmatprep.subr.mxu0 0.0
        %5124 = vmatpush1.msra.mxu0 0.0
        %5125 = vmatprep.subr.mxu0 0.0
        %5126 = vmatpush1.msra.mxu0 0.0
        %5127 = vmatprep.subr.mxu0 0.0
        %5128 = vmatpush1.msra.mxu0 0.0
        %5129 = vmatprep.subr.mxu0 0.0
        %5130 = vmatpush1.msra.mxu0 0.0
        %5131 = vmatprep.subr.mxu0 0.0
        %5132 = vmatpush1.msra.mxu0 0.0
        %5133 = vmatprep.subr.mxu0 0.0
        %5134 = vmatpush1.msra.mxu0 0.0
        %5135 = vmatprep.subr.mxu0 0.0
        %5136 = vmatpush1.msra.mxu0 0.0
        %5137 = vmatprep.subr.mxu0 0.0
        %5138 = vmatpush1.msra.mxu0 0.0
        %5139 = vmatprep.subr.mxu0 0.0
        %5140 = vmatpush1.msra.mxu0 0.0
        %5141 = vmatprep.subr.mxu0 0.0
        %5142 = vmatpush1.msra.mxu0 0.0
        %5143 = vmatprep.subr.mxu0 0.0
        %5144 = vmatpush1.msra.mxu0 0.0
        %5145 = vmatprep.subr.mxu0 0.0
        %5146 = vmatpush1.msra.mxu0 0.0
        %5147 = vmatprep.subr.mxu0 0.0
        %5148 = vmatpush1.msra.mxu0 0.0
        %5149 = vmatprep.subr.mxu0 0.0
        %5150 = vmatpush1.msra.mxu0 0.0
        %5151 = vmatprep.subr.mxu0 0.0
        %5152 = vmatpush1.msra.mxu0 0.0
        %5153 = vmatprep.subr.mxu0 0.0
        %5154 = vmatpush1.msra.mxu0 0.0
        %5155 = vmatprep.subr.mxu0 0.0
        %5156 = vmatpush1.msra.mxu0 0.0
        %5157 = vmatprep.subr.mxu0 0.0
        %5158 = vmatpush1.msra.mxu0 0.0
        %5159 = vmatprep.subr.mxu0 0.0
        %5160 = vmatpush1.msra.mxu0 0.0
        %5161 = vmatprep.mubr.f32.mxu0 0.0
        %5162 = vmatmul.mubr.f32.gmra.mrb[0].mxu0 %v5095
        %v5163 = vpop.f32.mrb[0].mxu0
        %v5164 = vadd.f32 0.0, %v5163
        %v5165 = vpop.f32.mrb[0].mxu0
        %5166 = vdwg.mxu0
        %s5167 = scalar_lea.vmem [#allocation5], 64
        %v5168 = vld [vmem:[%s5167] sm:$0xff]
        %v5169 = vld [vmem:[%s5167 + $0x8] sm:$0xff]
        %v5170 = vld [vmem:[%s5167 + $0x10] sm:$0xff]
        %v5171 = vld [vmem:[%s5167 + $0x18] sm:$0xff]
        %v5173 = vsel %vm4944, %v5164, 0
        %5175 = vmatprep.subr.mxu0 0.0
        %5176 = vmatpush1.msra.mxu0 %v5168
        %5177 = vmatprep.subr.mxu0 0.0
        %5178 = vmatpush1.msra.mxu0 %v5169
        %5179 = vmatprep.subr.mxu0 0.0
        %5180 = vmatpush1.msra.mxu0 %v5170
        %5181 = vmatprep.subr.mxu0 0.0
        %5182 = vmatpush1.msra.mxu0 %v5171
        %5183 = vmatprep.subr.mxu0 0.0
        %5184 = vmatpush1.msra.mxu0 0.0
        %5185 = vmatprep.subr.mxu0 0.0
        %5186 = vmatpush1.msra.mxu0 0.0
        %5187 = vmatprep.subr.mxu0 0.0
        %5188 = vmatpush1.msra.mxu0 0.0
        %5189 = vmatprep.subr.mxu0 0.0
        %5190 = vmatpush1.msra.mxu0 0.0
        %5191 = vmatprep.subr.mxu0 0.0
        %5192 = vmatpush1.msra.mxu0 0.0
        %5193 = vmatprep.subr.mxu0 0.0
        %5194 = vmatpush1.msra.mxu0 0.0
        %5195 = vmatprep.subr.mxu0 0.0
        %5196 = vmatpush1.msra.mxu0 0.0
        %5197 = vmatprep.subr.mxu0 0.0
        %5198 = vmatpush1.msra.mxu0 0.0
        %5199 = vmatprep.subr.mxu0 0.0
        %5200 = vmatpush1.msra.mxu0 0.0
        %5201 = vmatprep.subr.mxu0 0.0
        %5202 = vmatpush1.msra.mxu0 0.0
        %5203 = vmatprep.subr.mxu0 0.0
        %5204 = vmatpush1.msra.mxu0 0.0
        %5205 = vmatprep.subr.mxu0 0.0
        %5206 = vmatpush1.msra.mxu0 0.0
        %5207 = vmatprep.subr.mxu0 0.0
        %5208 = vmatpush1.msra.mxu0 0.0
        %5209 = vmatprep.subr.mxu0 0.0
        %5210 = vmatpush1.msra.mxu0 0.0
        %5211 = vmatprep.subr.mxu0 0.0
        %5212 = vmatpush1.msra.mxu0 0.0
        %5213 = vmatprep.subr.mxu0 0.0
        %5214 = vmatpush1.msra.mxu0 0.0
        %5215 = vmatprep.subr.mxu0 0.0
        %5216 = vmatpush1.msra.mxu0 0.0
        %5217 = vmatprep.subr.mxu0 0.0
        %5218 = vmatpush1.msra.mxu0 0.0
        %5219 = vmatprep.subr.mxu0 0.0
        %5220 = vmatpush1.msra.mxu0 0.0
        %5221 = vmatprep.subr.mxu0 0.0
        %5222 = vmatpush1.msra.mxu0 0.0
        %5223 = vmatprep.subr.mxu0 0.0
        %5224 = vmatpush1.msra.mxu0 0.0
        %5225 = vmatprep.subr.mxu0 0.0
        %5226 = vmatpush1.msra.mxu0 0.0
        %5227 = vmatprep.subr.mxu0 0.0
        %5228 = vmatpush1.msra.mxu0 0.0
        %5229 = vmatprep.subr.mxu0 0.0
        %5230 = vmatpush1.msra.mxu0 0.0
        %5231 = vmatprep.subr.mxu0 0.0
        %5232 = vmatpush1.msra.mxu0 0.0
        %5233 = vmatprep.subr.mxu0 0.0
        %5234 = vmatpush1.msra.mxu0 0.0
        %5235 = vmatprep.subr.mxu0 0.0
        %5236 = vmatpush1.msra.mxu0 0.0
        %5237 = vmatprep.subr.mxu0 0.0
        %5238 = vmatpush1.msra.mxu0 0.0
        %5239 = vmatprep.mubr.f32.mxu0 0.0
        %5240 = vmatmul.mubr.f32.gmra.mrb[0].mxu0 %v5173
        %v5241 = vpop.f32.mrb[0].mxu0
        %v5242 = vadd.f32 0.0, %v5241
        %v5243 = vpop.f32.mrb[0].mxu0
        %5244 = vdwg.mxu0
        %v5245 = vadd.f32 %v5088, %v5242
        %s5246 = scalar_lea.vmem %s7, 6
        %v5247 = vld [vmem:[%s5246] sm:$0x3]
        %v5248 = vunpack.c.l.bf16 %v5247
        %v5250 = vsel %vm3406, %v5248, 0
        %5252 = vmatprep.subr.mxu0 0.0
        %5253 = vmatpush1.msra.mxu0 %v4782
        %5254 = vmatprep.subr.mxu0 0.0
        %5255 = vmatpush1.msra.mxu0 %v4783
        %5256 = vmatprep.subr.mxu0 0.0
        %5257 = vmatpush1.msra.mxu0 0.0
        %5258 = vmatprep.subr.mxu0 0.0
        %5259 = vmatpush1.msra.mxu0 0.0
        %5260 = vmatprep.subr.mxu0 0.0
        %5261 = vmatpush1.msra.mxu0 0.0
        %5262 = vmatprep.subr.mxu0 0.0
        %5263 = vmatpush1.msra.mxu0 0.0
        %5264 = vmatprep.subr.mxu0 0.0
        %5265 = vmatpush1.msra.mxu0 0.0
        %5266 = vmatprep.subr.mxu0 0.0
        %5267 = vmatpush1.msra.mxu0 0.0
        %5268 = vmatprep.subr.mxu0 0.0
        %5269 = vmatpush1.msra.mxu0 0.0
        %5270 = vmatprep.subr.mxu0 0.0
        %5271 = vmatpush1.msra.mxu0 0.0
        %5272 = vmatprep.subr.mxu0 0.0
        %5273 = vmatpush1.msra.mxu0 0.0
        %5274 = vmatprep.subr.mxu0 0.0
        %5275 = vmatpush1.msra.mxu0 0.0
        %5276 = vmatprep.subr.mxu0 0.0
        %5277 = vmatpush1.msra.mxu0 0.0
        %5278 = vmatprep.subr.mxu0 0.0
        %5279 = vmatpush1.msra.mxu0 0.0
        %5280 = vmatprep.subr.mxu0 0.0
        %5281 = vmatpush1.msra.mxu0 0.0
        %5282 = vmatprep.subr.mxu0 0.0
        %5283 = vmatpush1.msra.mxu0 0.0
        %5284 = vmatprep.subr.mxu0 0.0
        %5285 = vmatpush1.msra.mxu0 0.0
        %5286 = vmatprep.subr.mxu0 0.0
        %5287 = vmatpush1.msra.mxu0 0.0
        %5288 = vmatprep.subr.mxu0 0.0
        %5289 = vmatpush1.msra.mxu0 0.0
        %5290 = vmatprep.subr.mxu0 0.0
        %5291 = vmatpush1.msra.mxu0 0.0
        %5292 = vmatprep.subr.mxu0 0.0
        %5293 = vmatpush1.msra.mxu0 0.0
        %5294 = vmatprep.subr.mxu0 0.0
        %5295 = vmatpush1.msra.mxu0 0.0
        %5296 = vmatprep.subr.mxu0 0.0
        %5297 = vmatpush1.msra.mxu0 0.0
        %5298 = vmatprep.subr.mxu0 0.0
        %5299 = vmatpush1.msra.mxu0 0.0
        %5300 = vmatprep.subr.mxu0 0.0
        %5301 = vmatpush1.msra.mxu0 0.0
        %5302 = vmatprep.subr.mxu0 0.0
        %5303 = vmatpush1.msra.mxu0 0.0
        %5304 = vmatprep.subr.mxu0 0.0
        %5305 = vmatpush1.msra.mxu0 0.0
        %5306 = vmatprep.subr.mxu0 0.0
        %5307 = vmatpush1.msra.mxu0 0.0
        %5308 = vmatprep.subr.mxu0 0.0
        %5309 = vmatpush1.msra.mxu0 0.0
        %5310 = vmatprep.subr.mxu0 0.0
        %5311 = vmatpush1.msra.mxu0 0.0
        %5312 = vmatprep.subr.mxu0 0.0
        %5313 = vmatpush1.msra.mxu0 0.0
        %5314 = vmatprep.subr.mxu0 0.0
        %5315 = vmatpush1.msra.mxu0 0.0
        %5316 = vmatprep.mubr.f32.mxu0 0.0
        %5317 = vmatmul.mubr.f32.gmra.mrb[0].mxu0 %v5250
        %v5318 = vpop.f32.mrb[0].mxu0
        %v5319 = vadd.f32 0.0, %v5318
        %v5320 = vpop.f32.mrb[0].mxu0
        %5321 = vdwg.mxu0
        %s5322 = scalar_lea.vmem [#allocation5], 96
        %v5323 = vld [vmem:[%s5322] sm:$0xff]
        %v5324 = vld [vmem:[%s5322 + $0x8] sm:$0xff]
        %v5325 = vld [vmem:[%s5322 + $0x10] sm:$0xff]
        %v5326 = vld [vmem:[%s5322 + $0x18] sm:$0xff]
        %v5328 = vsel %vm4944, %v5319, 0
        %5330 = vmatprep.subr.mxu0 0.0
        %5331 = vmatpush1.msra.mxu0 %v5323
        %5332 = vmatprep.subr.mxu0 0.0
        %5333 = vmatpush1.msra.mxu0 %v5324
        %5334 = vmatprep.subr.mxu0 0.0
        %5335 = vmatpush1.msra.mxu0 %v5325
        %5336 = vmatprep.subr.mxu0 0.0
        %5337 = vmatpush1.msra.mxu0 %v5326
        %5338 = vmatprep.subr.mxu0 0.0
        %5339 = vmatpush1.msra.mxu0 0.0
        %5340 = vmatprep.subr.mxu0 0.0
        %5341 = vmatpush1.msra.mxu0 0.0
        %5342 = vmatprep.subr.mxu0 0.0
        %5343 = vmatpush1.msra.mxu0 0.0
        %5344 = vmatprep.subr.mxu0 0.0
        %5345 = vmatpush1.msra.mxu0 0.0
        %5346 = vmatprep.subr.mxu0 0.0
        %5347 = vmatpush1.msra.mxu0 0.0
        %5348 = vmatprep.subr.mxu0 0.0
        %5349 = vmatpush1.msra.mxu0 0.0
        %5350 = vmatprep.subr.mxu0 0.0
        %5351 = vmatpush1.msra.mxu0 0.0
        %5352 = vmatprep.subr.mxu0 0.0
        %5353 = vmatpush1.msra.mxu0 0.0
        %5354 = vmatprep.subr.mxu0 0.0
        %5355 = vmatpush1.msra.mxu0 0.0
        %5356 = vmatprep.subr.mxu0 0.0
        %5357 = vmatpush1.msra.mxu0 0.0
        %5358 = vmatprep.subr.mxu0 0.0
        %5359 = vmatpush1.msra.mxu0 0.0
        %5360 = vmatprep.subr.mxu0 0.0
        %5361 = vmatpush1.msra.mxu0 0.0
        %5362 = vmatprep.subr.mxu0 0.0
        %5363 = vmatpush1.msra.mxu0 0.0
        %5364 = vmatprep.subr.mxu0 0.0
        %5365 = vmatpush1.msra.mxu0 0.0
        %5366 = vmatprep.subr.mxu0 0.0
        %5367 = vmatpush1.msra.mxu0 0.0
        %5368 = vmatprep.subr.mxu0 0.0
        %5369 = vmatpush1.msra.mxu0 0.0
        %5370 = vmatprep.subr.mxu0 0.0
        %5371 = vmatpush1.msra.mxu0 0.0
        %5372 = vmatprep.subr.mxu0 0.0
        %5373 = vmatpush1.msra.mxu0 0.0
        %5374 = vmatprep.subr.mxu0 0.0
        %5375 = vmatpush1.msra.mxu0 0.0
        %5376 = vmatprep.subr.mxu0 0.0
        %5377 = vmatpush1.msra.mxu0 0.0
        %5378 = vmatprep.subr.mxu0 0.0
        %5379 = vmatpush1.msra.mxu0 0.0
        %5380 = vmatprep.subr.mxu0 0.0
        %5381 = vmatpush1.msra.mxu0 0.0
        %5382 = vmatprep.subr.mxu0 0.0
        %5383 = vmatpush1.msra.mxu0 0.0
        %5384 = vmatprep.subr.mxu0 0.0
        %5385 = vmatpush1.msra.mxu0 0.0
        %5386 = vmatprep.subr.mxu0 0.0
        %5387 = vmatpush1.msra.mxu0 0.0
        %5388 = vmatprep.subr.mxu0 0.0
        %5389 = vmatpush1.msra.mxu0 0.0
        %5390 = vmatprep.subr.mxu0 0.0
        %5391 = vmatpush1.msra.mxu0 0.0
        %5392 = vmatprep.subr.mxu0 0.0
        %5393 = vmatpush1.msra.mxu0 0.0
        %5394 = vmatprep.mubr.f32.mxu0 0.0
        %5395 = vmatmul.mubr.f32.gmra.mrb[0].mxu0 %v5328
        %v5396 = vpop.f32.mrb[0].mxu0
        %v5397 = vadd.f32 0.0, %v5396
        %v5398 = vpop.f32.mrb[0].mxu0
        %5399 = vdwg.mxu0
        %v5400 = vadd.f32 %v5245, %v5397
        %s5401 = scalar_lea.vmem %s7, 8
        %v5402 = vld [vmem:[%s5401] sm:$0x3]
        %v5403 = vunpack.c.l.bf16 %v5402
        %v5405 = vsel %vm3406, %v5403, 0
        %5407 = vmatprep.subr.mxu0 0.0
        %5408 = vmatpush1.msra.mxu0 %v4782
        %5409 = vmatprep.subr.mxu0 0.0
        %5410 = vmatpush1.msra.mxu0 %v4783
        %5411 = vmatprep.subr.mxu0 0.0
        %5412 = vmatpush1.msra.mxu0 0.0
        %5413 = vmatprep.subr.mxu0 0.0
        %5414 = vmatpush1.msra.mxu0 0.0
        %5415 = vmatprep.subr.mxu0 0.0
        %5416 = vmatpush1.msra.mxu0 0.0
        %5417 = vmatprep.subr.mxu0 0.0
        %5418 = vmatpush1.msra.mxu0 0.0
        %5419 = vmatprep.subr.mxu0 0.0
        %5420 = vmatpush1.msra.mxu0 0.0
        %5421 = vmatprep.subr.mxu0 0.0
        %5422 = vmatpush1.msra.mxu0 0.0
        %5423 = vmatprep.subr.mxu0 0.0
        %5424 = vmatpush1.msra.mxu0 0.0
        %5425 = vmatprep.subr.mxu0 0.0
        %5426 = vmatpush1.msra.mxu0 0.0
        %5427 = vmatprep.subr.mxu0 0.0
        %5428 = vmatpush1.msra.mxu0 0.0
        %5429 = vmatprep.subr.mxu0 0.0
        %5430 = vmatpush1.msra.mxu0 0.0
        %5431 = vmatprep.subr.mxu0 0.0
        %5432 = vmatpush1.msra.mxu0 0.0
        %5433 = vmatprep.subr.mxu0 0.0
        %5434 = vmatpush1.msra.mxu0 0.0
        %5435 = vmatprep.subr.mxu0 0.0
        %5436 = vmatpush1.msra.mxu0 0.0
        %5437 = vmatprep.subr.mxu0 0.0
        %5438 = vmatpush1.msra.mxu0 0.0
        %5439 = vmatprep.subr.mxu0 0.0
        %5440 = vmatpush1.msra.mxu0 0.0
        %5441 = vmatprep.subr.mxu0 0.0
        %5442 = vmatpush1.msra.mxu0 0.0
        %5443 = vmatprep.subr.mxu0 0.0
        %5444 = vmatpush1.msra.mxu0 0.0
        %5445 = vmatprep.subr.mxu0 0.0
        %5446 = vmatpush1.msra.mxu0 0.0
        %5447 = vmatprep.subr.mxu0 0.0
        %5448 = vmatpush1.msra.mxu0 0.0
        %5449 = vmatprep.subr.mxu0 0.0
        %5450 = vmatpush1.msra.mxu0 0.0
        %5451 = vmatprep.subr.mxu0 0.0
        %5452 = vmatpush1.msra.mxu0 0.0
        %5453 = vmatprep.subr.mxu0 0.0
        %5454 = vmatpush1.msra.mxu0 0.0
        %5455 = vmatprep.subr.mxu0 0.0
        %5456 = vmatpush1.msra.mxu0 0.0
        %5457 = vmatprep.subr.mxu0 0.0
        %5458 = vmatpush1.msra.mxu0 0.0
        %5459 = vmatprep.subr.mxu0 0.0
        %5460 = vmatpush1.msra.mxu0 0.0
        %5461 = vmatprep.subr.mxu0 0.0
        %5462 = vmatpush1.msra.mxu0 0.0
        %5463 = vmatprep.subr.mxu0 0.0
        %5464 = vmatpush1.msra.mxu0 0.0
        %5465 = vmatprep.subr.mxu0 0.0
        %5466 = vmatpush1.msra.mxu0 0.0
        %5467 = vmatprep.subr.mxu0 0.0
        %5468 = vmatpush1.msra.mxu0 0.0
        %5469 = vmatprep.subr.mxu0 0.0
        %5470 = vmatpush1.msra.mxu0 0.0
        %5471 = vmatprep.mubr.f32.mxu0 0.0
        %5472 = vmatmul.mubr.f32.gmra.mrb[0].mxu0 %v5405
        %v5473 = vpop.f32.mrb[0].mxu0
        %v5474 = vadd.f32 0.0, %v5473
        %v5475 = vpop.f32.mrb[0].mxu0
        %5476 = vdwg.mxu0
        %s5477 = scalar_lea.vmem [#allocation5], 128
        %v5478 = vld [vmem:[%s5477] sm:$0xff]
        %v5479 = vld [vmem:[%s5477 + $0x8] sm:$0xff]
        %v5480 = vld [vmem:[%s5477 + $0x10] sm:$0xff]
        %v5481 = vld [vmem:[%s5477 + $0x18] sm:$0xff]
        %v5483 = vsel %vm4944, %v5474, 0
        %5485 = vmatprep.subr.mxu0 0.0
        %5486 = vmatpush1.msra.mxu0 %v5478
        %5487 = vmatprep.subr.mxu0 0.0
        %5488 = vmatpush1.msra.mxu0 %v5479
        %5489 = vmatprep.subr.mxu0 0.0
        %5490 = vmatpush1.msra.mxu0 %v5480
        %5491 = vmatprep.subr.mxu0 0.0
        %5492 = vmatpush1.msra.mxu0 %v5481
        %5493 = vmatprep.subr.mxu0 0.0
        %5494 = vmatpush1.msra.mxu0 0.0
        %5495 = vmatprep.subr.mxu0 0.0
        %5496 = vmatpush1.msra.mxu0 0.0
        %5497 = vmatprep.subr.mxu0 0.0
        %5498 = vmatpush1.msra.mxu0 0.0
        %5499 = vmatprep.subr.mxu0 0.0
        %5500 = vmatpush1.msra.mxu0 0.0
        %5501 = vmatprep.subr.mxu0 0.0
        %5502 = vmatpush1.msra.mxu0 0.0
        %5503 = vmatprep.subr.mxu0 0.0
        %5504 = vmatpush1.msra.mxu0 0.0
        %5505 = vmatprep.subr.mxu0 0.0
        %5506 = vmatpush1.msra.mxu0 0.0
        %5507 = vmatprep.subr.mxu0 0.0
        %5508 = vmatpush1.msra.mxu0 0.0
        %5509 = vmatprep.subr.mxu0 0.0
        %5510 = vmatpush1.msra.mxu0 0.0
        %5511 = vmatprep.subr.mxu0 0.0
        %5512 = vmatpush1.msra.mxu0 0.0
        %5513 = vmatprep.subr.mxu0 0.0
        %5514 = vmatpush1.msra.mxu0 0.0
        %5515 = vmatprep.subr.mxu0 0.0
        %5516 = vmatpush1.msra.mxu0 0.0
        %5517 = vmatprep.subr.mxu0 0.0
        %5518 = vmatpush1.msra.mxu0 0.0
        %5519 = vmatprep.subr.mxu0 0.0
        %5520 = vmatpush1.msra.mxu0 0.0
        %5521 = vmatprep.subr.mxu0 0.0
        %5522 = vmatpush1.msra.mxu0 0.0
        %5523 = vmatprep.subr.mxu0 0.0
        %5524 = vmatpush1.msra.mxu0 0.0
        %5525 = vmatprep.subr.mxu0 0.0
        %5526 = vmatpush1.msra.mxu0 0.0
        %5527 = vmatprep.subr.mxu0 0.0
        %5528 = vmatpush1.msra.mxu0 0.0
        %5529 = vmatprep.subr.mxu0 0.0
        %5530 = vmatpush1.msra.mxu0 0.0
        %5531 = vmatprep.subr.mxu0 0.0
        %5532 = vmatpush1.msra.mxu0 0.0
        %5533 = vmatprep.subr.mxu0 0.0
        %5534 = vmatpush1.msra.mxu0 0.0
        %5535 = vmatprep.subr.mxu0 0.0
        %5536 = vmatpush1.msra.mxu0 0.0
        %5537 = vmatprep.subr.mxu0 0.0
        %5538 = vmatpush1.msra.mxu0 0.0
        %5539 = vmatprep.subr.mxu0 0.0
        %5540 = vmatpush1.msra.mxu0 0.0
        %5541 = vmatprep.subr.mxu0 0.0
        %5542 = vmatpush1.msra.mxu0 0.0
        %5543 = vmatprep.subr.mxu0 0.0
        %5544 = vmatpush1.msra.mxu0 0.0
        %5545 = vmatprep.subr.mxu0 0.0
        %5546 = vmatpush1.msra.mxu0 0.0
        %5547 = vmatprep.subr.mxu0 0.0
        %5548 = vmatpush1.msra.mxu0 0.0
        %5549 = vmatprep.mubr.f32.mxu0 0.0
        %5550 = vmatmul.mubr.f32.gmra.mrb[0].mxu0 %v5483
        %v5551 = vpop.f32.mrb[0].mxu0
        %v5552 = vadd.f32 0.0, %v5551
        %v5553 = vpop.f32.mrb[0].mxu0
        %5554 = vdwg.mxu0
        %v5555 = vadd.f32 %v5400, %v5552
        %s5556 = scalar_lea.vmem %s7, 10
        %v5557 = vld [vmem:[%s5556] sm:$0x3]
        %v5558 = vunpack.c.l.bf16 %v5557
        %v5560 = vsel %vm3406, %v5558, 0
        %5562 = vmatprep.subr.mxu0 0.0
        %5563 = vmatpush1.msra.mxu0 %v4782
        %5564 = vmatprep.subr.mxu0 0.0
        %5565 = vmatpush1.msra.mxu0 %v4783
        %5566 = vmatprep.subr.mxu0 0.0
        %5567 = vmatpush1.msra.mxu0 0.0
        %5568 = vmatprep.subr.mxu0 0.0
        %5569 = vmatpush1.msra.mxu0 0.0
        %5570 = vmatprep.subr.mxu0 0.0
        %5571 = vmatpush1.msra.mxu0 0.0
        %5572 = vmatprep.subr.mxu0 0.0
        %5573 = vmatpush1.msra.mxu0 0.0
        %5574 = vmatprep.subr.mxu0 0.0
        %5575 = vmatpush1.msra.mxu0 0.0
        %5576 = vmatprep.subr.mxu0 0.0
        %5577 = vmatpush1.msra.mxu0 0.0
        %5578 = vmatprep.subr.mxu0 0.0
        %5579 = vmatpush1.msra.mxu0 0.0
        %5580 = vmatprep.subr.mxu0 0.0
        %5581 = vmatpush1.msra.mxu0 0.0
        %5582 = vmatprep.subr.mxu0 0.0
        %5583 = vmatpush1.msra.mxu0 0.0
        %5584 = vmatprep.subr.mxu0 0.0
        %5585 = vmatpush1.msra.mxu0 0.0
        %5586 = vmatprep.subr.mxu0 0.0
        %5587 = vmatpush1.msra.mxu0 0.0
        %5588 = vmatprep.subr.mxu0 0.0
        %5589 = vmatpush1.msra.mxu0 0.0
        %5590 = vmatprep.subr.mxu0 0.0
        %5591 = vmatpush1.msra.mxu0 0.0
        %5592 = vmatprep.subr.mxu0 0.0
        %5593 = vmatpush1.msra.mxu0 0.0
        %5594 = vmatprep.subr.mxu0 0.0
        %5595 = vmatpush1.msra.mxu0 0.0
        %5596 = vmatprep.subr.mxu0 0.0
        %5597 = vmatpush1.msra.mxu0 0.0
        %5598 = vmatprep.subr.mxu0 0.0
        %5599 = vmatpush1.msra.mxu0 0.0
        %5600 = vmatprep.subr.mxu0 0.0
        %5601 = vmatpush1.msra.mxu0 0.0
        %5602 = vmatprep.subr.mxu0 0.0
        %5603 = vmatpush1.msra.mxu0 0.0
        %5604 = vmatprep.subr.mxu0 0.0
        %5605 = vmatpush1.msra.mxu0 0.0
        %5606 = vmatprep.subr.mxu0 0.0
        %5607 = vmatpush1.msra.mxu0 0.0
        %5608 = vmatprep.subr.mxu0 0.0
        %5609 = vmatpush1.msra.mxu0 0.0
        %5610 = vmatprep.subr.mxu0 0.0
        %5611 = vmatpush1.msra.mxu0 0.0
        %5612 = vmatprep.subr.mxu0 0.0
        %5613 = vmatpush1.msra.mxu0 0.0
        %5614 = vmatprep.subr.mxu0 0.0
        %5615 = vmatpush1.msra.mxu0 0.0
        %5616 = vmatprep.subr.mxu0 0.0
        %5617 = vmatpush1.msra.mxu0 0.0
        %5618 = vmatprep.subr.mxu0 0.0
        %5619 = vmatpush1.msra.mxu0 0.0
        %5620 = vmatprep.subr.mxu0 0.0
        %5621 = vmatpush1.msra.mxu0 0.0
        %5622 = vmatprep.subr.mxu0 0.0
        %5623 = vmatpush1.msra.mxu0 0.0
        %5624 = vmatprep.subr.mxu0 0.0
        %5625 = vmatpush1.msra.mxu0 0.0
        %5626 = vmatprep.mubr.f32.mxu0 0.0
        %5627 = vmatmul.mubr.f32.gmra.mrb[0].mxu0 %v5560
        %v5628 = vpop.f32.mrb[0].mxu0
        %v5629 = vadd.f32 0.0, %v5628
        %v5630 = vpop.f32.mrb[0].mxu0
        %5631 = vdwg.mxu0
        %s5632 = scalar_lea.vmem [#allocation5], 160
        %v5633 = vld [vmem:[%s5632] sm:$0xff]
        %v5634 = vld [vmem:[%s5632 + $0x8] sm:$0xff]
        %v5635 = vld [vmem:[%s5632 + $0x10] sm:$0xff]
        %v5636 = vld [vmem:[%s5632 + $0x18] sm:$0xff]
        %v5638 = vsel %vm4944, %v5629, 0
        %5640 = vmatprep.subr.mxu0 0.0
        %5641 = vmatpush1.msra.mxu0 %v5633
        %5642 = vmatprep.subr.mxu0 0.0
        %5643 = vmatpush1.msra.mxu0 %v5634
        %5644 = vmatprep.subr.mxu0 0.0
        %5645 = vmatpush1.msra.mxu0 %v5635
        %5646 = vmatprep.subr.mxu0 0.0
        %5647 = vmatpush1.msra.mxu0 %v5636
        %5648 = vmatprep.subr.mxu0 0.0
        %5649 = vmatpush1.msra.mxu0 0.0
        %5650 = vmatprep.subr.mxu0 0.0
        %5651 = vmatpush1.msra.mxu0 0.0
        %5652 = vmatprep.subr.mxu0 0.0
        %5653 = vmatpush1.msra.mxu0 0.0
        %5654 = vmatprep.subr.mxu0 0.0
        %5655 = vmatpush1.msra.mxu0 0.0
        %5656 = vmatprep.subr.mxu0 0.0
        %5657 = vmatpush1.msra.mxu0 0.0
        %5658 = vmatprep.subr.mxu0 0.0
        %5659 = vmatpush1.msra.mxu0 0.0
        %5660 = vmatprep.subr.mxu0 0.0
        %5661 = vmatpush1.msra.mxu0 0.0
        %5662 = vmatprep.subr.mxu0 0.0
        %5663 = vmatpush1.msra.mxu0 0.0
        %5664 = vmatprep.subr.mxu0 0.0
        %5665 = vmatpush1.msra.mxu0 0.0
        %5666 = vmatprep.subr.mxu0 0.0
        %5667 = vmatpush1.msra.mxu0 0.0
        %5668 = vmatprep.subr.mxu0 0.0
        %5669 = vmatpush1.msra.mxu0 0.0
        %5670 = vmatprep.subr.mxu0 0.0
        %5671 = vmatpush1.msra.mxu0 0.0
        %5672 = vmatprep.subr.mxu0 0.0
        %5673 = vmatpush1.msra.mxu0 0.0
        %5674 = vmatprep.subr.mxu0 0.0
        %5675 = vmatpush1.msra.mxu0 0.0
        %5676 = vmatprep.subr.mxu0 0.0
        %5677 = vmatpush1.msra.mxu0 0.0
        %5678 = vmatprep.subr.mxu0 0.0
        %5679 = vmatpush1.msra.mxu0 0.0
        %5680 = vmatprep.subr.mxu0 0.0
        %5681 = vmatpush1.msra.mxu0 0.0
        %5682 = vmatprep.subr.mxu0 0.0
        %5683 = vmatpush1.msra.mxu0 0.0
        %5684 = vmatprep.subr.mxu0 0.0
        %5685 = vmatpush1.msra.mxu0 0.0
        %5686 = vmatprep.subr.mxu0 0.0
        %5687 = vmatpush1.msra.mxu0 0.0
        %5688 = vmatprep.subr.mxu0 0.0
        %5689 = vmatpush1.msra.mxu0 0.0
        %5690 = vmatprep.subr.mxu0 0.0
        %5691 = vmatpush1.msra.mxu0 0.0
        %5692 = vmatprep.subr.mxu0 0.0
        %5693 = vmatpush1.msra.mxu0 0.0
        %5694 = vmatprep.subr.mxu0 0.0
        %5695 = vmatpush1.msra.mxu0 0.0
        %5696 = vmatprep.subr.mxu0 0.0
        %5697 = vmatpush1.msra.mxu0 0.0
        %5698 = vmatprep.subr.mxu0 0.0
        %5699 = vmatpush1.msra.mxu0 0.0
        %5700 = vmatprep.subr.mxu0 0.0
        %5701 = vmatpush1.msra.mxu0 0.0
        %5702 = vmatprep.subr.mxu0 0.0
        %5703 = vmatpush1.msra.mxu0 0.0
        %5704 = vmatprep.mubr.f32.mxu0 0.0
        %5705 = vmatmul.mubr.f32.gmra.mrb[0].mxu0 %v5638
        %v5706 = vpop.f32.mrb[0].mxu0
        %v5707 = vadd.f32 0.0, %v5706
        %v5708 = vpop.f32.mrb[0].mxu0
        %5709 = vdwg.mxu0
        %v5710 = vadd.f32 %v5555, %v5707
        %s5711 = scalar_lea.vmem %s7, 12
        %v5712 = vld [vmem:[%s5711] sm:$0x3]
        %v5713 = vunpack.c.l.bf16 %v5712
        %v5715 = vsel %vm3406, %v5713, 0
        %5717 = vmatprep.subr.mxu0 0.0
        %5718 = vmatpush1.msra.mxu0 %v4782
        %5719 = vmatprep.subr.mxu0 0.0
        %5720 = vmatpush1.msra.mxu0 %v4783
        %5721 = vmatprep.subr.mxu0 0.0
        %5722 = vmatpush1.msra.mxu0 0.0
        %5723 = vmatprep.subr.mxu0 0.0
        %5724 = vmatpush1.msra.mxu0 0.0
        %5725 = vmatprep.subr.mxu0 0.0
        %5726 = vmatpush1.msra.mxu0 0.0
        %5727 = vmatprep.subr.mxu0 0.0
        %5728 = vmatpush1.msra.mxu0 0.0
        %5729 = vmatprep.subr.mxu0 0.0
        %5730 = vmatpush1.msra.mxu0 0.0
        %5731 = vmatprep.subr.mxu0 0.0
        %5732 = vmatpush1.msra.mxu0 0.0
        %5733 = vmatprep.subr.mxu0 0.0
        %5734 = vmatpush1.msra.mxu0 0.0
        %5735 = vmatprep.subr.mxu0 0.0
        %5736 = vmatpush1.msra.mxu0 0.0
        %5737 = vmatprep.subr.mxu0 0.0
        %5738 = vmatpush1.msra.mxu0 0.0
        %5739 = vmatprep.subr.mxu0 0.0
        %5740 = vmatpush1.msra.mxu0 0.0
        %5741 = vmatprep.subr.mxu0 0.0
        %5742 = vmatpush1.msra.mxu0 0.0
        %5743 = vmatprep.subr.mxu0 0.0
        %5744 = vmatpush1.msra.mxu0 0.0
        %5745 = vmatprep.subr.mxu0 0.0
        %5746 = vmatpush1.msra.mxu0 0.0
        %5747 = vmatprep.subr.mxu0 0.0
        %5748 = vmatpush1.msra.mxu0 0.0
        %5749 = vmatprep.subr.mxu0 0.0
        %5750 = vmatpush1.msra.mxu0 0.0
        %5751 = vmatprep.subr.mxu0 0.0
        %5752 = vmatpush1.msra.mxu0 0.0
        %5753 = vmatprep.subr.mxu0 0.0
        %5754 = vmatpush1.msra.mxu0 0.0
        %5755 = vmatprep.subr.mxu0 0.0
        %5756 = vmatpush1.msra.mxu0 0.0
        %5757 = vmatprep.subr.mxu0 0.0
        %5758 = vmatpush1.msra.mxu0 0.0
        %5759 = vmatprep.subr.mxu0 0.0
        %5760 = vmatpush1.msra.mxu0 0.0
        %5761 = vmatprep.subr.mxu0 0.0
        %5762 = vmatpush1.msra.mxu0 0.0
        %5763 = vmatprep.subr.mxu0 0.0
        %5764 = vmatpush1.msra.mxu0 0.0
        %5765 = vmatprep.subr.mxu0 0.0
        %5766 = vmatpush1.msra.mxu0 0.0
        %5767 = vmatprep.subr.mxu0 0.0
        %5768 = vmatpush1.msra.mxu0 0.0
        %5769 = vmatprep.subr.mxu0 0.0
        %5770 = vmatpush1.msra.mxu0 0.0
        %5771 = vmatprep.subr.mxu0 0.0
        %5772 = vmatpush1.msra.mxu0 0.0
        %5773 = vmatprep.subr.mxu0 0.0
        %5774 = vmatpush1.msra.mxu0 0.0
        %5775 = vmatprep.subr.mxu0 0.0
        %5776 = vmatpush1.msra.mxu0 0.0
        %5777 = vmatprep.subr.mxu0 0.0
        %5778 = vmatpush1.msra.mxu0 0.0
        %5779 = vmatprep.subr.mxu0 0.0
        %5780 = vmatpush1.msra.mxu0 0.0
        %5781 = vmatprep.mubr.f32.mxu0 0.0
        %5782 = vmatmul.mubr.f32.gmra.mrb[0].mxu0 %v5715
        %v5783 = vpop.f32.mrb[0].mxu0
        %v5784 = vadd.f32 0.0, %v5783
        %v5785 = vpop.f32.mrb[0].mxu0
        %5786 = vdwg.mxu0
        %s5787 = scalar_lea.vmem [#allocation5], 192
        %v5788 = vld [vmem:[%s5787] sm:$0xff]
        %v5789 = vld [vmem:[%s5787 + $0x8] sm:$0xff]
        %v5790 = vld [vmem:[%s5787 + $0x10] sm:$0xff]
        %v5791 = vld [vmem:[%s5787 + $0x18] sm:$0xff]
        %v5793 = vsel %vm4944, %v5784, 0
        %5795 = vmatprep.subr.mxu0 0.0
        %5796 = vmatpush1.msra.mxu0 %v5788
        %5797 = vmatprep.subr.mxu0 0.0
        %5798 = vmatpush1.msra.mxu0 %v5789
        %5799 = vmatprep.subr.mxu0 0.0
        %5800 = vmatpush1.msra.mxu0 %v5790
        %5801 = vmatprep.subr.mxu0 0.0
        %5802 = vmatpush1.msra.mxu0 %v5791
        %5803 = vmatprep.subr.mxu0 0.0
        %5804 = vmatpush1.msra.mxu0 0.0
        %5805 = vmatprep.subr.mxu0 0.0
        %5806 = vmatpush1.msra.mxu0 0.0
        %5807 = vmatprep.subr.mxu0 0.0
        %5808 = vmatpush1.msra.mxu0 0.0
        %5809 = vmatprep.subr.mxu0 0.0
        %5810 = vmatpush1.msra.mxu0 0.0
        %5811 = vmatprep.subr.mxu0 0.0
        %5812 = vmatpush1.msra.mxu0 0.0
        %5813 = vmatprep.subr.mxu0 0.0
        %5814 = vmatpush1.msra.mxu0 0.0
        %5815 = vmatprep.subr.mxu0 0.0
        %5816 = vmatpush1.msra.mxu0 0.0
        %5817 = vmatprep.subr.mxu0 0.0
        %5818 = vmatpush1.msra.mxu0 0.0
        %5819 = vmatprep.subr.mxu0 0.0
        %5820 = vmatpush1.msra.mxu0 0.0
        %5821 = vmatprep.subr.mxu0 0.0
        %5822 = vmatpush1.msra.mxu0 0.0
        %5823 = vmatprep.subr.mxu0 0.0
        %5824 = vmatpush1.msra.mxu0 0.0
        %5825 = vmatprep.subr.mxu0 0.0
        %5826 = vmatpush1.msra.mxu0 0.0
        %5827 = vmatprep.subr.mxu0 0.0
        %5828 = vmatpush1.msra.mxu0 0.0
        %5829 = vmatprep.subr.mxu0 0.0
        %5830 = vmatpush1.msra.mxu0 0.0
        %5831 = vmatprep.subr.mxu0 0.0
        %5832 = vmatpush1.msra.mxu0 0.0
        %5833 = vmatprep.subr.mxu0 0.0
        %5834 = vmatpush1.msra.mxu0 0.0
        %5835 = vmatprep.subr.mxu0 0.0
        %5836 = vmatpush1.msra.mxu0 0.0
        %5837 = vmatprep.subr.mxu0 0.0
        %5838 = vmatpush1.msra.mxu0 0.0
        %5839 = vmatprep.subr.mxu0 0.0
        %5840 = vmatpush1.msra.mxu0 0.0
        %5841 = vmatprep.subr.mxu0 0.0
        %5842 = vmatpush1.msra.mxu0 0.0
        %5843 = vmatprep.subr.mxu0 0.0
        %5844 = vmatpush1.msra.mxu0 0.0
        %5845 = vmatprep.subr.mxu0 0.0
        %5846 = vmatpush1.msra.mxu0 0.0
        %5847 = vmatprep.subr.mxu0 0.0
        %5848 = vmatpush1.msra.mxu0 0.0
        %5849 = vmatprep.subr.mxu0 0.0
        %5850 = vmatpush1.msra.mxu0 0.0
        %5851 = vmatprep.subr.mxu0 0.0
        %5852 = vmatpush1.msra.mxu0 0.0
        %5853 = vmatprep.subr.mxu0 0.0
        %5854 = vmatpush1.msra.mxu0 0.0
        %5855 = vmatprep.subr.mxu0 0.0
        %5856 = vmatpush1.msra.mxu0 0.0
        %5857 = vmatprep.subr.mxu0 0.0
        %5858 = vmatpush1.msra.mxu0 0.0
        %5859 = vmatprep.mubr.f32.mxu0 0.0
        %5860 = vmatmul.mubr.f32.gmra.mrb[0].mxu0 %v5793
        %v5861 = vpop.f32.mrb[0].mxu0
        %v5862 = vadd.f32 0.0, %v5861
        %v5863 = vpop.f32.mrb[0].mxu0
        %5864 = vdwg.mxu0
        %v5865 = vadd.f32 %v5710, %v5862
        %s5866 = scalar_lea.vmem %s7, 14
        %v5867 = vld [vmem:[%s5866] sm:$0x3]
        %v5868 = vunpack.c.l.bf16 %v5867
        %v5870 = vsel %vm3406, %v5868, 0
        %5872 = vmatprep.subr.mxu0 0.0
        %5873 = vmatpush1.msra.mxu0 %v4782
        %5874 = vmatprep.subr.mxu0 0.0
        %5875 = vmatpush1.msra.mxu0 %v4783
        %5876 = vmatprep.subr.mxu0 0.0
        %5877 = vmatpush1.msra.mxu0 0.0
        %5878 = vmatprep.subr.mxu0 0.0
        %5879 = vmatpush1.msra.mxu0 0.0
        %5880 = vmatprep.subr.mxu0 0.0
        %5881 = vmatpush1.msra.mxu0 0.0
        %5882 = vmatprep.subr.mxu0 0.0
        %5883 = vmatpush1.msra.mxu0 0.0
        %5884 = vmatprep.subr.mxu0 0.0
        %5885 = vmatpush1.msra.mxu0 0.0
        %5886 = vmatprep.subr.mxu0 0.0
        %5887 = vmatpush1.msra.mxu0 0.0
        %5888 = vmatprep.subr.mxu0 0.0
        %5889 = vmatpush1.msra.mxu0 0.0
        %5890 = vmatprep.subr.mxu0 0.0
        %5891 = vmatpush1.msra.mxu0 0.0
        %5892 = vmatprep.subr.mxu0 0.0
        %5893 = vmatpush1.msra.mxu0 0.0
        %5894 = vmatprep.subr.mxu0 0.0
        %5895 = vmatpush1.msra.mxu0 0.0
        %5896 = vmatprep.subr.mxu0 0.0
        %5897 = vmatpush1.msra.mxu0 0.0
        %5898 = vmatprep.subr.mxu0 0.0
        %5899 = vmatpush1.msra.mxu0 0.0
        %5900 = vmatprep.subr.mxu0 0.0
        %5901 = vmatpush1.msra.mxu0 0.0
        %5902 = vmatprep.subr.mxu0 0.0
        %5903 = vmatpush1.msra.mxu0 0.0
        %5904 = vmatprep.subr.mxu0 0.0
        %5905 = vmatpush1.msra.mxu0 0.0
        %5906 = vmatprep.subr.mxu0 0.0
        %5907 = vmatpush1.msra.mxu0 0.0
        %5908 = vmatprep.subr.mxu0 0.0
        %5909 = vmatpush1.msra.mxu0 0.0
        %5910 = vmatprep.subr.mxu0 0.0
        %5911 = vmatpush1.msra.mxu0 0.0
        %5912 = vmatprep.subr.mxu0 0.0
        %5913 = vmatpush1.msra.mxu0 0.0
        %5914 = vmatprep.subr.mxu0 0.0
        %5915 = vmatpush1.msra.mxu0 0.0
        %5916 = vmatprep.subr.mxu0 0.0
        %5917 = vmatpush1.msra.mxu0 0.0
        %5918 = vmatprep.subr.mxu0 0.0
        %5919 = vmatpush1.msra.mxu0 0.0
        %5920 = vmatprep.subr.mxu0 0.0
        %5921 = vmatpush1.msra.mxu0 0.0
        %5922 = vmatprep.subr.mxu0 0.0
        %5923 = vmatpush1.msra.mxu0 0.0
        %5924 = vmatprep.subr.mxu0 0.0
        %5925 = vmatpush1.msra.mxu0 0.0
        %5926 = vmatprep.subr.mxu0 0.0
        %5927 = vmatpush1.msra.mxu0 0.0
        %5928 = vmatprep.subr.mxu0 0.0
        %5929 = vmatpush1.msra.mxu0 0.0
        %5930 = vmatprep.subr.mxu0 0.0
        %5931 = vmatpush1.msra.mxu0 0.0
        %5932 = vmatprep.subr.mxu0 0.0
        %5933 = vmatpush1.msra.mxu0 0.0
        %5934 = vmatprep.subr.mxu0 0.0
        %5935 = vmatpush1.msra.mxu0 0.0
        %5936 = vmatprep.mubr.f32.mxu0 0.0
        %5937 = vmatmul.mubr.f32.gmra.mrb[0].mxu0 %v5870
        %v5938 = vpop.f32.mrb[0].mxu0
        %v5939 = vadd.f32 0.0, %v5938
        %v5940 = vpop.f32.mrb[0].mxu0
        %5941 = vdwg.mxu0
        %s5942 = scalar_lea.vmem [#allocation5], 224
        %v5943 = vld [vmem:[%s5942] sm:$0xff]
        %v5944 = vld [vmem:[%s5942 + $0x8] sm:$0xff]
        %v5945 = vld [vmem:[%s5942 + $0x10] sm:$0xff]
        %v5946 = vld [vmem:[%s5942 + $0x18] sm:$0xff]
        %v5948 = vsel %vm4944, %v5939, 0
        %5950 = vmatprep.subr.mxu0 0.0
        %5951 = vmatpush1.msra.mxu0 %v5943
        %5952 = vmatprep.subr.mxu0 0.0
        %5953 = vmatpush1.msra.mxu0 %v5944
        %5954 = vmatprep.subr.mxu0 0.0
        %5955 = vmatpush1.msra.mxu0 %v5945
        %5956 = vmatprep.subr.mxu0 0.0
        %5957 = vmatpush1.msra.mxu0 %v5946
        %5958 = vmatprep.subr.mxu0 0.0
        %5959 = vmatpush1.msra.mxu0 0.0
        %5960 = vmatprep.subr.mxu0 0.0
        %5961 = vmatpush1.msra.mxu0 0.0
        %5962 = vmatprep.subr.mxu0 0.0
        %5963 = vmatpush1.msra.mxu0 0.0
        %5964 = vmatprep.subr.mxu0 0.0
        %5965 = vmatpush1.msra.mxu0 0.0
        %5966 = vmatprep.subr.mxu0 0.0
        %5967 = vmatpush1.msra.mxu0 0.0
        %5968 = vmatprep.subr.mxu0 0.0
        %5969 = vmatpush1.msra.mxu0 0.0
        %5970 = vmatprep.subr.mxu0 0.0
        %5971 = vmatpush1.msra.mxu0 0.0
        %5972 = vmatprep.subr.mxu0 0.0
        %5973 = vmatpush1.msra.mxu0 0.0
        %5974 = vmatprep.subr.mxu0 0.0
        %5975 = vmatpush1.msra.mxu0 0.0
        %5976 = vmatprep.subr.mxu0 0.0
        %5977 = vmatpush1.msra.mxu0 0.0
        %5978 = vmatprep.subr.mxu0 0.0
        %5979 = vmatpush1.msra.mxu0 0.0
        %5980 = vmatprep.subr.mxu0 0.0
        %5981 = vmatpush1.msra.mxu0 0.0
        %5982 = vmatprep.subr.mxu0 0.0
        %5983 = vmatpush1.msra.mxu0 0.0
        %5984 = vmatprep.subr.mxu0 0.0
        %5985 = vmatpush1.msra.mxu0 0.0
        %5986 = vmatprep.subr.mxu0 0.0
        %5987 = vmatpush1.msra.mxu0 0.0
        %5988 = vmatprep.subr.mxu0 0.0
        %5989 = vmatpush1.msra.mxu0 0.0
        %5990 = vmatprep.subr.mxu0 0.0
        %5991 = vmatpush1.msra.mxu0 0.0
        %5992 = vmatprep.subr.mxu0 0.0
        %5993 = vmatpush1.msra.mxu0 0.0
        %5994 = vmatprep.subr.mxu0 0.0
        %5995 = vmatpush1.msra.mxu0 0.0
        %5996 = vmatprep.subr.mxu0 0.0
        %5997 = vmatpush1.msra.mxu0 0.0
        %5998 = vmatprep.subr.mxu0 0.0
        %5999 = vmatpush1.msra.mxu0 0.0
        %6000 = vmatprep.subr.mxu0 0.0
        %6001 = vmatpush1.msra.mxu0 0.0
        %6002 = vmatprep.subr.mxu0 0.0
        %6003 = vmatpush1.msra.mxu0 0.0
        %6004 = vmatprep.subr.mxu0 0.0
        %6005 = vmatpush1.msra.mxu0 0.0
        %6006 = vmatprep.subr.mxu0 0.0
        %6007 = vmatpush1.msra.mxu0 0.0
        %6008 = vmatprep.subr.mxu0 0.0
        %6009 = vmatpush1.msra.mxu0 0.0
        %6010 = vmatprep.subr.mxu0 0.0
        %6011 = vmatpush1.msra.mxu0 0.0
        %6012 = vmatprep.subr.mxu0 0.0
        %6013 = vmatpush1.msra.mxu0 0.0
        %6014 = vmatprep.mubr.f32.mxu0 0.0
        %6015 = vmatmul.mubr.f32.gmra.mrb[0].mxu0 %v5948
        %v6016 = vpop.f32.mrb[0].mxu0
        %v6017 = vadd.f32 0.0, %v6016
        %v6018 = vpop.f32.mrb[0].mxu0
        %6019 = vdwg.mxu0
        %v6020 = vadd.f32 %v5865, %v6017
        %s6021 = scalar_lea.vmem %s7, 16
        %v6022 = vld [vmem:[%s6021] sm:$0x3]
        %v6023 = vunpack.c.l.bf16 %v6022
        %v6025 = vsel %vm3406, %v6023, 0
        %6027 = vmatprep.subr.mxu0 0.0
        %6028 = vmatpush1.msra.mxu0 %v4782
        %6029 = vmatprep.subr.mxu0 0.0
        %6030 = vmatpush1.msra.mxu0 %v4783
        %6031 = vmatprep.subr.mxu0 0.0
        %6032 = vmatpush1.msra.mxu0 0.0
        %6033 = vmatprep.subr.mxu0 0.0
        %6034 = vmatpush1.msra.mxu0 0.0
        %6035 = vmatprep.subr.mxu0 0.0
        %6036 = vmatpush1.msra.mxu0 0.0
        %6037 = vmatprep.subr.mxu0 0.0
        %6038 = vmatpush1.msra.mxu0 0.0
        %6039 = vmatprep.subr.mxu0 0.0
        %6040 = vmatpush1.msra.mxu0 0.0
        %6041 = vmatprep.subr.mxu0 0.0
        %6042 = vmatpush1.msra.mxu0 0.0
        %6043 = vmatprep.subr.mxu0 0.0
        %6044 = vmatpush1.msra.mxu0 0.0
        %6045 = vmatprep.subr.mxu0 0.0
        %6046 = vmatpush1.msra.mxu0 0.0
        %6047 = vmatprep.subr.mxu0 0.0
        %6048 = vmatpush1.msra.mxu0 0.0
        %6049 = vmatprep.subr.mxu0 0.0
        %6050 = vmatpush1.msra.mxu0 0.0
        %6051 = vmatprep.subr.mxu0 0.0
        %6052 = vmatpush1.msra.mxu0 0.0
        %6053 = vmatprep.subr.mxu0 0.0
        %6054 = vmatpush1.msra.mxu0 0.0
        %6055 = vmatprep.subr.mxu0 0.0
        %6056 = vmatpush1.msra.mxu0 0.0
        %6057 = vmatprep.subr.mxu0 0.0
        %6058 = vmatpush1.msra.mxu0 0.0
        %6059 = vmatprep.subr.mxu0 0.0
        %6060 = vmatpush1.msra.mxu0 0.0
        %6061 = vmatprep.subr.mxu0 0.0
        %6062 = vmatpush1.msra.mxu0 0.0
        %6063 = vmatprep.subr.mxu0 0.0
        %6064 = vmatpush1.msra.mxu0 0.0
        %6065 = vmatprep.subr.mxu0 0.0
        %6066 = vmatpush1.msra.mxu0 0.0
        %6067 = vmatprep.subr.mxu0 0.0
        %6068 = vmatpush1.msra.mxu0 0.0
        %6069 = vmatprep.subr.mxu0 0.0
        %6070 = vmatpush1.msra.mxu0 0.0
        %6071 = vmatprep.subr.mxu0 0.0
        %6072 = vmatpush1.msra.mxu0 0.0
        %6073 = vmatprep.subr.mxu0 0.0
        %6074 = vmatpush1.msra.mxu0 0.0
        %6075 = vmatprep.subr.mxu0 0.0
        %6076 = vmatpush1.msra.mxu0 0.0
        %6077 = vmatprep.subr.mxu0 0.0
        %6078 = vmatpush1.msra.mxu0 0.0
        %6079 = vmatprep.subr.mxu0 0.0
        %6080 = vmatpush1.msra.mxu0 0.0
        %6081 = vmatprep.subr.mxu0 0.0
        %6082 = vmatpush1.msra.mxu0 0.0
        %6083 = vmatprep.subr.mxu0 0.0
        %6084 = vmatpush1.msra.mxu0 0.0
        %6085 = vmatprep.subr.mxu0 0.0
        %6086 = vmatpush1.msra.mxu0 0.0
        %6087 = vmatprep.subr.mxu0 0.0
        %6088 = vmatpush1.msra.mxu0 0.0
        %6089 = vmatprep.subr.mxu0 0.0
        %6090 = vmatpush1.msra.mxu0 0.0
        %6091 = vmatprep.mubr.f32.mxu0 0.0
        %6092 = vmatmul.mubr.f32.gmra.mrb[0].mxu0 %v6025
        %v6093 = vpop.f32.mrb[0].mxu0
        %v6094 = vadd.f32 0.0, %v6093
        %v6095 = vpop.f32.mrb[0].mxu0
        %6096 = vdwg.mxu0
        %s6097 = scalar_lea.vmem [#allocation5], 256
        %v6098 = vld [vmem:[%s6097] sm:$0xff]
        %v6099 = vld [vmem:[%s6097 + $0x8] sm:$0xff]
        %v6100 = vld [vmem:[%s6097 + $0x10] sm:$0xff]
        %v6101 = vld [vmem:[%s6097 + $0x18] sm:$0xff]
        %v6103 = vsel %vm4944, %v6094, 0
        %6105 = vmatprep.subr.mxu0 0.0
        %6106 = vmatpush1.msra.mxu0 %v6098
        %6107 = vmatprep.subr.mxu0 0.0
        %6108 = vmatpush1.msra.mxu0 %v6099
        %6109 = vmatprep.subr.mxu0 0.0
        %6110 = vmatpush1.msra.mxu0 %v6100
        %6111 = vmatprep.subr.mxu0 0.0
        %6112 = vmatpush1.msra.mxu0 %v6101
        %6113 = vmatprep.subr.mxu0 0.0
        %6114 = vmatpush1.msra.mxu0 0.0
        %6115 = vmatprep.subr.mxu0 0.0
        %6116 = vmatpush1.msra.mxu0 0.0
        %6117 = vmatprep.subr.mxu0 0.0
        %6118 = vmatpush1.msra.mxu0 0.0
        %6119 = vmatprep.subr.mxu0 0.0
        %6120 = vmatpush1.msra.mxu0 0.0
        %6121 = vmatprep.subr.mxu0 0.0
        %6122 = vmatpush1.msra.mxu0 0.0
        %6123 = vmatprep.subr.mxu0 0.0
        %6124 = vmatpush1.msra.mxu0 0.0
        %6125 = vmatprep.subr.mxu0 0.0
        %6126 = vmatpush1.msra.mxu0 0.0
        %6127 = vmatprep.subr.mxu0 0.0
        %6128 = vmatpush1.msra.mxu0 0.0
        %6129 = vmatprep.subr.mxu0 0.0
        %6130 = vmatpush1.msra.mxu0 0.0
        %6131 = vmatprep.subr.mxu0 0.0
        %6132 = vmatpush1.msra.mxu0 0.0
        %6133 = vmatprep.subr.mxu0 0.0
        %6134 = vmatpush1.msra.mxu0 0.0
        %6135 = vmatprep.subr.mxu0 0.0
        %6136 = vmatpush1.msra.mxu0 0.0
        %6137 = vmatprep.subr.mxu0 0.0
        %6138 = vmatpush1.msra.mxu0 0.0
        %6139 = vmatprep.subr.mxu0 0.0
        %6140 = vmatpush1.msra.mxu0 0.0
        %6141 = vmatprep.subr.mxu0 0.0
        %6142 = vmatpush1.msra.mxu0 0.0
        %6143 = vmatprep.subr.mxu0 0.0
        %6144 = vmatpush1.msra.mxu0 0.0
        %6145 = vmatprep.subr.mxu0 0.0
        %6146 = vmatpush1.msra.mxu0 0.0
        %6147 = vmatprep.subr.mxu0 0.0
        %6148 = vmatpush1.msra.mxu0 0.0
        %6149 = vmatprep.subr.mxu0 0.0
        %6150 = vmatpush1.msra.mxu0 0.0
        %6151 = vmatprep.subr.mxu0 0.0
        %6152 = vmatpush1.msra.mxu0 0.0
        %6153 = vmatprep.subr.mxu0 0.0
        %6154 = vmatpush1.msra.mxu0 0.0
        %6155 = vmatprep.subr.mxu0 0.0
        %6156 = vmatpush1.msra.mxu0 0.0
        %6157 = vmatprep.subr.mxu0 0.0
        %6158 = vmatpush1.msra.mxu0 0.0
        %6159 = vmatprep.subr.mxu0 0.0
        %6160 = vmatpush1.msra.mxu0 0.0
        %6161 = vmatprep.subr.mxu0 0.0
        %6162 = vmatpush1.msra.mxu0 0.0
        %6163 = vmatprep.subr.mxu0 0.0
        %6164 = vmatpush1.msra.mxu0 0.0
        %6165 = vmatprep.subr.mxu0 0.0
        %6166 = vmatpush1.msra.mxu0 0.0
        %6167 = vmatprep.subr.mxu0 0.0
        %6168 = vmatpush1.msra.mxu0 0.0
        %6169 = vmatprep.mubr.f32.mxu0 0.0
        %6170 = vmatmul.mubr.f32.gmra.mrb[0].mxu0 %v6103
        %v6171 = vpop.f32.mrb[0].mxu0
        %v6172 = vadd.f32 0.0, %v6171
        %v6173 = vpop.f32.mrb[0].mxu0
        %6174 = vdwg.mxu0
        %v6175 = vadd.f32 %v6020, %v6172
        %v6176 = vld [vmem:[#allocation7] sm:$0x1]
        %v6178 = vlaneseq
        %v6179 = vshrl.u32 %v6178, 7
        %v6180 = vsub.s32 0, %v6179
        %v6181 = vrot.slane %v6176, %v6180
        %v6183 = vadd.f32 %v6175, %v6181
        %v6184 = vmax.f32 %v6183, 0.0
        %v6185 = vld [vmem:[%s10] sm:$0x1]
        %v6186 = vunpack.c.l.bf16 %v6185
        %v6188 = vsel %vm1036, %v6186, 0
        %v6191 = vsel %vm1061, %v6184, 0
        %6193 = vmatprep.subr.mxu0 0.0
        %6194 = vmatpush1.msra.mxu0 %v6191
        %6195 = vmatprep.subr.mxu0 0.0
        %6196 = vmatpush1.msra.mxu0 0.0
        %6197 = vmatprep.subr.mxu0 0.0
        %6198 = vmatpush1.msra.mxu0 0.0
        %6199 = vmatprep.subr.mxu0 0.0
        %6200 = vmatpush1.msra.mxu0 0.0
        %6201 = vmatprep.subr.mxu0 0.0
        %6202 = vmatpush1.msra.mxu0 0.0
        %6203 = vmatprep.subr.mxu0 0.0
        %6204 = vmatpush1.msra.mxu0 0.0
        %6205 = vmatprep.subr.mxu0 0.0
        %6206 = vmatpush1.msra.mxu0 0.0
        %6207 = vmatprep.subr.mxu0 0.0
        %6208 = vmatpush1.msra.mxu0 0.0
        %6209 = vmatprep.subr.mxu0 0.0
        %6210 = vmatpush1.msra.mxu0 0.0
        %6211 = vmatprep.subr.mxu0 0.0
        %6212 = vmatpush1.msra.mxu0 0.0
        %6213 = vmatprep.subr.mxu0 0.0
        %6214 = vmatpush1.msra.mxu0 0.0
        %6215 = vmatprep.subr.mxu0 0.0
        %6216 = vmatpush1.msra.mxu0 0.0
        %6217 = vmatprep.subr.mxu0 0.0
        %6218 = vmatpush1.msra.mxu0 0.0
        %6219 = vmatprep.subr.mxu0 0.0
        %6220 = vmatpush1.msra.mxu0 0.0
        %6221 = vmatprep.subr.mxu0 0.0
        %6222 = vmatpush1.msra.mxu0 0.0
        %6223 = vmatprep.subr.mxu0 0.0
        %6224 = vmatpush1.msra.mxu0 0.0
        %6225 = vmatprep.subr.mxu0 0.0
        %6226 = vmatpush1.msra.mxu0 0.0
        %6227 = vmatprep.subr.mxu0 0.0
        %6228 = vmatpush1.msra.mxu0 0.0
        %6229 = vmatprep.subr.mxu0 0.0
        %6230 = vmatpush1.msra.mxu0 0.0
        %6231 = vmatprep.subr.mxu0 0.0
        %6232 = vmatpush1.msra.mxu0 0.0
        %6233 = vmatprep.subr.mxu0 0.0
        %6234 = vmatpush1.msra.mxu0 0.0
        %6235 = vmatprep.subr.mxu0 0.0
        %6236 = vmatpush1.msra.mxu0 0.0
        %6237 = vmatprep.subr.mxu0 0.0
        %6238 = vmatpush1.msra.mxu0 0.0
        %6239 = vmatprep.subr.mxu0 0.0
        %6240 = vmatpush1.msra.mxu0 0.0
        %6241 = vmatprep.subr.mxu0 0.0
        %6242 = vmatpush1.msra.mxu0 0.0
        %6243 = vmatprep.subr.mxu0 0.0
        %6244 = vmatpush1.msra.mxu0 0.0
        %6245 = vmatprep.subr.mxu0 0.0
        %6246 = vmatpush1.msra.mxu0 0.0
        %6247 = vmatprep.subr.mxu0 0.0
        %6248 = vmatpush1.msra.mxu0 0.0
        %6249 = vmatprep.subr.mxu0 0.0
        %6250 = vmatpush1.msra.mxu0 0.0
        %6251 = vmatprep.subr.mxu0 0.0
        %6252 = vmatpush1.msra.mxu0 0.0
        %6253 = vmatprep.subr.mxu0 0.0
        %6254 = vmatpush1.msra.mxu0 0.0
        %6255 = vmatprep.subr.mxu0 0.0
        %6256 = vmatpush1.msra.mxu0 0.0
        %6257 = vmatprep.mubr.f32.mxu0 0.0
        %6258 = vmatmul.mubr.f32.gmra.mrb[0].mxu0 %v6188
        %v6259 = vpop.f32.mrb[0].mxu0
        %v6260 = vadd.f32 0.0, %v6259
        %v6261 = vpop.f32.mrb[0].mxu0
        %6262 = vdwg.mxu0
        %v6263 = vld [vmem:[#allocation8] sm:$0xff]
        %v6264 = vld [vmem:[#allocation8 + $0x8] sm:$0xff]
        %v6265 = vld [vmem:[#allocation8 + $0x10] sm:$0xff]
        %v6266 = vld [vmem:[#allocation8 + $0x18] sm:$0xff]
        %v6267 = vld [vmem:[#allocation8 + $0x20] sm:$0xff]
        %v6268 = vld [vmem:[#allocation8 + $0x28] sm:$0xff]
        %v6269 = vld [vmem:[#allocation8 + $0x30] sm:$0xff]
        %v6270 = vld [vmem:[#allocation8 + $0x38] sm:$0xff]
        %s6271 = scalar_lea.vmem %s10, 1
        %v6272 = vld [vmem:[%s6271] sm:$0x1]
        %v6273 = vunpack.c.l.bf16 %v6272
        %v6275 = vsel %vm1036, %v6273, 0
        %6277 = vmatprep.subr.mxu0 0.0
        %6278 = vmatpush1.msra.mxu0 %v6191
        %6279 = vmatprep.subr.mxu0 0.0
        %6280 = vmatpush1.msra.mxu0 0.0
        %6281 = vmatprep.subr.mxu0 0.0
        %6282 = vmatpush1.msra.mxu0 0.0
        %6283 = vmatprep.subr.mxu0 0.0
        %6284 = vmatpush1.msra.mxu0 0.0
        %6285 = vmatprep.subr.mxu0 0.0
        %6286 = vmatpush1.msra.mxu0 0.0
        %6287 = vmatprep.subr.mxu0 0.0
        %6288 = vmatpush1.msra.mxu0 0.0
        %6289 = vmatprep.subr.mxu0 0.0
        %6290 = vmatpush1.msra.mxu0 0.0
        %6291 = vmatprep.subr.mxu0 0.0
        %6292 = vmatpush1.msra.mxu0 0.0
        %6293 = vmatprep.subr.mxu0 0.0
        %6294 = vmatpush1.msra.mxu0 0.0
        %6295 = vmatprep.subr.mxu0 0.0
        %6296 = vmatpush1.msra.mxu0 0.0
        %6297 = vmatprep.subr.mxu0 0.0
        %6298 = vmatpush1.msra.mxu0 0.0
        %6299 = vmatprep.subr.mxu0 0.0
        %6300 = vmatpush1.msra.mxu0 0.0
        %6301 = vmatprep.subr.mxu0 0.0
        %6302 = vmatpush1.msra.mxu0 0.0
        %6303 = vmatprep.subr.mxu0 0.0
        %6304 = vmatpush1.msra.mxu0 0.0
        %6305 = vmatprep.subr.mxu0 0.0
        %6306 = vmatpush1.msra.mxu0 0.0
        %6307 = vmatprep.subr.mxu0 0.0
        %6308 = vmatpush1.msra.mxu0 0.0
        %6309 = vmatprep.subr.mxu0 0.0
        %6310 = vmatpush1.msra.mxu0 0.0
        %6311 = vmatprep.subr.mxu0 0.0
        %6312 = vmatpush1.msra.mxu0 0.0
        %6313 = vmatprep.subr.mxu0 0.0
        %6314 = vmatpush1.msra.mxu0 0.0
        %6315 = vmatprep.subr.mxu0 0.0
        %6316 = vmatpush1.msra.mxu0 0.0
        %6317 = vmatprep.subr.mxu0 0.0
        %6318 = vmatpush1.msra.mxu0 0.0
        %6319 = vmatprep.subr.mxu0 0.0
        %6320 = vmatpush1.msra.mxu0 0.0
        %6321 = vmatprep.subr.mxu0 0.0
        %6322 = vmatpush1.msra.mxu0 0.0
        %6323 = vmatprep.subr.mxu0 0.0
        %6324 = vmatpush1.msra.mxu0 0.0
        %6325 = vmatprep.subr.mxu0 0.0
        %6326 = vmatpush1.msra.mxu0 0.0
        %6327 = vmatprep.subr.mxu0 0.0
        %6328 = vmatpush1.msra.mxu0 0.0
        %6329 = vmatprep.subr.mxu0 0.0
        %6330 = vmatpush1.msra.mxu0 0.0
        %6331 = vmatprep.subr.mxu0 0.0
        %6332 = vmatpush1.msra.mxu0 0.0
        %6333 = vmatprep.subr.mxu0 0.0
        %6334 = vmatpush1.msra.mxu0 0.0
        %6335 = vmatprep.subr.mxu0 0.0
        %6336 = vmatpush1.msra.mxu0 0.0
        %6337 = vmatprep.subr.mxu0 0.0
        %6338 = vmatpush1.msra.mxu0 0.0
        %6339 = vmatprep.subr.mxu0 0.0
        %6340 = vmatpush1.msra.mxu0 0.0
        %6341 = vmatprep.mubr.f32.mxu0 0.0
        %6342 = vmatmul.mubr.f32.gmra.mrb[0].mxu0 %v6275
        %v6343 = vpop.f32.mrb[0].mxu0
        %v6344 = vadd.f32 0.0, %v6343
        %v6345 = vpop.f32.mrb[0].mxu0
        %6346 = vdwg.mxu0
        %s6347 = scalar_lea.vmem [#allocation8], 64
        %v6348 = vld [vmem:[%s6347] sm:$0xff]
        %v6349 = vld [vmem:[%s6347 + $0x8] sm:$0xff]
        %v6350 = vld [vmem:[%s6347 + $0x10] sm:$0xff]
        %v6351 = vld [vmem:[%s6347 + $0x18] sm:$0xff]
        %v6352 = vld [vmem:[%s6347 + $0x20] sm:$0xff]
        %v6353 = vld [vmem:[%s6347 + $0x28] sm:$0xff]
        %v6354 = vld [vmem:[%s6347 + $0x30] sm:$0xff]
        %v6355 = vld [vmem:[%s6347 + $0x38] sm:$0xff]
        %v6357 = vsel %vm3233, %v6344, 0
        %6359 = vmatprep.subr.mxu0 0.0
        %6360 = vmatpush1.msra.mxu0 %v6348
        %6361 = vmatprep.subr.mxu0 0.0
        %6362 = vmatpush1.msra.mxu0 %v6349
        %6363 = vmatprep.subr.mxu0 0.0
        %6364 = vmatpush1.msra.mxu0 %v6350
        %6365 = vmatprep.subr.mxu0 0.0
        %6366 = vmatpush1.msra.mxu0 %v6351
        %6367 = vmatprep.subr.mxu0 0.0
        %6368 = vmatpush1.msra.mxu0 %v6352
        %6369 = vmatprep.subr.mxu0 0.0
        %6370 = vmatpush1.msra.mxu0 %v6353
        %6371 = vmatprep.subr.mxu0 0.0
        %6372 = vmatpush1.msra.mxu0 %v6354
        %6373 = vmatprep.subr.mxu0 0.0
        %6374 = vmatpush1.msra.mxu0 %v6355
        %6375 = vmatprep.subr.mxu0 0.0
        %6376 = vmatpush1.msra.mxu0 0.0
        %6377 = vmatprep.subr.mxu0 0.0
        %6378 = vmatpush1.msra.mxu0 0.0
        %6379 = vmatprep.subr.mxu0 0.0
        %6380 = vmatpush1.msra.mxu0 0.0
        %6381 = vmatprep.subr.mxu0 0.0
        %6382 = vmatpush1.msra.mxu0 0.0
        %6383 = vmatprep.subr.mxu0 0.0
        %6384 = vmatpush1.msra.mxu0 0.0
        %6385 = vmatprep.subr.mxu0 0.0
        %6386 = vmatpush1.msra.mxu0 0.0
        %6387 = vmatprep.subr.mxu0 0.0
        %6388 = vmatpush1.msra.mxu0 0.0
        %6389 = vmatprep.subr.mxu0 0.0
        %6390 = vmatpush1.msra.mxu0 0.0
        %6391 = vmatprep.subr.mxu0 0.0
        %6392 = vmatpush1.msra.mxu0 0.0
        %6393 = vmatprep.subr.mxu0 0.0
        %6394 = vmatpush1.msra.mxu0 0.0
        %6395 = vmatprep.subr.mxu0 0.0
        %6396 = vmatpush1.msra.mxu0 0.0
        %6397 = vmatprep.subr.mxu0 0.0
        %6398 = vmatpush1.msra.mxu0 0.0
        %6399 = vmatprep.subr.mxu0 0.0
        %6400 = vmatpush1.msra.mxu0 0.0
        %6401 = vmatprep.subr.mxu0 0.0
        %6402 = vmatpush1.msra.mxu0 0.0
        %6403 = vmatprep.subr.mxu0 0.0
        %6404 = vmatpush1.msra.mxu0 0.0
        %6405 = vmatprep.subr.mxu0 0.0
        %6406 = vmatpush1.msra.mxu0 0.0
        %6407 = vmatprep.subr.mxu0 0.0
        %6408 = vmatpush1.msra.mxu0 0.0
        %6409 = vmatprep.subr.mxu0 0.0
        %6410 = vmatpush1.msra.mxu0 0.0
        %6411 = vmatprep.subr.mxu0 0.0
        %6412 = vmatpush1.msra.mxu0 0.0
        %6413 = vmatprep.subr.mxu0 0.0
        %6414 = vmatpush1.msra.mxu0 0.0
        %6415 = vmatprep.subr.mxu0 0.0
        %6416 = vmatpush1.msra.mxu0 0.0
        %6417 = vmatprep.subr.mxu0 0.0
        %6418 = vmatpush1.msra.mxu0 0.0
        %6419 = vmatprep.subr.mxu0 0.0
        %6420 = vmatpush1.msra.mxu0 0.0
        %6421 = vmatprep.subr.mxu0 0.0
        %6422 = vmatpush1.msra.mxu0 0.0
        %6423 = vmatprep.mubr.f32.mxu0 0.0
        %6424 = vmatmul.mubr.f32.gmra.mrb[0].mxu0 %v6357
        %v6425 = vpop.f32.mrb[0].mxu0
        %v6426 = vadd.f32 0.0, %v6425
        %v6427 = vpop.f32.mrb[0].mxu0
        %6428 = vdwg.mxu0
        %v6430 = vsel %vm3233, %v6260, 0
        %6432 = vmatprep.subr.mxu0 0.0
        %6433 = vmatpush1.msra.mxu0 %v6263
        %6434 = vmatprep.subr.mxu0 0.0
        %6435 = vmatpush1.msra.mxu0 %v6264
        %6436 = vmatprep.subr.mxu0 0.0
        %6437 = vmatpush1.msra.mxu0 %v6265
        %6438 = vmatprep.subr.mxu0 0.0
        %6439 = vmatpush1.msra.mxu0 %v6266
        %6440 = vmatprep.subr.mxu0 0.0
        %6441 = vmatpush1.msra.mxu0 %v6267
        %6442 = vmatprep.subr.mxu0 0.0
        %6443 = vmatpush1.msra.mxu0 %v6268
        %6444 = vmatprep.subr.mxu0 0.0
        %6445 = vmatpush1.msra.mxu0 %v6269
        %6446 = vmatprep.subr.mxu0 0.0
        %6447 = vmatpush1.msra.mxu0 %v6270
        %6448 = vmatprep.subr.mxu0 0.0
        %6449 = vmatpush1.msra.mxu0 0.0
        %6450 = vmatprep.subr.mxu0 0.0
        %6451 = vmatpush1.msra.mxu0 0.0
        %6452 = vmatprep.subr.mxu0 0.0
        %6453 = vmatpush1.msra.mxu0 0.0
        %6454 = vmatprep.subr.mxu0 0.0
        %6455 = vmatpush1.msra.mxu0 0.0
        %6456 = vmatprep.subr.mxu0 0.0
        %6457 = vmatpush1.msra.mxu0 0.0
        %6458 = vmatprep.subr.mxu0 0.0
        %6459 = vmatpush1.msra.mxu0 0.0
        %6460 = vmatprep.subr.mxu0 0.0
        %6461 = vmatpush1.msra.mxu0 0.0
        %6462 = vmatprep.subr.mxu0 0.0
        %6463 = vmatpush1.msra.mxu0 0.0
        %6464 = vmatprep.subr.mxu0 0.0
        %6465 = vmatpush1.msra.mxu0 0.0
        %6466 = vmatprep.subr.mxu0 0.0
        %6467 = vmatpush1.msra.mxu0 0.0
        %6468 = vmatprep.subr.mxu0 0.0
        %6469 = vmatpush1.msra.mxu0 0.0
        %6470 = vmatprep.subr.mxu0 0.0
        %6471 = vmatpush1.msra.mxu0 0.0
        %6472 = vmatprep.subr.mxu0 0.0
        %6473 = vmatpush1.msra.mxu0 0.0
        %6474 = vmatprep.subr.mxu0 0.0
        %6475 = vmatpush1.msra.mxu0 0.0
        %6476 = vmatprep.subr.mxu0 0.0
        %6477 = vmatpush1.msra.mxu0 0.0
        %6478 = vmatprep.subr.mxu0 0.0
        %6479 = vmatpush1.msra.mxu0 0.0
        %6480 = vmatprep.subr.mxu0 0.0
        %6481 = vmatpush1.msra.mxu0 0.0
        %6482 = vmatprep.subr.mxu0 0.0
        %6483 = vmatpush1.msra.mxu0 0.0
        %6484 = vmatprep.subr.mxu0 0.0
        %6485 = vmatpush1.msra.mxu0 0.0
        %6486 = vmatprep.subr.mxu0 0.0
        %6487 = vmatpush1.msra.mxu0 0.0
        %6488 = vmatprep.subr.mxu0 0.0
        %6489 = vmatpush1.msra.mxu0 0.0
        %6490 = vmatprep.subr.mxu0 0.0
        %6491 = vmatpush1.msra.mxu0 0.0
        %6492 = vmatprep.subr.mxu0 0.0
        %6493 = vmatpush1.msra.mxu0 0.0
        %6494 = vmatprep.subr.mxu0 0.0
        %6495 = vmatpush1.msra.mxu0 0.0
        %6496 = vmatprep.mubr.f32.mxu0 0.0
        %6497 = vmatmul.mubr.f32.gmra.mrb[0].mxu0 %v6430
        %v6498 = vpop.f32.mrb[0].mxu0
        %v6499 = vadd.f32 %v6426, %v6498
        %v6500 = vpop.f32.mrb[0].mxu0
        %6501 = vdwg.mxu0
        %s6502 = scalar_lea.vmem %s10, 2
        %v6503 = vld [vmem:[%s6502] sm:$0x1]
        %v6504 = vunpack.c.l.bf16 %v6503
        %v6506 = vsel %vm1036, %v6504, 0
        %6508 = vmatprep.subr.mxu0 0.0
        %6509 = vmatpush1.msra.mxu0 %v6191
        %6510 = vmatprep.subr.mxu0 0.0
        %6511 = vmatpush1.msra.mxu0 0.0
        %6512 = vmatprep.subr.mxu0 0.0
        %6513 = vmatpush1.msra.mxu0 0.0
        %6514 = vmatprep.subr.mxu0 0.0
        %6515 = vmatpush1.msra.mxu0 0.0
        %6516 = vmatprep.subr.mxu0 0.0
        %6517 = vmatpush1.msra.mxu0 0.0
        %6518 = vmatprep.subr.mxu0 0.0
        %6519 = vmatpush1.msra.mxu0 0.0
        %6520 = vmatprep.subr.mxu0 0.0
        %6521 = vmatpush1.msra.mxu0 0.0
        %6522 = vmatprep.subr.mxu0 0.0
        %6523 = vmatpush1.msra.mxu0 0.0
        %6524 = vmatprep.subr.mxu0 0.0
        %6525 = vmatpush1.msra.mxu0 0.0
        %6526 = vmatprep.subr.mxu0 0.0
        %6527 = vmatpush1.msra.mxu0 0.0
        %6528 = vmatprep.subr.mxu0 0.0
        %6529 = vmatpush1.msra.mxu0 0.0
        %6530 = vmatprep.subr.mxu0 0.0
        %6531 = vmatpush1.msra.mxu0 0.0
        %6532 = vmatprep.subr.mxu0 0.0
        %6533 = vmatpush1.msra.mxu0 0.0
        %6534 = vmatprep.subr.mxu0 0.0
        %6535 = vmatpush1.msra.mxu0 0.0
        %6536 = vmatprep.subr.mxu0 0.0
        %6537 = vmatpush1.msra.mxu0 0.0
        %6538 = vmatprep.subr.mxu0 0.0
        %6539 = vmatpush1.msra.mxu0 0.0
        %6540 = vmatprep.subr.mxu0 0.0
        %6541 = vmatpush1.msra.mxu0 0.0
        %6542 = vmatprep.subr.mxu0 0.0
        %6543 = vmatpush1.msra.mxu0 0.0
        %6544 = vmatprep.subr.mxu0 0.0
        %6545 = vmatpush1.msra.mxu0 0.0
        %6546 = vmatprep.subr.mxu0 0.0
        %6547 = vmatpush1.msra.mxu0 0.0
        %6548 = vmatprep.subr.mxu0 0.0
        %6549 = vmatpush1.msra.mxu0 0.0
        %6550 = vmatprep.subr.mxu0 0.0
        %6551 = vmatpush1.msra.mxu0 0.0
        %6552 = vmatprep.subr.mxu0 0.0
        %6553 = vmatpush1.msra.mxu0 0.0
        %6554 = vmatprep.subr.mxu0 0.0
        %6555 = vmatpush1.msra.mxu0 0.0
        %6556 = vmatprep.subr.mxu0 0.0
        %6557 = vmatpush1.msra.mxu0 0.0
        %6558 = vmatprep.subr.mxu0 0.0
        %6559 = vmatpush1.msra.mxu0 0.0
        %6560 = vmatprep.subr.mxu0 0.0
        %6561 = vmatpush1.msra.mxu0 0.0
        %6562 = vmatprep.subr.mxu0 0.0
        %6563 = vmatpush1.msra.mxu0 0.0
        %6564 = vmatprep.subr.mxu0 0.0
        %6565 = vmatpush1.msra.mxu0 0.0
        %6566 = vmatprep.subr.mxu0 0.0
        %6567 = vmatpush1.msra.mxu0 0.0
        %6568 = vmatprep.subr.mxu0 0.0
        %6569 = vmatpush1.msra.mxu0 0.0
        %6570 = vmatprep.subr.mxu0 0.0
        %6571 = vmatpush1.msra.mxu0 0.0
        %6572 = vmatprep.mubr.f32.mxu0 0.0
        %6573 = vmatmul.mubr.f32.gmra.mrb[0].mxu0 %v6506
        %v6574 = vpop.f32.mrb[0].mxu0
        %v6575 = vadd.f32 0.0, %v6574
        %v6576 = vpop.f32.mrb[0].mxu0
        %6577 = vdwg.mxu0
        %s6578 = scalar_lea.vmem [#allocation8], 128
        %v6579 = vld [vmem:[%s6578] sm:$0xff]
        %v6580 = vld [vmem:[%s6578 + $0x8] sm:$0xff]
        %v6581 = vld [vmem:[%s6578 + $0x10] sm:$0xff]
        %v6582 = vld [vmem:[%s6578 + $0x18] sm:$0xff]
        %v6583 = vld [vmem:[%s6578 + $0x20] sm:$0xff]
        %v6584 = vld [vmem:[%s6578 + $0x28] sm:$0xff]
        %v6585 = vld [vmem:[%s6578 + $0x30] sm:$0xff]
        %v6586 = vld [vmem:[%s6578 + $0x38] sm:$0xff]
        %v6588 = vsel %vm3233, %v6575, 0
        %6590 = vmatprep.subr.mxu0 0.0
        %6591 = vmatpush1.msra.mxu0 %v6579
        %6592 = vmatprep.subr.mxu0 0.0
        %6593 = vmatpush1.msra.mxu0 %v6580
        %6594 = vmatprep.subr.mxu0 0.0
        %6595 = vmatpush1.msra.mxu0 %v6581
        %6596 = vmatprep.subr.mxu0 0.0
        %6597 = vmatpush1.msra.mxu0 %v6582
        %6598 = vmatprep.subr.mxu0 0.0
        %6599 = vmatpush1.msra.mxu0 %v6583
        %6600 = vmatprep.subr.mxu0 0.0
        %6601 = vmatpush1.msra.mxu0 %v6584
        %6602 = vmatprep.subr.mxu0 0.0
        %6603 = vmatpush1.msra.mxu0 %v6585
        %6604 = vmatprep.subr.mxu0 0.0
        %6605 = vmatpush1.msra.mxu0 %v6586
        %6606 = vmatprep.subr.mxu0 0.0
        %6607 = vmatpush1.msra.mxu0 0.0
        %6608 = vmatprep.subr.mxu0 0.0
        %6609 = vmatpush1.msra.mxu0 0.0
        %6610 = vmatprep.subr.mxu0 0.0
        %6611 = vmatpush1.msra.mxu0 0.0
        %6612 = vmatprep.subr.mxu0 0.0
        %6613 = vmatpush1.msra.mxu0 0.0
        %6614 = vmatprep.subr.mxu0 0.0
        %6615 = vmatpush1.msra.mxu0 0.0
        %6616 = vmatprep.subr.mxu0 0.0
        %6617 = vmatpush1.msra.mxu0 0.0
        %6618 = vmatprep.subr.mxu0 0.0
        %6619 = vmatpush1.msra.mxu0 0.0
        %6620 = vmatprep.subr.mxu0 0.0
        %6621 = vmatpush1.msra.mxu0 0.0
        %6622 = vmatprep.subr.mxu0 0.0
        %6623 = vmatpush1.msra.mxu0 0.0
        %6624 = vmatprep.subr.mxu0 0.0
        %6625 = vmatpush1.msra.mxu0 0.0
        %6626 = vmatprep.subr.mxu0 0.0
        %6627 = vmatpush1.msra.mxu0 0.0
        %6628 = vmatprep.subr.mxu0 0.0
        %6629 = vmatpush1.msra.mxu0 0.0
        %6630 = vmatprep.subr.mxu0 0.0
        %6631 = vmatpush1.msra.mxu0 0.0
        %6632 = vmatprep.subr.mxu0 0.0
        %6633 = vmatpush1.msra.mxu0 0.0
        %6634 = vmatprep.subr.mxu0 0.0
        %6635 = vmatpush1.msra.mxu0 0.0
        %6636 = vmatprep.subr.mxu0 0.0
        %6637 = vmatpush1.msra.mxu0 0.0
        %6638 = vmatprep.subr.mxu0 0.0
        %6639 = vmatpush1.msra.mxu0 0.0
        %6640 = vmatprep.subr.mxu0 0.0
        %6641 = vmatpush1.msra.mxu0 0.0
        %6642 = vmatprep.subr.mxu0 0.0
        %6643 = vmatpush1.msra.mxu0 0.0
        %6644 = vmatprep.subr.mxu0 0.0
        %6645 = vmatpush1.msra.mxu0 0.0
        %6646 = vmatprep.subr.mxu0 0.0
        %6647 = vmatpush1.msra.mxu0 0.0
        %6648 = vmatprep.subr.mxu0 0.0
        %6649 = vmatpush1.msra.mxu0 0.0
        %6650 = vmatprep.subr.mxu0 0.0
        %6651 = vmatpush1.msra.mxu0 0.0
        %6652 = vmatprep.subr.mxu0 0.0
        %6653 = vmatpush1.msra.mxu0 0.0
        %6654 = vmatprep.mubr.f32.mxu0 0.0
        %6655 = vmatmul.mubr.f32.gmra.mrb[0].mxu0 %v6588
        %v6656 = vpop.f32.mrb[0].mxu0
        %v6657 = vadd.f32 0.0, %v6656
        %v6658 = vpop.f32.mrb[0].mxu0
        %6659 = vdwg.mxu0
        %v6660 = vadd.f32 %v6499, %v6657
        %s6661 = scalar_lea.vmem %s10, 3
        %v6662 = vld [vmem:[%s6661] sm:$0x1]
        %v6663 = vunpack.c.l.bf16 %v6662
        %v6665 = vsel %vm1036, %v6663, 0
        %6667 = vmatprep.subr.mxu0 0.0
        %6668 = vmatpush1.msra.mxu0 %v6191
        %6669 = vmatprep.subr.mxu0 0.0
        %6670 = vmatpush1.msra.mxu0 0.0
        %6671 = vmatprep.subr.mxu0 0.0
        %6672 = vmatpush1.msra.mxu0 0.0
        %6673 = vmatprep.subr.mxu0 0.0
        %6674 = vmatpush1.msra.mxu0 0.0
        %6675 = vmatprep.subr.mxu0 0.0
        %6676 = vmatpush1.msra.mxu0 0.0
        %6677 = vmatprep.subr.mxu0 0.0
        %6678 = vmatpush1.msra.mxu0 0.0
        %6679 = vmatprep.subr.mxu0 0.0
        %6680 = vmatpush1.msra.mxu0 0.0
        %6681 = vmatprep.subr.mxu0 0.0
        %6682 = vmatpush1.msra.mxu0 0.0
        %6683 = vmatprep.subr.mxu0 0.0
        %6684 = vmatpush1.msra.mxu0 0.0
        %6685 = vmatprep.subr.mxu0 0.0
        %6686 = vmatpush1.msra.mxu0 0.0
        %6687 = vmatprep.subr.mxu0 0.0
        %6688 = vmatpush1.msra.mxu0 0.0
        %6689 = vmatprep.subr.mxu0 0.0
        %6690 = vmatpush1.msra.mxu0 0.0
        %6691 = vmatprep.subr.mxu0 0.0
        %6692 = vmatpush1.msra.mxu0 0.0
        %6693 = vmatprep.subr.mxu0 0.0
        %6694 = vmatpush1.msra.mxu0 0.0
        %6695 = vmatprep.subr.mxu0 0.0
        %6696 = vmatpush1.msra.mxu0 0.0
        %6697 = vmatprep.subr.mxu0 0.0
        %6698 = vmatpush1.msra.mxu0 0.0
        %6699 = vmatprep.subr.mxu0 0.0
        %6700 = vmatpush1.msra.mxu0 0.0
        %6701 = vmatprep.subr.mxu0 0.0
        %6702 = vmatpush1.msra.mxu0 0.0
        %6703 = vmatprep.subr.mxu0 0.0
        %6704 = vmatpush1.msra.mxu0 0.0
        %6705 = vmatprep.subr.mxu0 0.0
        %6706 = vmatpush1.msra.mxu0 0.0
        %6707 = vmatprep.subr.mxu0 0.0
        %6708 = vmatpush1.msra.mxu0 0.0
        %6709 = vmatprep.subr.mxu0 0.0
        %6710 = vmatpush1.msra.mxu0 0.0
        %6711 = vmatprep.subr.mxu0 0.0
        %6712 = vmatpush1.msra.mxu0 0.0
        %6713 = vmatprep.subr.mxu0 0.0
        %6714 = vmatpush1.msra.mxu0 0.0
        %6715 = vmatprep.subr.mxu0 0.0
        %6716 = vmatpush1.msra.mxu0 0.0
        %6717 = vmatprep.subr.mxu0 0.0
        %6718 = vmatpush1.msra.mxu0 0.0
        %6719 = vmatprep.subr.mxu0 0.0
        %6720 = vmatpush1.msra.mxu0 0.0
        %6721 = vmatprep.subr.mxu0 0.0
        %6722 = vmatpush1.msra.mxu0 0.0
        %6723 = vmatprep.subr.mxu0 0.0
        %6724 = vmatpush1.msra.mxu0 0.0
        %6725 = vmatprep.subr.mxu0 0.0
        %6726 = vmatpush1.msra.mxu0 0.0
        %6727 = vmatprep.subr.mxu0 0.0
        %6728 = vmatpush1.msra.mxu0 0.0
        %6729 = vmatprep.subr.mxu0 0.0
        %6730 = vmatpush1.msra.mxu0 0.0
        %6731 = vmatprep.mubr.f32.mxu0 0.0
        %6732 = vmatmul.mubr.f32.gmra.mrb[0].mxu0 %v6665
        %v6733 = vpop.f32.mrb[0].mxu0
        %v6734 = vadd.f32 0.0, %v6733
        %v6735 = vpop.f32.mrb[0].mxu0
        %6736 = vdwg.mxu0
        %s6737 = scalar_lea.vmem [#allocation8], 192
        %v6738 = vld [vmem:[%s6737] sm:$0xff]
        %v6739 = vld [vmem:[%s6737 + $0x8] sm:$0xff]
        %v6740 = vld [vmem:[%s6737 + $0x10] sm:$0xff]
        %v6741 = vld [vmem:[%s6737 + $0x18] sm:$0xff]
        %v6742 = vld [vmem:[%s6737 + $0x20] sm:$0xff]
        %v6743 = vld [vmem:[%s6737 + $0x28] sm:$0xff]
        %v6744 = vld [vmem:[%s6737 + $0x30] sm:$0xff]
        %v6745 = vld [vmem:[%s6737 + $0x38] sm:$0xff]
        %v6747 = vsel %vm3233, %v6734, 0
        %6749 = vmatprep.subr.mxu0 0.0
        %6750 = vmatpush1.msra.mxu0 %v6738
        %6751 = vmatprep.subr.mxu0 0.0
        %6752 = vmatpush1.msra.mxu0 %v6739
        %6753 = vmatprep.subr.mxu0 0.0
        %6754 = vmatpush1.msra.mxu0 %v6740
        %6755 = vmatprep.subr.mxu0 0.0
        %6756 = vmatpush1.msra.mxu0 %v6741
        %6757 = vmatprep.subr.mxu0 0.0
        %6758 = vmatpush1.msra.mxu0 %v6742
        %6759 = vmatprep.subr.mxu0 0.0
        %6760 = vmatpush1.msra.mxu0 %v6743
        %6761 = vmatprep.subr.mxu0 0.0
        %6762 = vmatpush1.msra.mxu0 %v6744
        %6763 = vmatprep.subr.mxu0 0.0
        %6764 = vmatpush1.msra.mxu0 %v6745
        %6765 = vmatprep.subr.mxu0 0.0
        %6766 = vmatpush1.msra.mxu0 0.0
        %6767 = vmatprep.subr.mxu0 0.0
        %6768 = vmatpush1.msra.mxu0 0.0
        %6769 = vmatprep.subr.mxu0 0.0
        %6770 = vmatpush1.msra.mxu0 0.0
        %6771 = vmatprep.subr.mxu0 0.0
        %6772 = vmatpush1.msra.mxu0 0.0
        %6773 = vmatprep.subr.mxu0 0.0
        %6774 = vmatpush1.msra.mxu0 0.0
        %6775 = vmatprep.subr.mxu0 0.0
        %6776 = vmatpush1.msra.mxu0 0.0
        %6777 = vmatprep.subr.mxu0 0.0
        %6778 = vmatpush1.msra.mxu0 0.0
        %6779 = vmatprep.subr.mxu0 0.0
        %6780 = vmatpush1.msra.mxu0 0.0
        %6781 = vmatprep.subr.mxu0 0.0
        %6782 = vmatpush1.msra.mxu0 0.0
        %6783 = vmatprep.subr.mxu0 0.0
        %6784 = vmatpush1.msra.mxu0 0.0
        %6785 = vmatprep.subr.mxu0 0.0
        %6786 = vmatpush1.msra.mxu0 0.0
        %6787 = vmatprep.subr.mxu0 0.0
        %6788 = vmatpush1.msra.mxu0 0.0
        %6789 = vmatprep.subr.mxu0 0.0
        %6790 = vmatpush1.msra.mxu0 0.0
        %6791 = vmatprep.subr.mxu0 0.0
        %6792 = vmatpush1.msra.mxu0 0.0
        %6793 = vmatprep.subr.mxu0 0.0
        %6794 = vmatpush1.msra.mxu0 0.0
        %6795 = vmatprep.subr.mxu0 0.0
        %6796 = vmatpush1.msra.mxu0 0.0
        %6797 = vmatprep.subr.mxu0 0.0
        %6798 = vmatpush1.msra.mxu0 0.0
        %6799 = vmatprep.subr.mxu0 0.0
        %6800 = vmatpush1.msra.mxu0 0.0
        %6801 = vmatprep.subr.mxu0 0.0
        %6802 = vmatpush1.msra.mxu0 0.0
        %6803 = vmatprep.subr.mxu0 0.0
        %6804 = vmatpush1.msra.mxu0 0.0
        %6805 = vmatprep.subr.mxu0 0.0
        %6806 = vmatpush1.msra.mxu0 0.0
        %6807 = vmatprep.subr.mxu0 0.0
        %6808 = vmatpush1.msra.mxu0 0.0
        %6809 = vmatprep.subr.mxu0 0.0
        %6810 = vmatpush1.msra.mxu0 0.0
        %6811 = vmatprep.subr.mxu0 0.0
        %6812 = vmatpush1.msra.mxu0 0.0
        %6813 = vmatprep.mubr.f32.mxu0 0.0
        %6814 = vmatmul.mubr.f32.gmra.mrb[0].mxu0 %v6747
        %v6815 = vpop.f32.mrb[0].mxu0
        %v6816 = vadd.f32 0.0, %v6815
        %v6817 = vpop.f32.mrb[0].mxu0
        %6818 = vdwg.mxu0
        %v6819 = vadd.f32 %v6660, %v6816
        %s6820 = scalar_lea.vmem %s10, 4
        %v6821 = vld [vmem:[%s6820] sm:$0x1]
        %v6822 = vunpack.c.l.bf16 %v6821
        %v6824 = vsel %vm1036, %v6822, 0
        %6826 = vmatprep.subr.mxu0 0.0
        %6827 = vmatpush1.msra.mxu0 %v6191
        %6828 = vmatprep.subr.mxu0 0.0
        %6829 = vmatpush1.msra.mxu0 0.0
        %6830 = vmatprep.subr.mxu0 0.0
        %6831 = vmatpush1.msra.mxu0 0.0
        %6832 = vmatprep.subr.mxu0 0.0
        %6833 = vmatpush1.msra.mxu0 0.0
        %6834 = vmatprep.subr.mxu0 0.0
        %6835 = vmatpush1.msra.mxu0 0.0
        %6836 = vmatprep.subr.mxu0 0.0
        %6837 = vmatpush1.msra.mxu0 0.0
        %6838 = vmatprep.subr.mxu0 0.0
        %6839 = vmatpush1.msra.mxu0 0.0
        %6840 = vmatprep.subr.mxu0 0.0
        %6841 = vmatpush1.msra.mxu0 0.0
        %6842 = vmatprep.subr.mxu0 0.0
        %6843 = vmatpush1.msra.mxu0 0.0
        %6844 = vmatprep.subr.mxu0 0.0
        %6845 = vmatpush1.msra.mxu0 0.0
        %6846 = vmatprep.subr.mxu0 0.0
        %6847 = vmatpush1.msra.mxu0 0.0
        %6848 = vmatprep.subr.mxu0 0.0
        %6849 = vmatpush1.msra.mxu0 0.0
        %6850 = vmatprep.subr.mxu0 0.0
        %6851 = vmatpush1.msra.mxu0 0.0
        %6852 = vmatprep.subr.mxu0 0.0
        %6853 = vmatpush1.msra.mxu0 0.0
        %6854 = vmatprep.subr.mxu0 0.0
        %6855 = vmatpush1.msra.mxu0 0.0
        %6856 = vmatprep.subr.mxu0 0.0
        %6857 = vmatpush1.msra.mxu0 0.0
        %6858 = vmatprep.subr.mxu0 0.0
        %6859 = vmatpush1.msra.mxu0 0.0
        %6860 = vmatprep.subr.mxu0 0.0
        %6861 = vmatpush1.msra.mxu0 0.0
        %6862 = vmatprep.subr.mxu0 0.0
        %6863 = vmatpush1.msra.mxu0 0.0
        %6864 = vmatprep.subr.mxu0 0.0
        %6865 = vmatpush1.msra.mxu0 0.0
        %6866 = vmatprep.subr.mxu0 0.0
        %6867 = vmatpush1.msra.mxu0 0.0
        %6868 = vmatprep.subr.mxu0 0.0
        %6869 = vmatpush1.msra.mxu0 0.0
        %6870 = vmatprep.subr.mxu0 0.0
        %6871 = vmatpush1.msra.mxu0 0.0
        %6872 = vmatprep.subr.mxu0 0.0
        %6873 = vmatpush1.msra.mxu0 0.0
        %6874 = vmatprep.subr.mxu0 0.0
        %6875 = vmatpush1.msra.mxu0 0.0
        %6876 = vmatprep.subr.mxu0 0.0
        %6877 = vmatpush1.msra.mxu0 0.0
        %6878 = vmatprep.subr.mxu0 0.0
        %6879 = vmatpush1.msra.mxu0 0.0
        %6880 = vmatprep.subr.mxu0 0.0
        %6881 = vmatpush1.msra.mxu0 0.0
        %6882 = vmatprep.subr.mxu0 0.0
        %6883 = vmatpush1.msra.mxu0 0.0
        %6884 = vmatprep.subr.mxu0 0.0
        %6885 = vmatpush1.msra.mxu0 0.0
        %6886 = vmatprep.subr.mxu0 0.0
        %6887 = vmatpush1.msra.mxu0 0.0
        %6888 = vmatprep.subr.mxu0 0.0
        %6889 = vmatpush1.msra.mxu0 0.0
        %6890 = vmatprep.mubr.f32.mxu0 0.0
        %6891 = vmatmul.mubr.f32.gmra.mrb[0].mxu0 %v6824
        %v6892 = vpop.f32.mrb[0].mxu0
        %v6893 = vadd.f32 0.0, %v6892
        %v6894 = vpop.f32.mrb[0].mxu0
        %6895 = vdwg.mxu0
        %s6896 = scalar_lea.vmem [#allocation8], 256
        %v6897 = vld [vmem:[%s6896] sm:$0xff]
        %v6898 = vld [vmem:[%s6896 + $0x8] sm:$0xff]
        %v6899 = vld [vmem:[%s6896 + $0x10] sm:$0xff]
        %v6900 = vld [vmem:[%s6896 + $0x18] sm:$0xff]
        %v6901 = vld [vmem:[%s6896 + $0x20] sm:$0xff]
        %v6902 = vld [vmem:[%s6896 + $0x28] sm:$0xff]
        %v6903 = vld [vmem:[%s6896 + $0x30] sm:$0xff]
        %v6904 = vld [vmem:[%s6896 + $0x38] sm:$0xff]
        %v6906 = vsel %vm3233, %v6893, 0
        %6908 = vmatprep.subr.mxu0 0.0
        %6909 = vmatpush1.msra.mxu0 %v6897
        %6910 = vmatprep.subr.mxu0 0.0
        %6911 = vmatpush1.msra.mxu0 %v6898
        %6912 = vmatprep.subr.mxu0 0.0
        %6913 = vmatpush1.msra.mxu0 %v6899
        %6914 = vmatprep.subr.mxu0 0.0
        %6915 = vmatpush1.msra.mxu0 %v6900
        %6916 = vmatprep.subr.mxu0 0.0
        %6917 = vmatpush1.msra.mxu0 %v6901
        %6918 = vmatprep.subr.mxu0 0.0
        %6919 = vmatpush1.msra.mxu0 %v6902
        %6920 = vmatprep.subr.mxu0 0.0
        %6921 = vmatpush1.msra.mxu0 %v6903
        %6922 = vmatprep.subr.mxu0 0.0
        %6923 = vmatpush1.msra.mxu0 %v6904
        %6924 = vmatprep.subr.mxu0 0.0
        %6925 = vmatpush1.msra.mxu0 0.0
        %6926 = vmatprep.subr.mxu0 0.0
        %6927 = vmatpush1.msra.mxu0 0.0
        %6928 = vmatprep.subr.mxu0 0.0
        %6929 = vmatpush1.msra.mxu0 0.0
        %6930 = vmatprep.subr.mxu0 0.0
        %6931 = vmatpush1.msra.mxu0 0.0
        %6932 = vmatprep.subr.mxu0 0.0
        %6933 = vmatpush1.msra.mxu0 0.0
        %6934 = vmatprep.subr.mxu0 0.0
        %6935 = vmatpush1.msra.mxu0 0.0
        %6936 = vmatprep.subr.mxu0 0.0
        %6937 = vmatpush1.msra.mxu0 0.0
        %6938 = vmatprep.subr.mxu0 0.0
        %6939 = vmatpush1.msra.mxu0 0.0
        %6940 = vmatprep.subr.mxu0 0.0
        %6941 = vmatpush1.msra.mxu0 0.0
        %6942 = vmatprep.subr.mxu0 0.0
        %6943 = vmatpush1.msra.mxu0 0.0
        %6944 = vmatprep.subr.mxu0 0.0
        %6945 = vmatpush1.msra.mxu0 0.0
        %6946 = vmatprep.subr.mxu0 0.0
        %6947 = vmatpush1.msra.mxu0 0.0
        %6948 = vmatprep.subr.mxu0 0.0
        %6949 = vmatpush1.msra.mxu0 0.0
        %6950 = vmatprep.subr.mxu0 0.0
        %6951 = vmatpush1.msra.mxu0 0.0
        %6952 = vmatprep.subr.mxu0 0.0
        %6953 = vmatpush1.msra.mxu0 0.0
        %6954 = vmatprep.subr.mxu0 0.0
        %6955 = vmatpush1.msra.mxu0 0.0
        %6956 = vmatprep.subr.mxu0 0.0
        %6957 = vmatpush1.msra.mxu0 0.0
        %6958 = vmatprep.subr.mxu0 0.0
        %6959 = vmatpush1.msra.mxu0 0.0
        %6960 = vmatprep.subr.mxu0 0.0
        %6961 = vmatpush1.msra.mxu0 0.0
        %6962 = vmatprep.subr.mxu0 0.0
        %6963 = vmatpush1.msra.mxu0 0.0
        %6964 = vmatprep.subr.mxu0 0.0
        %6965 = vmatpush1.msra.mxu0 0.0
        %6966 = vmatprep.subr.mxu0 0.0
        %6967 = vmatpush1.msra.mxu0 0.0
        %6968 = vmatprep.subr.mxu0 0.0
        %6969 = vmatpush1.msra.mxu0 0.0
        %6970 = vmatprep.subr.mxu0 0.0
        %6971 = vmatpush1.msra.mxu0 0.0
        %6972 = vmatprep.mubr.f32.mxu0 0.0
        %6973 = vmatmul.mubr.f32.gmra.mrb[0].mxu0 %v6906
        %v6974 = vpop.f32.mrb[0].mxu0
        %v6975 = vadd.f32 0.0, %v6974
        %v6976 = vpop.f32.mrb[0].mxu0
        %6977 = vdwg.mxu0
        %v6978 = vadd.f32 %v6819, %v6975
        %s6979 = scalar_lea.vmem %s10, 5
        %v6980 = vld [vmem:[%s6979] sm:$0x1]
        %v6981 = vunpack.c.l.bf16 %v6980
        %v6983 = vsel %vm1036, %v6981, 0
        %6985 = vmatprep.subr.mxu0 0.0
        %6986 = vmatpush1.msra.mxu0 %v6191
        %6987 = vmatprep.subr.mxu0 0.0
        %6988 = vmatpush1.msra.mxu0 0.0
        %6989 = vmatprep.subr.mxu0 0.0
        %6990 = vmatpush1.msra.mxu0 0.0
        %6991 = vmatprep.subr.mxu0 0.0
        %6992 = vmatpush1.msra.mxu0 0.0
        %6993 = vmatprep.subr.mxu0 0.0
        %6994 = vmatpush1.msra.mxu0 0.0
        %6995 = vmatprep.subr.mxu0 0.0
        %6996 = vmatpush1.msra.mxu0 0.0
        %6997 = vmatprep.subr.mxu0 0.0
        %6998 = vmatpush1.msra.mxu0 0.0
        %6999 = vmatprep.subr.mxu0 0.0
        %7000 = vmatpush1.msra.mxu0 0.0
        %7001 = vmatprep.subr.mxu0 0.0
        %7002 = vmatpush1.msra.mxu0 0.0
        %7003 = vmatprep.subr.mxu0 0.0
        %7004 = vmatpush1.msra.mxu0 0.0
        %7005 = vmatprep.subr.mxu0 0.0
        %7006 = vmatpush1.msra.mxu0 0.0
        %7007 = vmatprep.subr.mxu0 0.0
        %7008 = vmatpush1.msra.mxu0 0.0
        %7009 = vmatprep.subr.mxu0 0.0
        %7010 = vmatpush1.msra.mxu0 0.0
        %7011 = vmatprep.subr.mxu0 0.0
        %7012 = vmatpush1.msra.mxu0 0.0
        %7013 = vmatprep.subr.mxu0 0.0
        %7014 = vmatpush1.msra.mxu0 0.0
        %7015 = vmatprep.subr.mxu0 0.0
        %7016 = vmatpush1.msra.mxu0 0.0
        %7017 = vmatprep.subr.mxu0 0.0
        %7018 = vmatpush1.msra.mxu0 0.0
        %7019 = vmatprep.subr.mxu0 0.0
        %7020 = vmatpush1.msra.mxu0 0.0
        %7021 = vmatprep.subr.mxu0 0.0
        %7022 = vmatpush1.msra.mxu0 0.0
        %7023 = vmatprep.subr.mxu0 0.0
        %7024 = vmatpush1.msra.mxu0 0.0
        %7025 = vmatprep.subr.mxu0 0.0
        %7026 = vmatpush1.msra.mxu0 0.0
        %7027 = vmatprep.subr.mxu0 0.0
        %7028 = vmatpush1.msra.mxu0 0.0
        %7029 = vmatprep.subr.mxu0 0.0
        %7030 = vmatpush1.msra.mxu0 0.0
        %7031 = vmatprep.subr.mxu0 0.0
        %7032 = vmatpush1.msra.mxu0 0.0
        %7033 = vmatprep.subr.mxu0 0.0
        %7034 = vmatpush1.msra.mxu0 0.0
        %7035 = vmatprep.subr.mxu0 0.0
        %7036 = vmatpush1.msra.mxu0 0.0
        %7037 = vmatprep.subr.mxu0 0.0
        %7038 = vmatpush1.msra.mxu0 0.0
        %7039 = vmatprep.subr.mxu0 0.0
        %7040 = vmatpush1.msra.mxu0 0.0
        %7041 = vmatprep.subr.mxu0 0.0
        %7042 = vmatpush1.msra.mxu0 0.0
        %7043 = vmatprep.subr.mxu0 0.0
        %7044 = vmatpush1.msra.mxu0 0.0
        %7045 = vmatprep.subr.mxu0 0.0
        %7046 = vmatpush1.msra.mxu0 0.0
        %7047 = vmatprep.subr.mxu0 0.0
        %7048 = vmatpush1.msra.mxu0 0.0
        %7049 = vmatprep.mubr.f32.mxu0 0.0
        %7050 = vmatmul.mubr.f32.gmra.mrb[0].mxu0 %v6983
        %v7051 = vpop.f32.mrb[0].mxu0
        %v7052 = vadd.f32 0.0, %v7051
        %v7053 = vpop.f32.mrb[0].mxu0
        %7054 = vdwg.mxu0
        %s7055 = scalar_lea.vmem [#allocation8], 320
        %v7056 = vld [vmem:[%s7055] sm:$0xff]
        %v7057 = vld [vmem:[%s7055 + $0x8] sm:$0xff]
        %v7058 = vld [vmem:[%s7055 + $0x10] sm:$0xff]
        %v7059 = vld [vmem:[%s7055 + $0x18] sm:$0xff]
        %v7060 = vld [vmem:[%s7055 + $0x20] sm:$0xff]
        %v7061 = vld [vmem:[%s7055 + $0x28] sm:$0xff]
        %v7062 = vld [vmem:[%s7055 + $0x30] sm:$0xff]
        %v7063 = vld [vmem:[%s7055 + $0x38] sm:$0xff]
        %v7065 = vsel %vm3233, %v7052, 0
        %7067 = vmatprep.subr.mxu0 0.0
        %7068 = vmatpush1.msra.mxu0 %v7056
        %7069 = vmatprep.subr.mxu0 0.0
        %7070 = vmatpush1.msra.mxu0 %v7057
        %7071 = vmatprep.subr.mxu0 0.0
        %7072 = vmatpush1.msra.mxu0 %v7058
        %7073 = vmatprep.subr.mxu0 0.0
        %7074 = vmatpush1.msra.mxu0 %v7059
        %7075 = vmatprep.subr.mxu0 0.0
        %7076 = vmatpush1.msra.mxu0 %v7060
        %7077 = vmatprep.subr.mxu0 0.0
        %7078 = vmatpush1.msra.mxu0 %v7061
        %7079 = vmatprep.subr.mxu0 0.0
        %7080 = vmatpush1.msra.mxu0 %v7062
        %7081 = vmatprep.subr.mxu0 0.0
        %7082 = vmatpush1.msra.mxu0 %v7063
        %7083 = vmatprep.subr.mxu0 0.0
        %7084 = vmatpush1.msra.mxu0 0.0
        %7085 = vmatprep.subr.mxu0 0.0
        %7086 = vmatpush1.msra.mxu0 0.0
        %7087 = vmatprep.subr.mxu0 0.0
        %7088 = vmatpush1.msra.mxu0 0.0
        %7089 = vmatprep.subr.mxu0 0.0
        %7090 = vmatpush1.msra.mxu0 0.0
        %7091 = vmatprep.subr.mxu0 0.0
        %7092 = vmatpush1.msra.mxu0 0.0
        %7093 = vmatprep.subr.mxu0 0.0
        %7094 = vmatpush1.msra.mxu0 0.0
        %7095 = vmatprep.subr.mxu0 0.0
        %7096 = vmatpush1.msra.mxu0 0.0
        %7097 = vmatprep.subr.mxu0 0.0
        %7098 = vmatpush1.msra.mxu0 0.0
        %7099 = vmatprep.subr.mxu0 0.0
        %7100 = vmatpush1.msra.mxu0 0.0
        %7101 = vmatprep.subr.mxu0 0.0
        %7102 = vmatpush1.msra.mxu0 0.0
        %7103 = vmatprep.subr.mxu0 0.0
        %7104 = vmatpush1.msra.mxu0 0.0
        %7105 = vmatprep.subr.mxu0 0.0
        %7106 = vmatpush1.msra.mxu0 0.0
        %7107 = vmatprep.subr.mxu0 0.0
        %7108 = vmatpush1.msra.mxu0 0.0
        %7109 = vmatprep.subr.mxu0 0.0
        %7110 = vmatpush1.msra.mxu0 0.0
        %7111 = vmatprep.subr.mxu0 0.0
        %7112 = vmatpush1.msra.mxu0 0.0
        %7113 = vmatprep.subr.mxu0 0.0
        %7114 = vmatpush1.msra.mxu0 0.0
        %7115 = vmatprep.subr.mxu0 0.0
        %7116 = vmatpush1.msra.mxu0 0.0
        %7117 = vmatprep.subr.mxu0 0.0
        %7118 = vmatpush1.msra.mxu0 0.0
        %7119 = vmatprep.subr.mxu0 0.0
        %7120 = vmatpush1.msra.mxu0 0.0
        %7121 = vmatprep.subr.mxu0 0.0
        %7122 = vmatpush1.msra.mxu0 0.0
        %7123 = vmatprep.subr.mxu0 0.0
        %7124 = vmatpush1.msra.mxu0 0.0
        %7125 = vmatprep.subr.mxu0 0.0
        %7126 = vmatpush1.msra.mxu0 0.0
        %7127 = vmatprep.subr.mxu0 0.0
        %7128 = vmatpush1.msra.mxu0 0.0
        %7129 = vmatprep.subr.mxu0 0.0
        %7130 = vmatpush1.msra.mxu0 0.0
        %7131 = vmatprep.mubr.f32.mxu0 0.0
        %7132 = vmatmul.mubr.f32.gmra.mrb[0].mxu0 %v7065
        %v7133 = vpop.f32.mrb[0].mxu0
        %v7134 = vadd.f32 0.0, %v7133
        %v7135 = vpop.f32.mrb[0].mxu0
        %7136 = vdwg.mxu0
        %v7137 = vadd.f32 %v6978, %v7134
        %s7138 = scalar_lea.vmem %s10, 6
        %v7139 = vld [vmem:[%s7138] sm:$0x1]
        %v7140 = vunpack.c.l.bf16 %v7139
        %v7142 = vsel %vm1036, %v7140, 0
        %7144 = vmatprep.subr.mxu0 0.0
        %7145 = vmatpush1.msra.mxu0 %v6191
        %7146 = vmatprep.subr.mxu0 0.0
        %7147 = vmatpush1.msra.mxu0 0.0
        %7148 = vmatprep.subr.mxu0 0.0
        %7149 = vmatpush1.msra.mxu0 0.0
        %7150 = vmatprep.subr.mxu0 0.0
        %7151 = vmatpush1.msra.mxu0 0.0
        %7152 = vmatprep.subr.mxu0 0.0
        %7153 = vmatpush1.msra.mxu0 0.0
        %7154 = vmatprep.subr.mxu0 0.0
        %7155 = vmatpush1.msra.mxu0 0.0
        %7156 = vmatprep.subr.mxu0 0.0
        %7157 = vmatpush1.msra.mxu0 0.0
        %7158 = vmatprep.subr.mxu0 0.0
        %7159 = vmatpush1.msra.mxu0 0.0
        %7160 = vmatprep.subr.mxu0 0.0
        %7161 = vmatpush1.msra.mxu0 0.0
        %7162 = vmatprep.subr.mxu0 0.0
        %7163 = vmatpush1.msra.mxu0 0.0
        %7164 = vmatprep.subr.mxu0 0.0
        %7165 = vmatpush1.msra.mxu0 0.0
        %7166 = vmatprep.subr.mxu0 0.0
        %7167 = vmatpush1.msra.mxu0 0.0
        %7168 = vmatprep.subr.mxu0 0.0
        %7169 = vmatpush1.msra.mxu0 0.0
        %7170 = vmatprep.subr.mxu0 0.0
        %7171 = vmatpush1.msra.mxu0 0.0
        %7172 = vmatprep.subr.mxu0 0.0
        %7173 = vmatpush1.msra.mxu0 0.0
        %7174 = vmatprep.subr.mxu0 0.0
        %7175 = vmatpush1.msra.mxu0 0.0
        %7176 = vmatprep.subr.mxu0 0.0
        %7177 = vmatpush1.msra.mxu0 0.0
        %7178 = vmatprep.subr.mxu0 0.0
        %7179 = vmatpush1.msra.mxu0 0.0
        %7180 = vmatprep.subr.mxu0 0.0
        %7181 = vmatpush1.msra.mxu0 0.0
        %7182 = vmatprep.subr.mxu0 0.0
        %7183 = vmatpush1.msra.mxu0 0.0
        %7184 = vmatprep.subr.mxu0 0.0
        %7185 = vmatpush1.msra.mxu0 0.0
        %7186 = vmatprep.subr.mxu0 0.0
        %7187 = vmatpush1.msra.mxu0 0.0
        %7188 = vmatprep.subr.mxu0 0.0
        %7189 = vmatpush1.msra.mxu0 0.0
        %7190 = vmatprep.subr.mxu0 0.0
        %7191 = vmatpush1.msra.mxu0 0.0
        %7192 = vmatprep.subr.mxu0 0.0
        %7193 = vmatpush1.msra.mxu0 0.0
        %7194 = vmatprep.subr.mxu0 0.0
        %7195 = vmatpush1.msra.mxu0 0.0
        %7196 = vmatprep.subr.mxu0 0.0
        %7197 = vmatpush1.msra.mxu0 0.0
        %7198 = vmatprep.subr.mxu0 0.0
        %7199 = vmatpush1.msra.mxu0 0.0
        %7200 = vmatprep.subr.mxu0 0.0
        %7201 = vmatpush1.msra.mxu0 0.0
        %7202 = vmatprep.subr.mxu0 0.0
        %7203 = vmatpush1.msra.mxu0 0.0
        %7204 = vmatprep.subr.mxu0 0.0
        %7205 = vmatpush1.msra.mxu0 0.0
        %7206 = vmatprep.subr.mxu0 0.0
        %7207 = vmatpush1.msra.mxu0 0.0
        %7208 = vmatprep.mubr.f32.mxu0 0.0
        %7209 = vmatmul.mubr.f32.gmra.mrb[0].mxu0 %v7142
        %v7210 = vpop.f32.mrb[0].mxu0
        %v7211 = vadd.f32 0.0, %v7210
        %v7212 = vpop.f32.mrb[0].mxu0
        %7213 = vdwg.mxu0
        %s7214 = scalar_lea.vmem [#allocation8], 384
        %v7215 = vld [vmem:[%s7214] sm:$0xff]
        %v7216 = vld [vmem:[%s7214 + $0x8] sm:$0xff]
        %v7217 = vld [vmem:[%s7214 + $0x10] sm:$0xff]
        %v7218 = vld [vmem:[%s7214 + $0x18] sm:$0xff]
        %v7219 = vld [vmem:[%s7214 + $0x20] sm:$0xff]
        %v7220 = vld [vmem:[%s7214 + $0x28] sm:$0xff]
        %v7221 = vld [vmem:[%s7214 + $0x30] sm:$0xff]
        %v7222 = vld [vmem:[%s7214 + $0x38] sm:$0xff]
        %v7224 = vsel %vm3233, %v7211, 0
        %7226 = vmatprep.subr.mxu0 0.0
        %7227 = vmatpush1.msra.mxu0 %v7215
        %7228 = vmatprep.subr.mxu0 0.0
        %7229 = vmatpush1.msra.mxu0 %v7216
        %7230 = vmatprep.subr.mxu0 0.0
        %7231 = vmatpush1.msra.mxu0 %v7217
        %7232 = vmatprep.subr.mxu0 0.0
        %7233 = vmatpush1.msra.mxu0 %v7218
        %7234 = vmatprep.subr.mxu0 0.0
        %7235 = vmatpush1.msra.mxu0 %v7219
        %7236 = vmatprep.subr.mxu0 0.0
        %7237 = vmatpush1.msra.mxu0 %v7220
        %7238 = vmatprep.subr.mxu0 0.0
        %7239 = vmatpush1.msra.mxu0 %v7221
        %7240 = vmatprep.subr.mxu0 0.0
        %7241 = vmatpush1.msra.mxu0 %v7222
        %7242 = vmatprep.subr.mxu0 0.0
        %7243 = vmatpush1.msra.mxu0 0.0
        %7244 = vmatprep.subr.mxu0 0.0
        %7245 = vmatpush1.msra.mxu0 0.0
        %7246 = vmatprep.subr.mxu0 0.0
        %7247 = vmatpush1.msra.mxu0 0.0
        %7248 = vmatprep.subr.mxu0 0.0
        %7249 = vmatpush1.msra.mxu0 0.0
        %7250 = vmatprep.subr.mxu0 0.0
        %7251 = vmatpush1.msra.mxu0 0.0
        %7252 = vmatprep.subr.mxu0 0.0
        %7253 = vmatpush1.msra.mxu0 0.0
        %7254 = vmatprep.subr.mxu0 0.0
        %7255 = vmatpush1.msra.mxu0 0.0
        %7256 = vmatprep.subr.mxu0 0.0
        %7257 = vmatpush1.msra.mxu0 0.0
        %7258 = vmatprep.subr.mxu0 0.0
        %7259 = vmatpush1.msra.mxu0 0.0
        %7260 = vmatprep.subr.mxu0 0.0
        %7261 = vmatpush1.msra.mxu0 0.0
        %7262 = vmatprep.subr.mxu0 0.0
        %7263 = vmatpush1.msra.mxu0 0.0
        %7264 = vmatprep.subr.mxu0 0.0
        %7265 = vmatpush1.msra.mxu0 0.0
        %7266 = vmatprep.subr.mxu0 0.0
        %7267 = vmatpush1.msra.mxu0 0.0
        %7268 = vmatprep.subr.mxu0 0.0
        %7269 = vmatpush1.msra.mxu0 0.0
        %7270 = vmatprep.subr.mxu0 0.0
        %7271 = vmatpush1.msra.mxu0 0.0
        %7272 = vmatprep.subr.mxu0 0.0
        %7273 = vmatpush1.msra.mxu0 0.0
        %7274 = vmatprep.subr.mxu0 0.0
        %7275 = vmatpush1.msra.mxu0 0.0
        %7276 = vmatprep.subr.mxu0 0.0
        %7277 = vmatpush1.msra.mxu0 0.0
        %7278 = vmatprep.subr.mxu0 0.0
        %7279 = vmatpush1.msra.mxu0 0.0
        %7280 = vmatprep.subr.mxu0 0.0
        %7281 = vmatpush1.msra.mxu0 0.0
        %7282 = vmatprep.subr.mxu0 0.0
        %7283 = vmatpush1.msra.mxu0 0.0
        %7284 = vmatprep.subr.mxu0 0.0
        %7285 = vmatpush1.msra.mxu0 0.0
        %7286 = vmatprep.subr.mxu0 0.0
        %7287 = vmatpush1.msra.mxu0 0.0
        %7288 = vmatprep.subr.mxu0 0.0
        %7289 = vmatpush1.msra.mxu0 0.0
        %7290 = vmatprep.mubr.f32.mxu0 0.0
        %7291 = vmatmul.mubr.f32.gmra.mrb[0].mxu0 %v7224
        %v7292 = vpop.f32.mrb[0].mxu0
        %v7293 = vadd.f32 0.0, %v7292
        %v7294 = vpop.f32.mrb[0].mxu0
        %7295 = vdwg.mxu0
        %v7296 = vadd.f32 %v7137, %v7293
        %s7297 = scalar_lea.vmem %s10, 7
        %v7298 = vld [vmem:[%s7297] sm:$0x1]
        %v7299 = vunpack.c.l.bf16 %v7298
        %v7301 = vsel %vm1036, %v7299, 0
        %7303 = vmatprep.subr.mxu0 0.0
        %7304 = vmatpush1.msra.mxu0 %v6191
        %7305 = vmatprep.subr.mxu0 0.0
        %7306 = vmatpush1.msra.mxu0 0.0
        %7307 = vmatprep.subr.mxu0 0.0
        %7308 = vmatpush1.msra.mxu0 0.0
        %7309 = vmatprep.subr.mxu0 0.0
        %7310 = vmatpush1.msra.mxu0 0.0
        %7311 = vmatprep.subr.mxu0 0.0
        %7312 = vmatpush1.msra.mxu0 0.0
        %7313 = vmatprep.subr.mxu0 0.0
        %7314 = vmatpush1.msra.mxu0 0.0
        %7315 = vmatprep.subr.mxu0 0.0
        %7316 = vmatpush1.msra.mxu0 0.0
        %7317 = vmatprep.subr.mxu0 0.0
        %7318 = vmatpush1.msra.mxu0 0.0
        %7319 = vmatprep.subr.mxu0 0.0
        %7320 = vmatpush1.msra.mxu0 0.0
        %7321 = vmatprep.subr.mxu0 0.0
        %7322 = vmatpush1.msra.mxu0 0.0
        %7323 = vmatprep.subr.mxu0 0.0
        %7324 = vmatpush1.msra.mxu0 0.0
        %7325 = vmatprep.subr.mxu0 0.0
        %7326 = vmatpush1.msra.mxu0 0.0
        %7327 = vmatprep.subr.mxu0 0.0
        %7328 = vmatpush1.msra.mxu0 0.0
        %7329 = vmatprep.subr.mxu0 0.0
        %7330 = vmatpush1.msra.mxu0 0.0
        %7331 = vmatprep.subr.mxu0 0.0
        %7332 = vmatpush1.msra.mxu0 0.0
        %7333 = vmatprep.subr.mxu0 0.0
        %7334 = vmatpush1.msra.mxu0 0.0
        %7335 = vmatprep.subr.mxu0 0.0
        %7336 = vmatpush1.msra.mxu0 0.0
        %7337 = vmatprep.subr.mxu0 0.0
        %7338 = vmatpush1.msra.mxu0 0.0
        %7339 = vmatprep.subr.mxu0 0.0
        %7340 = vmatpush1.msra.mxu0 0.0
        %7341 = vmatprep.subr.mxu0 0.0
        %7342 = vmatpush1.msra.mxu0 0.0
        %7343 = vmatprep.subr.mxu0 0.0
        %7344 = vmatpush1.msra.mxu0 0.0
        %7345 = vmatprep.subr.mxu0 0.0
        %7346 = vmatpush1.msra.mxu0 0.0
        %7347 = vmatprep.subr.mxu0 0.0
        %7348 = vmatpush1.msra.mxu0 0.0
        %7349 = vmatprep.subr.mxu0 0.0
        %7350 = vmatpush1.msra.mxu0 0.0
        %7351 = vmatprep.subr.mxu0 0.0
        %7352 = vmatpush1.msra.mxu0 0.0
        %7353 = vmatprep.subr.mxu0 0.0
        %7354 = vmatpush1.msra.mxu0 0.0
        %7355 = vmatprep.subr.mxu0 0.0
        %7356 = vmatpush1.msra.mxu0 0.0
        %7357 = vmatprep.subr.mxu0 0.0
        %7358 = vmatpush1.msra.mxu0 0.0
        %7359 = vmatprep.subr.mxu0 0.0
        %7360 = vmatpush1.msra.mxu0 0.0
        %7361 = vmatprep.subr.mxu0 0.0
        %7362 = vmatpush1.msra.mxu0 0.0
        %7363 = vmatprep.subr.mxu0 0.0
        %7364 = vmatpush1.msra.mxu0 0.0
        %7365 = vmatprep.subr.mxu0 0.0
        %7366 = vmatpush1.msra.mxu0 0.0
        %7367 = vmatprep.mubr.f32.mxu0 0.0
        %7368 = vmatmul.mubr.f32.gmra.mrb[0].mxu0 %v7301
        %v7369 = vpop.f32.mrb[0].mxu0
        %v7370 = vadd.f32 0.0, %v7369
        %v7371 = vpop.f32.mrb[0].mxu0
        %7372 = vdwg.mxu0
        %s7373 = scalar_lea.vmem [#allocation8], 448
        %v7374 = vld [vmem:[%s7373] sm:$0xff]
        %v7375 = vld [vmem:[%s7373 + $0x8] sm:$0xff]
        %v7376 = vld [vmem:[%s7373 + $0x10] sm:$0xff]
        %v7377 = vld [vmem:[%s7373 + $0x18] sm:$0xff]
        %v7378 = vld [vmem:[%s7373 + $0x20] sm:$0xff]
        %v7379 = vld [vmem:[%s7373 + $0x28] sm:$0xff]
        %v7380 = vld [vmem:[%s7373 + $0x30] sm:$0xff]
        %v7381 = vld [vmem:[%s7373 + $0x38] sm:$0xff]
        %v7383 = vsel %vm3233, %v7370, 0
        %7385 = vmatprep.subr.mxu0 0.0
        %7386 = vmatpush1.msra.mxu0 %v7374
        %7387 = vmatprep.subr.mxu0 0.0
        %7388 = vmatpush1.msra.mxu0 %v7375
        %7389 = vmatprep.subr.mxu0 0.0
        %7390 = vmatpush1.msra.mxu0 %v7376
        %7391 = vmatprep.subr.mxu0 0.0
        %7392 = vmatpush1.msra.mxu0 %v7377
        %7393 = vmatprep.subr.mxu0 0.0
        %7394 = vmatpush1.msra.mxu0 %v7378
        %7395 = vmatprep.subr.mxu0 0.0
        %7396 = vmatpush1.msra.mxu0 %v7379
        %7397 = vmatprep.subr.mxu0 0.0
        %7398 = vmatpush1.msra.mxu0 %v7380
        %7399 = vmatprep.subr.mxu0 0.0
        %7400 = vmatpush1.msra.mxu0 %v7381
        %7401 = vmatprep.subr.mxu0 0.0
        %7402 = vmatpush1.msra.mxu0 0.0
        %7403 = vmatprep.subr.mxu0 0.0
        %7404 = vmatpush1.msra.mxu0 0.0
        %7405 = vmatprep.subr.mxu0 0.0
        %7406 = vmatpush1.msra.mxu0 0.0
        %7407 = vmatprep.subr.mxu0 0.0
        %7408 = vmatpush1.msra.mxu0 0.0
        %7409 = vmatprep.subr.mxu0 0.0
        %7410 = vmatpush1.msra.mxu0 0.0
        %7411 = vmatprep.subr.mxu0 0.0
        %7412 = vmatpush1.msra.mxu0 0.0
        %7413 = vmatprep.subr.mxu0 0.0
        %7414 = vmatpush1.msra.mxu0 0.0
        %7415 = vmatprep.subr.mxu0 0.0
        %7416 = vmatpush1.msra.mxu0 0.0
        %7417 = vmatprep.subr.mxu0 0.0
        %7418 = vmatpush1.msra.mxu0 0.0
        %7419 = vmatprep.subr.mxu0 0.0
        %7420 = vmatpush1.msra.mxu0 0.0
        %7421 = vmatprep.subr.mxu0 0.0
        %7422 = vmatpush1.msra.mxu0 0.0
        %7423 = vmatprep.subr.mxu0 0.0
        %7424 = vmatpush1.msra.mxu0 0.0
        %7425 = vmatprep.subr.mxu0 0.0
        %7426 = vmatpush1.msra.mxu0 0.0
        %7427 = vmatprep.subr.mxu0 0.0
        %7428 = vmatpush1.msra.mxu0 0.0
        %7429 = vmatprep.subr.mxu0 0.0
        %7430 = vmatpush1.msra.mxu0 0.0
        %7431 = vmatprep.subr.mxu0 0.0
        %7432 = vmatpush1.msra.mxu0 0.0
        %7433 = vmatprep.subr.mxu0 0.0
        %7434 = vmatpush1.msra.mxu0 0.0
        %7435 = vmatprep.subr.mxu0 0.0
        %7436 = vmatpush1.msra.mxu0 0.0
        %7437 = vmatprep.subr.mxu0 0.0
        %7438 = vmatpush1.msra.mxu0 0.0
        %7439 = vmatprep.subr.mxu0 0.0
        %7440 = vmatpush1.msra.mxu0 0.0
        %7441 = vmatprep.subr.mxu0 0.0
        %7442 = vmatpush1.msra.mxu0 0.0
        %7443 = vmatprep.subr.mxu0 0.0
        %7444 = vmatpush1.msra.mxu0 0.0
        %7445 = vmatprep.subr.mxu0 0.0
        %7446 = vmatpush1.msra.mxu0 0.0
        %7447 = vmatprep.subr.mxu0 0.0
        %7448 = vmatpush1.msra.mxu0 0.0
        %7449 = vmatprep.mubr.f32.mxu0 0.0
        %7450 = vmatmul.mubr.f32.gmra.mrb[0].mxu0 %v7383
        %v7451 = vpop.f32.mrb[0].mxu0
        %v7452 = vadd.f32 0.0, %v7451
        %v7453 = vpop.f32.mrb[0].mxu0
        %7454 = vdwg.mxu0
        %v7455 = vadd.f32 %v7296, %v7452
        %s7456 = scalar_lea.vmem %s10, 8
        %v7457 = vld [vmem:[%s7456] sm:$0x1]
        %v7458 = vunpack.c.l.bf16 %v7457
        %v7460 = vsel %vm1036, %v7458, 0
        %7462 = vmatprep.subr.mxu0 0.0
        %7463 = vmatpush1.msra.mxu0 %v6191
        %7464 = vmatprep.subr.mxu0 0.0
        %7465 = vmatpush1.msra.mxu0 0.0
        %7466 = vmatprep.subr.mxu0 0.0
        %7467 = vmatpush1.msra.mxu0 0.0
        %7468 = vmatprep.subr.mxu0 0.0
        %7469 = vmatpush1.msra.mxu0 0.0
        %7470 = vmatprep.subr.mxu0 0.0
        %7471 = vmatpush1.msra.mxu0 0.0
        %7472 = vmatprep.subr.mxu0 0.0
        %7473 = vmatpush1.msra.mxu0 0.0
        %7474 = vmatprep.subr.mxu0 0.0
        %7475 = vmatpush1.msra.mxu0 0.0
        %7476 = vmatprep.subr.mxu0 0.0
        %7477 = vmatpush1.msra.mxu0 0.0
        %7478 = vmatprep.subr.mxu0 0.0
        %7479 = vmatpush1.msra.mxu0 0.0
        %7480 = vmatprep.subr.mxu0 0.0
        %7481 = vmatpush1.msra.mxu0 0.0
        %7482 = vmatprep.subr.mxu0 0.0
        %7483 = vmatpush1.msra.mxu0 0.0
        %7484 = vmatprep.subr.mxu0 0.0
        %7485 = vmatpush1.msra.mxu0 0.0
        %7486 = vmatprep.subr.mxu0 0.0
        %7487 = vmatpush1.msra.mxu0 0.0
        %7488 = vmatprep.subr.mxu0 0.0
        %7489 = vmatpush1.msra.mxu0 0.0
        %7490 = vmatprep.subr.mxu0 0.0
        %7491 = vmatpush1.msra.mxu0 0.0
        %7492 = vmatprep.subr.mxu0 0.0
        %7493 = vmatpush1.msra.mxu0 0.0
        %7494 = vmatprep.subr.mxu0 0.0
        %7495 = vmatpush1.msra.mxu0 0.0
        %7496 = vmatprep.subr.mxu0 0.0
        %7497 = vmatpush1.msra.mxu0 0.0
        %7498 = vmatprep.subr.mxu0 0.0
        %7499 = vmatpush1.msra.mxu0 0.0
        %7500 = vmatprep.subr.mxu0 0.0
        %7501 = vmatpush1.msra.mxu0 0.0
        %7502 = vmatprep.subr.mxu0 0.0
        %7503 = vmatpush1.msra.mxu0 0.0
        %7504 = vmatprep.subr.mxu0 0.0
        %7505 = vmatpush1.msra.mxu0 0.0
        %7506 = vmatprep.subr.mxu0 0.0
        %7507 = vmatpush1.msra.mxu0 0.0
        %7508 = vmatprep.subr.mxu0 0.0
        %7509 = vmatpush1.msra.mxu0 0.0
        %7510 = vmatprep.subr.mxu0 0.0
        %7511 = vmatpush1.msra.mxu0 0.0
        %7512 = vmatprep.subr.mxu0 0.0
        %7513 = vmatpush1.msra.mxu0 0.0
        %7514 = vmatprep.subr.mxu0 0.0
        %7515 = vmatpush1.msra.mxu0 0.0
        %7516 = vmatprep.subr.mxu0 0.0
        %7517 = vmatpush1.msra.mxu0 0.0
        %7518 = vmatprep.subr.mxu0 0.0
        %7519 = vmatpush1.msra.mxu0 0.0
        %7520 = vmatprep.subr.mxu0 0.0
        %7521 = vmatpush1.msra.mxu0 0.0
        %7522 = vmatprep.subr.mxu0 0.0
        %7523 = vmatpush1.msra.mxu0 0.0
        %7524 = vmatprep.subr.mxu0 0.0
        %7525 = vmatpush1.msra.mxu0 0.0
        %7526 = vmatprep.mubr.f32.mxu0 0.0
        %7527 = vmatmul.mubr.f32.gmra.mrb[0].mxu0 %v7460
        %v7528 = vpop.f32.mrb[0].mxu0
        %v7529 = vadd.f32 0.0, %v7528
        %v7530 = vpop.f32.mrb[0].mxu0
        %7531 = vdwg.mxu0
        %s7532 = scalar_lea.vmem [#allocation8], 512
        %v7533 = vld [vmem:[%s7532] sm:$0xff]
        %v7534 = vld [vmem:[%s7532 + $0x8] sm:$0xff]
        %v7535 = vld [vmem:[%s7532 + $0x10] sm:$0xff]
        %v7536 = vld [vmem:[%s7532 + $0x18] sm:$0xff]
        %v7537 = vld [vmem:[%s7532 + $0x20] sm:$0xff]
        %v7538 = vld [vmem:[%s7532 + $0x28] sm:$0xff]
        %v7539 = vld [vmem:[%s7532 + $0x30] sm:$0xff]
        %v7540 = vld [vmem:[%s7532 + $0x38] sm:$0xff]
        %v7542 = vsel %vm3233, %v7529, 0
        %7544 = vmatprep.subr.mxu0 0.0
        %7545 = vmatpush1.msra.mxu0 %v7533
        %7546 = vmatprep.subr.mxu0 0.0
        %7547 = vmatpush1.msra.mxu0 %v7534
        %7548 = vmatprep.subr.mxu0 0.0
        %7549 = vmatpush1.msra.mxu0 %v7535
        %7550 = vmatprep.subr.mxu0 0.0
        %7551 = vmatpush1.msra.mxu0 %v7536
        %7552 = vmatprep.subr.mxu0 0.0
        %7553 = vmatpush1.msra.mxu0 %v7537
        %7554 = vmatprep.subr.mxu0 0.0
        %7555 = vmatpush1.msra.mxu0 %v7538
        %7556 = vmatprep.subr.mxu0 0.0
        %7557 = vmatpush1.msra.mxu0 %v7539
        %7558 = vmatprep.subr.mxu0 0.0
        %7559 = vmatpush1.msra.mxu0 %v7540
        %7560 = vmatprep.subr.mxu0 0.0
        %7561 = vmatpush1.msra.mxu0 0.0
        %7562 = vmatprep.subr.mxu0 0.0
        %7563 = vmatpush1.msra.mxu0 0.0
        %7564 = vmatprep.subr.mxu0 0.0
        %7565 = vmatpush1.msra.mxu0 0.0
        %7566 = vmatprep.subr.mxu0 0.0
        %7567 = vmatpush1.msra.mxu0 0.0
        %7568 = vmatprep.subr.mxu0 0.0
        %7569 = vmatpush1.msra.mxu0 0.0
        %7570 = vmatprep.subr.mxu0 0.0
        %7571 = vmatpush1.msra.mxu0 0.0
        %7572 = vmatprep.subr.mxu0 0.0
        %7573 = vmatpush1.msra.mxu0 0.0
        %7574 = vmatprep.subr.mxu0 0.0
        %7575 = vmatpush1.msra.mxu0 0.0
        %7576 = vmatprep.subr.mxu0 0.0
        %7577 = vmatpush1.msra.mxu0 0.0
        %7578 = vmatprep.subr.mxu0 0.0
        %7579 = vmatpush1.msra.mxu0 0.0
        %7580 = vmatprep.subr.mxu0 0.0
        %7581 = vmatpush1.msra.mxu0 0.0
        %7582 = vmatprep.subr.mxu0 0.0
        %7583 = vmatpush1.msra.mxu0 0.0
        %7584 = vmatprep.subr.mxu0 0.0
        %7585 = vmatpush1.msra.mxu0 0.0
        %7586 = vmatprep.subr.mxu0 0.0
        %7587 = vmatpush1.msra.mxu0 0.0
        %7588 = vmatprep.subr.mxu0 0.0
        %7589 = vmatpush1.msra.mxu0 0.0
        %7590 = vmatprep.subr.mxu0 0.0
        %7591 = vmatpush1.msra.mxu0 0.0
        %7592 = vmatprep.subr.mxu0 0.0
        %7593 = vmatpush1.msra.mxu0 0.0
        %7594 = vmatprep.subr.mxu0 0.0
        %7595 = vmatpush1.msra.mxu0 0.0
        %7596 = vmatprep.subr.mxu0 0.0
        %7597 = vmatpush1.msra.mxu0 0.0
        %7598 = vmatprep.subr.mxu0 0.0
        %7599 = vmatpush1.msra.mxu0 0.0
        %7600 = vmatprep.subr.mxu0 0.0
        %7601 = vmatpush1.msra.mxu0 0.0
        %7602 = vmatprep.subr.mxu0 0.0
        %7603 = vmatpush1.msra.mxu0 0.0
        %7604 = vmatprep.subr.mxu0 0.0
        %7605 = vmatpush1.msra.mxu0 0.0
        %7606 = vmatprep.subr.mxu0 0.0
        %7607 = vmatpush1.msra.mxu0 0.0
        %7608 = vmatprep.mubr.f32.mxu0 0.0
        %7609 = vmatmul.mubr.f32.gmra.mrb[0].mxu0 %v7542
        %v7610 = vpop.f32.mrb[0].mxu0
        %v7611 = vadd.f32 0.0, %v7610
        %v7612 = vpop.f32.mrb[0].mxu0
        %7613 = vdwg.mxu0
        %v7614 = vadd.f32 %v7455, %v7611
        %v7615 = vld [vmem:[#allocation10] sm:$0x1]
        %v7616 = vadd.f32 %v7614, %v7615
        %v7617 = vmax.f32 %v7616, 0.0
        %v7618 = vld [vmem:[#allocation11] sm:$0x1]
        %v7619 = vld [vmem:[%s13] sm:$0xff]
        %v7620 = vld [vmem:[%s13 + $0x8] sm:$0xff]
        %v7621 = vld [vmem:[%s13 + $0x10] sm:$0xff]
        %v7622 = vld [vmem:[%s13 + $0x18] sm:$0xff]
        %v7623 = vld [vmem:[%s13 + $0x20] sm:$0xff]
        %v7624 = vld [vmem:[%s13 + $0x28] sm:$0xff]
        %v7625 = vld [vmem:[%s13 + $0x30] sm:$0xff]
        %v7626 = vld [vmem:[%s13 + $0x38] sm:$0xff]
        %v7627 = vld [vmem:[%s13 + $0x40] sm:$0xff]
        %v7628 = vld [vmem:[%s13 + $0x48] sm:$0xff]
        %v7629 = vld [vmem:[%s13 + $0x50] sm:$0xff]
        %v7630 = vld [vmem:[%s13 + $0x58] sm:$0xff]
        %v7631 = vld [vmem:[%s13 + $0x60] sm:$0xff]
        %v7632 = vld [vmem:[%s13 + $0x68] sm:$0xff]
        %v7633 = vld [vmem:[%s13 + $0x70] sm:$0xff]
        %v7634 = vld [vmem:[%s13 + $0x78] sm:$0xff]
        %7635 = vmatprep.subr.mxu0 0.0
        %7636 = vmatpush1.msra.mxu0 %v7619
        %7637 = vmatprep.subr.mxu0 0.0
        %7638 = vmatpush1.msra.mxu0 %v7620
        %7639 = vmatprep.subr.mxu0 0.0
        %7640 = vmatpush1.msra.mxu0 %v7621
        %7641 = vmatprep.subr.mxu0 0.0
        %7642 = vmatpush1.msra.mxu0 %v7622
        %7643 = vmatprep.subr.mxu0 0.0
        %7644 = vmatpush1.msra.mxu0 %v7623
        %7645 = vmatprep.subr.mxu0 0.0
        %7646 = vmatpush1.msra.mxu0 %v7624
        %7647 = vmatprep.subr.mxu0 0.0
        %7648 = vmatpush1.msra.mxu0 %v7625
        %7649 = vmatprep.subr.mxu0 0.0
        %7650 = vmatpush1.msra.mxu0 %v7626
        %7651 = vmatprep.subr.mxu0 0.0
        %7652 = vmatpush1.msra.mxu0 %v7627
        %7653 = vmatprep.subr.mxu0 0.0
        %7654 = vmatpush1.msra.mxu0 %v7628
        %7655 = vmatprep.subr.mxu0 0.0
        %7656 = vmatpush1.msra.mxu0 %v7629
        %7657 = vmatprep.subr.mxu0 0.0
        %7658 = vmatpush1.msra.mxu0 %v7630
        %7659 = vmatprep.subr.mxu0 0.0
        %7660 = vmatpush1.msra.mxu0 %v7631
        %7661 = vmatprep.subr.mxu0 0.0
        %7662 = vmatpush1.msra.mxu0 %v7632
        %7663 = vmatprep.subr.mxu0 0.0
        %7664 = vmatpush1.msra.mxu0 %v7633
        %7665 = vmatprep.subr.mxu0 0.0
        %7666 = vmatpush1.msra.mxu0 %v7634
        %7667 = vmatprep.subr.mxu0 0.0
        %7668 = vmatpush1.msra.mxu0 0.0
        %7669 = vmatprep.subr.mxu0 0.0
        %7670 = vmatpush1.msra.mxu0 0.0
        %7671 = vmatprep.subr.mxu0 0.0
        %7672 = vmatpush1.msra.mxu0 0.0
        %7673 = vmatprep.subr.mxu0 0.0
        %7674 = vmatpush1.msra.mxu0 0.0
        %7675 = vmatprep.subr.mxu0 0.0
        %7676 = vmatpush1.msra.mxu0 0.0
        %7677 = vmatprep.subr.mxu0 0.0
        %7678 = vmatpush1.msra.mxu0 0.0
        %7679 = vmatprep.subr.mxu0 0.0
        %7680 = vmatpush1.msra.mxu0 0.0
        %7681 = vmatprep.subr.mxu0 0.0
        %7682 = vmatpush1.msra.mxu0 0.0
        %7683 = vmatprep.subr.mxu0 0.0
        %7684 = vmatpush1.msra.mxu0 0.0
        %7685 = vmatprep.subr.mxu0 0.0
        %7686 = vmatpush1.msra.mxu0 0.0
        %7687 = vmatprep.subr.mxu0 0.0
        %7688 = vmatpush1.msra.mxu0 0.0
        %7689 = vmatprep.subr.mxu0 0.0
        %7690 = vmatpush1.msra.mxu0 0.0
        %7691 = vmatprep.subr.mxu0 0.0
        %7692 = vmatpush1.msra.mxu0 0.0
        %7693 = vmatprep.subr.mxu0 0.0
        %7694 = vmatpush1.msra.mxu0 0.0
        %7695 = vmatprep.subr.mxu0 0.0
        %7696 = vmatpush1.msra.mxu0 0.0
        %7697 = vmatprep.subr.mxu0 0.0
        %7698 = vmatpush1.msra.mxu0 0.0
        %7699 = vmatprep.mubr.f32.mxu0 0.0
        %7700 = vmatmul.mubr.f32.gmra.mrb[0].mxu0 %v7617
        %v7701 = vpop.f32.mrb[0].mxu0
        %v7702 = vadd.f32 0.0, %v7701
        %v7703 = vpop.f32.mrb[0].mxu0
        %7704 = vdwg.mxu0
        %v7705 = vadd.f32 %v7618, %v7702
        %vm7706 = vcmask 57344
        %7707 = vst.msk [vmem:[%s730] sm:$0x1] %vm7706, %v7705
        %v7708 = vld [vmem:[%s15] sm:$0xff]
        %v7709 = vld [vmem:[#allocation13] sm:$0x1]
        %vm7710 = vcmask 64512
        %v7712 = vsel %vm7710, %v7705, 0
        %7714 = vmatprep.subr.mxu0 0.0
        %7715 = vmatpush1.msra.mxu0 %v7708
        %7716 = vmatprep.subr.mxu0 0.0
        %7717 = vmatpush1.msra.mxu0 0.0
        %7718 = vmatprep.subr.mxu0 0.0
        %7719 = vmatpush1.msra.mxu0 0.0
        %7720 = vmatprep.subr.mxu0 0.0
        %7721 = vmatpush1.msra.mxu0 0.0
        %7722 = vmatprep.subr.mxu0 0.0
        %7723 = vmatpush1.msra.mxu0 0.0
        %7724 = vmatprep.subr.mxu0 0.0
        %7725 = vmatpush1.msra.mxu0 0.0
        %7726 = vmatprep.subr.mxu0 0.0
        %7727 = vmatpush1.msra.mxu0 0.0
        %7728 = vmatprep.subr.mxu0 0.0
        %7729 = vmatpush1.msra.mxu0 0.0
        %7730 = vmatprep.subr.mxu0 0.0
        %7731 = vmatpush1.msra.mxu0 0.0
        %7732 = vmatprep.subr.mxu0 0.0
        %7733 = vmatpush1.msra.mxu0 0.0
        %7734 = vmatprep.subr.mxu0 0.0
        %7735 = vmatpush1.msra.mxu0 0.0
        %7736 = vmatprep.subr.mxu0 0.0
        %7737 = vmatpush1.msra.mxu0 0.0
        %7738 = vmatprep.subr.mxu0 0.0
        %7739 = vmatpush1.msra.mxu0 0.0
        %7740 = vmatprep.subr.mxu0 0.0
        %7741 = vmatpush1.msra.mxu0 0.0
        %7742 = vmatprep.subr.mxu0 0.0
        %7743 = vmatpush1.msra.mxu0 0.0
        %7744 = vmatprep.subr.mxu0 0.0
        %7745 = vmatpush1.msra.mxu0 0.0
        %7746 = vmatprep.subr.mxu0 0.0
        %7747 = vmatpush1.msra.mxu0 0.0
        %7748 = vmatprep.subr.mxu0 0.0
        %7749 = vmatpush1.msra.mxu0 0.0
        %7750 = vmatprep.subr.mxu0 0.0
        %7751 = vmatpush1.msra.mxu0 0.0
        %7752 = vmatprep.subr.mxu0 0.0
        %7753 = vmatpush1.msra.mxu0 0.0
        %7754 = vmatprep.subr.mxu0 0.0
        %7755 = vmatpush1.msra.mxu0 0.0
        %7756 = vmatprep.subr.mxu0 0.0
        %7757 = vmatpush1.msra.mxu0 0.0
        %7758 = vmatprep.subr.mxu0 0.0
        %7759 = vmatpush1.msra.mxu0 0.0
        %7760 = vmatprep.subr.mxu0 0.0
        %7761 = vmatpush1.msra.mxu0 0.0
        %7762 = vmatprep.subr.mxu0 0.0
        %7763 = vmatpush1.msra.mxu0 0.0
        %7764 = vmatprep.subr.mxu0 0.0
        %7765 = vmatpush1.msra.mxu0 0.0
        %7766 = vmatprep.subr.mxu0 0.0
        %7767 = vmatpush1.msra.mxu0 0.0
        %7768 = vmatprep.subr.mxu0 0.0
        %7769 = vmatpush1.msra.mxu0 0.0
        %7770 = vmatprep.subr.mxu0 0.0
        %7771 = vmatpush1.msra.mxu0 0.0
        %7772 = vmatprep.subr.mxu0 0.0
        %7773 = vmatpush1.msra.mxu0 0.0
        %7774 = vmatprep.subr.mxu0 0.0
        %7775 = vmatpush1.msra.mxu0 0.0
        %7776 = vmatprep.subr.mxu0 0.0
        %7777 = vmatpush1.msra.mxu0 0.0
        %7778 = vmatprep.mubr.f32.mxu0 0.0
        %7779 = vmatmul.mubr.f32.gmra.mrb[0].mxu0 %v7712
        %v7780 = vpop.f32.mrb[0].mxu0
        %v7781 = vadd.f32 %v7709, %v7780
        %v7782 = vpop.f32.mrb[0].mxu0
        %7783 = vdwg.mxu0
        %vm7784 = vcmp.ge.f32.partialorder %v7781, 0.0
        %v7785 = vmul.f32 %v7781, 0.01
        %v7786 = vsel %vm7784, %v7781, %v7785
        %v7787 = vld [vmem:[%s17] sm:$0xff]
        %v7788 = vld [vmem:[%s17 + $0x8] sm:$0xff]
        %v7789 = vld [vmem:[#allocation14] sm:$0x1]
        %v7791 = vsel %vm3406, %v7786, 0
        %7793 = vmatprep.subr.mxu0 0.0
        %7794 = vmatpush1.msra.mxu0 %v7787
        %7795 = vmatprep.subr.mxu0 0.0
        %7796 = vmatpush1.msra.mxu0 %v7788
        %7797 = vmatprep.subr.mxu0 0.0
        %7798 = vmatpush1.msra.mxu0 0.0
        %7799 = vmatprep.subr.mxu0 0.0
        %7800 = vmatpush1.msra.mxu0 0.0
        %7801 = vmatprep.subr.mxu0 0.0
        %7802 = vmatpush1.msra.mxu0 0.0
        %7803 = vmatprep.subr.mxu0 0.0
        %7804 = vmatpush1.msra.mxu0 0.0
        %7805 = vmatprep.subr.mxu0 0.0
        %7806 = vmatpush1.msra.mxu0 0.0
        %7807 = vmatprep.subr.mxu0 0.0
        %7808 = vmatpush1.msra.mxu0 0.0
        %7809 = vmatprep.subr.mxu0 0.0
        %7810 = vmatpush1.msra.mxu0 0.0
        %7811 = vmatprep.subr.mxu0 0.0
        %7812 = vmatpush1.msra.mxu0 0.0
        %7813 = vmatprep.subr.mxu0 0.0
        %7814 = vmatpush1.msra.mxu0 0.0
        %7815 = vmatprep.subr.mxu0 0.0
        %7816 = vmatpush1.msra.mxu0 0.0
        %7817 = vmatprep.subr.mxu0 0.0
        %7818 = vmatpush1.msra.mxu0 0.0
        %7819 = vmatprep.subr.mxu0 0.0
        %7820 = vmatpush1.msra.mxu0 0.0
        %7821 = vmatprep.subr.mxu0 0.0
        %7822 = vmatpush1.msra.mxu0 0.0
        %7823 = vmatprep.subr.mxu0 0.0
        %7824 = vmatpush1.msra.mxu0 0.0
        %7825 = vmatprep.subr.mxu0 0.0
        %7826 = vmatpush1.msra.mxu0 0.0
        %7827 = vmatprep.subr.mxu0 0.0
        %7828 = vmatpush1.msra.mxu0 0.0
        %7829 = vmatprep.subr.mxu0 0.0
        %7830 = vmatpush1.msra.mxu0 0.0
        %7831 = vmatprep.subr.mxu0 0.0
        %7832 = vmatpush1.msra.mxu0 0.0
        %7833 = vmatprep.subr.mxu0 0.0
        %7834 = vmatpush1.msra.mxu0 0.0
        %7835 = vmatprep.subr.mxu0 0.0
        %7836 = vmatpush1.msra.mxu0 0.0
        %7837 = vmatprep.subr.mxu0 0.0
        %7838 = vmatpush1.msra.mxu0 0.0
        %7839 = vmatprep.subr.mxu0 0.0
        %7840 = vmatpush1.msra.mxu0 0.0
        %7841 = vmatprep.subr.mxu0 0.0
        %7842 = vmatpush1.msra.mxu0 0.0
        %7843 = vmatprep.subr.mxu0 0.0
        %7844 = vmatpush1.msra.mxu0 0.0
        %7845 = vmatprep.subr.mxu0 0.0
        %7846 = vmatpush1.msra.mxu0 0.0
        %7847 = vmatprep.subr.mxu0 0.0
        %7848 = vmatpush1.msra.mxu0 0.0
        %7849 = vmatprep.subr.mxu0 0.0
        %7850 = vmatpush1.msra.mxu0 0.0
        %7851 = vmatprep.subr.mxu0 0.0
        %7852 = vmatpush1.msra.mxu0 0.0
        %7853 = vmatprep.subr.mxu0 0.0
        %7854 = vmatpush1.msra.mxu0 0.0
        %7855 = vmatprep.subr.mxu0 0.0
        %7856 = vmatpush1.msra.mxu0 0.0
        %7857 = vmatprep.mubr.f32.mxu0 0.0
        %7858 = vmatmul.mubr.f32.gmra.mrb[0].mxu0 %v7791
        %v7859 = vpop.f32.mrb[0].mxu0
        %v7860 = vadd.f32 %v7789, %v7859
        %v7861 = vpop.f32.mrb[0].mxu0
        %7862 = vdwg.mxu0
        %vm7863 = vcmask 32768
        %7864 = vst.msk [vmem:[%s736] sm:$0x1] %vm7863, %v7860
        %s7865 = sand.u32 %s455, 1
        %s7866 = scalar_lea.sflag [#allocation4], %s7865
        %s7867 = sand.u32 %s455, 1
        %s7868 = scalar_lea.vmem [#allocation16], %s7867
        %s7869 = sand.u32 %s481, 1
        %s7870 = scalar_lea.sflag [#allocation18], %s7869
        %s7871 = sand.u32 %s481, 1
        %s7872 = scalar_lea.vmem [#allocation17], %s7871
        // Predicated region
        $region129: #{independent_mlp_forward.1} parent=95 // pred_check
          %p7873 = pneg %p465
        $region130: #{independent_mlp_forward.1} parent=95 // pred_check_branch
          %7875 = sbr.rel (%p7873) target = $region132
        $region131: #{independent_mlp_forward.1} parent=95 // pred_region
          %s7877 = ssub.s32 16, 16
          %7878 = vsyncadd %s7866, %s7877
          %s7879 = smul.addr %s43, 16
          %s7880 = scalar_lea.hbm %s19, %s7879
          %s7882 = sshll.u32 %s7868, 4
          %s7883 = int_to_ptr.vmem [resolvable:$true] %s7882
          %7885 = dma.vmem_to_hbm [thread:$0]  %s7883, 16, %s7880, %s7866
        $region132: #{independent_mlp_forward.1} parent=95 // pred_fallthru
          _
        // Predicated region
        $region133: #{independent_mlp_forward.1} parent=95 // pred_check
          %p7886 = pneg %p491
        $region134: #{independent_mlp_forward.1} parent=95 // pred_check_branch
          %7888 = sbr.rel (%p7886) target = $region136
        $region135: #{independent_mlp_forward.1} parent=95 // pred_region
          %s7890 = ssub.s32 16, 16
          %7891 = vsyncadd %s7870, %s7890
          %s7892 = smul.addr %s43, 16
          %s7893 = scalar_lea.hbm %s20, %s7892
          %s7895 = sshll.u32 %s7872, 4
          %s7896 = int_to_ptr.vmem [resolvable:$true] %s7895
          %7898 = dma.vmem_to_hbm [thread:$0]  %s7896, 16, %s7893, %s7870
        $region136: #{independent_mlp_forward.1} parent=95 // pred_fallthru
          _
      $region96: #{independent_mlp_forward.1} parent=5 // pred_fallthru
        _
      %p7899 = scmp.le.s32.totalorder 2, %s38
      // Predicated region
      $region137: #{independent_mlp_forward.1} parent=5 // pred_check
        %p7900 = pneg %p7899
      $region138: #{independent_mlp_forward.1} parent=5 // pred_check_branch
        %7902 = sbr.rel (%p7900) target = $region140
      $region139: #{independent_mlp_forward.1} parent=5 // pred_region
        %s7903 = ssub.s32 %s38, 2
        // Predicated region
        $region141: #{independent_mlp_forward.1} parent=139 // pred_check
          %p7904 = pneg %p471
        $region142: #{independent_mlp_forward.1} parent=139 // pred_check_branch
          %7906 = sbr.rel (%p7904) target = $region144
        $region143: #{independent_mlp_forward.1} parent=139 // pred_region
          %s7907 = sand.u32 %s456, 1
          %s7908 = scalar_lea.sflag [#allocation4], %s7907
          %s7909 = sand.u32 %s456, 1
          %s7910 = scalar_lea.vmem [#allocation16], %s7909
          %7911 = dma.done %s7908, 16
        $region144: #{independent_mlp_forward.1} parent=139 // pred_fallthru
          _
        // Predicated region
        $region145: #{independent_mlp_forward.1} parent=139 // pred_check
          %p7912 = pneg %p497
        $region146: #{independent_mlp_forward.1} parent=139 // pred_check_branch
          %7914 = sbr.rel (%p7912) target = $region148
        $region147: #{independent_mlp_forward.1} parent=139 // pred_region
          %s7915 = sand.u32 %s482, 1
          %s7916 = scalar_lea.sflag [#allocation18], %s7915
          %s7917 = sand.u32 %s482, 1
          %s7918 = scalar_lea.vmem [#allocation17], %s7917
          %7919 = dma.done %s7916, 16
        $region148: #{independent_mlp_forward.1} parent=139 // pred_fallthru
          _
      $region140: #{independent_mlp_forward.1} parent=5 // pred_fallthru
        _
    $region6: #{independent_mlp_forward.1} parent=1 // loop_footer
      %s42 = sadd.s32 1, %s38
    $region7: #{independent_mlp_forward.1} parent=1 // loop_footer_branch
      %37 = sbr.rel target = $region3
    $region8: #{independent_mlp_forward.1} parent=1 // loop_exit
      _
    %7920 = vsyncpa [#allocation3], 1
    %s7921 = scalar_lea.sflag [#allocation3], 1
    %7922 = vsyncpa %s7921, 1
    %7923 = vsyncpa [#allocation6], 1
    %7924 = vsyncpa [#allocation9], 1
    %7925 = vsyncpa [#allocation12], 1
    %7926 = vsyncpa [#allocation15], 1
    %7927 = vsyncpa [#allocation4], 1
    %s7928 = scalar_lea.sflag [#allocation4], 1
    %7929 = vsyncpa %s7928, 1
    %7930 = vsyncpa [#allocation18], 1
    %s7931 = scalar_lea.sflag [#allocation18], 1
    %7932 = vsyncpa %s7931, 1

</llo_original>
